<compile_context>
chip_gen: v7x
topology: tpu7x:2x2x1
jax: 0.10.0
libtpu: 0.0.40
codegen_flags: <defaults>
</compile_context>

<pallas_src>
from functools import partial

import numpy as np
import jax
import jax.numpy as jnp
from jax import lax
from jax.experimental import pallas as pl
from jax.experimental.pallas import tpu as pltpu

# ----- small, deterministic hyper-parameters consistent with the module -----
INPUT_DIM = 8          # input_dim
WINDOW = 16            # window_size (even; power of two for the cheap iota masks)
CHUNK = 4              # chunk_num
BATCH = 8              # batch size

W2 = WINDOW // 2
FLAT = 32 * W2                # flattened stride-2 features per (batch, chunk) group
SLAB_W = 128                  # lane width of the parameter slabs
DP = SLAB_W                   # lane-padded output feature dim (>= INPUT_DIM)

LOG2_WINDOW = WINDOW.bit_length() - 1
LOG2_CHUNK = CHUNK.bit_length() - 1
assert (1 << LOG2_WINDOW) == WINDOW and WINDOW % 2 == 0
assert (1 << LOG2_CHUNK) == CHUNK
assert DP >= INPUT_DIM

CONV_CFG = [(INPUT_DIM, 128), (128, 128), (128, 64), (64, 64), (64, 32)]
_K = [3 * cin for cin, _ in CONV_CFG]                 # 24, 384, 384, 192, 192

# weight-slab placement: conv i lives at rows [off, off+3*cin), lanes [lo, lo+cout).
# conv3 (384 rows, lanes 0:64) shares its rows with conv4 (lanes 64:128, first 192
# rows) and conv5 (lanes 64:96, last 192 rows) -> no zero-lane waste.
_O1 = 0
_O2 = _O1 + _K[0]             # 24
_O3 = _O2 + _K[1]             # 408
_O4 = _O3                     # rows shared with conv3, lanes 64:128
_O5 = _O4 + _K[3]             # 600
W_OFF = [(_O1, 0), (_O2, 0), (_O3, 0), (_O4, 64), (_O5, 64)]
OL = _O3 + _K[2]              # 792 — permuted Linear weight starts here
WS_ROWS = OL + FLAT           # 1048

assert _O5 + _K[4] == OL                       # conv5 fits exactly under conv3's rows
assert all(co <= SLAB_W for _, co in CONV_CFG[:2])
assert all(co <= 64 for _, co in CONV_CFG[2:])  # conv3/4/5 fit their 64-lane halves
assert WS_ROWS % 8 == 0 and CONV_CFG[4][1] == 32

# misc-slab rows (biases / gates only; structural sum matrices are built in-kernel)
B_ROWS = (0, 1, 2, 3, 4)       # folded conv biases 1..5 (conv5 bias untiled, 32 lanes)
BLR, GWR, GBR = 5, 6, 7        # Linear bias, gate_W, gate_b
MS_ROWS = 8


def _cnn_gated_vec_kernel(x_ref, ws_ref, ms_ref, out_ref):
    m_rows = x_ref.shape[1]                     # BT*chunk*window rows this step
    bt = out_ref.shape[1]                       # batch elements this step
    qrows = bt * CHUNK                          # (batch-in-step, chunk) groups

    h = x_ref[0]                                # (m_rows, INPUT_DIM) f32

    # per-row window position: row = b*chunk*W + chunk*W + l  ->  l = row mod W
    row = lax.broadcasted_iota(jnp.int32, (m_rows, 1), 0)
    lpos = row & (WINDOW - 1)
    prev_ok = lpos != 0                         # x[l-1] exists
    next_ok = lpos != (WINDOW - 1)              # x[l+1] exists

    def conv3(h_in, w0, w1, w2, b):
        """k=3 / pad=1 conv (+ folded BN) + ReLU as three accumulating dots."""
        hp = jnp.where(prev_ok, pltpu.roll(h_in, 1, 0), 0.0)            # x[l-1]
        hn = jnp.where(next_ok, pltpu.roll(h_in, m_rows - 1, 0), 0.0)   # x[l+1]
        acc = jnp.dot(h_in, w1, preferred_element_type=jnp.float32)
        acc = acc + jnp.dot(hp, w0, preferred_element_type=jnp.float32)
        acc = acc + jnp.dot(hn, w2, preferred_element_type=jnp.float32)
        return jnp.maximum(acc + b, 0.0)

    # four stride-1 conv+BN+ReLU blocks (static weight-slab slices per tap)
    for i in range(4):
        cin, cout = CONV_CFG[i]
        off, lo = W_OFF[i]
        h = conv3(h,
                  ws_ref[off:off + cin, lo:lo + cout],
                  ws_ref[off + cin:off + 2 * cin, lo:lo + cout],
                  ws_ref[off + 2 * cin:off + 3 * cin, lo:lo + cout],
                  ms_ref[B_ROWS[i]:B_ROWS[i] + 1, 0:cout])

    # stride-2 conv: weight stored untiled (192, 32); tile W2x on lanes in VMEM
    cin5, cout5 = CONV_CFG[4]
    off5, lo5 = W_OFF[4]
    w5 = jnp.tile(ws_ref[off5:off5 + 3 * cin5, lo5:lo5 + cout5], (1, W2))   # (192, FLAT)
    b5 = jnp.tile(ms_ref[B_ROWS[4]:B_ROWS[4] + 1, 0:cout5], (1, W2))        # (1, FLAT)
    h5 = conv3(h, w5[0:cin5], w5[cin5:2 * cin5], w5[2 * cin5:3 * cin5], b5)  # (m, FLAT)

    # keep lane block l' = l/2 of even rows only; after the group-sum matmul
    # this IS the flattened stride-2 output in the kernel's (l', channel) order
    # (torch's channel-major flatten order is baked into the permuted Linear weight).
    col_blk = lax.broadcasted_iota(jnp.int32, (1, FLAT), 1) >> 5     # lane // 32
    key = jnp.where((lpos & 1) == 0, lpos >> 1, -1)                  # l' or -1
    masked = jnp.where(col_blk == key, h5, 0.0)                      # (m, FLAT)

    # per-(batch-in-step, chunk) row sum, built from iota (not DMA'd)
    gq = lax.broadcasted_iota(jnp.int32, (qrows, m_rows), 0)
    gr = lax.broadcasted_iota(jnp.int32, (qrows, m_rows), 1)
    gsum = jnp.where((gr >> LOG2_WINDOW) == gq, 1.0, 0.0).astype(jnp.float32)
    flat = jnp.dot(gsum, masked, preferred_element_type=jnp.float32)  # (qrows, FLAT)

    # Linear(32*W2 -> D, zero-padded to DP lanes) + ReLU
    h6 = jnp.dot(flat, ws_ref[OL:OL + FLAT, :], preferred_element_type=jnp.float32)
    h6 = jnp.maximum(h6 + ms_ref[BLR:BLR + 1, :], 0.0)               # (qrows, DP)

    # gated sum over chunks: z_b = sum_c (gate_W * h + gate_b) * h
    g = ms_ref[GWR:GWR + 1, :] * h6 + ms_ref[GBR:GBR + 1, :]
    bq = lax.broadcasted_iota(jnp.int32, (bt, qrows), 0)
    bc = lax.broadcasted_iota(jnp.int32, (bt, qrows), 1)
    bsum = jnp.where((bc >> LOG2_CHUNK) == bq, 1.0, 0.0).astype(jnp.float32)
    out_ref[0] = jnp.dot(bsum, g * h6, preferred_element_type=jnp.float32)  # (bt, DP)


@partial(jax.jit, static_argnames=("bt",))
def cnn_gated_vec_forward(x_nchw, weight_slab, misc_slab, *, bt):
    """x_nchw: (B, chunk_num, input_dim, window) float32 -> (B, input_dim)."""
    batch = x_nchw.shape[0]
    assert batch % bt == 0
    grid = batch // bt
    m_rows = bt * CHUNK * WINDOW
    x = jnp.transpose(x_nchw, (0, 1, 3, 2)).astype(jnp.float32)
    x = x.reshape(grid, m_rows, INPUT_DIM)                  # bt batches per step

    out = pl.pallas_call(
        _cnn_gated_vec_kernel,
        out_shape=jax.ShapeDtypeStruct((grid, bt, DP), jnp.float32),
        grid=(grid,),
        in_specs=[
            pl.BlockSpec((1, m_rows, INPUT_DIM), lambda g: (g, 0, 0)),
            pl.BlockSpec((WS_ROWS, SLAB_W), lambda g: (0, 0)),
            pl.BlockSpec((MS_ROWS, SLAB_W), lambda g: (0, 0)),
        ],
        out_specs=pl.BlockSpec((1, bt, DP), lambda g: (g, 0, 0)),
        compiler_params=pltpu.CompilerParams(dimension_semantics=("parallel",)),
    )(x, weight_slab, misc_slab)
    return out.reshape(batch, DP)[:, :INPUT_DIM]


def _pick_bt(batch):
    """One fat grid step on single-TensorCore chips (v5e/v6e); keep a 2-step
    'parallel' grid on v7x so the batch splits across its two TensorCores."""
    try:
        kind = jax.devices()[0].device_kind.lower()
    except Exception:
        kind = ""
    if ("v7" in kind or "7x" in kind) and batch % 2 == 0:
        return batch // 2
    return batch


def init_params(key):
    """Deterministic synthetic parameters (BN folded, eval mode).

    Returns (raw, slabs):
      raw   - float64 numpy params for the numpy reference.
      slabs - (weight_slab, misc_slab) float32 jax arrays for the kernel.
    """
    eps = 1e-5
    bn_scale = 1.0 / np.sqrt(1.0 + eps)   # gamma=1, beta=0, mean=0, var=1 (eval)
    ks = jax.random.split(key, 2 * len(CONV_CFG) + 4)

    raw = {}
    fused_w, fused_b = [], []
    for i, (cin, cout) in enumerate(CONV_CFG):
        w = np.asarray(jax.random.normal(ks[2 * i], (cout, cin, 3)),
                       np.float64) / np.sqrt(3.0 * cin)
        b = 0.05 * np.asarray(jax.random.normal(ks[2 * i + 1], (cout,)), np.float64)
        w, b = w * bn_scale, b * bn_scale           # fold eval-mode BatchNorm
        raw[f"w{i + 1}"], raw[f"b{i + 1}"] = w, b
        # taps stacked on the contraction axis: (3*Cin, Cout)
        fused_w.append(np.concatenate([w[:, :, 0].T, w[:, :, 1].T, w[:, :, 2].T], 0))
        fused_b.append(b)

    wlin = np.asarray(jax.random.normal(ks[10], (INPUT_DIM, 32 * W2)),
                      np.float64) / np.sqrt(32.0 * W2)
    blin = 0.05 * np.asarray(jax.random.normal(ks[11], (INPUT_DIM,)), np.float64)
    # module __init__ uses ones/zeros; random values here exercise the gate path
    gate_w = np.asarray(jax.random.normal(ks[12], (INPUT_DIM,)), np.float64)
    gate_b = 0.05 * np.asarray(jax.random.normal(ks[13], (INPUT_DIM,)), np.float64)
    raw.update(wlin=wlin, blin=blin, gate_w=gate_w, gate_b=gate_b)

    # ------- weight slab (128 lanes): densely packed fused conv taps + Linear ----
    ws = np.zeros((WS_ROWS, SLAB_W), np.float32)
    for i, (cin, cout) in enumerate(CONV_CFG):
        off, lo = W_OFF[i]
        ws[off:off + 3 * cin, lo:lo + cout] = fused_w[i]   # conv5 stored UNTILED
    # Linear weight permuted to the (l', channel) lane order produced by the
    # kernel, zero-padded to DP output lanes (lanes > INPUT_DIM stay zero)
    wl = wlin.reshape(INPUT_DIM, 32, W2).transpose(2, 1, 0).reshape(FLAT, INPUT_DIM)
    ws[OL:OL + FLAT, 0:INPUT_DIM] = wl

    # ------- misc slab (8 x 128): folded biases + Linear bias + gate params ------
    ms = np.zeros((MS_ROWS, SLAB_W), np.float32)
    for i, (_, cout) in enumerate(CONV_CFG):
        ms[B_ROWS[i], 0:cout] = fused_b[i]                 # conv5 bias untiled
    ms[BLR, 0:INPUT_DIM] = blin
    ms[GWR, 0:INPUT_DIM] = gate_w
    ms[GBR, 0:INPUT_DIM] = gate_b

    return raw, (jnp.asarray(ws), jnp.asarray(ms))


# ---------------------------- numpy reference --------------------------------
def _np_conv_bn_relu(h, w, b, stride):
    """Conv1d(k=3, padding=1) with folded BN, then ReLU.  h: (N, Cin, L)."""
    _, _, length = h.shape
    hp = np.pad(h, ((0, 0), (0, 0), (1, 1)))
    lout = (length + 2 - 3) // stride + 1
    cols = np.stack(
        [hp[:, :, k:k + (lout - 1) * stride + 1:stride] for k in range(3)], axis=-1)
    out = np.einsum("nclk,ock->nol", cols, w) + b[None, :, None]
    return np.maximum(out, 0.0)


def reference_forward(x, p):
    """Pure float64 numpy reference matching the PyTorch forward (folded BN)."""
    batch = x.shape[0]
    h = x.reshape(batch * CHUNK, INPUT_DIM, WINDOW).astype(np.float64)
    h = _np_conv_bn_relu(h, p["w1"], p["b1"], 1)
    h = _np_conv_bn_relu(h, p["w2"], p["b2"], 1)
    h = _np_conv_bn_relu(h, p["w3"], p["b3"], 1)
    h = _np_conv_bn_relu(h, p["w4"], p["b4"], 1)
    h = _np_conv_bn_relu(h, p["w5"], p["b5"], 2)              # (N, 32, W2)
    flat = h.reshape(batch * CHUNK, 32 * W2)                  # torch Flatten(1, 2)
    h = np.maximum(flat @ p["wlin"].T + p["blin"], 0.0)       # (N, D)
    h = h.reshape(batch, CHUNK, INPUT_DIM)
    g = p["gate_w"] * h + p["gate_b"]
    return np.sum(g * h, axis=1)                              # (B, D)


if __name__ == "__main__":
    key = jax.random.PRNGKey(0)
    kx, kp = jax.random.split(key)
    x = jax.random.normal(kx, (BATCH, CHUNK, INPUT_DIM, WINDOW), jnp.float32)
    raw, (weight_slab, misc_slab) = init_params(kp)

    bt = _pick_bt(BATCH)      # full batch on v5e/v6e; 2-way core split on v7x
    z = cnn_gated_vec_forward(x, weight_slab, misc_slab, bt=bt)
    z = jax.block_until_ready(z)
    assert z.shape == (BATCH, INPUT_DIM)

    z_ref = reference_forward(np.asarray(x, np.float64), raw)
    err = float(np.max(np.abs(np.asarray(z, np.float64) - z_ref)))
    mag = float(np.max(np.abs(z_ref)))
    assert err <= 1e-3 + 1e-3 * mag, f"mismatch: max abs err {err} (ref mag {mag})"

    print("KERNEL_OK")
</pallas_src>

<mosaic_0001>
module attributes {stable_mosaic.version = 11 : i64} {
  func.func @_cnn_gated_vec_kernel(%arg0: i32, %arg1: memref<1x512x8xf32, #tpu.memory_space<vmem>>, %arg2: memref<1048x128xf32, #tpu.memory_space<vmem>>, %arg3: memref<8x128xf32, #tpu.memory_space<vmem>>, %arg4: memref<1x8x128xf32, #tpu.memory_space<vmem>>) attributes {dimension_semantics = [#tpu.dimension_semantics<parallel>], iteration_bounds = array<i64: 1>, scalar_prefetch = 0 : i64, scratch_operands = 0 : i64, tpu.core_type = #tpu.core_type<tc>, window_params = [{transform_indices = @transform_0, window_bounds = array<i64: 1, 512, 8>}, {pipeline_mode = #tpu.pipeline_mode<synchronous>, transform_indices = @transform_1, window_bounds = array<i64: 1048, 128>}, {pipeline_mode = #tpu.pipeline_mode<synchronous>, transform_indices = @transform_2, window_bounds = array<i64: 8, 128>}, {transform_indices = @transform_3, window_bounds = array<i64: 1, 8, 128>}]} {
    %c0 = arith.constant 0 : index
    %c0_0 = arith.constant 0 : index
    %c0_1 = arith.constant 0 : index
    %0 = vector.load %arg1[%c0, %c0_0, %c0_1] : memref<1x512x8xf32, #tpu.memory_space<vmem>>, vector<1x512x8xf32>
    %1 = vector.shape_cast %0 : vector<1x512x8xf32> to vector<512x8xf32>
    %2 = tpu.iota {dimensions = array<i32: 0>} : vector<512x1xi32>
    %c15_i32 = arith.constant 15 : i32
    %3 = vector.broadcast %c15_i32 : i32 to vector<512x1xi32>
    %4 = arith.andi %2, %3 : vector<512x1xi32>
    %c0_i32 = arith.constant 0 : i32
    %5 = vector.broadcast %c0_i32 : i32 to vector<512x1xi32>
    %6 = arith.cmpi ne, %4, %5 : vector<512x1xi32>
    %c15_i32_2 = arith.constant 15 : i32
    %7 = vector.broadcast %c15_i32_2 : i32 to vector<512x1xi32>
    %8 = arith.cmpi ne, %4, %7 : vector<512x1xi32>
    %c0_3 = arith.constant 0 : index
    %c0_4 = arith.constant 0 : index
    %9 = vector.load %arg2[%c0_3, %c0_4] : memref<1048x128xf32, #tpu.memory_space<vmem>>, vector<8x128xf32>
    %c8 = arith.constant 8 : index
    %c0_5 = arith.constant 0 : index
    %10 = vector.load %arg2[%c8, %c0_5] : memref<1048x128xf32, #tpu.memory_space<vmem>>, vector<8x128xf32>
    %c16 = arith.constant 16 : index
    %c0_6 = arith.constant 0 : index
    %11 = vector.load %arg2[%c16, %c0_6] : memref<1048x128xf32, #tpu.memory_space<vmem>>, vector<8x128xf32>
    %c0_7 = arith.constant 0 : index
    %c0_8 = arith.constant 0 : index
    %12 = vector.load %arg3[%c0_7, %c0_8] : memref<8x128xf32, #tpu.memory_space<vmem>>, vector<1x128xf32>
    %c1_i32 = arith.constant 1 : i32
    %13 = tpu.dynamic_rotate %1 by %c1_i32 dim 0 : vector<512x8xf32>, i32 -> vector<512x8xf32>
    %cst = arith.constant 0.000000e+00 : f32
    %14 = vector.shape_cast %6 : vector<512x1xi1> to vector<512x1xi1>
    %15 = vector.broadcast %14 : vector<512x1xi1> to vector<512x8xi1>
    %16 = vector.broadcast %cst : f32 to vector<512x8xf32>
    %17 = arith.select %15, %13, %16 : vector<512x8xi1>, vector<512x8xf32>
    %c511_i32 = arith.constant 511 : i32
    %18 = tpu.dynamic_rotate %1 by %c511_i32 dim 0 : vector<512x8xf32>, i32 -> vector<512x8xf32>
    %cst_9 = arith.constant 0.000000e+00 : f32
    %19 = vector.shape_cast %8 : vector<512x1xi1> to vector<512x1xi1>
    %20 = vector.broadcast %19 : vector<512x1xi1> to vector<512x8xi1>
    %21 = vector.broadcast %cst_9 : f32 to vector<512x8xf32>
    %22 = arith.select %20, %18, %21 : vector<512x8xi1>, vector<512x8xf32>
    %cst_10 = arith.constant dense<0.000000e+00> : vector<512x128xf32>
    %23 = tpu.matmul %1, %10, %cst_10 {dimension_numbers = #tpu.dot_dimension_numbers<[1], [0], [0], [1], [0, 0, 1, 1], [], []>} : vector<512x8xf32>, vector<8x128xf32>, vector<512x128xf32> -> vector<512x128xf32>
    %cst_11 = arith.constant dense<0.000000e+00> : vector<512x128xf32>
    %24 = tpu.matmul %17, %9, %cst_11 {dimension_numbers = #tpu.dot_dimension_numbers<[1], [0], [0], [1], [0, 0, 1, 1], [], []>} : vector<512x8xf32>, vector<8x128xf32>, vector<512x128xf32> -> vector<512x128xf32>
    %25 = arith.addf %23, %24 : vector<512x128xf32>
    %cst_12 = arith.constant dense<0.000000e+00> : vector<512x128xf32>
    %26 = tpu.matmul %22, %11, %cst_12 {dimension_numbers = #tpu.dot_dimension_numbers<[1], [0], [0], [1], [0, 0, 1, 1], [], []>} : vector<512x8xf32>, vector<8x128xf32>, vector<512x128xf32> -> vector<512x128xf32>
    %27 = arith.addf %25, %26 : vector<512x128xf32>
    %28 = vector.broadcast %12 : vector<1x128xf32> to vector<512x128xf32>
    %29 = arith.addf %27, %28 : vector<512x128xf32>
    %cst_13 = arith.constant 0.000000e+00 : f32
    %30 = vector.broadcast %cst_13 : f32 to vector<512x128xf32>
    %31 = arith.maximumf %29, %30 : vector<512x128xf32>
    %c24 = arith.constant 24 : index
    %c0_14 = arith.constant 0 : index
    %32 = vector.load %arg2[%c24, %c0_14] : memref<1048x128xf32, #tpu.memory_space<vmem>>, vector<128x128xf32>
    %c152 = arith.constant 152 : index
    %c0_15 = arith.constant 0 : index
    %33 = vector.load %arg2[%c152, %c0_15] : memref<1048x128xf32, #tpu.memory_space<vmem>>, vector<128x128xf32>
    %c280 = arith.constant 280 : index
    %c0_16 = arith.constant 0 : index
    %34 = vector.load %arg2[%c280, %c0_16] : memref<1048x128xf32, #tpu.memory_space<vmem>>, vector<128x128xf32>
    %c1 = arith.constant 1 : index
    %c0_17 = arith.constant 0 : index
    %35 = vector.load %arg3[%c1, %c0_17] : memref<8x128xf32, #tpu.memory_space<vmem>>, vector<1x128xf32>
    %c1_i32_18 = arith.constant 1 : i32
    %36 = tpu.dynamic_rotate %31 by %c1_i32_18 dim 0 : vector<512x128xf32>, i32 -> vector<512x128xf32>
    %cst_19 = arith.constant 0.000000e+00 : f32
    %37 = vector.shape_cast %6 : vector<512x1xi1> to vector<512x1xi1>
    %38 = vector.broadcast %37 : vector<512x1xi1> to vector<512x128xi1>
    %39 = vector.broadcast %cst_19 : f32 to vector<512x128xf32>
    %40 = arith.select %38, %36, %39 : vector<512x128xi1>, vector<512x128xf32>
    %c511_i32_20 = arith.constant 511 : i32
    %41 = tpu.dynamic_rotate %31 by %c511_i32_20 dim 0 : vector<512x128xf32>, i32 -> vector<512x128xf32>
    %cst_21 = arith.constant 0.000000e+00 : f32
    %42 = vector.shape_cast %8 : vector<512x1xi1> to vector<512x1xi1>
    %43 = vector.broadcast %42 : vector<512x1xi1> to vector<512x128xi1>
    %44 = vector.broadcast %cst_21 : f32 to vector<512x128xf32>
    %45 = arith.select %43, %41, %44 : vector<512x128xi1>, vector<512x128xf32>
    %cst_22 = arith.constant dense<0.000000e+00> : vector<512x128xf32>
    %46 = tpu.matmul %31, %33, %cst_22 {dimension_numbers = #tpu.dot_dimension_numbers<[1], [0], [0], [1], [0, 0, 1, 1], [], []>} : vector<512x128xf32>, vector<128x128xf32>, vector<512x128xf32> -> vector<512x128xf32>
    %cst_23 = arith.constant dense<0.000000e+00> : vector<512x128xf32>
    %47 = tpu.matmul %40, %32, %cst_23 {dimension_numbers = #tpu.dot_dimension_numbers<[1], [0], [0], [1], [0, 0, 1, 1], [], []>} : vector<512x128xf32>, vector<128x128xf32>, vector<512x128xf32> -> vector<512x128xf32>
    %48 = arith.addf %46, %47 : vector<512x128xf32>
    %cst_24 = arith.constant dense<0.000000e+00> : vector<512x128xf32>
    %49 = tpu.matmul %45, %34, %cst_24 {dimension_numbers = #tpu.dot_dimension_numbers<[1], [0], [0], [1], [0, 0, 1, 1], [], []>} : vector<512x128xf32>, vector<128x128xf32>, vector<512x128xf32> -> vector<512x128xf32>
    %50 = arith.addf %48, %49 : vector<512x128xf32>
    %51 = vector.broadcast %35 : vector<1x128xf32> to vector<512x128xf32>
    %52 = arith.addf %50, %51 : vector<512x128xf32>
    %cst_25 = arith.constant 0.000000e+00 : f32
    %53 = vector.broadcast %cst_25 : f32 to vector<512x128xf32>
    %54 = arith.maximumf %52, %53 : vector<512x128xf32>
    %c408 = arith.constant 408 : index
    %c0_26 = arith.constant 0 : index
    %55 = vector.load %arg2[%c408, %c0_26] : memref<1048x128xf32, #tpu.memory_space<vmem>>, vector<128x64xf32>
    %c536 = arith.constant 536 : index
    %c0_27 = arith.constant 0 : index
    %56 = vector.load %arg2[%c536, %c0_27] : memref<1048x128xf32, #tpu.memory_space<vmem>>, vector<128x64xf32>
    %c664 = arith.constant 664 : index
    %c0_28 = arith.constant 0 : index
    %57 = vector.load %arg2[%c664, %c0_28] : memref<1048x128xf32, #tpu.memory_space<vmem>>, vector<128x64xf32>
    %c2 = arith.constant 2 : index
    %c0_29 = arith.constant 0 : index
    %58 = vector.load %arg3[%c2, %c0_29] : memref<8x128xf32, #tpu.memory_space<vmem>>, vector<1x64xf32>
    %c1_i32_30 = arith.constant 1 : i32
    %59 = tpu.dynamic_rotate %54 by %c1_i32_30 dim 0 : vector<512x128xf32>, i32 -> vector<512x128xf32>
    %cst_31 = arith.constant 0.000000e+00 : f32
    %60 = vector.shape_cast %6 : vector<512x1xi1> to vector<512x1xi1>
    %61 = vector.broadcast %60 : vector<512x1xi1> to vector<512x128xi1>
    %62 = vector.broadcast %cst_31 : f32 to vector<512x128xf32>
    %63 = arith.select %61, %59, %62 : vector<512x128xi1>, vector<512x128xf32>
    %c511_i32_32 = arith.constant 511 : i32
    %64 = tpu.dynamic_rotate %54 by %c511_i32_32 dim 0 : vector<512x128xf32>, i32 -> vector<512x128xf32>
    %cst_33 = arith.constant 0.000000e+00 : f32
    %65 = vector.shape_cast %8 : vector<512x1xi1> to vector<512x1xi1>
    %66 = vector.broadcast %65 : vector<512x1xi1> to vector<512x128xi1>
    %67 = vector.broadcast %cst_33 : f32 to vector<512x128xf32>
    %68 = arith.select %66, %64, %67 : vector<512x128xi1>, vector<512x128xf32>
    %cst_34 = arith.constant dense<0.000000e+00> : vector<512x64xf32>
    %69 = tpu.matmul %54, %56, %cst_34 {dimension_numbers = #tpu.dot_dimension_numbers<[1], [0], [0], [1], [0, 0, 1, 1], [], []>} : vector<512x128xf32>, vector<128x64xf32>, vector<512x64xf32> -> vector<512x64xf32>
    %cst_35 = arith.constant dense<0.000000e+00> : vector<512x64xf32>
    %70 = tpu.matmul %63, %55, %cst_35 {dimension_numbers = #tpu.dot_dimension_numbers<[1], [0], [0], [1], [0, 0, 1, 1], [], []>} : vector<512x128xf32>, vector<128x64xf32>, vector<512x64xf32> -> vector<512x64xf32>
    %71 = arith.addf %69, %70 : vector<512x64xf32>
    %cst_36 = arith.constant dense<0.000000e+00> : vector<512x64xf32>
    %72 = tpu.matmul %68, %57, %cst_36 {dimension_numbers = #tpu.dot_dimension_numbers<[1], [0], [0], [1], [0, 0, 1, 1], [], []>} : vector<512x128xf32>, vector<128x64xf32>, vector<512x64xf32> -> vector<512x64xf32>
    %73 = arith.addf %71, %72 : vector<512x64xf32>
    %74 = vector.broadcast %58 : vector<1x64xf32> to vector<512x64xf32>
    %75 = arith.addf %73, %74 : vector<512x64xf32>
    %cst_37 = arith.constant 0.000000e+00 : f32
    %76 = vector.broadcast %cst_37 : f32 to vector<512x64xf32>
    %77 = arith.maximumf %75, %76 : vector<512x64xf32>
    %c408_38 = arith.constant 408 : index
    %c64 = arith.constant 64 : index
    %78 = vector.load %arg2[%c408_38, %c64] : memref<1048x128xf32, #tpu.memory_space<vmem>>, vector<64x64xf32>
    %c472 = arith.constant 472 : index
    %c64_39 = arith.constant 64 : index
    %79 = vector.load %arg2[%c472, %c64_39] : memref<1048x128xf32, #tpu.memory_space<vmem>>, vector<64x64xf32>
    %c536_40 = arith.constant 536 : index
    %c64_41 = arith.constant 64 : index
    %80 = vector.load %arg2[%c536_40, %c64_41] : memref<1048x128xf32, #tpu.memory_space<vmem>>, vector<64x64xf32>
    %c3 = arith.constant 3 : index
    %c0_42 = arith.constant 0 : index
    %81 = vector.load %arg3[%c3, %c0_42] : memref<8x128xf32, #tpu.memory_space<vmem>>, vector<1x64xf32>
    %c1_i32_43 = arith.constant 1 : i32
    %82 = tpu.dynamic_rotate %77 by %c1_i32_43 dim 0 : vector<512x64xf32>, i32 -> vector<512x64xf32>
    %cst_44 = arith.constant 0.000000e+00 : f32
    %83 = vector.shape_cast %6 : vector<512x1xi1> to vector<512x1xi1>
    %84 = vector.broadcast %83 : vector<512x1xi1> to vector<512x64xi1>
    %85 = vector.broadcast %cst_44 : f32 to vector<512x64xf32>
    %86 = arith.select %84, %82, %85 : vector<512x64xi1>, vector<512x64xf32>
    %c511_i32_45 = arith.constant 511 : i32
    %87 = tpu.dynamic_rotate %77 by %c511_i32_45 dim 0 : vector<512x64xf32>, i32 -> vector<512x64xf32>
    %cst_46 = arith.constant 0.000000e+00 : f32
    %88 = vector.shape_cast %8 : vector<512x1xi1> to vector<512x1xi1>
    %89 = vector.broadcast %88 : vector<512x1xi1> to vector<512x64xi1>
    %90 = vector.broadcast %cst_46 : f32 to vector<512x64xf32>
    %91 = arith.select %89, %87, %90 : vector<512x64xi1>, vector<512x64xf32>
    %cst_47 = arith.constant dense<0.000000e+00> : vector<512x64xf32>
    %92 = tpu.matmul %77, %79, %cst_47 {dimension_numbers = #tpu.dot_dimension_numbers<[1], [0], [0], [1], [0, 0, 1, 1], [], []>} : vector<512x64xf32>, vector<64x64xf32>, vector<512x64xf32> -> vector<512x64xf32>
    %cst_48 = arith.constant dense<0.000000e+00> : vector<512x64xf32>
    %93 = tpu.matmul %86, %78, %cst_48 {dimension_numbers = #tpu.dot_dimension_numbers<[1], [0], [0], [1], [0, 0, 1, 1], [], []>} : vector<512x64xf32>, vector<64x64xf32>, vector<512x64xf32> -> vector<512x64xf32>
    %94 = arith.addf %92, %93 : vector<512x64xf32>
    %cst_49 = arith.constant dense<0.000000e+00> : vector<512x64xf32>
    %95 = tpu.matmul %91, %80, %cst_49 {dimension_numbers = #tpu.dot_dimension_numbers<[1], [0], [0], [1], [0, 0, 1, 1], [], []>} : vector<512x64xf32>, vector<64x64xf32>, vector<512x64xf32> -> vector<512x64xf32>
    %96 = arith.addf %94, %95 : vector<512x64xf32>
    %97 = vector.broadcast %81 : vector<1x64xf32> to vector<512x64xf32>
    %98 = arith.addf %96, %97 : vector<512x64xf32>
    %cst_50 = arith.constant 0.000000e+00 : f32
    %99 = vector.broadcast %cst_50 : f32 to vector<512x64xf32>
    %100 = arith.maximumf %98, %99 : vector<512x64xf32>
    %c600 = arith.constant 600 : index
    %c64_51 = arith.constant 64 : index
    %101 = vector.load %arg2[%c600, %c64_51] : memref<1048x128xf32, #tpu.memory_space<vmem>>, vector<192x32xf32>
    %102 = tpu.concatenate %101, %101, %101, %101, %101, %101, %101, %101 in 1 : vector<192x32xf32>, vector<192x32xf32>, vector<192x32xf32>, vector<192x32xf32>, vector<192x32xf32>, vector<192x32xf32>, vector<192x32xf32>, vector<192x32xf32> -> vector<192x256xf32>
    %c4 = arith.constant 4 : index
    %c0_52 = arith.constant 0 : index
    %103 = vector.load %arg3[%c4, %c0_52] : memref<8x128xf32, #tpu.memory_space<vmem>>, vector<1x32xf32>
    %104 = tpu.concatenate %103, %103, %103, %103, %103, %103, %103, %103 in 1 : vector<1x32xf32>, vector<1x32xf32>, vector<1x32xf32>, vector<1x32xf32>, vector<1x32xf32>, vector<1x32xf32>, vector<1x32xf32>, vector<1x32xf32> -> vector<1x256xf32>
    %105 = vector.extract_strided_slice %102 {offsets = [0, 0], sizes = [64, 256], strides = [1, 1]} : vector<192x256xf32> to vector<64x256xf32>
    %106 = vector.extract_strided_slice %102 {offsets = [64, 0], sizes = [64, 256], strides = [1, 1]} : vector<192x256xf32> to vector<64x256xf32>
    %107 = vector.extract_strided_slice %102 {offsets = [128, 0], sizes = [64, 256], strides = [1, 1]} : vector<192x256xf32> to vector<64x256xf32>
    %c1_i32_53 = arith.constant 1 : i32
    %108 = tpu.dynamic_rotate %100 by %c1_i32_53 dim 0 : vector<512x64xf32>, i32 -> vector<512x64xf32>
    %cst_54 = arith.constant 0.000000e+00 : f32
    %109 = vector.shape_cast %6 : vector<512x1xi1> to vector<512x1xi1>
    %110 = vector.broadcast %109 : vector<512x1xi1> to vector<512x64xi1>
    %111 = vector.broadcast %cst_54 : f32 to vector<512x64xf32>
    %112 = arith.select %110, %108, %111 : vector<512x64xi1>, vector<512x64xf32>
    %c511_i32_55 = arith.constant 511 : i32
    %113 = tpu.dynamic_rotate %100 by %c511_i32_55 dim 0 : vector<512x64xf32>, i32 -> vector<512x64xf32>
    %cst_56 = arith.constant 0.000000e+00 : f32
    %114 = vector.shape_cast %8 : vector<512x1xi1> to vector<512x1xi1>
    %115 = vector.broadcast %114 : vector<512x1xi1> to vector<512x64xi1>
    %116 = vector.broadcast %cst_56 : f32 to vector<512x64xf32>
    %117 = arith.select %115, %113, %116 : vector<512x64xi1>, vector<512x64xf32>
    %cst_57 = arith.constant dense<0.000000e+00> : vector<512x256xf32>
    %118 = tpu.matmul %100, %106, %cst_57 {dimension_numbers = #tpu.dot_dimension_numbers<[1], [0], [0], [1], [0, 0, 1, 1], [], []>} : vector<512x64xf32>, vector<64x256xf32>, vector<512x256xf32> -> vector<512x256xf32>
    %cst_58 = arith.constant dense<0.000000e+00> : vector<512x256xf32>
    %119 = tpu.matmul %112, %105, %cst_58 {dimension_numbers = #tpu.dot_dimension_numbers<[1], [0], [0], [1], [0, 0, 1, 1], [], []>} : vector<512x64xf32>, vector<64x256xf32>, vector<512x256xf32> -> vector<512x256xf32>
    %120 = arith.addf %118, %119 : vector<512x256xf32>
    %cst_59 = arith.constant dense<0.000000e+00> : vector<512x256xf32>
    %121 = tpu.matmul %117, %107, %cst_59 {dimension_numbers = #tpu.dot_dimension_numbers<[1], [0], [0], [1], [0, 0, 1, 1], [], []>} : vector<512x64xf32>, vector<64x256xf32>, vector<512x256xf32> -> vector<512x256xf32>
    %122 = arith.addf %120, %121 : vector<512x256xf32>
    %123 = vector.broadcast %104 : vector<1x256xf32> to vector<512x256xf32>
    %124 = arith.addf %122, %123 : vector<512x256xf32>
    %cst_60 = arith.constant 0.000000e+00 : f32
    %125 = vector.broadcast %cst_60 : f32 to vector<512x256xf32>
    %126 = arith.maximumf %124, %125 : vector<512x256xf32>
    %127 = tpu.iota {dimensions = array<i32: 1>} : vector<1x256xi32>
    %c5_i32 = arith.constant 5 : i32
    %128 = vector.broadcast %c5_i32 : i32 to vector<1x256xi32>
    %129 = arith.shrsi %127, %128 : vector<1x256xi32>
    %c1_i32_61 = arith.constant 1 : i32
    %130 = vector.broadcast %c1_i32_61 : i32 to vector<512x1xi32>
    %131 = arith.andi %4, %130 : vector<512x1xi32>
    %c0_i32_62 = arith.constant 0 : i32
    %132 = vector.broadcast %c0_i32_62 : i32 to vector<512x1xi32>
    %133 = arith.cmpi eq, %131, %132 : vector<512x1xi32>
    %c1_i32_63 = arith.constant 1 : i32
    %134 = vector.broadcast %c1_i32_63 : i32 to vector<512x1xi32>
    %135 = arith.shrsi %4, %134 : vector<512x1xi32>
    %c-1_i32 = arith.constant -1 : i32
    %136 = vector.broadcast %c-1_i32 : i32 to vector<512x1xi32>
    %137 = arith.select %133, %135, %136 : vector<512x1xi1>, vector<512x1xi32>
    %138 = vector.broadcast %129 : vector<1x256xi32> to vector<512x256xi32>
    %139 = vector.broadcast %137 : vector<512x1xi32> to vector<512x256xi32>
    %140 = arith.cmpi eq, %138, %139 : vector<512x256xi32>
    %cst_64 = arith.constant 0.000000e+00 : f32
    %141 = vector.broadcast %cst_64 : f32 to vector<512x256xf32>
    %142 = arith.select %140, %126, %141 : vector<512x256xi1>, vector<512x256xf32>
    %143 = tpu.iota {dimensions = array<i32: 0>} : vector<32x512xi32>
    %144 = tpu.iota {dimensions = array<i32: 1>} : vector<32x512xi32>
    %c4_i32 = arith.constant 4 : i32
    %145 = vector.broadcast %c4_i32 : i32 to vector<32x512xi32>
    %146 = arith.shrsi %144, %145 : vector<32x512xi32>
    %147 = arith.cmpi eq, %146, %143 : vector<32x512xi32>
    %cst_65 = arith.constant 1.000000e+00 : f32
    %cst_66 = arith.constant 0.000000e+00 : f32
    %148 = vector.broadcast %cst_65 : f32 to vector<32x512xf32>
    %149 = vector.broadcast %cst_66 : f32 to vector<32x512xf32>
    %150 = arith.select %147, %148, %149 : vector<32x512xi1>, vector<32x512xf32>
    %cst_67 = arith.constant dense<0.000000e+00> : vector<32x256xf32>
    %151 = tpu.matmul %150, %142, %cst_67 {dimension_numbers = #tpu.dot_dimension_numbers<[1], [0], [0], [1], [0, 0, 1, 1], [], []>} : vector<32x512xf32>, vector<512x256xf32>, vector<32x256xf32> -> vector<32x256xf32>
    %c792 = arith.constant 792 : index
    %c0_68 = arith.constant 0 : index
    %152 = vector.load %arg2[%c792, %c0_68] : memref<1048x128xf32, #tpu.memory_space<vmem>>, vector<256x128xf32>
    %cst_69 = arith.constant dense<0.000000e+00> : vector<32x128xf32>
    %153 = tpu.matmul %151, %152, %cst_69 {dimension_numbers = #tpu.dot_dimension_numbers<[1], [0], [0], [1], [0, 0, 1, 1], [], []>} : vector<32x256xf32>, vector<256x128xf32>, vector<32x128xf32> -> vector<32x128xf32>
    %c5 = arith.constant 5 : index
    %c0_70 = arith.constant 0 : index
    %154 = vector.load %arg3[%c5, %c0_70] : memref<8x128xf32, #tpu.memory_space<vmem>>, vector<1x128xf32>
    %155 = vector.broadcast %154 : vector<1x128xf32> to vector<32x128xf32>
    %156 = arith.addf %153, %155 : vector<32x128xf32>
    %cst_71 = arith.constant 0.000000e+00 : f32
    %157 = vector.broadcast %cst_71 : f32 to vector<32x128xf32>
    %158 = arith.maximumf %156, %157 : vector<32x128xf32>
    %c6 = arith.constant 6 : index
    %c0_72 = arith.constant 0 : index
    %159 = vector.load %arg3[%c6, %c0_72] : memref<8x128xf32, #tpu.memory_space<vmem>>, vector<1x128xf32>
    %160 = vector.broadcast %159 : vector<1x128xf32> to vector<32x128xf32>
    %161 = arith.mulf %160, %158 : vector<32x128xf32>
    %c7 = arith.constant 7 : index
    %c0_73 = arith.constant 0 : index
    %162 = vector.load %arg3[%c7, %c0_73] : memref<8x128xf32, #tpu.memory_space<vmem>>, vector<1x128xf32>
    %163 = vector.broadcast %162 : vector<1x128xf32> to vector<32x128xf32>
    %164 = arith.addf %161, %163 : vector<32x128xf32>
    %165 = tpu.iota {dimensions = array<i32: 0>} : vector<8x32xi32>
    %166 = tpu.iota {dimensions = array<i32: 1>} : vector<8x32xi32>
    %c2_i32 = arith.constant 2 : i32
    %167 = vector.broadcast %c2_i32 : i32 to vector<8x32xi32>
    %168 = arith.shrsi %166, %167 : vector<8x32xi32>
    %169 = arith.cmpi eq, %168, %165 : vector<8x32xi32>
    %cst_74 = arith.constant 1.000000e+00 : f32
    %cst_75 = arith.constant 0.000000e+00 : f32
    %170 = vector.broadcast %cst_74 : f32 to vector<8x32xf32>
    %171 = vector.broadcast %cst_75 : f32 to vector<8x32xf32>
    %172 = arith.select %169, %170, %171 : vector<8x32xi1>, vector<8x32xf32>
    %173 = arith.mulf %164, %158 : vector<32x128xf32>
    %cst_76 = arith.constant dense<0.000000e+00> : vector<8x128xf32>
    %174 = tpu.matmul %172, %173, %cst_76 {dimension_numbers = #tpu.dot_dimension_numbers<[1], [0], [0], [1], [0, 0, 1, 1], [], []>} : vector<8x32xf32>, vector<32x128xf32>, vector<8x128xf32> -> vector<8x128xf32>
    %c0_77 = arith.constant 0 : index
    %c0_78 = arith.constant 0 : index
    %c0_79 = arith.constant 0 : index
    %175 = vector.load %arg4[%c0_77, %c0_78, %c0_79] : memref<1x8x128xf32, #tpu.memory_space<vmem>>, vector<1x8x128xf32>
    %176 = vector.shape_cast %175 : vector<1x8x128xf32> to vector<8x128xf32>
    %177 = vector.shape_cast %174 : vector<8x128xf32> to vector<1x8x128xf32>
    tpu.vector_store %arg4[%c0_77, %c0_78, %c0_79], %177 {strides = array<i32>} : memref<1x8x128xf32, #tpu.memory_space<vmem>>, vector<1x8x128xf32>,
    return
  }
  func.func @transform_0(%arg0: i32) -> (i32, i32, i32) {
    %c0_i32 = arith.constant 0 : i32
    %c0_i32_0 = arith.constant 0 : i32
    %c0_i32_1 = arith.constant 0 : i32
    return %arg0, %c0_i32, %c0_i32_0 : i32, i32, i32
  }
  func.func @transform_1(%arg0: i32) -> (i32, i32) {
    %c0_i32 = arith.constant 0 : i32
    %c0_i32_0 = arith.constant 0 : i32
    %c0_i32_1 = arith.constant 0 : i32
    return %c0_i32, %c0_i32_0 : i32, i32
  }
  func.func @transform_2(%arg0: i32) -> (i32, i32) {
    %c0_i32 = arith.constant 0 : i32
    %c0_i32_0 = arith.constant 0 : i32
    %c0_i32_1 = arith.constant 0 : i32
    return %c0_i32, %c0_i32_0 : i32, i32
  }
  func.func @transform_3(%arg0: i32) -> (i32, i32, i32) {
    %c0_i32 = arith.constant 0 : i32
    %c0_i32_0 = arith.constant 0 : i32
    %c0_i32_1 = arith.constant 0 : i32
    return %arg0, %c0_i32, %c0_i32_0 : i32, i32, i32
  }
}

</mosaic_0001>

<llo_original>
// kernel: cnn_gated_vec_forward.1
$region0: #{cnn_gated_vec_forward.1}
  #allocation0 [shape = 'u32[]', space=smem, size = 0x4, offset = 0x4, fixed_abs, tag = 'smem constant byte address 0x4 - core index']
  #allocation1 [shape = 'u32[144,128]{1,0:T(1,128)}', space=vmem, size = 0x12000, scoped, tag = 'internal scratch']
  %s0 = inlined_call_operand.vmem [shape: f32[1,512,8], index: 0, kind: input, shape index: {}]
  %s1 = inlined_call_operand.hbm [shape: f32[1048,128], index: 1, kind: input, shape index: {}]
  %s2 = inlined_call_operand.vmem [shape: f32[8,128], index: 2, kind: input, shape index: {}]
  %s3 = inlined_call_operand.hbm [shape: f32[1,8,128], index: 3, kind: output, shape index: {}]
  %s4 = sld [smem:[#allocation0]]
  $region26: #{cnn_gated_vec_forward.1} parent=0
    _
  %s6 = ssub.s32 1, %s4
  %s7 = scalar_select 0, %s6, %s4
  $region1: #{cnn_gated_vec_forward.1} parent=0
    #allocation2 [shape = 'u8[536576]{0}', space=vmem, size = 0x83000, scoped, tag = 'input window, operand 1, single buffered']
    #allocation3 [shape = 's32[1]{0}', space=sflag, size = 0x4, scoped, tag = 'scoped memory for cnn_gated_vec_forward.1']
    #allocation4 [shape = 's32[1]{0}', space=sflag, size = 0x4, scoped, tag = 'scoped memory for cnn_gated_vec_forward.1']
    #allocation5 [shape = 'u8[4096]{0}', space=vmem, size = 0x1000, scoped, tag = 'output window, operand 0, single buffered']
    %8 = vsyncpa [#allocation3], 0
    %9 = vsyncpa [#allocation4], 0
    // Predicated region
    $region2: #{cnn_gated_vec_forward.1} parent=1 // pred_check
      _
    $region3: #{cnn_gated_vec_forward.1} parent=1 // pred_check_branch
      %11 = sbr.rel (0) target = $region5
    $region4: #{cnn_gated_vec_forward.1} parent=1 // pred_region
      _
    $region5: #{cnn_gated_vec_forward.1} parent=1 // pred_fallthru
      _
    // Predicated region
    $region6: #{cnn_gated_vec_forward.1} parent=1 // pred_check
      _
    $region7: #{cnn_gated_vec_forward.1} parent=1 // pred_check_branch
      %13 = sbr.rel (0) target = $region9
    $region8: #{cnn_gated_vec_forward.1} parent=1 // pred_region
      %s15 = ssub.s32 16768, 16768
      %16 = vsyncadd [#allocation3], %s15
      %s17 = sshll.u32 [#allocation2], 4
      %s18 = int_to_ptr.vmem [resolvable:$true] %s17
      %23 = dma.hbm_to_vmem [thread:$0]  %s1, 16768, %s18, [#allocation3], 128, 128, 8
    $region9: #{cnn_gated_vec_forward.1} parent=1 // pred_fallthru
      _
    // Predicated region
    $region10: #{cnn_gated_vec_forward.1} parent=1 // pred_check
      _
    $region11: #{cnn_gated_vec_forward.1} parent=1 // pred_check_branch
      %25 = sbr.rel (0) target = $region13
    $region12: #{cnn_gated_vec_forward.1} parent=1 // pred_region
      _
    $region13: #{cnn_gated_vec_forward.1} parent=1 // pred_fallthru
      _
    // Predicated region
    $region14: #{cnn_gated_vec_forward.1} parent=1 // pred_check
      _
    $region15: #{cnn_gated_vec_forward.1} parent=1 // pred_check_branch
      %27 = sbr.rel (0) target = $region17
    $region16: #{cnn_gated_vec_forward.1} parent=1 // pred_region
      %28 = dma.done [#allocation3], 16768
    $region17: #{cnn_gated_vec_forward.1} parent=1 // pred_fallthru
      _
    %v29 = vld [vmem:[%s0] sm:$0xff]
    %v30 = vld [vmem:[%s0 + $0x8] sm:$0xff]
    %v31 = vld [vmem:[%s0 + $0x10] sm:$0xff]
    %v32 = vld [vmem:[%s0 + $0x18] sm:$0xff]
    %v33 = vld [vmem:[%s0 + $0x20] sm:$0xff]
    %v34 = vld [vmem:[%s0 + $0x28] sm:$0xff]
    %v35 = vld [vmem:[%s0 + $0x30] sm:$0xff]
    %v36 = vld [vmem:[%s0 + $0x38] sm:$0xff]
    %v37 = vld [vmem:[%s0 + $0x40] sm:$0xff]
    %v38 = vld [vmem:[%s0 + $0x48] sm:$0xff]
    %v39 = vld [vmem:[%s0 + $0x50] sm:$0xff]
    %v40 = vld [vmem:[%s0 + $0x58] sm:$0xff]
    %v41 = vld [vmem:[%s0 + $0x60] sm:$0xff]
    %v42 = vld [vmem:[%s0 + $0x68] sm:$0xff]
    %v43 = vld [vmem:[%s0 + $0x70] sm:$0xff]
    %v44 = vld [vmem:[%s0 + $0x78] sm:$0xff]
    %v45 = vld [vmem:[%s0 + $0x80] sm:$0xff]
    %v46 = vld [vmem:[%s0 + $0x88] sm:$0xff]
    %v47 = vld [vmem:[%s0 + $0x90] sm:$0xff]
    %v48 = vld [vmem:[%s0 + $0x98] sm:$0xff]
    %v49 = vld [vmem:[%s0 + $0xa0] sm:$0xff]
    %v50 = vld [vmem:[%s0 + $0xa8] sm:$0xff]
    %v51 = vld [vmem:[%s0 + $0xb0] sm:$0xff]
    %v52 = vld [vmem:[%s0 + $0xb8] sm:$0xff]
    %v53 = vld [vmem:[%s0 + $0xc0] sm:$0xff]
    %v54 = vld [vmem:[%s0 + $0xc8] sm:$0xff]
    %v55 = vld [vmem:[%s0 + $0xd0] sm:$0xff]
    %v56 = vld [vmem:[%s0 + $0xd8] sm:$0xff]
    %v57 = vld [vmem:[%s0 + $0xe0] sm:$0xff]
    %v58 = vld [vmem:[%s0 + $0xe8] sm:$0xff]
    %v59 = vld [vmem:[%s0 + $0xf0] sm:$0xff]
    %v60 = vld [vmem:[%s0 + $0xf8] sm:$0xff]
    %v61 = vld [vmem:[%s0 + $0x100] sm:$0xff]
    %v62 = vld [vmem:[%s0 + $0x108] sm:$0xff]
    %v63 = vld [vmem:[%s0 + $0x110] sm:$0xff]
    %v64 = vld [vmem:[%s0 + $0x118] sm:$0xff]
    %v65 = vld [vmem:[%s0 + $0x120] sm:$0xff]
    %v66 = vld [vmem:[%s0 + $0x128] sm:$0xff]
    %v67 = vld [vmem:[%s0 + $0x130] sm:$0xff]
    %v68 = vld [vmem:[%s0 + $0x138] sm:$0xff]
    %v69 = vld [vmem:[%s0 + $0x140] sm:$0xff]
    %v70 = vld [vmem:[%s0 + $0x148] sm:$0xff]
    %v71 = vld [vmem:[%s0 + $0x150] sm:$0xff]
    %v72 = vld [vmem:[%s0 + $0x158] sm:$0xff]
    %v73 = vld [vmem:[%s0 + $0x160] sm:$0xff]
    %v74 = vld [vmem:[%s0 + $0x168] sm:$0xff]
    %v75 = vld [vmem:[%s0 + $0x170] sm:$0xff]
    %v76 = vld [vmem:[%s0 + $0x178] sm:$0xff]
    %v77 = vld [vmem:[%s0 + $0x180] sm:$0xff]
    %v78 = vld [vmem:[%s0 + $0x188] sm:$0xff]
    %v79 = vld [vmem:[%s0 + $0x190] sm:$0xff]
    %v80 = vld [vmem:[%s0 + $0x198] sm:$0xff]
    %v81 = vld [vmem:[%s0 + $0x1a0] sm:$0xff]
    %v82 = vld [vmem:[%s0 + $0x1a8] sm:$0xff]
    %v83 = vld [vmem:[%s0 + $0x1b0] sm:$0xff]
    %v84 = vld [vmem:[%s0 + $0x1b8] sm:$0xff]
    %v85 = vld [vmem:[%s0 + $0x1c0] sm:$0xff]
    %v86 = vld [vmem:[%s0 + $0x1c8] sm:$0xff]
    %v87 = vld [vmem:[%s0 + $0x1d0] sm:$0xff]
    %v88 = vld [vmem:[%s0 + $0x1d8] sm:$0xff]
    %v89 = vld [vmem:[%s0 + $0x1e0] sm:$0xff]
    %v90 = vld [vmem:[%s0 + $0x1e8] sm:$0xff]
    %v91 = vld [vmem:[%s0 + $0x1f0] sm:$0xff]
    %v92 = vld [vmem:[%s0 + $0x1f8] sm:$0xff]
    %v93 = vlaneseq
    %v94 = vshrl.u32 %v93, 7
    %v95 = vadd.s32 %v94, 8
    %v96 = vadd.s32 %v94, 16
    %v97 = vadd.s32 %v94, 24
    %v98 = vadd.s32 %v94, 32
    %v99 = vadd.s32 %v94, 40
    %v100 = vadd.s32 %v94, 48
    %v101 = vadd.s32 %v94, 56
    %v102 = vadd.s32 %v94, 64
    %v103 = vadd.s32 %v94, 72
    %v104 = vadd.s32 %v94, 80
    %v105 = vadd.s32 %v94, 88
    %v106 = vadd.s32 %v94, 96
    %v107 = vadd.s32 %v94, 104
    %v108 = vadd.s32 %v94, 112
    %v109 = vadd.s32 %v94, 120
    %v110 = vadd.s32 %v94, 128
    %v111 = vadd.s32 %v94, 136
    %v112 = vadd.s32 %v94, 144
    %v113 = vadd.s32 %v94, 152
    %v114 = vadd.s32 %v94, 160
    %v115 = vadd.s32 %v94, 168
    %v116 = vadd.s32 %v94, 176
    %v117 = vadd.s32 %v94, 184
    %v118 = vadd.s32 %v94, 192
    %v119 = vadd.s32 %v94, 200
    %v120 = vadd.s32 %v94, 208
    %v121 = vadd.s32 %v94, 216
    %v122 = vadd.s32 %v94, 224
    %v123 = vadd.s32 %v94, 232
    %v124 = vadd.s32 %v94, 240
    %v125 = vadd.s32 %v94, 248
    %v126 = vadd.s32 %v94, 256
    %v127 = vadd.s32 %v94, 264
    %v128 = vadd.s32 %v94, 272
    %v129 = vadd.s32 %v94, 280
    %v130 = vadd.s32 %v94, 288
    %v131 = vadd.s32 %v94, 296
    %v132 = vadd.s32 %v94, 304
    %v133 = vadd.s32 %v94, 312
    %v134 = vadd.s32 %v94, 320
    %v135 = vadd.s32 %v94, 328
    %v136 = vadd.s32 %v94, 336
    %v137 = vadd.s32 %v94, 344
    %v138 = vadd.s32 %v94, 352
    %v139 = vadd.s32 %v94, 360
    %v140 = vadd.s32 %v94, 368
    %v141 = vadd.s32 %v94, 376
    %v142 = vadd.s32 %v94, 384
    %v143 = vadd.s32 %v94, 392
    %v144 = vadd.s32 %v94, 400
    %v145 = vadd.s32 %v94, 408
    %v146 = vadd.s32 %v94, 416
    %v147 = vadd.s32 %v94, 424
    %v148 = vadd.s32 %v94, 432
    %v149 = vadd.s32 %v94, 440
    %v150 = vadd.s32 %v94, 448
    %v151 = vadd.s32 %v94, 456
    %v152 = vadd.s32 %v94, 464
    %v153 = vadd.s32 %v94, 472
    %v154 = vadd.s32 %v94, 480
    %v155 = vadd.s32 %v94, 488
    %v156 = vadd.s32 %v94, 496
    %v157 = vadd.s32 %v94, 504
    %v158 = vand.u32 %v94, 15
    %v159 = vand.u32 %v95, 15
    %v160 = vand.u32 %v96, 15
    %v161 = vand.u32 %v97, 15
    %v162 = vand.u32 %v98, 15
    %v163 = vand.u32 %v99, 15
    %v164 = vand.u32 %v100, 15
    %v165 = vand.u32 %v101, 15
    %v166 = vand.u32 %v102, 15
    %v167 = vand.u32 %v103, 15
    %v168 = vand.u32 %v104, 15
    %v169 = vand.u32 %v105, 15
    %v170 = vand.u32 %v106, 15
    %v171 = vand.u32 %v107, 15
    %v172 = vand.u32 %v108, 15
    %v173 = vand.u32 %v109, 15
    %v174 = vand.u32 %v110, 15
    %v175 = vand.u32 %v111, 15
    %v176 = vand.u32 %v112, 15
    %v177 = vand.u32 %v113, 15
    %v178 = vand.u32 %v114, 15
    %v179 = vand.u32 %v115, 15
    %v180 = vand.u32 %v116, 15
    %v181 = vand.u32 %v117, 15
    %v182 = vand.u32 %v118, 15
    %v183 = vand.u32 %v119, 15
    %v184 = vand.u32 %v120, 15
    %v185 = vand.u32 %v121, 15
    %v186 = vand.u32 %v122, 15
    %v187 = vand.u32 %v123, 15
    %v188 = vand.u32 %v124, 15
    %v189 = vand.u32 %v125, 15
    %v190 = vand.u32 %v126, 15
    %v191 = vand.u32 %v127, 15
    %v192 = vand.u32 %v128, 15
    %v193 = vand.u32 %v129, 15
    %v194 = vand.u32 %v130, 15
    %v195 = vand.u32 %v131, 15
    %v196 = vand.u32 %v132, 15
    %v197 = vand.u32 %v133, 15
    %v198 = vand.u32 %v134, 15
    %v199 = vand.u32 %v135, 15
    %v200 = vand.u32 %v136, 15
    %v201 = vand.u32 %v137, 15
    %v202 = vand.u32 %v138, 15
    %v203 = vand.u32 %v139, 15
    %v204 = vand.u32 %v140, 15
    %v205 = vand.u32 %v141, 15
    %v206 = vand.u32 %v142, 15
    %v207 = vand.u32 %v143, 15
    %v208 = vand.u32 %v144, 15
    %v209 = vand.u32 %v145, 15
    %v210 = vand.u32 %v146, 15
    %v211 = vand.u32 %v147, 15
    %v212 = vand.u32 %v148, 15
    %v213 = vand.u32 %v149, 15
    %v214 = vand.u32 %v150, 15
    %v215 = vand.u32 %v151, 15
    %v216 = vand.u32 %v152, 15
    %v217 = vand.u32 %v153, 15
    %v218 = vand.u32 %v154, 15
    %v219 = vand.u32 %v155, 15
    %v220 = vand.u32 %v156, 15
    %v221 = vand.u32 %v157, 15
    %vm222 = vcmp.ne.s32.totalorder %v158, 0
    %vm223 = vcmp.ne.s32.totalorder %v159, 0
    %vm224 = vcmp.ne.s32.totalorder %v160, 0
    %vm225 = vcmp.ne.s32.totalorder %v161, 0
    %vm226 = vcmp.ne.s32.totalorder %v162, 0
    %vm227 = vcmp.ne.s32.totalorder %v163, 0
    %vm228 = vcmp.ne.s32.totalorder %v164, 0
    %vm229 = vcmp.ne.s32.totalorder %v165, 0
    %vm230 = vcmp.ne.s32.totalorder %v166, 0
    %vm231 = vcmp.ne.s32.totalorder %v167, 0
    %vm232 = vcmp.ne.s32.totalorder %v168, 0
    %vm233 = vcmp.ne.s32.totalorder %v169, 0
    %vm234 = vcmp.ne.s32.totalorder %v170, 0
    %vm235 = vcmp.ne.s32.totalorder %v171, 0
    %vm236 = vcmp.ne.s32.totalorder %v172, 0
    %vm237 = vcmp.ne.s32.totalorder %v173, 0
    %vm238 = vcmp.ne.s32.totalorder %v174, 0
    %vm239 = vcmp.ne.s32.totalorder %v175, 0
    %vm240 = vcmp.ne.s32.totalorder %v176, 0
    %vm241 = vcmp.ne.s32.totalorder %v177, 0
    %vm242 = vcmp.ne.s32.totalorder %v178, 0
    %vm243 = vcmp.ne.s32.totalorder %v179, 0
    %vm244 = vcmp.ne.s32.totalorder %v180, 0
    %vm245 = vcmp.ne.s32.totalorder %v181, 0
    %vm246 = vcmp.ne.s32.totalorder %v182, 0
    %vm247 = vcmp.ne.s32.totalorder %v183, 0
    %vm248 = vcmp.ne.s32.totalorder %v184, 0
    %vm249 = vcmp.ne.s32.totalorder %v185, 0
    %vm250 = vcmp.ne.s32.totalorder %v186, 0
    %vm251 = vcmp.ne.s32.totalorder %v187, 0
    %vm252 = vcmp.ne.s32.totalorder %v188, 0
    %vm253 = vcmp.ne.s32.totalorder %v189, 0
    %vm254 = vcmp.ne.s32.totalorder %v190, 0
    %vm255 = vcmp.ne.s32.totalorder %v191, 0
    %vm256 = vcmp.ne.s32.totalorder %v192, 0
    %vm257 = vcmp.ne.s32.totalorder %v193, 0
    %vm258 = vcmp.ne.s32.totalorder %v194, 0
    %vm259 = vcmp.ne.s32.totalorder %v195, 0
    %vm260 = vcmp.ne.s32.totalorder %v196, 0
    %vm261 = vcmp.ne.s32.totalorder %v197, 0
    %vm262 = vcmp.ne.s32.totalorder %v198, 0
    %vm263 = vcmp.ne.s32.totalorder %v199, 0
    %vm264 = vcmp.ne.s32.totalorder %v200, 0
    %vm265 = vcmp.ne.s32.totalorder %v201, 0
    %vm266 = vcmp.ne.s32.totalorder %v202, 0
    %vm267 = vcmp.ne.s32.totalorder %v203, 0
    %vm268 = vcmp.ne.s32.totalorder %v204, 0
    %vm269 = vcmp.ne.s32.totalorder %v205, 0
    %vm270 = vcmp.ne.s32.totalorder %v206, 0
    %vm271 = vcmp.ne.s32.totalorder %v207, 0
    %vm272 = vcmp.ne.s32.totalorder %v208, 0
    %vm273 = vcmp.ne.s32.totalorder %v209, 0
    %vm274 = vcmp.ne.s32.totalorder %v210, 0
    %vm275 = vcmp.ne.s32.totalorder %v211, 0
    %vm276 = vcmp.ne.s32.totalorder %v212, 0
    %vm277 = vcmp.ne.s32.totalorder %v213, 0
    %vm278 = vcmp.ne.s32.totalorder %v214, 0
    %vm279 = vcmp.ne.s32.totalorder %v215, 0
    %vm280 = vcmp.ne.s32.totalorder %v216, 0
    %vm281 = vcmp.ne.s32.totalorder %v217, 0
    %vm282 = vcmp.ne.s32.totalorder %v218, 0
    %vm283 = vcmp.ne.s32.totalorder %v219, 0
    %vm284 = vcmp.ne.s32.totalorder %v220, 0
    %vm285 = vcmp.ne.s32.totalorder %v221, 0
    %vm286 = vcmp.ne.s32.totalorder %v158, 15
    %vm287 = vcmp.ne.s32.totalorder %v159, 15
    %vm288 = vcmp.ne.s32.totalorder %v160, 15
    %vm289 = vcmp.ne.s32.totalorder %v161, 15
    %vm290 = vcmp.ne.s32.totalorder %v162, 15
    %vm291 = vcmp.ne.s32.totalorder %v163, 15
    %vm292 = vcmp.ne.s32.totalorder %v164, 15
    %vm293 = vcmp.ne.s32.totalorder %v165, 15
    %vm294 = vcmp.ne.s32.totalorder %v166, 15
    %vm295 = vcmp.ne.s32.totalorder %v167, 15
    %vm296 = vcmp.ne.s32.totalorder %v168, 15
    %vm297 = vcmp.ne.s32.totalorder %v169, 15
    %vm298 = vcmp.ne.s32.totalorder %v170, 15
    %vm299 = vcmp.ne.s32.totalorder %v171, 15
    %vm300 = vcmp.ne.s32.totalorder %v172, 15
    %vm301 = vcmp.ne.s32.totalorder %v173, 15
    %vm302 = vcmp.ne.s32.totalorder %v174, 15
    %vm303 = vcmp.ne.s32.totalorder %v175, 15
    %vm304 = vcmp.ne.s32.totalorder %v176, 15
    %vm305 = vcmp.ne.s32.totalorder %v177, 15
    %vm306 = vcmp.ne.s32.totalorder %v178, 15
    %vm307 = vcmp.ne.s32.totalorder %v179, 15
    %vm308 = vcmp.ne.s32.totalorder %v180, 15
    %vm309 = vcmp.ne.s32.totalorder %v181, 15
    %vm310 = vcmp.ne.s32.totalorder %v182, 15
    %vm311 = vcmp.ne.s32.totalorder %v183, 15
    %vm312 = vcmp.ne.s32.totalorder %v184, 15
    %vm313 = vcmp.ne.s32.totalorder %v185, 15
    %vm314 = vcmp.ne.s32.totalorder %v186, 15
    %vm315 = vcmp.ne.s32.totalorder %v187, 15
    %vm316 = vcmp.ne.s32.totalorder %v188, 15
    %vm317 = vcmp.ne.s32.totalorder %v189, 15
    %vm318 = vcmp.ne.s32.totalorder %v190, 15
    %vm319 = vcmp.ne.s32.totalorder %v191, 15
    %vm320 = vcmp.ne.s32.totalorder %v192, 15
    %vm321 = vcmp.ne.s32.totalorder %v193, 15
    %vm322 = vcmp.ne.s32.totalorder %v194, 15
    %vm323 = vcmp.ne.s32.totalorder %v195, 15
    %vm324 = vcmp.ne.s32.totalorder %v196, 15
    %vm325 = vcmp.ne.s32.totalorder %v197, 15
    %vm326 = vcmp.ne.s32.totalorder %v198, 15
    %vm327 = vcmp.ne.s32.totalorder %v199, 15
    %vm328 = vcmp.ne.s32.totalorder %v200, 15
    %vm329 = vcmp.ne.s32.totalorder %v201, 15
    %vm330 = vcmp.ne.s32.totalorder %v202, 15
    %vm331 = vcmp.ne.s32.totalorder %v203, 15
    %vm332 = vcmp.ne.s32.totalorder %v204, 15
    %vm333 = vcmp.ne.s32.totalorder %v205, 15
    %vm334 = vcmp.ne.s32.totalorder %v206, 15
    %vm335 = vcmp.ne.s32.totalorder %v207, 15
    %vm336 = vcmp.ne.s32.totalorder %v208, 15
    %vm337 = vcmp.ne.s32.totalorder %v209, 15
    %vm338 = vcmp.ne.s32.totalorder %v210, 15
    %vm339 = vcmp.ne.s32.totalorder %v211, 15
    %vm340 = vcmp.ne.s32.totalorder %v212, 15
    %vm341 = vcmp.ne.s32.totalorder %v213, 15
    %vm342 = vcmp.ne.s32.totalorder %v214, 15
    %vm343 = vcmp.ne.s32.totalorder %v215, 15
    %vm344 = vcmp.ne.s32.totalorder %v216, 15
    %vm345 = vcmp.ne.s32.totalorder %v217, 15
    %vm346 = vcmp.ne.s32.totalorder %v218, 15
    %vm347 = vcmp.ne.s32.totalorder %v219, 15
    %vm348 = vcmp.ne.s32.totalorder %v220, 15
    %vm349 = vcmp.ne.s32.totalorder %v221, 15
    %v350 = vld [vmem:[#allocation2] sm:$0xff]
    %v351 = vld [vmem:[#allocation2 + $0x8] sm:$0xff]
    %v352 = vld [vmem:[#allocation2 + $0x10] sm:$0xff]
    %v353 = vld [vmem:[%s2] sm:$0x1]
    %v354 = vrot.slane %v29, 7
    %v355 = vrot.slane %v30, 7
    %v356 = vrot.slane %v31, 7
    %v357 = vrot.slane %v32, 7
    %v358 = vrot.slane %v33, 7
    %v359 = vrot.slane %v34, 7
    %v360 = vrot.slane %v35, 7
    %v361 = vrot.slane %v36, 7
    %v362 = vrot.slane %v37, 7
    %v363 = vrot.slane %v38, 7
    %v364 = vrot.slane %v39, 7
    %v365 = vrot.slane %v40, 7
    %v366 = vrot.slane %v41, 7
    %v367 = vrot.slane %v42, 7
    %v368 = vrot.slane %v43, 7
    %v369 = vrot.slane %v44, 7
    %v370 = vrot.slane %v45, 7
    %v371 = vrot.slane %v46, 7
    %v372 = vrot.slane %v47, 7
    %v373 = vrot.slane %v48, 7
    %v374 = vrot.slane %v49, 7
    %v375 = vrot.slane %v50, 7
    %v376 = vrot.slane %v51, 7
    %v377 = vrot.slane %v52, 7
    %v378 = vrot.slane %v53, 7
    %v379 = vrot.slane %v54, 7
    %v380 = vrot.slane %v55, 7
    %v381 = vrot.slane %v56, 7
    %v382 = vrot.slane %v57, 7
    %v383 = vrot.slane %v58, 7
    %v384 = vrot.slane %v59, 7
    %v385 = vrot.slane %v60, 7
    %v386 = vrot.slane %v61, 7
    %v387 = vrot.slane %v62, 7
    %v388 = vrot.slane %v63, 7
    %v389 = vrot.slane %v64, 7
    %v390 = vrot.slane %v65, 7
    %v391 = vrot.slane %v66, 7
    %v392 = vrot.slane %v67, 7
    %v393 = vrot.slane %v68, 7
    %v394 = vrot.slane %v69, 7
    %v395 = vrot.slane %v70, 7
    %v396 = vrot.slane %v71, 7
    %v397 = vrot.slane %v72, 7
    %v398 = vrot.slane %v73, 7
    %v399 = vrot.slane %v74, 7
    %v400 = vrot.slane %v75, 7
    %v401 = vrot.slane %v76, 7
    %v402 = vrot.slane %v77, 7
    %v403 = vrot.slane %v78, 7
    %v404 = vrot.slane %v79, 7
    %v405 = vrot.slane %v80, 7
    %v406 = vrot.slane %v81, 7
    %v407 = vrot.slane %v82, 7
    %v408 = vrot.slane %v83, 7
    %v409 = vrot.slane %v84, 7
    %v410 = vrot.slane %v85, 7
    %v411 = vrot.slane %v86, 7
    %v412 = vrot.slane %v87, 7
    %v413 = vrot.slane %v88, 7
    %v414 = vrot.slane %v89, 7
    %v415 = vrot.slane %v90, 7
    %v416 = vrot.slane %v91, 7
    %v417 = vrot.slane %v92, 7
    %vm418 = vcmp.lt.s32.totalorder %v94, 1
    %v419 = vsel %vm418, %v416, %v417
    %v420 = vsel %vm418, %v415, %v416
    %v421 = vsel %vm418, %v414, %v415
    %v422 = vsel %vm418, %v413, %v414
    %v423 = vsel %vm418, %v412, %v413
    %v424 = vsel %vm418, %v411, %v412
    %v425 = vsel %vm418, %v410, %v411
    %v426 = vsel %vm418, %v409, %v410
    %v427 = vsel %vm418, %v408, %v409
    %v428 = vsel %vm418, %v407, %v408
    %v429 = vsel %vm418, %v406, %v407
    %v430 = vsel %vm418, %v405, %v406
    %v431 = vsel %vm418, %v404, %v405
    %v432 = vsel %vm418, %v403, %v404
    %v433 = vsel %vm418, %v402, %v403
    %v434 = vsel %vm418, %v401, %v402
    %v435 = vsel %vm418, %v400, %v401
    %v436 = vsel %vm418, %v399, %v400
    %v437 = vsel %vm418, %v398, %v399
    %v438 = vsel %vm418, %v397, %v398
    %v439 = vsel %vm418, %v396, %v397
    %v440 = vsel %vm418, %v395, %v396
    %v441 = vsel %vm418, %v394, %v395
    %v442 = vsel %vm418, %v393, %v394
    %v443 = vsel %vm418, %v392, %v393
    %v444 = vsel %vm418, %v391, %v392
    %v445 = vsel %vm418, %v390, %v391
    %v446 = vsel %vm418, %v389, %v390
    %v447 = vsel %vm418, %v388, %v389
    %v448 = vsel %vm418, %v387, %v388
    %v449 = vsel %vm418, %v386, %v387
    %v450 = vsel %vm418, %v385, %v386
    %v451 = vsel %vm418, %v384, %v385
    %v452 = vsel %vm418, %v383, %v384
    %v453 = vsel %vm418, %v382, %v383
    %v454 = vsel %vm418, %v381, %v382
    %v455 = vsel %vm418, %v380, %v381
    %v456 = vsel %vm418, %v379, %v380
    %v457 = vsel %vm418, %v378, %v379
    %v458 = vsel %vm418, %v377, %v378
    %v459 = vsel %vm418, %v376, %v377
    %v460 = vsel %vm418, %v375, %v376
    %v461 = vsel %vm418, %v374, %v375
    %v462 = vsel %vm418, %v373, %v374
    %v463 = vsel %vm418, %v372, %v373
    %v464 = vsel %vm418, %v371, %v372
    %v465 = vsel %vm418, %v370, %v371
    %v466 = vsel %vm418, %v369, %v370
    %v467 = vsel %vm418, %v368, %v369
    %v468 = vsel %vm418, %v367, %v368
    %v469 = vsel %vm418, %v366, %v367
    %v470 = vsel %vm418, %v365, %v366
    %v471 = vsel %vm418, %v364, %v365
    %v472 = vsel %vm418, %v363, %v364
    %v473 = vsel %vm418, %v362, %v363
    %v474 = vsel %vm418, %v361, %v362
    %v475 = vsel %vm418, %v360, %v361
    %v476 = vsel %vm418, %v359, %v360
    %v477 = vsel %vm418, %v358, %v359
    %v478 = vsel %vm418, %v357, %v358
    %v479 = vsel %vm418, %v356, %v357
    %v480 = vsel %vm418, %v355, %v356
    %v481 = vsel %vm418, %v354, %v355
    %v482 = vsel %vm418, %v417, %v354
    %v483 = vsel %vm222, 1, 0
    %v484 = vsel %vm223, 1, 0
    %v485 = vsel %vm224, 1, 0
    %v486 = vsel %vm225, 1, 0
    %v487 = vsel %vm226, 1, 0
    %v488 = vsel %vm227, 1, 0
    %v489 = vsel %vm228, 1, 0
    %v490 = vsel %vm229, 1, 0
    %v491 = vsel %vm230, 1, 0
    %v492 = vsel %vm231, 1, 0
    %v493 = vsel %vm232, 1, 0
    %v494 = vsel %vm233, 1, 0
    %v495 = vsel %vm234, 1, 0
    %v496 = vsel %vm235, 1, 0
    %v497 = vsel %vm236, 1, 0
    %v498 = vsel %vm237, 1, 0
    %v499 = vsel %vm238, 1, 0
    %v500 = vsel %vm239, 1, 0
    %v501 = vsel %vm240, 1, 0
    %v502 = vsel %vm241, 1, 0
    %v503 = vsel %vm242, 1, 0
    %v504 = vsel %vm243, 1, 0
    %v505 = vsel %vm244, 1, 0
    %v506 = vsel %vm245, 1, 0
    %v507 = vsel %vm246, 1, 0
    %v508 = vsel %vm247, 1, 0
    %v509 = vsel %vm248, 1, 0
    %v510 = vsel %vm249, 1, 0
    %v511 = vsel %vm250, 1, 0
    %v512 = vsel %vm251, 1, 0
    %v513 = vsel %vm252, 1, 0
    %v514 = vsel %vm253, 1, 0
    %v515 = vsel %vm254, 1, 0
    %v516 = vsel %vm255, 1, 0
    %v517 = vsel %vm256, 1, 0
    %v518 = vsel %vm257, 1, 0
    %v519 = vsel %vm258, 1, 0
    %v520 = vsel %vm259, 1, 0
    %v521 = vsel %vm260, 1, 0
    %v522 = vsel %vm261, 1, 0
    %v523 = vsel %vm262, 1, 0
    %v524 = vsel %vm263, 1, 0
    %v525 = vsel %vm264, 1, 0
    %v526 = vsel %vm265, 1, 0
    %v527 = vsel %vm266, 1, 0
    %v528 = vsel %vm267, 1, 0
    %v529 = vsel %vm268, 1, 0
    %v530 = vsel %vm269, 1, 0
    %v531 = vsel %vm270, 1, 0
    %v532 = vsel %vm271, 1, 0
    %v533 = vsel %vm272, 1, 0
    %v534 = vsel %vm273, 1, 0
    %v535 = vsel %vm274, 1, 0
    %v536 = vsel %vm275, 1, 0
    %v537 = vsel %vm276, 1, 0
    %v538 = vsel %vm277, 1, 0
    %v539 = vsel %vm278, 1, 0
    %v540 = vsel %vm279, 1, 0
    %v541 = vsel %vm280, 1, 0
    %v542 = vsel %vm281, 1, 0
    %v543 = vsel %vm282, 1, 0
    %v544 = vsel %vm283, 1, 0
    %v545 = vsel %vm284, 1, 0
    %v546 = vsel %vm285, 1, 0
    %vm547 = vcmp.eq.s32.totalorder %v483, 1
    %vm548 = vcmp.eq.s32.totalorder %v484, 1
    %vm549 = vcmp.eq.s32.totalorder %v485, 1
    %vm550 = vcmp.eq.s32.totalorder %v486, 1
    %vm551 = vcmp.eq.s32.totalorder %v487, 1
    %vm552 = vcmp.eq.s32.totalorder %v488, 1
    %vm553 = vcmp.eq.s32.totalorder %v489, 1
    %vm554 = vcmp.eq.s32.totalorder %v490, 1
    %vm555 = vcmp.eq.s32.totalorder %v491, 1
    %vm556 = vcmp.eq.s32.totalorder %v492, 1
    %vm557 = vcmp.eq.s32.totalorder %v493, 1
    %vm558 = vcmp.eq.s32.totalorder %v494, 1
    %vm559 = vcmp.eq.s32.totalorder %v495, 1
    %vm560 = vcmp.eq.s32.totalorder %v496, 1
    %vm561 = vcmp.eq.s32.totalorder %v497, 1
    %vm562 = vcmp.eq.s32.totalorder %v498, 1
    %vm563 = vcmp.eq.s32.totalorder %v499, 1
    %vm564 = vcmp.eq.s32.totalorder %v500, 1
    %vm565 = vcmp.eq.s32.totalorder %v501, 1
    %vm566 = vcmp.eq.s32.totalorder %v502, 1
    %vm567 = vcmp.eq.s32.totalorder %v503, 1
    %vm568 = vcmp.eq.s32.totalorder %v504, 1
    %vm569 = vcmp.eq.s32.totalorder %v505, 1
    %vm570 = vcmp.eq.s32.totalorder %v506, 1
    %vm571 = vcmp.eq.s32.totalorder %v507, 1
    %vm572 = vcmp.eq.s32.totalorder %v508, 1
    %vm573 = vcmp.eq.s32.totalorder %v509, 1
    %vm574 = vcmp.eq.s32.totalorder %v510, 1
    %vm575 = vcmp.eq.s32.totalorder %v511, 1
    %vm576 = vcmp.eq.s32.totalorder %v512, 1
    %vm577 = vcmp.eq.s32.totalorder %v513, 1
    %vm578 = vcmp.eq.s32.totalorder %v514, 1
    %vm579 = vcmp.eq.s32.totalorder %v515, 1
    %vm580 = vcmp.eq.s32.totalorder %v516, 1
    %vm581 = vcmp.eq.s32.totalorder %v517, 1
    %vm582 = vcmp.eq.s32.totalorder %v518, 1
    %vm583 = vcmp.eq.s32.totalorder %v519, 1
    %vm584 = vcmp.eq.s32.totalorder %v520, 1
    %vm585 = vcmp.eq.s32.totalorder %v521, 1
    %vm586 = vcmp.eq.s32.totalorder %v522, 1
    %vm587 = vcmp.eq.s32.totalorder %v523, 1
    %vm588 = vcmp.eq.s32.totalorder %v524, 1
    %vm589 = vcmp.eq.s32.totalorder %v525, 1
    %vm590 = vcmp.eq.s32.totalorder %v526, 1
    %vm591 = vcmp.eq.s32.totalorder %v527, 1
    %vm592 = vcmp.eq.s32.totalorder %v528, 1
    %vm593 = vcmp.eq.s32.totalorder %v529, 1
    %vm594 = vcmp.eq.s32.totalorder %v530, 1
    %vm595 = vcmp.eq.s32.totalorder %v531, 1
    %vm596 = vcmp.eq.s32.totalorder %v532, 1
    %vm597 = vcmp.eq.s32.totalorder %v533, 1
    %vm598 = vcmp.eq.s32.totalorder %v534, 1
    %vm599 = vcmp.eq.s32.totalorder %v535, 1
    %vm600 = vcmp.eq.s32.totalorder %v536, 1
    %vm601 = vcmp.eq.s32.totalorder %v537, 1
    %vm602 = vcmp.eq.s32.totalorder %v538, 1
    %vm603 = vcmp.eq.s32.totalorder %v539, 1
    %vm604 = vcmp.eq.s32.totalorder %v540, 1
    %vm605 = vcmp.eq.s32.totalorder %v541, 1
    %vm606 = vcmp.eq.s32.totalorder %v542, 1
    %vm607 = vcmp.eq.s32.totalorder %v543, 1
    %vm608 = vcmp.eq.s32.totalorder %v544, 1
    %vm609 = vcmp.eq.s32.totalorder %v545, 1
    %vm610 = vcmp.eq.s32.totalorder %v546, 1
    %v611 = vsel %vm547, %v482, 0.0
    %v612 = vsel %vm548, %v481, 0.0
    %v613 = vsel %vm549, %v480, 0.0
    %v614 = vsel %vm550, %v479, 0.0
    %v615 = vsel %vm551, %v478, 0.0
    %v616 = vsel %vm552, %v477, 0.0
    %v617 = vsel %vm553, %v476, 0.0
    %v618 = vsel %vm554, %v475, 0.0
    %v619 = vsel %vm555, %v474, 0.0
    %v620 = vsel %vm556, %v473, 0.0
    %v621 = vsel %vm557, %v472, 0.0
    %v622 = vsel %vm558, %v471, 0.0
    %v623 = vsel %vm559, %v470, 0.0
    %v624 = vsel %vm560, %v469, 0.0
    %v625 = vsel %vm561, %v468, 0.0
    %v626 = vsel %vm562, %v467, 0.0
    %v627 = vsel %vm563, %v466, 0.0
    %v628 = vsel %vm564, %v465, 0.0
    %v629 = vsel %vm565, %v464, 0.0
    %v630 = vsel %vm566, %v463, 0.0
    %v631 = vsel %vm567, %v462, 0.0
    %v632 = vsel %vm568, %v461, 0.0
    %v633 = vsel %vm569, %v460, 0.0
    %v634 = vsel %vm570, %v459, 0.0
    %v635 = vsel %vm571, %v458, 0.0
    %v636 = vsel %vm572, %v457, 0.0
    %v637 = vsel %vm573, %v456, 0.0
    %v638 = vsel %vm574, %v455, 0.0
    %v639 = vsel %vm575, %v454, 0.0
    %v640 = vsel %vm576, %v453, 0.0
    %v641 = vsel %vm577, %v452, 0.0
    %v642 = vsel %vm578, %v451, 0.0
    %v643 = vsel %vm579, %v450, 0.0
    %v644 = vsel %vm580, %v449, 0.0
    %v645 = vsel %vm581, %v448, 0.0
    %v646 = vsel %vm582, %v447, 0.0
    %v647 = vsel %vm583, %v446, 0.0
    %v648 = vsel %vm584, %v445, 0.0
    %v649 = vsel %vm585, %v444, 0.0
    %v650 = vsel %vm586, %v443, 0.0
    %v651 = vsel %vm587, %v442, 0.0
    %v652 = vsel %vm588, %v441, 0.0
    %v653 = vsel %vm589, %v440, 0.0
    %v654 = vsel %vm590, %v439, 0.0
    %v655 = vsel %vm591, %v438, 0.0
    %v656 = vsel %vm592, %v437, 0.0
    %v657 = vsel %vm593, %v436, 0.0
    %v658 = vsel %vm594, %v435, 0.0
    %v659 = vsel %vm595, %v434, 0.0
    %v660 = vsel %vm596, %v433, 0.0
    %v661 = vsel %vm597, %v432, 0.0
    %v662 = vsel %vm598, %v431, 0.0
    %v663 = vsel %vm599, %v430, 0.0
    %v664 = vsel %vm600, %v429, 0.0
    %v665 = vsel %vm601, %v428, 0.0
    %v666 = vsel %vm602, %v427, 0.0
    %v667 = vsel %vm603, %v426, 0.0
    %v668 = vsel %vm604, %v425, 0.0
    %v669 = vsel %vm605, %v424, 0.0
    %v670 = vsel %vm606, %v423, 0.0
    %v671 = vsel %vm607, %v422, 0.0
    %v672 = vsel %vm608, %v421, 0.0
    %v673 = vsel %vm609, %v420, 0.0
    %v674 = vsel %vm610, %v419, 0.0
    %v675 = vrot.slane %v29, 1
    %v676 = vrot.slane %v30, 1
    %v677 = vrot.slane %v31, 1
    %v678 = vrot.slane %v32, 1
    %v679 = vrot.slane %v33, 1
    %v680 = vrot.slane %v34, 1
    %v681 = vrot.slane %v35, 1
    %v682 = vrot.slane %v36, 1
    %v683 = vrot.slane %v37, 1
    %v684 = vrot.slane %v38, 1
    %v685 = vrot.slane %v39, 1
    %v686 = vrot.slane %v40, 1
    %v687 = vrot.slane %v41, 1
    %v688 = vrot.slane %v42, 1
    %v689 = vrot.slane %v43, 1
    %v690 = vrot.slane %v44, 1
    %v691 = vrot.slane %v45, 1
    %v692 = vrot.slane %v46, 1
    %v693 = vrot.slane %v47, 1
    %v694 = vrot.slane %v48, 1
    %v695 = vrot.slane %v49, 1
    %v696 = vrot.slane %v50, 1
    %v697 = vrot.slane %v51, 1
    %v698 = vrot.slane %v52, 1
    %v699 = vrot.slane %v53, 1
    %v700 = vrot.slane %v54, 1
    %v701 = vrot.slane %v55, 1
    %v702 = vrot.slane %v56, 1
    %v703 = vrot.slane %v57, 1
    %v704 = vrot.slane %v58, 1
    %v705 = vrot.slane %v59, 1
    %v706 = vrot.slane %v60, 1
    %v707 = vrot.slane %v61, 1
    %v708 = vrot.slane %v62, 1
    %v709 = vrot.slane %v63, 1
    %v710 = vrot.slane %v64, 1
    %v711 = vrot.slane %v65, 1
    %v712 = vrot.slane %v66, 1
    %v713 = vrot.slane %v67, 1
    %v714 = vrot.slane %v68, 1
    %v715 = vrot.slane %v69, 1
    %v716 = vrot.slane %v70, 1
    %v717 = vrot.slane %v71, 1
    %v718 = vrot.slane %v72, 1
    %v719 = vrot.slane %v73, 1
    %v720 = vrot.slane %v74, 1
    %v721 = vrot.slane %v75, 1
    %v722 = vrot.slane %v76, 1
    %v723 = vrot.slane %v77, 1
    %v724 = vrot.slane %v78, 1
    %v725 = vrot.slane %v79, 1
    %v726 = vrot.slane %v80, 1
    %v727 = vrot.slane %v81, 1
    %v728 = vrot.slane %v82, 1
    %v729 = vrot.slane %v83, 1
    %v730 = vrot.slane %v84, 1
    %v731 = vrot.slane %v85, 1
    %v732 = vrot.slane %v86, 1
    %v733 = vrot.slane %v87, 1
    %v734 = vrot.slane %v88, 1
    %v735 = vrot.slane %v89, 1
    %v736 = vrot.slane %v90, 1
    %v737 = vrot.slane %v91, 1
    %v738 = vrot.slane %v92, 1
    %vm739 = vcmp.lt.s32.totalorder %v94, 7
    %v740 = vsel %vm739, %v737, %v738
    %v741 = vsel %vm739, %v736, %v737
    %v742 = vsel %vm739, %v735, %v736
    %v743 = vsel %vm739, %v734, %v735
    %v744 = vsel %vm739, %v733, %v734
    %v745 = vsel %vm739, %v732, %v733
    %v746 = vsel %vm739, %v731, %v732
    %v747 = vsel %vm739, %v730, %v731
    %v748 = vsel %vm739, %v729, %v730
    %v749 = vsel %vm739, %v728, %v729
    %v750 = vsel %vm739, %v727, %v728
    %v751 = vsel %vm739, %v726, %v727
    %v752 = vsel %vm739, %v725, %v726
    %v753 = vsel %vm739, %v724, %v725
    %v754 = vsel %vm739, %v723, %v724
    %v755 = vsel %vm739, %v722, %v723
    %v756 = vsel %vm739, %v721, %v722
    %v757 = vsel %vm739, %v720, %v721
    %v758 = vsel %vm739, %v719, %v720
    %v759 = vsel %vm739, %v718, %v719
    %v760 = vsel %vm739, %v717, %v718
    %v761 = vsel %vm739, %v716, %v717
    %v762 = vsel %vm739, %v715, %v716
    %v763 = vsel %vm739, %v714, %v715
    %v764 = vsel %vm739, %v713, %v714
    %v765 = vsel %vm739, %v712, %v713
    %v766 = vsel %vm739, %v711, %v712
    %v767 = vsel %vm739, %v710, %v711
    %v768 = vsel %vm739, %v709, %v710
    %v769 = vsel %vm739, %v708, %v709
    %v770 = vsel %vm739, %v707, %v708
    %v771 = vsel %vm739, %v706, %v707
    %v772 = vsel %vm739, %v705, %v706
    %v773 = vsel %vm739, %v704, %v705
    %v774 = vsel %vm739, %v703, %v704
    %v775 = vsel %vm739, %v702, %v703
    %v776 = vsel %vm739, %v701, %v702
    %v777 = vsel %vm739, %v700, %v701
    %v778 = vsel %vm739, %v699, %v700
    %v779 = vsel %vm739, %v698, %v699
    %v780 = vsel %vm739, %v697, %v698
    %v781 = vsel %vm739, %v696, %v697
    %v782 = vsel %vm739, %v695, %v696
    %v783 = vsel %vm739, %v694, %v695
    %v784 = vsel %vm739, %v693, %v694
    %v785 = vsel %vm739, %v692, %v693
    %v786 = vsel %vm739, %v691, %v692
    %v787 = vsel %vm739, %v690, %v691
    %v788 = vsel %vm739, %v689, %v690
    %v789 = vsel %vm739, %v688, %v689
    %v790 = vsel %vm739, %v687, %v688
    %v791 = vsel %vm739, %v686, %v687
    %v792 = vsel %vm739, %v685, %v686
    %v793 = vsel %vm739, %v684, %v685
    %v794 = vsel %vm739, %v683, %v684
    %v795 = vsel %vm739, %v682, %v683
    %v796 = vsel %vm739, %v681, %v682
    %v797 = vsel %vm739, %v680, %v681
    %v798 = vsel %vm739, %v679, %v680
    %v799 = vsel %vm739, %v678, %v679
    %v800 = vsel %vm739, %v677, %v678
    %v801 = vsel %vm739, %v676, %v677
    %v802 = vsel %vm739, %v675, %v676
    %v803 = vsel %vm739, %v738, %v675
    %v804 = vsel %vm286, 1, 0
    %v805 = vsel %vm287, 1, 0
    %v806 = vsel %vm288, 1, 0
    %v807 = vsel %vm289, 1, 0
    %v808 = vsel %vm290, 1, 0
    %v809 = vsel %vm291, 1, 0
    %v810 = vsel %vm292, 1, 0
    %v811 = vsel %vm293, 1, 0
    %v812 = vsel %vm294, 1, 0
    %v813 = vsel %vm295, 1, 0
    %v814 = vsel %vm296, 1, 0
    %v815 = vsel %vm297, 1, 0
    %v816 = vsel %vm298, 1, 0
    %v817 = vsel %vm299, 1, 0
    %v818 = vsel %vm300, 1, 0
    %v819 = vsel %vm301, 1, 0
    %v820 = vsel %vm302, 1, 0
    %v821 = vsel %vm303, 1, 0
    %v822 = vsel %vm304, 1, 0
    %v823 = vsel %vm305, 1, 0
    %v824 = vsel %vm306, 1, 0
    %v825 = vsel %vm307, 1, 0
    %v826 = vsel %vm308, 1, 0
    %v827 = vsel %vm309, 1, 0
    %v828 = vsel %vm310, 1, 0
    %v829 = vsel %vm311, 1, 0
    %v830 = vsel %vm312, 1, 0
    %v831 = vsel %vm313, 1, 0
    %v832 = vsel %vm314, 1, 0
    %v833 = vsel %vm315, 1, 0
    %v834 = vsel %vm316, 1, 0
    %v835 = vsel %vm317, 1, 0
    %v836 = vsel %vm318, 1, 0
    %v837 = vsel %vm319, 1, 0
    %v838 = vsel %vm320, 1, 0
    %v839 = vsel %vm321, 1, 0
    %v840 = vsel %vm322, 1, 0
    %v841 = vsel %vm323, 1, 0
    %v842 = vsel %vm324, 1, 0
    %v843 = vsel %vm325, 1, 0
    %v844 = vsel %vm326, 1, 0
    %v845 = vsel %vm327, 1, 0
    %v846 = vsel %vm328, 1, 0
    %v847 = vsel %vm329, 1, 0
    %v848 = vsel %vm330, 1, 0
    %v849 = vsel %vm331, 1, 0
    %v850 = vsel %vm332, 1, 0
    %v851 = vsel %vm333, 1, 0
    %v852 = vsel %vm334, 1, 0
    %v853 = vsel %vm335, 1, 0
    %v854 = vsel %vm336, 1, 0
    %v855 = vsel %vm337, 1, 0
    %v856 = vsel %vm338, 1, 0
    %v857 = vsel %vm339, 1, 0
    %v858 = vsel %vm340, 1, 0
    %v859 = vsel %vm341, 1, 0
    %v860 = vsel %vm342, 1, 0
    %v861 = vsel %vm343, 1, 0
    %v862 = vsel %vm344, 1, 0
    %v863 = vsel %vm345, 1, 0
    %v864 = vsel %vm346, 1, 0
    %v865 = vsel %vm347, 1, 0
    %v866 = vsel %vm348, 1, 0
    %v867 = vsel %vm349, 1, 0
    %vm868 = vcmp.eq.s32.totalorder %v804, 1
    %vm869 = vcmp.eq.s32.totalorder %v805, 1
    %vm870 = vcmp.eq.s32.totalorder %v806, 1
    %vm871 = vcmp.eq.s32.totalorder %v807, 1
    %vm872 = vcmp.eq.s32.totalorder %v808, 1
    %vm873 = vcmp.eq.s32.totalorder %v809, 1
    %vm874 = vcmp.eq.s32.totalorder %v810, 1
    %vm875 = vcmp.eq.s32.totalorder %v811, 1
    %vm876 = vcmp.eq.s32.totalorder %v812, 1
    %vm877 = vcmp.eq.s32.totalorder %v813, 1
    %vm878 = vcmp.eq.s32.totalorder %v814, 1
    %vm879 = vcmp.eq.s32.totalorder %v815, 1
    %vm880 = vcmp.eq.s32.totalorder %v816, 1
    %vm881 = vcmp.eq.s32.totalorder %v817, 1
    %vm882 = vcmp.eq.s32.totalorder %v818, 1
    %vm883 = vcmp.eq.s32.totalorder %v819, 1
    %vm884 = vcmp.eq.s32.totalorder %v820, 1
    %vm885 = vcmp.eq.s32.totalorder %v821, 1
    %vm886 = vcmp.eq.s32.totalorder %v822, 1
    %vm887 = vcmp.eq.s32.totalorder %v823, 1
    %vm888 = vcmp.eq.s32.totalorder %v824, 1
    %vm889 = vcmp.eq.s32.totalorder %v825, 1
    %vm890 = vcmp.eq.s32.totalorder %v826, 1
    %vm891 = vcmp.eq.s32.totalorder %v827, 1
    %vm892 = vcmp.eq.s32.totalorder %v828, 1
    %vm893 = vcmp.eq.s32.totalorder %v829, 1
    %vm894 = vcmp.eq.s32.totalorder %v830, 1
    %vm895 = vcmp.eq.s32.totalorder %v831, 1
    %vm896 = vcmp.eq.s32.totalorder %v832, 1
    %vm897 = vcmp.eq.s32.totalorder %v833, 1
    %vm898 = vcmp.eq.s32.totalorder %v834, 1
    %vm899 = vcmp.eq.s32.totalorder %v835, 1
    %vm900 = vcmp.eq.s32.totalorder %v836, 1
    %vm901 = vcmp.eq.s32.totalorder %v837, 1
    %vm902 = vcmp.eq.s32.totalorder %v838, 1
    %vm903 = vcmp.eq.s32.totalorder %v839, 1
    %vm904 = vcmp.eq.s32.totalorder %v840, 1
    %vm905 = vcmp.eq.s32.totalorder %v841, 1
    %vm906 = vcmp.eq.s32.totalorder %v842, 1
    %vm907 = vcmp.eq.s32.totalorder %v843, 1
    %vm908 = vcmp.eq.s32.totalorder %v844, 1
    %vm909 = vcmp.eq.s32.totalorder %v845, 1
    %vm910 = vcmp.eq.s32.totalorder %v846, 1
    %vm911 = vcmp.eq.s32.totalorder %v847, 1
    %vm912 = vcmp.eq.s32.totalorder %v848, 1
    %vm913 = vcmp.eq.s32.totalorder %v849, 1
    %vm914 = vcmp.eq.s32.totalorder %v850, 1
    %vm915 = vcmp.eq.s32.totalorder %v851, 1
    %vm916 = vcmp.eq.s32.totalorder %v852, 1
    %vm917 = vcmp.eq.s32.totalorder %v853, 1
    %vm918 = vcmp.eq.s32.totalorder %v854, 1
    %vm919 = vcmp.eq.s32.totalorder %v855, 1
    %vm920 = vcmp.eq.s32.totalorder %v856, 1
    %vm921 = vcmp.eq.s32.totalorder %v857, 1
    %vm922 = vcmp.eq.s32.totalorder %v858, 1
    %vm923 = vcmp.eq.s32.totalorder %v859, 1
    %vm924 = vcmp.eq.s32.totalorder %v860, 1
    %vm925 = vcmp.eq.s32.totalorder %v861, 1
    %vm926 = vcmp.eq.s32.totalorder %v862, 1
    %vm927 = vcmp.eq.s32.totalorder %v863, 1
    %vm928 = vcmp.eq.s32.totalorder %v864, 1
    %vm929 = vcmp.eq.s32.totalorder %v865, 1
    %vm930 = vcmp.eq.s32.totalorder %v866, 1
    %vm931 = vcmp.eq.s32.totalorder %v867, 1
    %v932 = vsel %vm868, %v802, 0.0
    %v933 = vsel %vm869, %v801, 0.0
    %v934 = vsel %vm870, %v800, 0.0
    %v935 = vsel %vm871, %v799, 0.0
    %v936 = vsel %vm872, %v798, 0.0
    %v937 = vsel %vm873, %v797, 0.0
    %v938 = vsel %vm874, %v796, 0.0
    %v939 = vsel %vm875, %v795, 0.0
    %v940 = vsel %vm876, %v794, 0.0
    %v941 = vsel %vm877, %v793, 0.0
    %v942 = vsel %vm878, %v792, 0.0
    %v943 = vsel %vm879, %v791, 0.0
    %v944 = vsel %vm880, %v790, 0.0
    %v945 = vsel %vm881, %v789, 0.0
    %v946 = vsel %vm882, %v788, 0.0
    %v947 = vsel %vm883, %v787, 0.0
    %v948 = vsel %vm884, %v786, 0.0
    %v949 = vsel %vm885, %v785, 0.0
    %v950 = vsel %vm886, %v784, 0.0
    %v951 = vsel %vm887, %v783, 0.0
    %v952 = vsel %vm888, %v782, 0.0
    %v953 = vsel %vm889, %v781, 0.0
    %v954 = vsel %vm890, %v780, 0.0
    %v955 = vsel %vm891, %v779, 0.0
    %v956 = vsel %vm892, %v778, 0.0
    %v957 = vsel %vm893, %v777, 0.0
    %v958 = vsel %vm894, %v776, 0.0
    %v959 = vsel %vm895, %v775, 0.0
    %v960 = vsel %vm896, %v774, 0.0
    %v961 = vsel %vm897, %v773, 0.0
    %v962 = vsel %vm898, %v772, 0.0
    %v963 = vsel %vm899, %v771, 0.0
    %v964 = vsel %vm900, %v770, 0.0
    %v965 = vsel %vm901, %v769, 0.0
    %v966 = vsel %vm902, %v768, 0.0
    %v967 = vsel %vm903, %v767, 0.0
    %v968 = vsel %vm904, %v766, 0.0
    %v969 = vsel %vm905, %v765, 0.0
    %v970 = vsel %vm906, %v764, 0.0
    %v971 = vsel %vm907, %v763, 0.0
    %v972 = vsel %vm908, %v762, 0.0
    %v973 = vsel %vm909, %v761, 0.0
    %v974 = vsel %vm910, %v760, 0.0
    %v975 = vsel %vm911, %v759, 0.0
    %v976 = vsel %vm912, %v758, 0.0
    %v977 = vsel %vm913, %v757, 0.0
    %v978 = vsel %vm914, %v756, 0.0
    %v979 = vsel %vm915, %v755, 0.0
    %v980 = vsel %vm916, %v754, 0.0
    %v981 = vsel %vm917, %v753, 0.0
    %v982 = vsel %vm918, %v752, 0.0
    %v983 = vsel %vm919, %v751, 0.0
    %v984 = vsel %vm920, %v750, 0.0
    %v985 = vsel %vm921, %v749, 0.0
    %v986 = vsel %vm922, %v748, 0.0
    %v987 = vsel %vm923, %v747, 0.0
    %v988 = vsel %vm924, %v746, 0.0
    %v989 = vsel %vm925, %v745, 0.0
    %v990 = vsel %vm926, %v744, 0.0
    %v991 = vsel %vm927, %v743, 0.0
    %v992 = vsel %vm928, %v742, 0.0
    %v993 = vsel %vm929, %v741, 0.0
    %v994 = vsel %vm930, %v740, 0.0
    %v995 = vsel %vm931, %v803, 0.0
    %vm996 = vcmask 64512
    %v998 = vsel %vm996, %v611, 0
    %v1001 = vsel %vm996, %v612, 0
    %v1004 = vsel %vm996, %v613, 0
    %v1007 = vsel %vm996, %v614, 0
    %v1010 = vsel %vm996, %v615, 0
    %v1013 = vsel %vm996, %v616, 0
    %v1016 = vsel %vm996, %v617, 0
    %v1019 = vsel %vm996, %v618, 0
    %v1022 = vsel %vm996, %v619, 0
    %v1025 = vsel %vm996, %v620, 0
    %v1028 = vsel %vm996, %v621, 0
    %v1031 = vsel %vm996, %v622, 0
    %v1034 = vsel %vm996, %v623, 0
    %v1037 = vsel %vm996, %v624, 0
    %v1040 = vsel %vm996, %v625, 0
    %v1043 = vsel %vm996, %v626, 0
    %v1046 = vsel %vm996, %v627, 0
    %v1049 = vsel %vm996, %v628, 0
    %v1052 = vsel %vm996, %v629, 0
    %v1055 = vsel %vm996, %v630, 0
    %v1058 = vsel %vm996, %v631, 0
    %v1061 = vsel %vm996, %v632, 0
    %v1064 = vsel %vm996, %v633, 0
    %v1067 = vsel %vm996, %v634, 0
    %v1070 = vsel %vm996, %v635, 0
    %v1073 = vsel %vm996, %v636, 0
    %v1076 = vsel %vm996, %v637, 0
    %v1079 = vsel %vm996, %v638, 0
    %v1082 = vsel %vm996, %v639, 0
    %v1085 = vsel %vm996, %v640, 0
    %v1088 = vsel %vm996, %v641, 0
    %v1091 = vsel %vm996, %v642, 0
    %v1094 = vsel %vm996, %v643, 0
    %v1097 = vsel %vm996, %v644, 0
    %v1100 = vsel %vm996, %v645, 0
    %v1103 = vsel %vm996, %v646, 0
    %v1106 = vsel %vm996, %v647, 0
    %v1109 = vsel %vm996, %v648, 0
    %v1112 = vsel %vm996, %v649, 0
    %v1115 = vsel %vm996, %v650, 0
    %v1118 = vsel %vm996, %v651, 0
    %v1121 = vsel %vm996, %v652, 0
    %v1124 = vsel %vm996, %v653, 0
    %v1127 = vsel %vm996, %v654, 0
    %v1130 = vsel %vm996, %v655, 0
    %v1133 = vsel %vm996, %v656, 0
    %v1136 = vsel %vm996, %v657, 0
    %v1139 = vsel %vm996, %v658, 0
    %v1142 = vsel %vm996, %v659, 0
    %v1145 = vsel %vm996, %v660, 0
    %v1148 = vsel %vm996, %v661, 0
    %v1151 = vsel %vm996, %v662, 0
    %v1154 = vsel %vm996, %v663, 0
    %v1157 = vsel %vm996, %v664, 0
    %v1160 = vsel %vm996, %v665, 0
    %v1163 = vsel %vm996, %v666, 0
    %v1166 = vsel %vm996, %v667, 0
    %v1169 = vsel %vm996, %v668, 0
    %v1172 = vsel %vm996, %v669, 0
    %v1175 = vsel %vm996, %v670, 0
    %v1178 = vsel %vm996, %v671, 0
    %v1181 = vsel %vm996, %v672, 0
    %v1184 = vsel %vm996, %v673, 0
    %v1187 = vsel %vm996, %v674, 0
    %1189 = vmatprep.subr.mxu0 0.0
    %1190 = vmatpush1.msra.mxu0 %v350
    %1191 = vmatprep.subr.mxu0 0.0
    %1192 = vmatpush1.msra.mxu0 0.0
    %1193 = vmatprep.subr.mxu0 0.0
    %1194 = vmatpush1.msra.mxu0 0.0
    %1195 = vmatprep.subr.mxu0 0.0
    %1196 = vmatpush1.msra.mxu0 0.0
    %1197 = vmatprep.subr.mxu0 0.0
    %1198 = vmatpush1.msra.mxu0 0.0
    %1199 = vmatprep.subr.mxu0 0.0
    %1200 = vmatpush1.msra.mxu0 0.0
    %1201 = vmatprep.subr.mxu0 0.0
    %1202 = vmatpush1.msra.mxu0 0.0
    %1203 = vmatprep.subr.mxu0 0.0
    %1204 = vmatpush1.msra.mxu0 0.0
    %1205 = vmatprep.subr.mxu0 0.0
    %1206 = vmatpush1.msra.mxu0 0.0
    %1207 = vmatprep.subr.mxu0 0.0
    %1208 = vmatpush1.msra.mxu0 0.0
    %1209 = vmatprep.subr.mxu0 0.0
    %1210 = vmatpush1.msra.mxu0 0.0
    %1211 = vmatprep.subr.mxu0 0.0
    %1212 = vmatpush1.msra.mxu0 0.0
    %1213 = vmatprep.subr.mxu0 0.0
    %1214 = vmatpush1.msra.mxu0 0.0
    %1215 = vmatprep.subr.mxu0 0.0
    %1216 = vmatpush1.msra.mxu0 0.0
    %1217 = vmatprep.subr.mxu0 0.0
    %1218 = vmatpush1.msra.mxu0 0.0
    %1219 = vmatprep.subr.mxu0 0.0
    %1220 = vmatpush1.msra.mxu0 0.0
    %1221 = vmatprep.subr.mxu0 0.0
    %1222 = vmatpush1.msra.mxu0 0.0
    %1223 = vmatprep.subr.mxu0 0.0
    %1224 = vmatpush1.msra.mxu0 0.0
    %1225 = vmatprep.subr.mxu0 0.0
    %1226 = vmatpush1.msra.mxu0 0.0
    %1227 = vmatprep.subr.mxu0 0.0
    %1228 = vmatpush1.msra.mxu0 0.0
    %1229 = vmatprep.subr.mxu0 0.0
    %1230 = vmatpush1.msra.mxu0 0.0
    %1231 = vmatprep.subr.mxu0 0.0
    %1232 = vmatpush1.msra.mxu0 0.0
    %1233 = vmatprep.subr.mxu0 0.0
    %1234 = vmatpush1.msra.mxu0 0.0
    %1235 = vmatprep.subr.mxu0 0.0
    %1236 = vmatpush1.msra.mxu0 0.0
    %1237 = vmatprep.subr.mxu0 0.0
    %1238 = vmatpush1.msra.mxu0 0.0
    %1239 = vmatprep.subr.mxu0 0.0
    %1240 = vmatpush1.msra.mxu0 0.0
    %1241 = vmatprep.subr.mxu0 0.0
    %1242 = vmatpush1.msra.mxu0 0.0
    %1243 = vmatprep.subr.mxu0 0.0
    %1244 = vmatpush1.msra.mxu0 0.0
    %1245 = vmatprep.subr.mxu0 0.0
    %1246 = vmatpush1.msra.mxu0 0.0
    %1247 = vmatprep.subr.mxu0 0.0
    %1248 = vmatpush1.msra.mxu0 0.0
    %1249 = vmatprep.subr.mxu0 0.0
    %1250 = vmatpush1.msra.mxu0 0.0
    %1251 = vmatprep.subr.mxu0 0.0
    %1252 = vmatpush1.msra.mxu0 0.0
    %1253 = vmatprep.mubr.f32.mxu0 0.0
    %1254 = vmatmul.mubr.f32.gmra.mrb[0].mxu0 %v998
    %v1255 = vpop.f32.mrb[0].mxu0
    %v1256 = vadd.f32 0.0, %v1255
    %v1257 = vpop.f32.mrb[0].mxu0
    %1258 = vmatprep.mubr.f32.mxu0 0.0
    %1259 = vmatmul.mubr.f32.gmra.mrb[0].mxu0 %v1001
    %v1260 = vpop.f32.mrb[0].mxu0
    %v1261 = vadd.f32 0.0, %v1260
    %v1262 = vpop.f32.mrb[0].mxu0
    %1263 = vmatprep.mubr.f32.mxu0 0.0
    %1264 = vmatmul.mubr.f32.gmra.mrb[0].mxu0 %v1004
    %v1265 = vpop.f32.mrb[0].mxu0
    %v1266 = vadd.f32 0.0, %v1265
    %v1267 = vpop.f32.mrb[0].mxu0
    %1268 = vmatprep.mubr.f32.mxu0 0.0
    %1269 = vmatmul.mubr.f32.gmra.mrb[0].mxu0 %v1007
    %v1270 = vpop.f32.mrb[0].mxu0
    %v1271 = vadd.f32 0.0, %v1270
    %v1272 = vpop.f32.mrb[0].mxu0
    %1273 = vmatprep.mubr.f32.mxu0 0.0
    %1274 = vmatmul.mubr.f32.gmra.mrb[0].mxu0 %v1010
    %v1275 = vpop.f32.mrb[0].mxu0
    %v1276 = vadd.f32 0.0, %v1275
    %v1277 = vpop.f32.mrb[0].mxu0
    %1278 = vmatprep.mubr.f32.mxu0 0.0
    %1279 = vmatmul.mubr.f32.gmra.mrb[0].mxu0 %v1013
    %v1280 = vpop.f32.mrb[0].mxu0
    %v1281 = vadd.f32 0.0, %v1280
    %v1282 = vpop.f32.mrb[0].mxu0
    %1283 = vmatprep.mubr.f32.mxu0 0.0
    %1284 = vmatmul.mubr.f32.gmra.mrb[0].mxu0 %v1016
    %v1285 = vpop.f32.mrb[0].mxu0
    %v1286 = vadd.f32 0.0, %v1285
    %v1287 = vpop.f32.mrb[0].mxu0
    %1288 = vmatprep.mubr.f32.mxu0 0.0
    %1289 = vmatmul.mubr.f32.gmra.mrb[0].mxu0 %v1019
    %v1290 = vpop.f32.mrb[0].mxu0
    %v1291 = vadd.f32 0.0, %v1290
    %v1292 = vpop.f32.mrb[0].mxu0
    %1293 = vmatprep.mubr.f32.mxu0 0.0
    %1294 = vmatmul.mubr.f32.gmra.mrb[0].mxu0 %v1022
    %v1295 = vpop.f32.mrb[0].mxu0
    %v1296 = vadd.f32 0.0, %v1295
    %v1297 = vpop.f32.mrb[0].mxu0
    %1298 = vmatprep.mubr.f32.mxu0 0.0
    %1299 = vmatmul.mubr.f32.gmra.mrb[0].mxu0 %v1025
    %v1300 = vpop.f32.mrb[0].mxu0
    %v1301 = vadd.f32 0.0, %v1300
    %v1302 = vpop.f32.mrb[0].mxu0
    %1303 = vmatprep.mubr.f32.mxu0 0.0
    %1304 = vmatmul.mubr.f32.gmra.mrb[0].mxu0 %v1028
    %v1305 = vpop.f32.mrb[0].mxu0
    %v1306 = vadd.f32 0.0, %v1305
    %v1307 = vpop.f32.mrb[0].mxu0
    %1308 = vmatprep.mubr.f32.mxu0 0.0
    %1309 = vmatmul.mubr.f32.gmra.mrb[0].mxu0 %v1031
    %v1310 = vpop.f32.mrb[0].mxu0
    %v1311 = vadd.f32 0.0, %v1310
    %v1312 = vpop.f32.mrb[0].mxu0
    %1313 = vmatprep.mubr.f32.mxu0 0.0
    %1314 = vmatmul.mubr.f32.gmra.mrb[0].mxu0 %v1034
    %v1315 = vpop.f32.mrb[0].mxu0
    %v1316 = vadd.f32 0.0, %v1315
    %v1317 = vpop.f32.mrb[0].mxu0
    %1318 = vmatprep.mubr.f32.mxu0 0.0
    %1319 = vmatmul.mubr.f32.gmra.mrb[0].mxu0 %v1037
    %v1320 = vpop.f32.mrb[0].mxu0
    %v1321 = vadd.f32 0.0, %v1320
    %v1322 = vpop.f32.mrb[0].mxu0
    %1323 = vmatprep.mubr.f32.mxu0 0.0
    %1324 = vmatmul.mubr.f32.gmra.mrb[0].mxu0 %v1040
    %v1325 = vpop.f32.mrb[0].mxu0
    %v1326 = vadd.f32 0.0, %v1325
    %v1327 = vpop.f32.mrb[0].mxu0
    %1328 = vmatprep.mubr.f32.mxu0 0.0
    %1329 = vmatmul.mubr.f32.gmra.mrb[0].mxu0 %v1043
    %v1330 = vpop.f32.mrb[0].mxu0
    %v1331 = vadd.f32 0.0, %v1330
    %v1332 = vpop.f32.mrb[0].mxu0
    %1333 = vmatprep.mubr.f32.mxu0 0.0
    %1334 = vmatmul.mubr.f32.gmra.mrb[0].mxu0 %v1046
    %v1335 = vpop.f32.mrb[0].mxu0
    %v1336 = vadd.f32 0.0, %v1335
    %v1337 = vpop.f32.mrb[0].mxu0
    %1338 = vmatprep.mubr.f32.mxu0 0.0
    %1339 = vmatmul.mubr.f32.gmra.mrb[0].mxu0 %v1049
    %v1340 = vpop.f32.mrb[0].mxu0
    %v1341 = vadd.f32 0.0, %v1340
    %v1342 = vpop.f32.mrb[0].mxu0
    %1343 = vmatprep.mubr.f32.mxu0 0.0
    %1344 = vmatmul.mubr.f32.gmra.mrb[0].mxu0 %v1052
    %v1345 = vpop.f32.mrb[0].mxu0
    %v1346 = vadd.f32 0.0, %v1345
    %v1347 = vpop.f32.mrb[0].mxu0
    %1348 = vmatprep.mubr.f32.mxu0 0.0
    %1349 = vmatmul.mubr.f32.gmra.mrb[0].mxu0 %v1055
    %v1350 = vpop.f32.mrb[0].mxu0
    %v1351 = vadd.f32 0.0, %v1350
    %v1352 = vpop.f32.mrb[0].mxu0
    %1353 = vmatprep.mubr.f32.mxu0 0.0
    %1354 = vmatmul.mubr.f32.gmra.mrb[0].mxu0 %v1058
    %v1355 = vpop.f32.mrb[0].mxu0
    %v1356 = vadd.f32 0.0, %v1355
    %v1357 = vpop.f32.mrb[0].mxu0
    %1358 = vmatprep.mubr.f32.mxu0 0.0
    %1359 = vmatmul.mubr.f32.gmra.mrb[0].mxu0 %v1061
    %v1360 = vpop.f32.mrb[0].mxu0
    %v1361 = vadd.f32 0.0, %v1360
    %v1362 = vpop.f32.mrb[0].mxu0
    %1363 = vmatprep.mubr.f32.mxu0 0.0
    %1364 = vmatmul.mubr.f32.gmra.mrb[0].mxu0 %v1064
    %v1365 = vpop.f32.mrb[0].mxu0
    %v1366 = vadd.f32 0.0, %v1365
    %v1367 = vpop.f32.mrb[0].mxu0
    %1368 = vmatprep.mubr.f32.mxu0 0.0
    %1369 = vmatmul.mubr.f32.gmra.mrb[0].mxu0 %v1067
    %v1370 = vpop.f32.mrb[0].mxu0
    %v1371 = vadd.f32 0.0, %v1370
    %v1372 = vpop.f32.mrb[0].mxu0
    %1373 = vmatprep.mubr.f32.mxu0 0.0
    %1374 = vmatmul.mubr.f32.gmra.mrb[0].mxu0 %v1070
    %v1375 = vpop.f32.mrb[0].mxu0
    %v1376 = vadd.f32 0.0, %v1375
    %v1377 = vpop.f32.mrb[0].mxu0
    %1378 = vmatprep.mubr.f32.mxu0 0.0
    %1379 = vmatmul.mubr.f32.gmra.mrb[0].mxu0 %v1073
    %v1380 = vpop.f32.mrb[0].mxu0
    %v1381 = vadd.f32 0.0, %v1380
    %v1382 = vpop.f32.mrb[0].mxu0
    %1383 = vmatprep.mubr.f32.mxu0 0.0
    %1384 = vmatmul.mubr.f32.gmra.mrb[0].mxu0 %v1076
    %v1385 = vpop.f32.mrb[0].mxu0
    %v1386 = vadd.f32 0.0, %v1385
    %v1387 = vpop.f32.mrb[0].mxu0
    %1388 = vmatprep.mubr.f32.mxu0 0.0
    %1389 = vmatmul.mubr.f32.gmra.mrb[0].mxu0 %v1079
    %v1390 = vpop.f32.mrb[0].mxu0
    %v1391 = vadd.f32 0.0, %v1390
    %v1392 = vpop.f32.mrb[0].mxu0
    %1393 = vmatprep.mubr.f32.mxu0 0.0
    %1394 = vmatmul.mubr.f32.gmra.mrb[0].mxu0 %v1082
    %v1395 = vpop.f32.mrb[0].mxu0
    %v1396 = vadd.f32 0.0, %v1395
    %v1397 = vpop.f32.mrb[0].mxu0
    %1398 = vmatprep.mubr.f32.mxu0 0.0
    %1399 = vmatmul.mubr.f32.gmra.mrb[0].mxu0 %v1085
    %v1400 = vpop.f32.mrb[0].mxu0
    %v1401 = vadd.f32 0.0, %v1400
    %v1402 = vpop.f32.mrb[0].mxu0
    %1403 = vmatprep.mubr.f32.mxu0 0.0
    %1404 = vmatmul.mubr.f32.gmra.mrb[0].mxu0 %v1088
    %v1405 = vpop.f32.mrb[0].mxu0
    %v1406 = vadd.f32 0.0, %v1405
    %v1407 = vpop.f32.mrb[0].mxu0
    %1408 = vmatprep.mubr.f32.mxu0 0.0
    %1409 = vmatmul.mubr.f32.gmra.mrb[0].mxu0 %v1091
    %v1410 = vpop.f32.mrb[0].mxu0
    %v1411 = vadd.f32 0.0, %v1410
    %v1412 = vpop.f32.mrb[0].mxu0
    %1413 = vmatprep.mubr.f32.mxu0 0.0
    %1414 = vmatmul.mubr.f32.gmra.mrb[0].mxu0 %v1094
    %v1415 = vpop.f32.mrb[0].mxu0
    %v1416 = vadd.f32 0.0, %v1415
    %v1417 = vpop.f32.mrb[0].mxu0
    %1418 = vmatprep.mubr.f32.mxu0 0.0
    %1419 = vmatmul.mubr.f32.gmra.mrb[0].mxu0 %v1097
    %v1420 = vpop.f32.mrb[0].mxu0
    %v1421 = vadd.f32 0.0, %v1420
    %v1422 = vpop.f32.mrb[0].mxu0
    %1423 = vmatprep.mubr.f32.mxu0 0.0
    %1424 = vmatmul.mubr.f32.gmra.mrb[0].mxu0 %v1100
    %v1425 = vpop.f32.mrb[0].mxu0
    %v1426 = vadd.f32 0.0, %v1425
    %v1427 = vpop.f32.mrb[0].mxu0
    %1428 = vmatprep.mubr.f32.mxu0 0.0
    %1429 = vmatmul.mubr.f32.gmra.mrb[0].mxu0 %v1103
    %v1430 = vpop.f32.mrb[0].mxu0
    %v1431 = vadd.f32 0.0, %v1430
    %v1432 = vpop.f32.mrb[0].mxu0
    %1433 = vmatprep.mubr.f32.mxu0 0.0
    %1434 = vmatmul.mubr.f32.gmra.mrb[0].mxu0 %v1106
    %v1435 = vpop.f32.mrb[0].mxu0
    %v1436 = vadd.f32 0.0, %v1435
    %v1437 = vpop.f32.mrb[0].mxu0
    %1438 = vmatprep.mubr.f32.mxu0 0.0
    %1439 = vmatmul.mubr.f32.gmra.mrb[0].mxu0 %v1109
    %v1440 = vpop.f32.mrb[0].mxu0
    %v1441 = vadd.f32 0.0, %v1440
    %v1442 = vpop.f32.mrb[0].mxu0
    %1443 = vmatprep.mubr.f32.mxu0 0.0
    %1444 = vmatmul.mubr.f32.gmra.mrb[0].mxu0 %v1112
    %v1445 = vpop.f32.mrb[0].mxu0
    %v1446 = vadd.f32 0.0, %v1445
    %v1447 = vpop.f32.mrb[0].mxu0
    %1448 = vmatprep.mubr.f32.mxu0 0.0
    %1449 = vmatmul.mubr.f32.gmra.mrb[0].mxu0 %v1115
    %v1450 = vpop.f32.mrb[0].mxu0
    %v1451 = vadd.f32 0.0, %v1450
    %v1452 = vpop.f32.mrb[0].mxu0
    %1453 = vmatprep.mubr.f32.mxu0 0.0
    %1454 = vmatmul.mubr.f32.gmra.mrb[0].mxu0 %v1118
    %v1455 = vpop.f32.mrb[0].mxu0
    %v1456 = vadd.f32 0.0, %v1455
    %v1457 = vpop.f32.mrb[0].mxu0
    %1458 = vmatprep.mubr.f32.mxu0 0.0
    %1459 = vmatmul.mubr.f32.gmra.mrb[0].mxu0 %v1121
    %v1460 = vpop.f32.mrb[0].mxu0
    %v1461 = vadd.f32 0.0, %v1460
    %v1462 = vpop.f32.mrb[0].mxu0
    %1463 = vmatprep.mubr.f32.mxu0 0.0
    %1464 = vmatmul.mubr.f32.gmra.mrb[0].mxu0 %v1124
    %v1465 = vpop.f32.mrb[0].mxu0
    %v1466 = vadd.f32 0.0, %v1465
    %v1467 = vpop.f32.mrb[0].mxu0
    %1468 = vmatprep.mubr.f32.mxu0 0.0
    %1469 = vmatmul.mubr.f32.gmra.mrb[0].mxu0 %v1127
    %v1470 = vpop.f32.mrb[0].mxu0
    %v1471 = vadd.f32 0.0, %v1470
    %v1472 = vpop.f32.mrb[0].mxu0
    %1473 = vmatprep.mubr.f32.mxu0 0.0
    %1474 = vmatmul.mubr.f32.gmra.mrb[0].mxu0 %v1130
    %v1475 = vpop.f32.mrb[0].mxu0
    %v1476 = vadd.f32 0.0, %v1475
    %v1477 = vpop.f32.mrb[0].mxu0
    %1478 = vmatprep.mubr.f32.mxu0 0.0
    %1479 = vmatmul.mubr.f32.gmra.mrb[0].mxu0 %v1133
    %v1480 = vpop.f32.mrb[0].mxu0
    %v1481 = vadd.f32 0.0, %v1480
    %v1482 = vpop.f32.mrb[0].mxu0
    %1483 = vmatprep.mubr.f32.mxu0 0.0
    %1484 = vmatmul.mubr.f32.gmra.mrb[0].mxu0 %v1136
    %v1485 = vpop.f32.mrb[0].mxu0
    %v1486 = vadd.f32 0.0, %v1485
    %v1487 = vpop.f32.mrb[0].mxu0
    %1488 = vmatprep.mubr.f32.mxu0 0.0
    %1489 = vmatmul.mubr.f32.gmra.mrb[0].mxu0 %v1139
    %v1490 = vpop.f32.mrb[0].mxu0
    %v1491 = vadd.f32 0.0, %v1490
    %v1492 = vpop.f32.mrb[0].mxu0
    %1493 = vmatprep.mubr.f32.mxu0 0.0
    %1494 = vmatmul.mubr.f32.gmra.mrb[0].mxu0 %v1142
    %v1495 = vpop.f32.mrb[0].mxu0
    %v1496 = vadd.f32 0.0, %v1495
    %v1497 = vpop.f32.mrb[0].mxu0
    %1498 = vmatprep.mubr.f32.mxu0 0.0
    %1499 = vmatmul.mubr.f32.gmra.mrb[0].mxu0 %v1145
    %v1500 = vpop.f32.mrb[0].mxu0
    %v1501 = vadd.f32 0.0, %v1500
    %v1502 = vpop.f32.mrb[0].mxu0
    %1503 = vmatprep.mubr.f32.mxu0 0.0
    %1504 = vmatmul.mubr.f32.gmra.mrb[0].mxu0 %v1148
    %v1505 = vpop.f32.mrb[0].mxu0
    %v1506 = vadd.f32 0.0, %v1505
    %v1507 = vpop.f32.mrb[0].mxu0
    %1508 = vmatprep.mubr.f32.mxu0 0.0
    %1509 = vmatmul.mubr.f32.gmra.mrb[0].mxu0 %v1151
    %v1510 = vpop.f32.mrb[0].mxu0
    %v1511 = vadd.f32 0.0, %v1510
    %v1512 = vpop.f32.mrb[0].mxu0
    %1513 = vmatprep.mubr.f32.mxu0 0.0
    %1514 = vmatmul.mubr.f32.gmra.mrb[0].mxu0 %v1154
    %v1515 = vpop.f32.mrb[0].mxu0
    %v1516 = vadd.f32 0.0, %v1515
    %v1517 = vpop.f32.mrb[0].mxu0
    %1518 = vmatprep.mubr.f32.mxu0 0.0
    %1519 = vmatmul.mubr.f32.gmra.mrb[0].mxu0 %v1157
    %v1520 = vpop.f32.mrb[0].mxu0
    %v1521 = vadd.f32 0.0, %v1520
    %v1522 = vpop.f32.mrb[0].mxu0
    %1523 = vmatprep.mubr.f32.mxu0 0.0
    %1524 = vmatmul.mubr.f32.gmra.mrb[0].mxu0 %v1160
    %v1525 = vpop.f32.mrb[0].mxu0
    %v1526 = vadd.f32 0.0, %v1525
    %v1527 = vpop.f32.mrb[0].mxu0
    %1528 = vmatprep.mubr.f32.mxu0 0.0
    %1529 = vmatmul.mubr.f32.gmra.mrb[0].mxu0 %v1163
    %v1530 = vpop.f32.mrb[0].mxu0
    %v1531 = vadd.f32 0.0, %v1530
    %v1532 = vpop.f32.mrb[0].mxu0
    %1533 = vmatprep.mubr.f32.mxu0 0.0
    %1534 = vmatmul.mubr.f32.gmra.mrb[0].mxu0 %v1166
    %v1535 = vpop.f32.mrb[0].mxu0
    %v1536 = vadd.f32 0.0, %v1535
    %v1537 = vpop.f32.mrb[0].mxu0
    %1538 = vmatprep.mubr.f32.mxu0 0.0
    %1539 = vmatmul.mubr.f32.gmra.mrb[0].mxu0 %v1169
    %v1540 = vpop.f32.mrb[0].mxu0
    %v1541 = vadd.f32 0.0, %v1540
    %v1542 = vpop.f32.mrb[0].mxu0
    %1543 = vmatprep.mubr.f32.mxu0 0.0
    %1544 = vmatmul.mubr.f32.gmra.mrb[0].mxu0 %v1172
    %v1545 = vpop.f32.mrb[0].mxu0
    %v1546 = vadd.f32 0.0, %v1545
    %v1547 = vpop.f32.mrb[0].mxu0
    %1548 = vmatprep.mubr.f32.mxu0 0.0
    %1549 = vmatmul.mubr.f32.gmra.mrb[0].mxu0 %v1175
    %v1550 = vpop.f32.mrb[0].mxu0
    %v1551 = vadd.f32 0.0, %v1550
    %v1552 = vpop.f32.mrb[0].mxu0
    %1553 = vmatprep.mubr.f32.mxu0 0.0
    %1554 = vmatmul.mubr.f32.gmra.mrb[0].mxu0 %v1178
    %v1555 = vpop.f32.mrb[0].mxu0
    %v1556 = vadd.f32 0.0, %v1555
    %v1557 = vpop.f32.mrb[0].mxu0
    %1558 = vmatprep.mubr.f32.mxu0 0.0
    %1559 = vmatmul.mubr.f32.gmra.mrb[0].mxu0 %v1181
    %v1560 = vpop.f32.mrb[0].mxu0
    %v1561 = vadd.f32 0.0, %v1560
    %v1562 = vpop.f32.mrb[0].mxu0
    %1563 = vmatprep.mubr.f32.mxu0 0.0
    %1564 = vmatmul.mubr.f32.gmra.mrb[0].mxu0 %v1184
    %v1565 = vpop.f32.mrb[0].mxu0
    %v1566 = vadd.f32 0.0, %v1565
    %v1567 = vpop.f32.mrb[0].mxu0
    %1568 = vmatprep.mubr.f32.mxu0 0.0
    %1569 = vmatmul.mubr.f32.gmra.mrb[0].mxu0 %v1187
    %v1570 = vpop.f32.mrb[0].mxu0
    %v1571 = vadd.f32 0.0, %v1570
    %v1572 = vpop.f32.mrb[0].mxu0
    %1573 = vdwg.mxu0
    %v1575 = vsel %vm996, %v29, 0
    %v1578 = vsel %vm996, %v30, 0
    %v1581 = vsel %vm996, %v31, 0
    %v1584 = vsel %vm996, %v32, 0
    %v1587 = vsel %vm996, %v33, 0
    %v1590 = vsel %vm996, %v34, 0
    %v1593 = vsel %vm996, %v35, 0
    %v1596 = vsel %vm996, %v36, 0
    %v1599 = vsel %vm996, %v37, 0
    %v1602 = vsel %vm996, %v38, 0
    %v1605 = vsel %vm996, %v39, 0
    %v1608 = vsel %vm996, %v40, 0
    %v1611 = vsel %vm996, %v41, 0
    %v1614 = vsel %vm996, %v42, 0
    %v1617 = vsel %vm996, %v43, 0
    %v1620 = vsel %vm996, %v44, 0
    %v1623 = vsel %vm996, %v45, 0
    %v1626 = vsel %vm996, %v46, 0
    %v1629 = vsel %vm996, %v47, 0
    %v1632 = vsel %vm996, %v48, 0
    %v1635 = vsel %vm996, %v49, 0
    %v1638 = vsel %vm996, %v50, 0
    %v1641 = vsel %vm996, %v51, 0
    %v1644 = vsel %vm996, %v52, 0
    %v1647 = vsel %vm996, %v53, 0
    %v1650 = vsel %vm996, %v54, 0
    %v1653 = vsel %vm996, %v55, 0
    %v1656 = vsel %vm996, %v56, 0
    %v1659 = vsel %vm996, %v57, 0
    %v1662 = vsel %vm996, %v58, 0
    %v1665 = vsel %vm996, %v59, 0
    %v1668 = vsel %vm996, %v60, 0
    %v1671 = vsel %vm996, %v61, 0
    %v1674 = vsel %vm996, %v62, 0
    %v1677 = vsel %vm996, %v63, 0
    %v1680 = vsel %vm996, %v64, 0
    %v1683 = vsel %vm996, %v65, 0
    %v1686 = vsel %vm996, %v66, 0
    %v1689 = vsel %vm996, %v67, 0
    %v1692 = vsel %vm996, %v68, 0
    %v1695 = vsel %vm996, %v69, 0
    %v1698 = vsel %vm996, %v70, 0
    %v1701 = vsel %vm996, %v71, 0
    %v1704 = vsel %vm996, %v72, 0
    %v1707 = vsel %vm996, %v73, 0
    %v1710 = vsel %vm996, %v74, 0
    %v1713 = vsel %vm996, %v75, 0
    %v1716 = vsel %vm996, %v76, 0
    %v1719 = vsel %vm996, %v77, 0
    %v1722 = vsel %vm996, %v78, 0
    %v1725 = vsel %vm996, %v79, 0
    %v1728 = vsel %vm996, %v80, 0
    %v1731 = vsel %vm996, %v81, 0
    %v1734 = vsel %vm996, %v82, 0
    %v1737 = vsel %vm996, %v83, 0
    %v1740 = vsel %vm996, %v84, 0
    %v1743 = vsel %vm996, %v85, 0
    %v1746 = vsel %vm996, %v86, 0
    %v1749 = vsel %vm996, %v87, 0
    %v1752 = vsel %vm996, %v88, 0
    %v1755 = vsel %vm996, %v89, 0
    %v1758 = vsel %vm996, %v90, 0
    %v1761 = vsel %vm996, %v91, 0
    %v1764 = vsel %vm996, %v92, 0
    %1766 = vmatprep.subr.mxu0 0.0
    %1767 = vmatpush1.msra.mxu0 %v351
    %1768 = vmatprep.subr.mxu0 0.0
    %1769 = vmatpush1.msra.mxu0 0.0
    %1770 = vmatprep.subr.mxu0 0.0
    %1771 = vmatpush1.msra.mxu0 0.0
    %1772 = vmatprep.subr.mxu0 0.0
    %1773 = vmatpush1.msra.mxu0 0.0
    %1774 = vmatprep.subr.mxu0 0.0
    %1775 = vmatpush1.msra.mxu0 0.0
    %1776 = vmatprep.subr.mxu0 0.0
    %1777 = vmatpush1.msra.mxu0 0.0
    %1778 = vmatprep.subr.mxu0 0.0
    %1779 = vmatpush1.msra.mxu0 0.0
    %1780 = vmatprep.subr.mxu0 0.0
    %1781 = vmatpush1.msra.mxu0 0.0
    %1782 = vmatprep.subr.mxu0 0.0
    %1783 = vmatpush1.msra.mxu0 0.0
    %1784 = vmatprep.subr.mxu0 0.0
    %1785 = vmatpush1.msra.mxu0 0.0
    %1786 = vmatprep.subr.mxu0 0.0
    %1787 = vmatpush1.msra.mxu0 0.0
    %1788 = vmatprep.subr.mxu0 0.0
    %1789 = vmatpush1.msra.mxu0 0.0
    %1790 = vmatprep.subr.mxu0 0.0
    %1791 = vmatpush1.msra.mxu0 0.0
    %1792 = vmatprep.subr.mxu0 0.0
    %1793 = vmatpush1.msra.mxu0 0.0
    %1794 = vmatprep.subr.mxu0 0.0
    %1795 = vmatpush1.msra.mxu0 0.0
    %1796 = vmatprep.subr.mxu0 0.0
    %1797 = vmatpush1.msra.mxu0 0.0
    %1798 = vmatprep.subr.mxu0 0.0
    %1799 = vmatpush1.msra.mxu0 0.0
    %1800 = vmatprep.subr.mxu0 0.0
    %1801 = vmatpush1.msra.mxu0 0.0
    %1802 = vmatprep.subr.mxu0 0.0
    %1803 = vmatpush1.msra.mxu0 0.0
    %1804 = vmatprep.subr.mxu0 0.0
    %1805 = vmatpush1.msra.mxu0 0.0
    %1806 = vmatprep.subr.mxu0 0.0
    %1807 = vmatpush1.msra.mxu0 0.0
    %1808 = vmatprep.subr.mxu0 0.0
    %1809 = vmatpush1.msra.mxu0 0.0
    %1810 = vmatprep.subr.mxu0 0.0
    %1811 = vmatpush1.msra.mxu0 0.0
    %1812 = vmatprep.subr.mxu0 0.0
    %1813 = vmatpush1.msra.mxu0 0.0
    %1814 = vmatprep.subr.mxu0 0.0
    %1815 = vmatpush1.msra.mxu0 0.0
    %1816 = vmatprep.subr.mxu0 0.0
    %1817 = vmatpush1.msra.mxu0 0.0
    %1818 = vmatprep.subr.mxu0 0.0
    %1819 = vmatpush1.msra.mxu0 0.0
    %1820 = vmatprep.subr.mxu0 0.0
    %1821 = vmatpush1.msra.mxu0 0.0
    %1822 = vmatprep.subr.mxu0 0.0
    %1823 = vmatpush1.msra.mxu0 0.0
    %1824 = vmatprep.subr.mxu0 0.0
    %1825 = vmatpush1.msra.mxu0 0.0
    %1826 = vmatprep.subr.mxu0 0.0
    %1827 = vmatpush1.msra.mxu0 0.0
    %1828 = vmatprep.subr.mxu0 0.0
    %1829 = vmatpush1.msra.mxu0 0.0
    %1830 = vmatprep.mubr.f32.mxu0 0.0
    %1831 = vmatmul.mubr.f32.gmra.mrb[0].mxu0 %v1575
    %v1832 = vpop.f32.mrb[0].mxu0
    %v1833 = vadd.f32 %v1256, %v1832
    %v1834 = vpop.f32.mrb[0].mxu0
    %1835 = vmatprep.mubr.f32.mxu0 0.0
    %1836 = vmatmul.mubr.f32.gmra.mrb[0].mxu0 %v1578
    %v1837 = vpop.f32.mrb[0].mxu0
    %v1838 = vadd.f32 %v1261, %v1837
    %v1839 = vpop.f32.mrb[0].mxu0
    %1840 = vmatprep.mubr.f32.mxu0 0.0
    %1841 = vmatmul.mubr.f32.gmra.mrb[0].mxu0 %v1581
    %v1842 = vpop.f32.mrb[0].mxu0
    %v1843 = vadd.f32 %v1266, %v1842
    %v1844 = vpop.f32.mrb[0].mxu0
    %1845 = vmatprep.mubr.f32.mxu0 0.0
    %1846 = vmatmul.mubr.f32.gmra.mrb[0].mxu0 %v1584
    %v1847 = vpop.f32.mrb[0].mxu0
    %v1848 = vadd.f32 %v1271, %v1847
    %v1849 = vpop.f32.mrb[0].mxu0
    %1850 = vmatprep.mubr.f32.mxu0 0.0
    %1851 = vmatmul.mubr.f32.gmra.mrb[0].mxu0 %v1587
    %v1852 = vpop.f32.mrb[0].mxu0
    %v1853 = vadd.f32 %v1276, %v1852
    %v1854 = vpop.f32.mrb[0].mxu0
    %1855 = vmatprep.mubr.f32.mxu0 0.0
    %1856 = vmatmul.mubr.f32.gmra.mrb[0].mxu0 %v1590
    %v1857 = vpop.f32.mrb[0].mxu0
    %v1858 = vadd.f32 %v1281, %v1857
    %v1859 = vpop.f32.mrb[0].mxu0
    %1860 = vmatprep.mubr.f32.mxu0 0.0
    %1861 = vmatmul.mubr.f32.gmra.mrb[0].mxu0 %v1593
    %v1862 = vpop.f32.mrb[0].mxu0
    %v1863 = vadd.f32 %v1286, %v1862
    %v1864 = vpop.f32.mrb[0].mxu0
    %1865 = vmatprep.mubr.f32.mxu0 0.0
    %1866 = vmatmul.mubr.f32.gmra.mrb[0].mxu0 %v1596
    %v1867 = vpop.f32.mrb[0].mxu0
    %v1868 = vadd.f32 %v1291, %v1867
    %v1869 = vpop.f32.mrb[0].mxu0
    %1870 = vmatprep.mubr.f32.mxu0 0.0
    %1871 = vmatmul.mubr.f32.gmra.mrb[0].mxu0 %v1599
    %v1872 = vpop.f32.mrb[0].mxu0
    %v1873 = vadd.f32 %v1296, %v1872
    %v1874 = vpop.f32.mrb[0].mxu0
    %1875 = vmatprep.mubr.f32.mxu0 0.0
    %1876 = vmatmul.mubr.f32.gmra.mrb[0].mxu0 %v1602
    %v1877 = vpop.f32.mrb[0].mxu0
    %v1878 = vadd.f32 %v1301, %v1877
    %v1879 = vpop.f32.mrb[0].mxu0
    %1880 = vmatprep.mubr.f32.mxu0 0.0
    %1881 = vmatmul.mubr.f32.gmra.mrb[0].mxu0 %v1605
    %v1882 = vpop.f32.mrb[0].mxu0
    %v1883 = vadd.f32 %v1306, %v1882
    %v1884 = vpop.f32.mrb[0].mxu0
    %1885 = vmatprep.mubr.f32.mxu0 0.0
    %1886 = vmatmul.mubr.f32.gmra.mrb[0].mxu0 %v1608
    %v1887 = vpop.f32.mrb[0].mxu0
    %v1888 = vadd.f32 %v1311, %v1887
    %v1889 = vpop.f32.mrb[0].mxu0
    %1890 = vmatprep.mubr.f32.mxu0 0.0
    %1891 = vmatmul.mubr.f32.gmra.mrb[0].mxu0 %v1611
    %v1892 = vpop.f32.mrb[0].mxu0
    %v1893 = vadd.f32 %v1316, %v1892
    %v1894 = vpop.f32.mrb[0].mxu0
    %1895 = vmatprep.mubr.f32.mxu0 0.0
    %1896 = vmatmul.mubr.f32.gmra.mrb[0].mxu0 %v1614
    %v1897 = vpop.f32.mrb[0].mxu0
    %v1898 = vadd.f32 %v1321, %v1897
    %v1899 = vpop.f32.mrb[0].mxu0
    %1900 = vmatprep.mubr.f32.mxu0 0.0
    %1901 = vmatmul.mubr.f32.gmra.mrb[0].mxu0 %v1617
    %v1902 = vpop.f32.mrb[0].mxu0
    %v1903 = vadd.f32 %v1326, %v1902
    %v1904 = vpop.f32.mrb[0].mxu0
    %1905 = vmatprep.mubr.f32.mxu0 0.0
    %1906 = vmatmul.mubr.f32.gmra.mrb[0].mxu0 %v1620
    %v1907 = vpop.f32.mrb[0].mxu0
    %v1908 = vadd.f32 %v1331, %v1907
    %v1909 = vpop.f32.mrb[0].mxu0
    %1910 = vmatprep.mubr.f32.mxu0 0.0
    %1911 = vmatmul.mubr.f32.gmra.mrb[0].mxu0 %v1623
    %v1912 = vpop.f32.mrb[0].mxu0
    %v1913 = vadd.f32 %v1336, %v1912
    %v1914 = vpop.f32.mrb[0].mxu0
    %1915 = vmatprep.mubr.f32.mxu0 0.0
    %1916 = vmatmul.mubr.f32.gmra.mrb[0].mxu0 %v1626
    %v1917 = vpop.f32.mrb[0].mxu0
    %v1918 = vadd.f32 %v1341, %v1917
    %v1919 = vpop.f32.mrb[0].mxu0
    %1920 = vmatprep.mubr.f32.mxu0 0.0
    %1921 = vmatmul.mubr.f32.gmra.mrb[0].mxu0 %v1629
    %v1922 = vpop.f32.mrb[0].mxu0
    %v1923 = vadd.f32 %v1346, %v1922
    %v1924 = vpop.f32.mrb[0].mxu0
    %1925 = vmatprep.mubr.f32.mxu0 0.0
    %1926 = vmatmul.mubr.f32.gmra.mrb[0].mxu0 %v1632
    %v1927 = vpop.f32.mrb[0].mxu0
    %v1928 = vadd.f32 %v1351, %v1927
    %v1929 = vpop.f32.mrb[0].mxu0
    %1930 = vmatprep.mubr.f32.mxu0 0.0
    %1931 = vmatmul.mubr.f32.gmra.mrb[0].mxu0 %v1635
    %v1932 = vpop.f32.mrb[0].mxu0
    %v1933 = vadd.f32 %v1356, %v1932
    %v1934 = vpop.f32.mrb[0].mxu0
    %1935 = vmatprep.mubr.f32.mxu0 0.0
    %1936 = vmatmul.mubr.f32.gmra.mrb[0].mxu0 %v1638
    %v1937 = vpop.f32.mrb[0].mxu0
    %v1938 = vadd.f32 %v1361, %v1937
    %v1939 = vpop.f32.mrb[0].mxu0
    %1940 = vmatprep.mubr.f32.mxu0 0.0
    %1941 = vmatmul.mubr.f32.gmra.mrb[0].mxu0 %v1641
    %v1942 = vpop.f32.mrb[0].mxu0
    %v1943 = vadd.f32 %v1366, %v1942
    %v1944 = vpop.f32.mrb[0].mxu0
    %1945 = vmatprep.mubr.f32.mxu0 0.0
    %1946 = vmatmul.mubr.f32.gmra.mrb[0].mxu0 %v1644
    %v1947 = vpop.f32.mrb[0].mxu0
    %v1948 = vadd.f32 %v1371, %v1947
    %v1949 = vpop.f32.mrb[0].mxu0
    %1950 = vmatprep.mubr.f32.mxu0 0.0
    %1951 = vmatmul.mubr.f32.gmra.mrb[0].mxu0 %v1647
    %v1952 = vpop.f32.mrb[0].mxu0
    %v1953 = vadd.f32 %v1376, %v1952
    %v1954 = vpop.f32.mrb[0].mxu0
    %1955 = vmatprep.mubr.f32.mxu0 0.0
    %1956 = vmatmul.mubr.f32.gmra.mrb[0].mxu0 %v1650
    %v1957 = vpop.f32.mrb[0].mxu0
    %v1958 = vadd.f32 %v1381, %v1957
    %v1959 = vpop.f32.mrb[0].mxu0
    %1960 = vmatprep.mubr.f32.mxu0 0.0
    %1961 = vmatmul.mubr.f32.gmra.mrb[0].mxu0 %v1653
    %v1962 = vpop.f32.mrb[0].mxu0
    %v1963 = vadd.f32 %v1386, %v1962
    %v1964 = vpop.f32.mrb[0].mxu0
    %1965 = vmatprep.mubr.f32.mxu0 0.0
    %1966 = vmatmul.mubr.f32.gmra.mrb[0].mxu0 %v1656
    %v1967 = vpop.f32.mrb[0].mxu0
    %v1968 = vadd.f32 %v1391, %v1967
    %v1969 = vpop.f32.mrb[0].mxu0
    %1970 = vmatprep.mubr.f32.mxu0 0.0
    %1971 = vmatmul.mubr.f32.gmra.mrb[0].mxu0 %v1659
    %v1972 = vpop.f32.mrb[0].mxu0
    %v1973 = vadd.f32 %v1396, %v1972
    %v1974 = vpop.f32.mrb[0].mxu0
    %1975 = vmatprep.mubr.f32.mxu0 0.0
    %1976 = vmatmul.mubr.f32.gmra.mrb[0].mxu0 %v1662
    %v1977 = vpop.f32.mrb[0].mxu0
    %v1978 = vadd.f32 %v1401, %v1977
    %v1979 = vpop.f32.mrb[0].mxu0
    %1980 = vmatprep.mubr.f32.mxu0 0.0
    %1981 = vmatmul.mubr.f32.gmra.mrb[0].mxu0 %v1665
    %v1982 = vpop.f32.mrb[0].mxu0
    %v1983 = vadd.f32 %v1406, %v1982
    %v1984 = vpop.f32.mrb[0].mxu0
    %1985 = vmatprep.mubr.f32.mxu0 0.0
    %1986 = vmatmul.mubr.f32.gmra.mrb[0].mxu0 %v1668
    %v1987 = vpop.f32.mrb[0].mxu0
    %v1988 = vadd.f32 %v1411, %v1987
    %v1989 = vpop.f32.mrb[0].mxu0
    %1990 = vmatprep.mubr.f32.mxu0 0.0
    %1991 = vmatmul.mubr.f32.gmra.mrb[0].mxu0 %v1671
    %v1992 = vpop.f32.mrb[0].mxu0
    %v1993 = vadd.f32 %v1416, %v1992
    %v1994 = vpop.f32.mrb[0].mxu0
    %1995 = vmatprep.mubr.f32.mxu0 0.0
    %1996 = vmatmul.mubr.f32.gmra.mrb[0].mxu0 %v1674
    %v1997 = vpop.f32.mrb[0].mxu0
    %v1998 = vadd.f32 %v1421, %v1997
    %v1999 = vpop.f32.mrb[0].mxu0
    %2000 = vmatprep.mubr.f32.mxu0 0.0
    %2001 = vmatmul.mubr.f32.gmra.mrb[0].mxu0 %v1677
    %v2002 = vpop.f32.mrb[0].mxu0
    %v2003 = vadd.f32 %v1426, %v2002
    %v2004 = vpop.f32.mrb[0].mxu0
    %2005 = vmatprep.mubr.f32.mxu0 0.0
    %2006 = vmatmul.mubr.f32.gmra.mrb[0].mxu0 %v1680
    %v2007 = vpop.f32.mrb[0].mxu0
    %v2008 = vadd.f32 %v1431, %v2007
    %v2009 = vpop.f32.mrb[0].mxu0
    %2010 = vmatprep.mubr.f32.mxu0 0.0
    %2011 = vmatmul.mubr.f32.gmra.mrb[0].mxu0 %v1683
    %v2012 = vpop.f32.mrb[0].mxu0
    %v2013 = vadd.f32 %v1436, %v2012
    %v2014 = vpop.f32.mrb[0].mxu0
    %2015 = vmatprep.mubr.f32.mxu0 0.0
    %2016 = vmatmul.mubr.f32.gmra.mrb[0].mxu0 %v1686
    %v2017 = vpop.f32.mrb[0].mxu0
    %v2018 = vadd.f32 %v1441, %v2017
    %v2019 = vpop.f32.mrb[0].mxu0
    %2020 = vmatprep.mubr.f32.mxu0 0.0
    %2021 = vmatmul.mubr.f32.gmra.mrb[0].mxu0 %v1689
    %v2022 = vpop.f32.mrb[0].mxu0
    %v2023 = vadd.f32 %v1446, %v2022
    %v2024 = vpop.f32.mrb[0].mxu0
    %2025 = vmatprep.mubr.f32.mxu0 0.0
    %2026 = vmatmul.mubr.f32.gmra.mrb[0].mxu0 %v1692
    %v2027 = vpop.f32.mrb[0].mxu0
    %v2028 = vadd.f32 %v1451, %v2027
    %v2029 = vpop.f32.mrb[0].mxu0
    %2030 = vmatprep.mubr.f32.mxu0 0.0
    %2031 = vmatmul.mubr.f32.gmra.mrb[0].mxu0 %v1695
    %v2032 = vpop.f32.mrb[0].mxu0
    %v2033 = vadd.f32 %v1456, %v2032
    %v2034 = vpop.f32.mrb[0].mxu0
    %2035 = vmatprep.mubr.f32.mxu0 0.0
    %2036 = vmatmul.mubr.f32.gmra.mrb[0].mxu0 %v1698
    %v2037 = vpop.f32.mrb[0].mxu0
    %v2038 = vadd.f32 %v1461, %v2037
    %v2039 = vpop.f32.mrb[0].mxu0
    %2040 = vmatprep.mubr.f32.mxu0 0.0
    %2041 = vmatmul.mubr.f32.gmra.mrb[0].mxu0 %v1701
    %v2042 = vpop.f32.mrb[0].mxu0
    %v2043 = vadd.f32 %v1466, %v2042
    %v2044 = vpop.f32.mrb[0].mxu0
    %2045 = vmatprep.mubr.f32.mxu0 0.0
    %2046 = vmatmul.mubr.f32.gmra.mrb[0].mxu0 %v1704
    %v2047 = vpop.f32.mrb[0].mxu0
    %v2048 = vadd.f32 %v1471, %v2047
    %v2049 = vpop.f32.mrb[0].mxu0
    %2050 = vmatprep.mubr.f32.mxu0 0.0
    %2051 = vmatmul.mubr.f32.gmra.mrb[0].mxu0 %v1707
    %v2052 = vpop.f32.mrb[0].mxu0
    %v2053 = vadd.f32 %v1476, %v2052
    %v2054 = vpop.f32.mrb[0].mxu0
    %2055 = vmatprep.mubr.f32.mxu0 0.0
    %2056 = vmatmul.mubr.f32.gmra.mrb[0].mxu0 %v1710
    %v2057 = vpop.f32.mrb[0].mxu0
    %v2058 = vadd.f32 %v1481, %v2057
    %v2059 = vpop.f32.mrb[0].mxu0
    %2060 = vmatprep.mubr.f32.mxu0 0.0
    %2061 = vmatmul.mubr.f32.gmra.mrb[0].mxu0 %v1713
    %v2062 = vpop.f32.mrb[0].mxu0
    %v2063 = vadd.f32 %v1486, %v2062
    %v2064 = vpop.f32.mrb[0].mxu0
    %2065 = vmatprep.mubr.f32.mxu0 0.0
    %2066 = vmatmul.mubr.f32.gmra.mrb[0].mxu0 %v1716
    %v2067 = vpop.f32.mrb[0].mxu0
    %v2068 = vadd.f32 %v1491, %v2067
    %v2069 = vpop.f32.mrb[0].mxu0
    %2070 = vmatprep.mubr.f32.mxu0 0.0
    %2071 = vmatmul.mubr.f32.gmra.mrb[0].mxu0 %v1719
    %v2072 = vpop.f32.mrb[0].mxu0
    %v2073 = vadd.f32 %v1496, %v2072
    %v2074 = vpop.f32.mrb[0].mxu0
    %2075 = vmatprep.mubr.f32.mxu0 0.0
    %2076 = vmatmul.mubr.f32.gmra.mrb[0].mxu0 %v1722
    %v2077 = vpop.f32.mrb[0].mxu0
    %v2078 = vadd.f32 %v1501, %v2077
    %v2079 = vpop.f32.mrb[0].mxu0
    %2080 = vmatprep.mubr.f32.mxu0 0.0
    %2081 = vmatmul.mubr.f32.gmra.mrb[0].mxu0 %v1725
    %v2082 = vpop.f32.mrb[0].mxu0
    %v2083 = vadd.f32 %v1506, %v2082
    %v2084 = vpop.f32.mrb[0].mxu0
    %2085 = vmatprep.mubr.f32.mxu0 0.0
    %2086 = vmatmul.mubr.f32.gmra.mrb[0].mxu0 %v1728
    %v2087 = vpop.f32.mrb[0].mxu0
    %v2088 = vadd.f32 %v1511, %v2087
    %v2089 = vpop.f32.mrb[0].mxu0
    %2090 = vmatprep.mubr.f32.mxu0 0.0
    %2091 = vmatmul.mubr.f32.gmra.mrb[0].mxu0 %v1731
    %v2092 = vpop.f32.mrb[0].mxu0
    %v2093 = vadd.f32 %v1516, %v2092
    %v2094 = vpop.f32.mrb[0].mxu0
    %2095 = vmatprep.mubr.f32.mxu0 0.0
    %2096 = vmatmul.mubr.f32.gmra.mrb[0].mxu0 %v1734
    %v2097 = vpop.f32.mrb[0].mxu0
    %v2098 = vadd.f32 %v1521, %v2097
    %v2099 = vpop.f32.mrb[0].mxu0
    %2100 = vmatprep.mubr.f32.mxu0 0.0
    %2101 = vmatmul.mubr.f32.gmra.mrb[0].mxu0 %v1737
    %v2102 = vpop.f32.mrb[0].mxu0
    %v2103 = vadd.f32 %v1526, %v2102
    %v2104 = vpop.f32.mrb[0].mxu0
    %2105 = vmatprep.mubr.f32.mxu0 0.0
    %2106 = vmatmul.mubr.f32.gmra.mrb[0].mxu0 %v1740
    %v2107 = vpop.f32.mrb[0].mxu0
    %v2108 = vadd.f32 %v1531, %v2107
    %v2109 = vpop.f32.mrb[0].mxu0
    %2110 = vmatprep.mubr.f32.mxu0 0.0
    %2111 = vmatmul.mubr.f32.gmra.mrb[0].mxu0 %v1743
    %v2112 = vpop.f32.mrb[0].mxu0
    %v2113 = vadd.f32 %v1536, %v2112
    %v2114 = vpop.f32.mrb[0].mxu0
    %2115 = vmatprep.mubr.f32.mxu0 0.0
    %2116 = vmatmul.mubr.f32.gmra.mrb[0].mxu0 %v1746
    %v2117 = vpop.f32.mrb[0].mxu0
    %v2118 = vadd.f32 %v1541, %v2117
    %v2119 = vpop.f32.mrb[0].mxu0
    %2120 = vmatprep.mubr.f32.mxu0 0.0
    %2121 = vmatmul.mubr.f32.gmra.mrb[0].mxu0 %v1749
    %v2122 = vpop.f32.mrb[0].mxu0
    %v2123 = vadd.f32 %v1546, %v2122
    %v2124 = vpop.f32.mrb[0].mxu0
    %2125 = vmatprep.mubr.f32.mxu0 0.0
    %2126 = vmatmul.mubr.f32.gmra.mrb[0].mxu0 %v1752
    %v2127 = vpop.f32.mrb[0].mxu0
    %v2128 = vadd.f32 %v1551, %v2127
    %v2129 = vpop.f32.mrb[0].mxu0
    %2130 = vmatprep.mubr.f32.mxu0 0.0
    %2131 = vmatmul.mubr.f32.gmra.mrb[0].mxu0 %v1755
    %v2132 = vpop.f32.mrb[0].mxu0
    %v2133 = vadd.f32 %v1556, %v2132
    %v2134 = vpop.f32.mrb[0].mxu0
    %2135 = vmatprep.mubr.f32.mxu0 0.0
    %2136 = vmatmul.mubr.f32.gmra.mrb[0].mxu0 %v1758
    %v2137 = vpop.f32.mrb[0].mxu0
    %v2138 = vadd.f32 %v1561, %v2137
    %v2139 = vpop.f32.mrb[0].mxu0
    %2140 = vmatprep.mubr.f32.mxu0 0.0
    %2141 = vmatmul.mubr.f32.gmra.mrb[0].mxu0 %v1761
    %v2142 = vpop.f32.mrb[0].mxu0
    %v2143 = vadd.f32 %v1566, %v2142
    %v2144 = vpop.f32.mrb[0].mxu0
    %2145 = vmatprep.mubr.f32.mxu0 0.0
    %2146 = vmatmul.mubr.f32.gmra.mrb[0].mxu0 %v1764
    %v2147 = vpop.f32.mrb[0].mxu0
    %v2148 = vadd.f32 %v1571, %v2147
    %v2149 = vpop.f32.mrb[0].mxu0
    %2150 = vdwg.mxu0
    %v2152 = vsel %vm996, %v932, 0
    %v2155 = vsel %vm996, %v933, 0
    %v2158 = vsel %vm996, %v934, 0
    %v2161 = vsel %vm996, %v935, 0
    %v2164 = vsel %vm996, %v936, 0
    %v2167 = vsel %vm996, %v937, 0
    %v2170 = vsel %vm996, %v938, 0
    %v2173 = vsel %vm996, %v939, 0
    %v2176 = vsel %vm996, %v940, 0
    %v2179 = vsel %vm996, %v941, 0
    %v2182 = vsel %vm996, %v942, 0
    %v2185 = vsel %vm996, %v943, 0
    %v2188 = vsel %vm996, %v944, 0
    %v2191 = vsel %vm996, %v945, 0
    %v2194 = vsel %vm996, %v946, 0
    %v2197 = vsel %vm996, %v947, 0
    %v2200 = vsel %vm996, %v948, 0
    %v2203 = vsel %vm996, %v949, 0
    %v2206 = vsel %vm996, %v950, 0
    %v2209 = vsel %vm996, %v951, 0
    %v2212 = vsel %vm996, %v952, 0
    %v2215 = vsel %vm996, %v953, 0
    %v2218 = vsel %vm996, %v954, 0
    %v2221 = vsel %vm996, %v955, 0
    %v2224 = vsel %vm996, %v956, 0
    %v2227 = vsel %vm996, %v957, 0
    %v2230 = vsel %vm996, %v958, 0
    %v2233 = vsel %vm996, %v959, 0
    %v2236 = vsel %vm996, %v960, 0
    %v2239 = vsel %vm996, %v961, 0
    %v2242 = vsel %vm996, %v962, 0
    %v2245 = vsel %vm996, %v963, 0
    %v2248 = vsel %vm996, %v964, 0
    %v2251 = vsel %vm996, %v965, 0
    %v2254 = vsel %vm996, %v966, 0
    %v2257 = vsel %vm996, %v967, 0
    %v2260 = vsel %vm996, %v968, 0
    %v2263 = vsel %vm996, %v969, 0
    %v2266 = vsel %vm996, %v970, 0
    %v2269 = vsel %vm996, %v971, 0
    %v2272 = vsel %vm996, %v972, 0
    %v2275 = vsel %vm996, %v973, 0
    %v2278 = vsel %vm996, %v974, 0
    %v2281 = vsel %vm996, %v975, 0
    %v2284 = vsel %vm996, %v976, 0
    %v2287 = vsel %vm996, %v977, 0
    %v2290 = vsel %vm996, %v978, 0
    %v2293 = vsel %vm996, %v979, 0
    %v2296 = vsel %vm996, %v980, 0
    %v2299 = vsel %vm996, %v981, 0
    %v2302 = vsel %vm996, %v982, 0
    %v2305 = vsel %vm996, %v983, 0
    %v2308 = vsel %vm996, %v984, 0
    %v2311 = vsel %vm996, %v985, 0
    %v2314 = vsel %vm996, %v986, 0
    %v2317 = vsel %vm996, %v987, 0
    %v2320 = vsel %vm996, %v988, 0
    %v2323 = vsel %vm996, %v989, 0
    %v2326 = vsel %vm996, %v990, 0
    %v2329 = vsel %vm996, %v991, 0
    %v2332 = vsel %vm996, %v992, 0
    %v2335 = vsel %vm996, %v993, 0
    %v2338 = vsel %vm996, %v994, 0
    %v2341 = vsel %vm996, %v995, 0
    %2343 = vmatprep.subr.mxu0 0.0
    %2344 = vmatpush1.msra.mxu0 %v352
    %2345 = vmatprep.subr.mxu0 0.0
    %2346 = vmatpush1.msra.mxu0 0.0
    %2347 = vmatprep.subr.mxu0 0.0
    %2348 = vmatpush1.msra.mxu0 0.0
    %2349 = vmatprep.subr.mxu0 0.0
    %2350 = vmatpush1.msra.mxu0 0.0
    %2351 = vmatprep.subr.mxu0 0.0
    %2352 = vmatpush1.msra.mxu0 0.0
    %2353 = vmatprep.subr.mxu0 0.0
    %2354 = vmatpush1.msra.mxu0 0.0
    %2355 = vmatprep.subr.mxu0 0.0
    %2356 = vmatpush1.msra.mxu0 0.0
    %2357 = vmatprep.subr.mxu0 0.0
    %2358 = vmatpush1.msra.mxu0 0.0
    %2359 = vmatprep.subr.mxu0 0.0
    %2360 = vmatpush1.msra.mxu0 0.0
    %2361 = vmatprep.subr.mxu0 0.0
    %2362 = vmatpush1.msra.mxu0 0.0
    %2363 = vmatprep.subr.mxu0 0.0
    %2364 = vmatpush1.msra.mxu0 0.0
    %2365 = vmatprep.subr.mxu0 0.0
    %2366 = vmatpush1.msra.mxu0 0.0
    %2367 = vmatprep.subr.mxu0 0.0
    %2368 = vmatpush1.msra.mxu0 0.0
    %2369 = vmatprep.subr.mxu0 0.0
    %2370 = vmatpush1.msra.mxu0 0.0
    %2371 = vmatprep.subr.mxu0 0.0
    %2372 = vmatpush1.msra.mxu0 0.0
    %2373 = vmatprep.subr.mxu0 0.0
    %2374 = vmatpush1.msra.mxu0 0.0
    %2375 = vmatprep.subr.mxu0 0.0
    %2376 = vmatpush1.msra.mxu0 0.0
    %2377 = vmatprep.subr.mxu0 0.0
    %2378 = vmatpush1.msra.mxu0 0.0
    %2379 = vmatprep.subr.mxu0 0.0
    %2380 = vmatpush1.msra.mxu0 0.0
    %2381 = vmatprep.subr.mxu0 0.0
    %2382 = vmatpush1.msra.mxu0 0.0
    %2383 = vmatprep.subr.mxu0 0.0
    %2384 = vmatpush1.msra.mxu0 0.0
    %2385 = vmatprep.subr.mxu0 0.0
    %2386 = vmatpush1.msra.mxu0 0.0
    %2387 = vmatprep.subr.mxu0 0.0
    %2388 = vmatpush1.msra.mxu0 0.0
    %2389 = vmatprep.subr.mxu0 0.0
    %2390 = vmatpush1.msra.mxu0 0.0
    %2391 = vmatprep.subr.mxu0 0.0
    %2392 = vmatpush1.msra.mxu0 0.0
    %2393 = vmatprep.subr.mxu0 0.0
    %2394 = vmatpush1.msra.mxu0 0.0
    %2395 = vmatprep.subr.mxu0 0.0
    %2396 = vmatpush1.msra.mxu0 0.0
    %2397 = vmatprep.subr.mxu0 0.0
    %2398 = vmatpush1.msra.mxu0 0.0
    %2399 = vmatprep.subr.mxu0 0.0
    %2400 = vmatpush1.msra.mxu0 0.0
    %2401 = vmatprep.subr.mxu0 0.0
    %2402 = vmatpush1.msra.mxu0 0.0
    %2403 = vmatprep.subr.mxu0 0.0
    %2404 = vmatpush1.msra.mxu0 0.0
    %2405 = vmatprep.subr.mxu0 0.0
    %2406 = vmatpush1.msra.mxu0 0.0
    %2407 = vmatprep.mubr.f32.mxu0 0.0
    %2408 = vmatmul.mubr.f32.gmra.mrb[0].mxu0 %v2152
    %v2409 = vpop.f32.mrb[0].mxu0
    %v2410 = vadd.f32 0.0, %v2409
    %v2411 = vpop.f32.mrb[0].mxu0
    %2412 = vmatprep.mubr.f32.mxu0 0.0
    %2413 = vmatmul.mubr.f32.gmra.mrb[0].mxu0 %v2155
    %v2414 = vpop.f32.mrb[0].mxu0
    %v2415 = vadd.f32 0.0, %v2414
    %v2416 = vpop.f32.mrb[0].mxu0
    %2417 = vmatprep.mubr.f32.mxu0 0.0
    %2418 = vmatmul.mubr.f32.gmra.mrb[0].mxu0 %v2158
    %v2419 = vpop.f32.mrb[0].mxu0
    %v2420 = vadd.f32 0.0, %v2419
    %v2421 = vpop.f32.mrb[0].mxu0
    %2422 = vmatprep.mubr.f32.mxu0 0.0
    %2423 = vmatmul.mubr.f32.gmra.mrb[0].mxu0 %v2161
    %v2424 = vpop.f32.mrb[0].mxu0
    %v2425 = vadd.f32 0.0, %v2424
    %v2426 = vpop.f32.mrb[0].mxu0
    %2427 = vmatprep.mubr.f32.mxu0 0.0
    %2428 = vmatmul.mubr.f32.gmra.mrb[0].mxu0 %v2164
    %v2429 = vpop.f32.mrb[0].mxu0
    %v2430 = vadd.f32 0.0, %v2429
    %v2431 = vpop.f32.mrb[0].mxu0
    %2432 = vmatprep.mubr.f32.mxu0 0.0
    %2433 = vmatmul.mubr.f32.gmra.mrb[0].mxu0 %v2167
    %v2434 = vpop.f32.mrb[0].mxu0
    %v2435 = vadd.f32 0.0, %v2434
    %v2436 = vpop.f32.mrb[0].mxu0
    %2437 = vmatprep.mubr.f32.mxu0 0.0
    %2438 = vmatmul.mubr.f32.gmra.mrb[0].mxu0 %v2170
    %v2439 = vpop.f32.mrb[0].mxu0
    %v2440 = vadd.f32 0.0, %v2439
    %v2441 = vpop.f32.mrb[0].mxu0
    %2442 = vmatprep.mubr.f32.mxu0 0.0
    %2443 = vmatmul.mubr.f32.gmra.mrb[0].mxu0 %v2173
    %v2444 = vpop.f32.mrb[0].mxu0
    %v2445 = vadd.f32 0.0, %v2444
    %v2446 = vpop.f32.mrb[0].mxu0
    %2447 = vmatprep.mubr.f32.mxu0 0.0
    %2448 = vmatmul.mubr.f32.gmra.mrb[0].mxu0 %v2176
    %v2449 = vpop.f32.mrb[0].mxu0
    %v2450 = vadd.f32 0.0, %v2449
    %v2451 = vpop.f32.mrb[0].mxu0
    %2452 = vmatprep.mubr.f32.mxu0 0.0
    %2453 = vmatmul.mubr.f32.gmra.mrb[0].mxu0 %v2179
    %v2454 = vpop.f32.mrb[0].mxu0
    %v2455 = vadd.f32 0.0, %v2454
    %v2456 = vpop.f32.mrb[0].mxu0
    %2457 = vmatprep.mubr.f32.mxu0 0.0
    %2458 = vmatmul.mubr.f32.gmra.mrb[0].mxu0 %v2182
    %v2459 = vpop.f32.mrb[0].mxu0
    %v2460 = vadd.f32 0.0, %v2459
    %v2461 = vpop.f32.mrb[0].mxu0
    %2462 = vmatprep.mubr.f32.mxu0 0.0
    %2463 = vmatmul.mubr.f32.gmra.mrb[0].mxu0 %v2185
    %v2464 = vpop.f32.mrb[0].mxu0
    %v2465 = vadd.f32 0.0, %v2464
    %v2466 = vpop.f32.mrb[0].mxu0
    %2467 = vmatprep.mubr.f32.mxu0 0.0
    %2468 = vmatmul.mubr.f32.gmra.mrb[0].mxu0 %v2188
    %v2469 = vpop.f32.mrb[0].mxu0
    %v2470 = vadd.f32 0.0, %v2469
    %v2471 = vpop.f32.mrb[0].mxu0
    %2472 = vmatprep.mubr.f32.mxu0 0.0
    %2473 = vmatmul.mubr.f32.gmra.mrb[0].mxu0 %v2191
    %v2474 = vpop.f32.mrb[0].mxu0
    %v2475 = vadd.f32 0.0, %v2474
    %v2476 = vpop.f32.mrb[0].mxu0
    %2477 = vmatprep.mubr.f32.mxu0 0.0
    %2478 = vmatmul.mubr.f32.gmra.mrb[0].mxu0 %v2194
    %v2479 = vpop.f32.mrb[0].mxu0
    %v2480 = vadd.f32 0.0, %v2479
    %v2481 = vpop.f32.mrb[0].mxu0
    %2482 = vmatprep.mubr.f32.mxu0 0.0
    %2483 = vmatmul.mubr.f32.gmra.mrb[0].mxu0 %v2197
    %v2484 = vpop.f32.mrb[0].mxu0
    %v2485 = vadd.f32 0.0, %v2484
    %v2486 = vpop.f32.mrb[0].mxu0
    %2487 = vmatprep.mubr.f32.mxu0 0.0
    %2488 = vmatmul.mubr.f32.gmra.mrb[0].mxu0 %v2200
    %v2489 = vpop.f32.mrb[0].mxu0
    %v2490 = vadd.f32 0.0, %v2489
    %v2491 = vpop.f32.mrb[0].mxu0
    %2492 = vmatprep.mubr.f32.mxu0 0.0
    %2493 = vmatmul.mubr.f32.gmra.mrb[0].mxu0 %v2203
    %v2494 = vpop.f32.mrb[0].mxu0
    %v2495 = vadd.f32 0.0, %v2494
    %v2496 = vpop.f32.mrb[0].mxu0
    %2497 = vmatprep.mubr.f32.mxu0 0.0
    %2498 = vmatmul.mubr.f32.gmra.mrb[0].mxu0 %v2206
    %v2499 = vpop.f32.mrb[0].mxu0
    %v2500 = vadd.f32 0.0, %v2499
    %v2501 = vpop.f32.mrb[0].mxu0
    %2502 = vmatprep.mubr.f32.mxu0 0.0
    %2503 = vmatmul.mubr.f32.gmra.mrb[0].mxu0 %v2209
    %v2504 = vpop.f32.mrb[0].mxu0
    %v2505 = vadd.f32 0.0, %v2504
    %v2506 = vpop.f32.mrb[0].mxu0
    %2507 = vmatprep.mubr.f32.mxu0 0.0
    %2508 = vmatmul.mubr.f32.gmra.mrb[0].mxu0 %v2212
    %v2509 = vpop.f32.mrb[0].mxu0
    %v2510 = vadd.f32 0.0, %v2509
    %v2511 = vpop.f32.mrb[0].mxu0
    %2512 = vmatprep.mubr.f32.mxu0 0.0
    %2513 = vmatmul.mubr.f32.gmra.mrb[0].mxu0 %v2215
    %v2514 = vpop.f32.mrb[0].mxu0
    %v2515 = vadd.f32 0.0, %v2514
    %v2516 = vpop.f32.mrb[0].mxu0
    %2517 = vmatprep.mubr.f32.mxu0 0.0
    %2518 = vmatmul.mubr.f32.gmra.mrb[0].mxu0 %v2218
    %v2519 = vpop.f32.mrb[0].mxu0
    %v2520 = vadd.f32 0.0, %v2519
    %v2521 = vpop.f32.mrb[0].mxu0
    %2522 = vmatprep.mubr.f32.mxu0 0.0
    %2523 = vmatmul.mubr.f32.gmra.mrb[0].mxu0 %v2221
    %v2524 = vpop.f32.mrb[0].mxu0
    %v2525 = vadd.f32 0.0, %v2524
    %v2526 = vpop.f32.mrb[0].mxu0
    %2527 = vmatprep.mubr.f32.mxu0 0.0
    %2528 = vmatmul.mubr.f32.gmra.mrb[0].mxu0 %v2224
    %v2529 = vpop.f32.mrb[0].mxu0
    %v2530 = vadd.f32 0.0, %v2529
    %v2531 = vpop.f32.mrb[0].mxu0
    %2532 = vmatprep.mubr.f32.mxu0 0.0
    %2533 = vmatmul.mubr.f32.gmra.mrb[0].mxu0 %v2227
    %v2534 = vpop.f32.mrb[0].mxu0
    %v2535 = vadd.f32 0.0, %v2534
    %v2536 = vpop.f32.mrb[0].mxu0
    %2537 = vmatprep.mubr.f32.mxu0 0.0
    %2538 = vmatmul.mubr.f32.gmra.mrb[0].mxu0 %v2230
    %v2539 = vpop.f32.mrb[0].mxu0
    %v2540 = vadd.f32 0.0, %v2539
    %v2541 = vpop.f32.mrb[0].mxu0
    %2542 = vmatprep.mubr.f32.mxu0 0.0
    %2543 = vmatmul.mubr.f32.gmra.mrb[0].mxu0 %v2233
    %v2544 = vpop.f32.mrb[0].mxu0
    %v2545 = vadd.f32 0.0, %v2544
    %v2546 = vpop.f32.mrb[0].mxu0
    %2547 = vmatprep.mubr.f32.mxu0 0.0
    %2548 = vmatmul.mubr.f32.gmra.mrb[0].mxu0 %v2236
    %v2549 = vpop.f32.mrb[0].mxu0
    %v2550 = vadd.f32 0.0, %v2549
    %v2551 = vpop.f32.mrb[0].mxu0
    %2552 = vmatprep.mubr.f32.mxu0 0.0
    %2553 = vmatmul.mubr.f32.gmra.mrb[0].mxu0 %v2239
    %v2554 = vpop.f32.mrb[0].mxu0
    %v2555 = vadd.f32 0.0, %v2554
    %v2556 = vpop.f32.mrb[0].mxu0
    %2557 = vmatprep.mubr.f32.mxu0 0.0
    %2558 = vmatmul.mubr.f32.gmra.mrb[0].mxu0 %v2242
    %v2559 = vpop.f32.mrb[0].mxu0
    %v2560 = vadd.f32 0.0, %v2559
    %v2561 = vpop.f32.mrb[0].mxu0
    %2562 = vmatprep.mubr.f32.mxu0 0.0
    %2563 = vmatmul.mubr.f32.gmra.mrb[0].mxu0 %v2245
    %v2564 = vpop.f32.mrb[0].mxu0
    %v2565 = vadd.f32 0.0, %v2564
    %v2566 = vpop.f32.mrb[0].mxu0
    %2567 = vmatprep.mubr.f32.mxu0 0.0
    %2568 = vmatmul.mubr.f32.gmra.mrb[0].mxu0 %v2248
    %v2569 = vpop.f32.mrb[0].mxu0
    %v2570 = vadd.f32 0.0, %v2569
    %v2571 = vpop.f32.mrb[0].mxu0
    %2572 = vmatprep.mubr.f32.mxu0 0.0
    %2573 = vmatmul.mubr.f32.gmra.mrb[0].mxu0 %v2251
    %v2574 = vpop.f32.mrb[0].mxu0
    %v2575 = vadd.f32 0.0, %v2574
    %v2576 = vpop.f32.mrb[0].mxu0
    %2577 = vmatprep.mubr.f32.mxu0 0.0
    %2578 = vmatmul.mubr.f32.gmra.mrb[0].mxu0 %v2254
    %v2579 = vpop.f32.mrb[0].mxu0
    %v2580 = vadd.f32 0.0, %v2579
    %v2581 = vpop.f32.mrb[0].mxu0
    %2582 = vmatprep.mubr.f32.mxu0 0.0
    %2583 = vmatmul.mubr.f32.gmra.mrb[0].mxu0 %v2257
    %v2584 = vpop.f32.mrb[0].mxu0
    %v2585 = vadd.f32 0.0, %v2584
    %v2586 = vpop.f32.mrb[0].mxu0
    %2587 = vmatprep.mubr.f32.mxu0 0.0
    %2588 = vmatmul.mubr.f32.gmra.mrb[0].mxu0 %v2260
    %v2589 = vpop.f32.mrb[0].mxu0
    %v2590 = vadd.f32 0.0, %v2589
    %v2591 = vpop.f32.mrb[0].mxu0
    %2592 = vmatprep.mubr.f32.mxu0 0.0
    %2593 = vmatmul.mubr.f32.gmra.mrb[0].mxu0 %v2263
    %v2594 = vpop.f32.mrb[0].mxu0
    %v2595 = vadd.f32 0.0, %v2594
    %v2596 = vpop.f32.mrb[0].mxu0
    %2597 = vmatprep.mubr.f32.mxu0 0.0
    %2598 = vmatmul.mubr.f32.gmra.mrb[0].mxu0 %v2266
    %v2599 = vpop.f32.mrb[0].mxu0
    %v2600 = vadd.f32 0.0, %v2599
    %v2601 = vpop.f32.mrb[0].mxu0
    %2602 = vmatprep.mubr.f32.mxu0 0.0
    %2603 = vmatmul.mubr.f32.gmra.mrb[0].mxu0 %v2269
    %v2604 = vpop.f32.mrb[0].mxu0
    %v2605 = vadd.f32 0.0, %v2604
    %v2606 = vpop.f32.mrb[0].mxu0
    %2607 = vmatprep.mubr.f32.mxu0 0.0
    %2608 = vmatmul.mubr.f32.gmra.mrb[0].mxu0 %v2272
    %v2609 = vpop.f32.mrb[0].mxu0
    %v2610 = vadd.f32 0.0, %v2609
    %v2611 = vpop.f32.mrb[0].mxu0
    %2612 = vmatprep.mubr.f32.mxu0 0.0
    %2613 = vmatmul.mubr.f32.gmra.mrb[0].mxu0 %v2275
    %v2614 = vpop.f32.mrb[0].mxu0
    %v2615 = vadd.f32 0.0, %v2614
    %v2616 = vpop.f32.mrb[0].mxu0
    %2617 = vmatprep.mubr.f32.mxu0 0.0
    %2618 = vmatmul.mubr.f32.gmra.mrb[0].mxu0 %v2278
    %v2619 = vpop.f32.mrb[0].mxu0
    %v2620 = vadd.f32 0.0, %v2619
    %v2621 = vpop.f32.mrb[0].mxu0
    %2622 = vmatprep.mubr.f32.mxu0 0.0
    %2623 = vmatmul.mubr.f32.gmra.mrb[0].mxu0 %v2281
    %v2624 = vpop.f32.mrb[0].mxu0
    %v2625 = vadd.f32 0.0, %v2624
    %v2626 = vpop.f32.mrb[0].mxu0
    %2627 = vmatprep.mubr.f32.mxu0 0.0
    %2628 = vmatmul.mubr.f32.gmra.mrb[0].mxu0 %v2284
    %v2629 = vpop.f32.mrb[0].mxu0
    %v2630 = vadd.f32 0.0, %v2629
    %v2631 = vpop.f32.mrb[0].mxu0
    %2632 = vmatprep.mubr.f32.mxu0 0.0
    %2633 = vmatmul.mubr.f32.gmra.mrb[0].mxu0 %v2287
    %v2634 = vpop.f32.mrb[0].mxu0
    %v2635 = vadd.f32 0.0, %v2634
    %v2636 = vpop.f32.mrb[0].mxu0
    %2637 = vmatprep.mubr.f32.mxu0 0.0
    %2638 = vmatmul.mubr.f32.gmra.mrb[0].mxu0 %v2290
    %v2639 = vpop.f32.mrb[0].mxu0
    %v2640 = vadd.f32 0.0, %v2639
    %v2641 = vpop.f32.mrb[0].mxu0
    %2642 = vmatprep.mubr.f32.mxu0 0.0
    %2643 = vmatmul.mubr.f32.gmra.mrb[0].mxu0 %v2293
    %v2644 = vpop.f32.mrb[0].mxu0
    %v2645 = vadd.f32 0.0, %v2644
    %v2646 = vpop.f32.mrb[0].mxu0
    %2647 = vmatprep.mubr.f32.mxu0 0.0
    %2648 = vmatmul.mubr.f32.gmra.mrb[0].mxu0 %v2296
    %v2649 = vpop.f32.mrb[0].mxu0
    %v2650 = vadd.f32 0.0, %v2649
    %v2651 = vpop.f32.mrb[0].mxu0
    %2652 = vmatprep.mubr.f32.mxu0 0.0
    %2653 = vmatmul.mubr.f32.gmra.mrb[0].mxu0 %v2299
    %v2654 = vpop.f32.mrb[0].mxu0
    %v2655 = vadd.f32 0.0, %v2654
    %v2656 = vpop.f32.mrb[0].mxu0
    %2657 = vmatprep.mubr.f32.mxu0 0.0
    %2658 = vmatmul.mubr.f32.gmra.mrb[0].mxu0 %v2302
    %v2659 = vpop.f32.mrb[0].mxu0
    %v2660 = vadd.f32 0.0, %v2659
    %v2661 = vpop.f32.mrb[0].mxu0
    %2662 = vmatprep.mubr.f32.mxu0 0.0
    %2663 = vmatmul.mubr.f32.gmra.mrb[0].mxu0 %v2305
    %v2664 = vpop.f32.mrb[0].mxu0
    %v2665 = vadd.f32 0.0, %v2664
    %v2666 = vpop.f32.mrb[0].mxu0
    %2667 = vmatprep.mubr.f32.mxu0 0.0
    %2668 = vmatmul.mubr.f32.gmra.mrb[0].mxu0 %v2308
    %v2669 = vpop.f32.mrb[0].mxu0
    %v2670 = vadd.f32 0.0, %v2669
    %v2671 = vpop.f32.mrb[0].mxu0
    %2672 = vmatprep.mubr.f32.mxu0 0.0
    %2673 = vmatmul.mubr.f32.gmra.mrb[0].mxu0 %v2311
    %v2674 = vpop.f32.mrb[0].mxu0
    %v2675 = vadd.f32 0.0, %v2674
    %v2676 = vpop.f32.mrb[0].mxu0
    %2677 = vmatprep.mubr.f32.mxu0 0.0
    %2678 = vmatmul.mubr.f32.gmra.mrb[0].mxu0 %v2314
    %v2679 = vpop.f32.mrb[0].mxu0
    %v2680 = vadd.f32 0.0, %v2679
    %v2681 = vpop.f32.mrb[0].mxu0
    %2682 = vmatprep.mubr.f32.mxu0 0.0
    %2683 = vmatmul.mubr.f32.gmra.mrb[0].mxu0 %v2317
    %v2684 = vpop.f32.mrb[0].mxu0
    %v2685 = vadd.f32 0.0, %v2684
    %v2686 = vpop.f32.mrb[0].mxu0
    %2687 = vmatprep.mubr.f32.mxu0 0.0
    %2688 = vmatmul.mubr.f32.gmra.mrb[0].mxu0 %v2320
    %v2689 = vpop.f32.mrb[0].mxu0
    %v2690 = vadd.f32 0.0, %v2689
    %v2691 = vpop.f32.mrb[0].mxu0
    %2692 = vmatprep.mubr.f32.mxu0 0.0
    %2693 = vmatmul.mubr.f32.gmra.mrb[0].mxu0 %v2323
    %v2694 = vpop.f32.mrb[0].mxu0
    %v2695 = vadd.f32 0.0, %v2694
    %v2696 = vpop.f32.mrb[0].mxu0
    %2697 = vmatprep.mubr.f32.mxu0 0.0
    %2698 = vmatmul.mubr.f32.gmra.mrb[0].mxu0 %v2326
    %v2699 = vpop.f32.mrb[0].mxu0
    %v2700 = vadd.f32 0.0, %v2699
    %v2701 = vpop.f32.mrb[0].mxu0
    %2702 = vmatprep.mubr.f32.mxu0 0.0
    %2703 = vmatmul.mubr.f32.gmra.mrb[0].mxu0 %v2329
    %v2704 = vpop.f32.mrb[0].mxu0
    %v2705 = vadd.f32 0.0, %v2704
    %v2706 = vpop.f32.mrb[0].mxu0
    %2707 = vmatprep.mubr.f32.mxu0 0.0
    %2708 = vmatmul.mubr.f32.gmra.mrb[0].mxu0 %v2332
    %v2709 = vpop.f32.mrb[0].mxu0
    %v2710 = vadd.f32 0.0, %v2709
    %v2711 = vpop.f32.mrb[0].mxu0
    %2712 = vmatprep.mubr.f32.mxu0 0.0
    %2713 = vmatmul.mubr.f32.gmra.mrb[0].mxu0 %v2335
    %v2714 = vpop.f32.mrb[0].mxu0
    %v2715 = vadd.f32 0.0, %v2714
    %v2716 = vpop.f32.mrb[0].mxu0
    %2717 = vmatprep.mubr.f32.mxu0 0.0
    %2718 = vmatmul.mubr.f32.gmra.mrb[0].mxu0 %v2338
    %v2719 = vpop.f32.mrb[0].mxu0
    %v2720 = vadd.f32 0.0, %v2719
    %v2721 = vpop.f32.mrb[0].mxu0
    %2722 = vmatprep.mubr.f32.mxu0 0.0
    %2723 = vmatmul.mubr.f32.gmra.mrb[0].mxu0 %v2341
    %v2724 = vpop.f32.mrb[0].mxu0
    %v2725 = vadd.f32 0.0, %v2724
    %v2726 = vpop.f32.mrb[0].mxu0
    %2727 = vdwg.mxu0
    %v2728 = vadd.f32 %v1833, %v2410
    %v2729 = vadd.f32 %v1838, %v2415
    %v2730 = vadd.f32 %v1843, %v2420
    %v2731 = vadd.f32 %v1848, %v2425
    %v2732 = vadd.f32 %v1853, %v2430
    %v2733 = vadd.f32 %v1858, %v2435
    %v2734 = vadd.f32 %v1863, %v2440
    %v2735 = vadd.f32 %v1868, %v2445
    %v2736 = vadd.f32 %v1873, %v2450
    %v2737 = vadd.f32 %v1878, %v2455
    %v2738 = vadd.f32 %v1883, %v2460
    %v2739 = vadd.f32 %v1888, %v2465
    %v2740 = vadd.f32 %v1893, %v2470
    %v2741 = vadd.f32 %v1898, %v2475
    %v2742 = vadd.f32 %v1903, %v2480
    %v2743 = vadd.f32 %v1908, %v2485
    %v2744 = vadd.f32 %v1913, %v2490
    %v2745 = vadd.f32 %v1918, %v2495
    %v2746 = vadd.f32 %v1923, %v2500
    %v2747 = vadd.f32 %v1928, %v2505
    %v2748 = vadd.f32 %v1933, %v2510
    %v2749 = vadd.f32 %v1938, %v2515
    %v2750 = vadd.f32 %v1943, %v2520
    %v2751 = vadd.f32 %v1948, %v2525
    %v2752 = vadd.f32 %v1953, %v2530
    %v2753 = vadd.f32 %v1958, %v2535
    %v2754 = vadd.f32 %v1963, %v2540
    %v2755 = vadd.f32 %v1968, %v2545
    %v2756 = vadd.f32 %v1973, %v2550
    %v2757 = vadd.f32 %v1978, %v2555
    %v2758 = vadd.f32 %v1983, %v2560
    %v2759 = vadd.f32 %v1988, %v2565
    %v2760 = vadd.f32 %v1993, %v2570
    %v2761 = vadd.f32 %v1998, %v2575
    %v2762 = vadd.f32 %v2003, %v2580
    %v2763 = vadd.f32 %v2008, %v2585
    %v2764 = vadd.f32 %v2013, %v2590
    %v2765 = vadd.f32 %v2018, %v2595
    %v2766 = vadd.f32 %v2023, %v2600
    %v2767 = vadd.f32 %v2028, %v2605
    %v2768 = vadd.f32 %v2033, %v2610
    %v2769 = vadd.f32 %v2038, %v2615
    %v2770 = vadd.f32 %v2043, %v2620
    %v2771 = vadd.f32 %v2048, %v2625
    %v2772 = vadd.f32 %v2053, %v2630
    %v2773 = vadd.f32 %v2058, %v2635
    %v2774 = vadd.f32 %v2063, %v2640
    %v2775 = vadd.f32 %v2068, %v2645
    %v2776 = vadd.f32 %v2073, %v2650
    %v2777 = vadd.f32 %v2078, %v2655
    %v2778 = vadd.f32 %v2083, %v2660
    %v2779 = vadd.f32 %v2088, %v2665
    %v2780 = vadd.f32 %v2093, %v2670
    %v2781 = vadd.f32 %v2098, %v2675
    %v2782 = vadd.f32 %v2103, %v2680
    %v2783 = vadd.f32 %v2108, %v2685
    %v2784 = vadd.f32 %v2113, %v2690
    %v2785 = vadd.f32 %v2118, %v2695
    %v2786 = vadd.f32 %v2123, %v2700
    %v2787 = vadd.f32 %v2128, %v2705
    %v2788 = vadd.f32 %v2133, %v2710
    %v2789 = vadd.f32 %v2138, %v2715
    %v2790 = vadd.f32 %v2143, %v2720
    %v2791 = vadd.f32 %v2148, %v2725
    %v2792 = vlaneseq
    %v2793 = vshrl.u32 %v2792, 7
    %v2794 = vsub.s32 0, %v2793
    %v2795 = vrot.slane %v353, %v2794
    %v2796 = vadd.f32 %v2728, %v2795
    %v2797 = vadd.f32 %v2729, %v2795
    %v2798 = vadd.f32 %v2730, %v2795
    %v2799 = vadd.f32 %v2731, %v2795
    %v2800 = vadd.f32 %v2732, %v2795
    %v2801 = vadd.f32 %v2733, %v2795
    %v2802 = vadd.f32 %v2734, %v2795
    %v2803 = vadd.f32 %v2735, %v2795
    %v2804 = vadd.f32 %v2736, %v2795
    %v2805 = vadd.f32 %v2737, %v2795
    %v2806 = vadd.f32 %v2738, %v2795
    %v2807 = vadd.f32 %v2739, %v2795
    %v2808 = vadd.f32 %v2740, %v2795
    %v2809 = vadd.f32 %v2741, %v2795
    %v2810 = vadd.f32 %v2742, %v2795
    %v2811 = vadd.f32 %v2743, %v2795
    %v2812 = vadd.f32 %v2744, %v2795
    %v2813 = vadd.f32 %v2745, %v2795
    %v2814 = vadd.f32 %v2746, %v2795
    %v2815 = vadd.f32 %v2747, %v2795
    %v2816 = vadd.f32 %v2748, %v2795
    %v2817 = vadd.f32 %v2749, %v2795
    %v2818 = vadd.f32 %v2750, %v2795
    %v2819 = vadd.f32 %v2751, %v2795
    %v2820 = vadd.f32 %v2752, %v2795
    %v2821 = vadd.f32 %v2753, %v2795
    %v2822 = vadd.f32 %v2754, %v2795
    %v2823 = vadd.f32 %v2755, %v2795
    %v2824 = vadd.f32 %v2756, %v2795
    %v2825 = vadd.f32 %v2757, %v2795
    %v2826 = vadd.f32 %v2758, %v2795
    %v2827 = vadd.f32 %v2759, %v2795
    %v2828 = vadd.f32 %v2760, %v2795
    %v2829 = vadd.f32 %v2761, %v2795
    %v2830 = vadd.f32 %v2762, %v2795
    %v2831 = vadd.f32 %v2763, %v2795
    %v2832 = vadd.f32 %v2764, %v2795
    %v2833 = vadd.f32 %v2765, %v2795
    %v2834 = vadd.f32 %v2766, %v2795
    %v2835 = vadd.f32 %v2767, %v2795
    %v2836 = vadd.f32 %v2768, %v2795
    %v2837 = vadd.f32 %v2769, %v2795
    %v2838 = vadd.f32 %v2770, %v2795
    %v2839 = vadd.f32 %v2771, %v2795
    %v2840 = vadd.f32 %v2772, %v2795
    %v2841 = vadd.f32 %v2773, %v2795
    %v2842 = vadd.f32 %v2774, %v2795
    %v2843 = vadd.f32 %v2775, %v2795
    %v2844 = vadd.f32 %v2776, %v2795
    %v2845 = vadd.f32 %v2777, %v2795
    %v2846 = vadd.f32 %v2778, %v2795
    %v2847 = vadd.f32 %v2779, %v2795
    %v2848 = vadd.f32 %v2780, %v2795
    %v2849 = vadd.f32 %v2781, %v2795
    %v2850 = vadd.f32 %v2782, %v2795
    %v2851 = vadd.f32 %v2783, %v2795
    %v2852 = vadd.f32 %v2784, %v2795
    %v2853 = vadd.f32 %v2785, %v2795
    %v2854 = vadd.f32 %v2786, %v2795
    %v2855 = vadd.f32 %v2787, %v2795
    %v2856 = vadd.f32 %v2788, %v2795
    %v2857 = vadd.f32 %v2789, %v2795
    %v2858 = vadd.f32 %v2790, %v2795
    %v2859 = vadd.f32 %v2791, %v2795
    %v2860 = vmax.f32 %v2796, 0.0
    %v2861 = vmax.f32 %v2797, 0.0
    %v2862 = vmax.f32 %v2798, 0.0
    %v2863 = vmax.f32 %v2799, 0.0
    %v2864 = vmax.f32 %v2800, 0.0
    %v2865 = vmax.f32 %v2801, 0.0
    %v2866 = vmax.f32 %v2802, 0.0
    %v2867 = vmax.f32 %v2803, 0.0
    %v2868 = vmax.f32 %v2804, 0.0
    %v2869 = vmax.f32 %v2805, 0.0
    %v2870 = vmax.f32 %v2806, 0.0
    %v2871 = vmax.f32 %v2807, 0.0
    %v2872 = vmax.f32 %v2808, 0.0
    %v2873 = vmax.f32 %v2809, 0.0
    %v2874 = vmax.f32 %v2810, 0.0
    %v2875 = vmax.f32 %v2811, 0.0
    %v2876 = vmax.f32 %v2812, 0.0
    %v2877 = vmax.f32 %v2813, 0.0
    %v2878 = vmax.f32 %v2814, 0.0
    %v2879 = vmax.f32 %v2815, 0.0
    %v2880 = vmax.f32 %v2816, 0.0
    %v2881 = vmax.f32 %v2817, 0.0
    %v2882 = vmax.f32 %v2818, 0.0
    %v2883 = vmax.f32 %v2819, 0.0
    %v2884 = vmax.f32 %v2820, 0.0
    %v2885 = vmax.f32 %v2821, 0.0
    %v2886 = vmax.f32 %v2822, 0.0
    %v2887 = vmax.f32 %v2823, 0.0
    %v2888 = vmax.f32 %v2824, 0.0
    %v2889 = vmax.f32 %v2825, 0.0
    %v2890 = vmax.f32 %v2826, 0.0
    %v2891 = vmax.f32 %v2827, 0.0
    %v2892 = vmax.f32 %v2828, 0.0
    %v2893 = vmax.f32 %v2829, 0.0
    %v2894 = vmax.f32 %v2830, 0.0
    %v2895 = vmax.f32 %v2831, 0.0
    %v2896 = vmax.f32 %v2832, 0.0
    %v2897 = vmax.f32 %v2833, 0.0
    %v2898 = vmax.f32 %v2834, 0.0
    %v2899 = vmax.f32 %v2835, 0.0
    %v2900 = vmax.f32 %v2836, 0.0
    %v2901 = vmax.f32 %v2837, 0.0
    %v2902 = vmax.f32 %v2838, 0.0
    %v2903 = vmax.f32 %v2839, 0.0
    %v2904 = vmax.f32 %v2840, 0.0
    %v2905 = vmax.f32 %v2841, 0.0
    %v2906 = vmax.f32 %v2842, 0.0
    %v2907 = vmax.f32 %v2843, 0.0
    %v2908 = vmax.f32 %v2844, 0.0
    %v2909 = vmax.f32 %v2845, 0.0
    %v2910 = vmax.f32 %v2846, 0.0
    %v2911 = vmax.f32 %v2847, 0.0
    %v2912 = vmax.f32 %v2848, 0.0
    %v2913 = vmax.f32 %v2849, 0.0
    %v2914 = vmax.f32 %v2850, 0.0
    %v2915 = vmax.f32 %v2851, 0.0
    %v2916 = vmax.f32 %v2852, 0.0
    %v2917 = vmax.f32 %v2853, 0.0
    %v2918 = vmax.f32 %v2854, 0.0
    %v2919 = vmax.f32 %v2855, 0.0
    %v2920 = vmax.f32 %v2856, 0.0
    %v2921 = vmax.f32 %v2857, 0.0
    %v2922 = vmax.f32 %v2858, 0.0
    %v2923 = vmax.f32 %v2859, 0.0
    %v2924 = vld [vmem:[#allocation2 + $0x18] sm:$0xff]
    %v2925 = vld [vmem:[#allocation2 + $0x20] sm:$0xff]
    %v2926 = vld [vmem:[#allocation2 + $0x28] sm:$0xff]
    %v2927 = vld [vmem:[#allocation2 + $0x30] sm:$0xff]
    %v2928 = vld [vmem:[#allocation2 + $0x38] sm:$0xff]
    %v2929 = vld [vmem:[#allocation2 + $0x40] sm:$0xff]
    %v2930 = vld [vmem:[#allocation2 + $0x48] sm:$0xff]
    %v2931 = vld [vmem:[#allocation2 + $0x50] sm:$0xff]
    %v2932 = vld [vmem:[#allocation2 + $0x58] sm:$0xff]
    %v2933 = vld [vmem:[#allocation2 + $0x60] sm:$0xff]
    %v2934 = vld [vmem:[#allocation2 + $0x68] sm:$0xff]
    %v2935 = vld [vmem:[#allocation2 + $0x70] sm:$0xff]
    %v2936 = vld [vmem:[#allocation2 + $0x78] sm:$0xff]
    %v2937 = vld [vmem:[#allocation2 + $0x80] sm:$0xff]
    %v2938 = vld [vmem:[#allocation2 + $0x88] sm:$0xff]
    %v2939 = vld [vmem:[#allocation2 + $0x90] sm:$0xff]
    %v2940 = vld [vmem:[#allocation2 + $0x98] sm:$0xff]
    %v2941 = vld [vmem:[#allocation2 + $0xa0] sm:$0xff]
    %v2942 = vld [vmem:[#allocation2 + $0xa8] sm:$0xff]
    %v2943 = vld [vmem:[#allocation2 + $0xb0] sm:$0xff]
    %v2944 = vld [vmem:[#allocation2 + $0xb8] sm:$0xff]
    %v2945 = vld [vmem:[#allocation2 + $0xc0] sm:$0xff]
    %v2946 = vld [vmem:[#allocation2 + $0xc8] sm:$0xff]
    %v2947 = vld [vmem:[#allocation2 + $0xd0] sm:$0xff]
    %v2948 = vld [vmem:[#allocation2 + $0xd8] sm:$0xff]
    %v2949 = vld [vmem:[#allocation2 + $0xe0] sm:$0xff]
    %v2950 = vld [vmem:[#allocation2 + $0xe8] sm:$0xff]
    %v2951 = vld [vmem:[#allocation2 + $0xf0] sm:$0xff]
    %v2952 = vld [vmem:[#allocation2 + $0xf8] sm:$0xff]
    %v2953 = vld [vmem:[#allocation2 + $0x100] sm:$0xff]
    %v2954 = vld [vmem:[#allocation2 + $0x108] sm:$0xff]
    %v2955 = vld [vmem:[#allocation2 + $0x110] sm:$0xff]
    %v2956 = vld [vmem:[#allocation2 + $0x118] sm:$0xff]
    %v2957 = vld [vmem:[#allocation2 + $0x120] sm:$0xff]
    %v2958 = vld [vmem:[#allocation2 + $0x128] sm:$0xff]
    %v2959 = vld [vmem:[#allocation2 + $0x130] sm:$0xff]
    %v2960 = vld [vmem:[#allocation2 + $0x138] sm:$0xff]
    %v2961 = vld [vmem:[#allocation2 + $0x140] sm:$0xff]
    %v2962 = vld [vmem:[#allocation2 + $0x148] sm:$0xff]
    %v2963 = vld [vmem:[#allocation2 + $0x150] sm:$0xff]
    %v2964 = vld [vmem:[#allocation2 + $0x158] sm:$0xff]
    %v2965 = vld [vmem:[#allocation2 + $0x160] sm:$0xff]
    %v2966 = vld [vmem:[#allocation2 + $0x168] sm:$0xff]
    %v2967 = vld [vmem:[#allocation2 + $0x170] sm:$0xff]
    %v2968 = vld [vmem:[#allocation2 + $0x178] sm:$0xff]
    %v2969 = vld [vmem:[#allocation2 + $0x180] sm:$0xff]
    %v2970 = vld [vmem:[#allocation2 + $0x188] sm:$0xff]
    %v2971 = vld [vmem:[#allocation2 + $0x190] sm:$0xff]
    %v2972 = vld [vmem:[%s2 + $0x1] sm:$0x1]
    %v2973 = vrot.slane %v2860, 7
    %v2974 = vrot.slane %v2861, 7
    %v2975 = vrot.slane %v2862, 7
    %v2976 = vrot.slane %v2863, 7
    %v2977 = vrot.slane %v2864, 7
    %v2978 = vrot.slane %v2865, 7
    %v2979 = vrot.slane %v2866, 7
    %v2980 = vrot.slane %v2867, 7
    %v2981 = vrot.slane %v2868, 7
    %v2982 = vrot.slane %v2869, 7
    %v2983 = vrot.slane %v2870, 7
    %v2984 = vrot.slane %v2871, 7
    %v2985 = vrot.slane %v2872, 7
    %v2986 = vrot.slane %v2873, 7
    %v2987 = vrot.slane %v2874, 7
    %v2988 = vrot.slane %v2875, 7
    %v2989 = vrot.slane %v2876, 7
    %v2990 = vrot.slane %v2877, 7
    %v2991 = vrot.slane %v2878, 7
    %v2992 = vrot.slane %v2879, 7
    %v2993 = vrot.slane %v2880, 7
    %v2994 = vrot.slane %v2881, 7
    %v2995 = vrot.slane %v2882, 7
    %v2996 = vrot.slane %v2883, 7
    %v2997 = vrot.slane %v2884, 7
    %v2998 = vrot.slane %v2885, 7
    %v2999 = vrot.slane %v2886, 7
    %v3000 = vrot.slane %v2887, 7
    %v3001 = vrot.slane %v2888, 7
    %v3002 = vrot.slane %v2889, 7
    %v3003 = vrot.slane %v2890, 7
    %v3004 = vrot.slane %v2891, 7
    %v3005 = vrot.slane %v2892, 7
    %v3006 = vrot.slane %v2893, 7
    %v3007 = vrot.slane %v2894, 7
    %v3008 = vrot.slane %v2895, 7
    %v3009 = vrot.slane %v2896, 7
    %v3010 = vrot.slane %v2897, 7
    %v3011 = vrot.slane %v2898, 7
    %v3012 = vrot.slane %v2899, 7
    %v3013 = vrot.slane %v2900, 7
    %v3014 = vrot.slane %v2901, 7
    %v3015 = vrot.slane %v2902, 7
    %v3016 = vrot.slane %v2903, 7
    %v3017 = vrot.slane %v2904, 7
    %v3018 = vrot.slane %v2905, 7
    %v3019 = vrot.slane %v2906, 7
    %v3020 = vrot.slane %v2907, 7
    %v3021 = vrot.slane %v2908, 7
    %v3022 = vrot.slane %v2909, 7
    %v3023 = vrot.slane %v2910, 7
    %v3024 = vrot.slane %v2911, 7
    %v3025 = vrot.slane %v2912, 7
    %v3026 = vrot.slane %v2913, 7
    %v3027 = vrot.slane %v2914, 7
    %v3028 = vrot.slane %v2915, 7
    %v3029 = vrot.slane %v2916, 7
    %v3030 = vrot.slane %v2917, 7
    %v3031 = vrot.slane %v2918, 7
    %v3032 = vrot.slane %v2919, 7
    %v3033 = vrot.slane %v2920, 7
    %v3034 = vrot.slane %v2921, 7
    %v3035 = vrot.slane %v2922, 7
    %v3036 = vrot.slane %v2923, 7
    %v3037 = vsel %vm418, %v3035, %v3036
    %v3038 = vsel %vm418, %v3034, %v3035
    %v3039 = vsel %vm418, %v3033, %v3034
    %v3040 = vsel %vm418, %v3032, %v3033
    %v3041 = vsel %vm418, %v3031, %v3032
    %v3042 = vsel %vm418, %v3030, %v3031
    %v3043 = vsel %vm418, %v3029, %v3030
    %v3044 = vsel %vm418, %v3028, %v3029
    %v3045 = vsel %vm418, %v3027, %v3028
    %v3046 = vsel %vm418, %v3026, %v3027
    %v3047 = vsel %vm418, %v3025, %v3026
    %v3048 = vsel %vm418, %v3024, %v3025
    %v3049 = vsel %vm418, %v3023, %v3024
    %v3050 = vsel %vm418, %v3022, %v3023
    %v3051 = vsel %vm418, %v3021, %v3022
    %v3052 = vsel %vm418, %v3020, %v3021
    %v3053 = vsel %vm418, %v3019, %v3020
    %v3054 = vsel %vm418, %v3018, %v3019
    %v3055 = vsel %vm418, %v3017, %v3018
    %v3056 = vsel %vm418, %v3016, %v3017
    %v3057 = vsel %vm418, %v3015, %v3016
    %v3058 = vsel %vm418, %v3014, %v3015
    %v3059 = vsel %vm418, %v3013, %v3014
    %v3060 = vsel %vm418, %v3012, %v3013
    %v3061 = vsel %vm418, %v3011, %v3012
    %v3062 = vsel %vm418, %v3010, %v3011
    %v3063 = vsel %vm418, %v3009, %v3010
    %v3064 = vsel %vm418, %v3008, %v3009
    %v3065 = vsel %vm418, %v3007, %v3008
    %v3066 = vsel %vm418, %v3006, %v3007
    %v3067 = vsel %vm418, %v3005, %v3006
    %v3068 = vsel %vm418, %v3004, %v3005
    %v3069 = vsel %vm418, %v3003, %v3004
    %v3070 = vsel %vm418, %v3002, %v3003
    %v3071 = vsel %vm418, %v3001, %v3002
    %v3072 = vsel %vm418, %v3000, %v3001
    %v3073 = vsel %vm418, %v2999, %v3000
    %v3074 = vsel %vm418, %v2998, %v2999
    %v3075 = vsel %vm418, %v2997, %v2998
    %v3076 = vsel %vm418, %v2996, %v2997
    %v3077 = vsel %vm418, %v2995, %v2996
    %v3078 = vsel %vm418, %v2994, %v2995
    %v3079 = vsel %vm418, %v2993, %v2994
    %v3080 = vsel %vm418, %v2992, %v2993
    %v3081 = vsel %vm418, %v2991, %v2992
    %v3082 = vsel %vm418, %v2990, %v2991
    %v3083 = vsel %vm418, %v2989, %v2990
    %v3084 = vsel %vm418, %v2988, %v2989
    %v3085 = vsel %vm418, %v2987, %v2988
    %v3086 = vsel %vm418, %v2986, %v2987
    %v3087 = vsel %vm418, %v2985, %v2986
    %v3088 = vsel %vm418, %v2984, %v2985
    %v3089 = vsel %vm418, %v2983, %v2984
    %v3090 = vsel %vm418, %v2982, %v2983
    %v3091 = vsel %vm418, %v2981, %v2982
    %v3092 = vsel %vm418, %v2980, %v2981
    %v3093 = vsel %vm418, %v2979, %v2980
    %v3094 = vsel %vm418, %v2978, %v2979
    %v3095 = vsel %vm418, %v2977, %v2978
    %v3096 = vsel %vm418, %v2976, %v2977
    %v3097 = vsel %vm418, %v2975, %v2976
    %v3098 = vsel %vm418, %v2974, %v2975
    %v3099 = vsel %vm418, %v2973, %v2974
    %v3100 = vsel %vm418, %v3036, %v2973
    %v3101 = vsel %vm547, %v3100, 0.0
    %v3102 = vsel %vm548, %v3099, 0.0
    %v3103 = vsel %vm549, %v3098, 0.0
    %v3104 = vsel %vm550, %v3097, 0.0
    %v3105 = vsel %vm551, %v3096, 0.0
    %v3106 = vsel %vm552, %v3095, 0.0
    %v3107 = vsel %vm553, %v3094, 0.0
    %v3108 = vsel %vm554, %v3093, 0.0
    %v3109 = vsel %vm555, %v3092, 0.0
    %v3110 = vsel %vm556, %v3091, 0.0
    %v3111 = vsel %vm557, %v3090, 0.0
    %v3112 = vsel %vm558, %v3089, 0.0
    %v3113 = vsel %vm559, %v3088, 0.0
    %v3114 = vsel %vm560, %v3087, 0.0
    %v3115 = vsel %vm561, %v3086, 0.0
    %v3116 = vsel %vm562, %v3085, 0.0
    %v3117 = vsel %vm563, %v3084, 0.0
    %v3118 = vsel %vm564, %v3083, 0.0
    %v3119 = vsel %vm565, %v3082, 0.0
    %v3120 = vsel %vm566, %v3081, 0.0
    %v3121 = vsel %vm567, %v3080, 0.0
    %v3122 = vsel %vm568, %v3079, 0.0
    %v3123 = vsel %vm569, %v3078, 0.0
    %v3124 = vsel %vm570, %v3077, 0.0
    %v3125 = vsel %vm571, %v3076, 0.0
    %v3126 = vsel %vm572, %v3075, 0.0
    %v3127 = vsel %vm573, %v3074, 0.0
    %v3128 = vsel %vm574, %v3073, 0.0
    %v3129 = vsel %vm575, %v3072, 0.0
    %v3130 = vsel %vm576, %v3071, 0.0
    %v3131 = vsel %vm577, %v3070, 0.0
    %v3132 = vsel %vm578, %v3069, 0.0
    %v3133 = vsel %vm579, %v3068, 0.0
    %v3134 = vsel %vm580, %v3067, 0.0
    %v3135 = vsel %vm581, %v3066, 0.0
    %v3136 = vsel %vm582, %v3065, 0.0
    %v3137 = vsel %vm583, %v3064, 0.0
    %v3138 = vsel %vm584, %v3063, 0.0
    %v3139 = vsel %vm585, %v3062, 0.0
    %v3140 = vsel %vm586, %v3061, 0.0
    %v3141 = vsel %vm587, %v3060, 0.0
    %v3142 = vsel %vm588, %v3059, 0.0
    %v3143 = vsel %vm589, %v3058, 0.0
    %v3144 = vsel %vm590, %v3057, 0.0
    %v3145 = vsel %vm591, %v3056, 0.0
    %v3146 = vsel %vm592, %v3055, 0.0
    %v3147 = vsel %vm593, %v3054, 0.0
    %v3148 = vsel %vm594, %v3053, 0.0
    %v3149 = vsel %vm595, %v3052, 0.0
    %v3150 = vsel %vm596, %v3051, 0.0
    %v3151 = vsel %vm597, %v3050, 0.0
    %v3152 = vsel %vm598, %v3049, 0.0
    %v3153 = vsel %vm599, %v3048, 0.0
    %v3154 = vsel %vm600, %v3047, 0.0
    %v3155 = vsel %vm601, %v3046, 0.0
    %v3156 = vsel %vm602, %v3045, 0.0
    %v3157 = vsel %vm603, %v3044, 0.0
    %v3158 = vsel %vm604, %v3043, 0.0
    %v3159 = vsel %vm605, %v3042, 0.0
    %v3160 = vsel %vm606, %v3041, 0.0
    %v3161 = vsel %vm607, %v3040, 0.0
    %v3162 = vsel %vm608, %v3039, 0.0
    %v3163 = vsel %vm609, %v3038, 0.0
    %v3164 = vsel %vm610, %v3037, 0.0
    %v3165 = vrot.slane %v2860, 1
    %v3166 = vrot.slane %v2861, 1
    %v3167 = vrot.slane %v2862, 1
    %v3168 = vrot.slane %v2863, 1
    %v3169 = vrot.slane %v2864, 1
    %v3170 = vrot.slane %v2865, 1
    %v3171 = vrot.slane %v2866, 1
    %v3172 = vrot.slane %v2867, 1
    %v3173 = vrot.slane %v2868, 1
    %v3174 = vrot.slane %v2869, 1
    %v3175 = vrot.slane %v2870, 1
    %v3176 = vrot.slane %v2871, 1
    %v3177 = vrot.slane %v2872, 1
    %v3178 = vrot.slane %v2873, 1
    %v3179 = vrot.slane %v2874, 1
    %v3180 = vrot.slane %v2875, 1
    %v3181 = vrot.slane %v2876, 1
    %v3182 = vrot.slane %v2877, 1
    %v3183 = vrot.slane %v2878, 1
    %v3184 = vrot.slane %v2879, 1
    %v3185 = vrot.slane %v2880, 1
    %v3186 = vrot.slane %v2881, 1
    %v3187 = vrot.slane %v2882, 1
    %v3188 = vrot.slane %v2883, 1
    %v3189 = vrot.slane %v2884, 1
    %v3190 = vrot.slane %v2885, 1
    %v3191 = vrot.slane %v2886, 1
    %v3192 = vrot.slane %v2887, 1
    %v3193 = vrot.slane %v2888, 1
    %v3194 = vrot.slane %v2889, 1
    %v3195 = vrot.slane %v2890, 1
    %v3196 = vrot.slane %v2891, 1
    %v3197 = vrot.slane %v2892, 1
    %v3198 = vrot.slane %v2893, 1
    %v3199 = vrot.slane %v2894, 1
    %v3200 = vrot.slane %v2895, 1
    %v3201 = vrot.slane %v2896, 1
    %v3202 = vrot.slane %v2897, 1
    %v3203 = vrot.slane %v2898, 1
    %v3204 = vrot.slane %v2899, 1
    %v3205 = vrot.slane %v2900, 1
    %v3206 = vrot.slane %v2901, 1
    %v3207 = vrot.slane %v2902, 1
    %v3208 = vrot.slane %v2903, 1
    %v3209 = vrot.slane %v2904, 1
    %v3210 = vrot.slane %v2905, 1
    %v3211 = vrot.slane %v2906, 1
    %v3212 = vrot.slane %v2907, 1
    %v3213 = vrot.slane %v2908, 1
    %v3214 = vrot.slane %v2909, 1
    %v3215 = vrot.slane %v2910, 1
    %v3216 = vrot.slane %v2911, 1
    %v3217 = vrot.slane %v2912, 1
    %v3218 = vrot.slane %v2913, 1
    %v3219 = vrot.slane %v2914, 1
    %v3220 = vrot.slane %v2915, 1
    %v3221 = vrot.slane %v2916, 1
    %v3222 = vrot.slane %v2917, 1
    %v3223 = vrot.slane %v2918, 1
    %v3224 = vrot.slane %v2919, 1
    %v3225 = vrot.slane %v2920, 1
    %v3226 = vrot.slane %v2921, 1
    %v3227 = vrot.slane %v2922, 1
    %v3228 = vrot.slane %v2923, 1
    %v3229 = vsel %vm739, %v3227, %v3228
    %v3230 = vsel %vm739, %v3226, %v3227
    %v3231 = vsel %vm739, %v3225, %v3226
    %v3232 = vsel %vm739, %v3224, %v3225
    %v3233 = vsel %vm739, %v3223, %v3224
    %v3234 = vsel %vm739, %v3222, %v3223
    %v3235 = vsel %vm739, %v3221, %v3222
    %v3236 = vsel %vm739, %v3220, %v3221
    %v3237 = vsel %vm739, %v3219, %v3220
    %v3238 = vsel %vm739, %v3218, %v3219
    %v3239 = vsel %vm739, %v3217, %v3218
    %v3240 = vsel %vm739, %v3216, %v3217
    %v3241 = vsel %vm739, %v3215, %v3216
    %v3242 = vsel %vm739, %v3214, %v3215
    %v3243 = vsel %vm739, %v3213, %v3214
    %v3244 = vsel %vm739, %v3212, %v3213
    %v3245 = vsel %vm739, %v3211, %v3212
    %v3246 = vsel %vm739, %v3210, %v3211
    %v3247 = vsel %vm739, %v3209, %v3210
    %v3248 = vsel %vm739, %v3208, %v3209
    %v3249 = vsel %vm739, %v3207, %v3208
    %v3250 = vsel %vm739, %v3206, %v3207
    %v3251 = vsel %vm739, %v3205, %v3206
    %v3252 = vsel %vm739, %v3204, %v3205
    %v3253 = vsel %vm739, %v3203, %v3204
    %v3254 = vsel %vm739, %v3202, %v3203
    %v3255 = vsel %vm739, %v3201, %v3202
    %v3256 = vsel %vm739, %v3200, %v3201
    %v3257 = vsel %vm739, %v3199, %v3200
    %v3258 = vsel %vm739, %v3198, %v3199
    %v3259 = vsel %vm739, %v3197, %v3198
    %v3260 = vsel %vm739, %v3196, %v3197
    %v3261 = vsel %vm739, %v3195, %v3196
    %v3262 = vsel %vm739, %v3194, %v3195
    %v3263 = vsel %vm739, %v3193, %v3194
    %v3264 = vsel %vm739, %v3192, %v3193
    %v3265 = vsel %vm739, %v3191, %v3192
    %v3266 = vsel %vm739, %v3190, %v3191
    %v3267 = vsel %vm739, %v3189, %v3190
    %v3268 = vsel %vm739, %v3188, %v3189
    %v3269 = vsel %vm739, %v3187, %v3188
    %v3270 = vsel %vm739, %v3186, %v3187
    %v3271 = vsel %vm739, %v3185, %v3186
    %v3272 = vsel %vm739, %v3184, %v3185
    %v3273 = vsel %vm739, %v3183, %v3184
    %v3274 = vsel %vm739, %v3182, %v3183
    %v3275 = vsel %vm739, %v3181, %v3182
    %v3276 = vsel %vm739, %v3180, %v3181
    %v3277 = vsel %vm739, %v3179, %v3180
    %v3278 = vsel %vm739, %v3178, %v3179
    %v3279 = vsel %vm739, %v3177, %v3178
    %v3280 = vsel %vm739, %v3176, %v3177
    %v3281 = vsel %vm739, %v3175, %v3176
    %v3282 = vsel %vm739, %v3174, %v3175
    %v3283 = vsel %vm739, %v3173, %v3174
    %v3284 = vsel %vm739, %v3172, %v3173
    %v3285 = vsel %vm739, %v3171, %v3172
    %v3286 = vsel %vm739, %v3170, %v3171
    %v3287 = vsel %vm739, %v3169, %v3170
    %v3288 = vsel %vm739, %v3168, %v3169
    %v3289 = vsel %vm739, %v3167, %v3168
    %v3290 = vsel %vm739, %v3166, %v3167
    %v3291 = vsel %vm739, %v3165, %v3166
    %v3292 = vsel %vm739, %v3228, %v3165
    %v3293 = vsel %vm868, %v3291, 0.0
    %v3294 = vsel %vm869, %v3290, 0.0
    %v3295 = vsel %vm870, %v3289, 0.0
    %v3296 = vsel %vm871, %v3288, 0.0
    %v3297 = vsel %vm872, %v3287, 0.0
    %v3298 = vsel %vm873, %v3286, 0.0
    %v3299 = vsel %vm874, %v3285, 0.0
    %v3300 = vsel %vm875, %v3284, 0.0
    %v3301 = vsel %vm876, %v3283, 0.0
    %v3302 = vsel %vm877, %v3282, 0.0
    %v3303 = vsel %vm878, %v3281, 0.0
    %v3304 = vsel %vm879, %v3280, 0.0
    %v3305 = vsel %vm880, %v3279, 0.0
    %v3306 = vsel %vm881, %v3278, 0.0
    %v3307 = vsel %vm882, %v3277, 0.0
    %v3308 = vsel %vm883, %v3276, 0.0
    %v3309 = vsel %vm884, %v3275, 0.0
    %v3310 = vsel %vm885, %v3274, 0.0
    %v3311 = vsel %vm886, %v3273, 0.0
    %v3312 = vsel %vm887, %v3272, 0.0
    %v3313 = vsel %vm888, %v3271, 0.0
    %v3314 = vsel %vm889, %v3270, 0.0
    %v3315 = vsel %vm890, %v3269, 0.0
    %v3316 = vsel %vm891, %v3268, 0.0
    %v3317 = vsel %vm892, %v3267, 0.0
    %v3318 = vsel %vm893, %v3266, 0.0
    %v3319 = vsel %vm894, %v3265, 0.0
    %v3320 = vsel %vm895, %v3264, 0.0
    %v3321 = vsel %vm896, %v3263, 0.0
    %v3322 = vsel %vm897, %v3262, 0.0
    %v3323 = vsel %vm898, %v3261, 0.0
    %v3324 = vsel %vm899, %v3260, 0.0
    %v3325 = vsel %vm900, %v3259, 0.0
    %v3326 = vsel %vm901, %v3258, 0.0
    %v3327 = vsel %vm902, %v3257, 0.0
    %v3328 = vsel %vm903, %v3256, 0.0
    %v3329 = vsel %vm904, %v3255, 0.0
    %v3330 = vsel %vm905, %v3254, 0.0
    %v3331 = vsel %vm906, %v3253, 0.0
    %v3332 = vsel %vm907, %v3252, 0.0
    %v3333 = vsel %vm908, %v3251, 0.0
    %v3334 = vsel %vm909, %v3250, 0.0
    %v3335 = vsel %vm910, %v3249, 0.0
    %v3336 = vsel %vm911, %v3248, 0.0
    %v3337 = vsel %vm912, %v3247, 0.0
    %v3338 = vsel %vm913, %v3246, 0.0
    %v3339 = vsel %vm914, %v3245, 0.0
    %v3340 = vsel %vm915, %v3244, 0.0
    %v3341 = vsel %vm916, %v3243, 0.0
    %v3342 = vsel %vm917, %v3242, 0.0
    %v3343 = vsel %vm918, %v3241, 0.0
    %v3344 = vsel %vm919, %v3240, 0.0
    %v3345 = vsel %vm920, %v3239, 0.0
    %v3346 = vsel %vm921, %v3238, 0.0
    %v3347 = vsel %vm922, %v3237, 0.0
    %v3348 = vsel %vm923, %v3236, 0.0
    %v3349 = vsel %vm924, %v3235, 0.0
    %v3350 = vsel %vm925, %v3234, 0.0
    %v3351 = vsel %vm926, %v3233, 0.0
    %v3352 = vsel %vm927, %v3232, 0.0
    %v3353 = vsel %vm928, %v3231, 0.0
    %v3354 = vsel %vm929, %v3230, 0.0
    %v3355 = vsel %vm930, %v3229, 0.0
    %v3356 = vsel %vm931, %v3292, 0.0
    %3357 = vmatprep.subr.mxu0 0.0
    %3358 = vmatpush1.msra.mxu0 %v2924
    %3359 = vmatprep.subr.mxu0 0.0
    %3360 = vmatpush1.msra.mxu0 %v2925
    %3361 = vmatprep.subr.mxu0 0.0
    %3362 = vmatpush1.msra.mxu0 %v2926
    %3363 = vmatprep.subr.mxu0 0.0
    %3364 = vmatpush1.msra.mxu0 %v2927
    %3365 = vmatprep.subr.mxu0 0.0
    %3366 = vmatpush1.msra.mxu0 %v2928
    %3367 = vmatprep.subr.mxu0 0.0
    %3368 = vmatpush1.msra.mxu0 %v2929
    %3369 = vmatprep.subr.mxu0 0.0
    %3370 = vmatpush1.msra.mxu0 %v2930
    %3371 = vmatprep.subr.mxu0 0.0
    %3372 = vmatpush1.msra.mxu0 %v2931
    %3373 = vmatprep.subr.mxu0 0.0
    %3374 = vmatpush1.msra.mxu0 %v2932
    %3375 = vmatprep.subr.mxu0 0.0
    %3376 = vmatpush1.msra.mxu0 %v2933
    %3377 = vmatprep.subr.mxu0 0.0
    %3378 = vmatpush1.msra.mxu0 %v2934
    %3379 = vmatprep.subr.mxu0 0.0
    %3380 = vmatpush1.msra.mxu0 %v2935
    %3381 = vmatprep.subr.mxu0 0.0
    %3382 = vmatpush1.msra.mxu0 %v2936
    %3383 = vmatprep.subr.mxu0 0.0
    %3384 = vmatpush1.msra.mxu0 %v2937
    %3385 = vmatprep.subr.mxu0 0.0
    %3386 = vmatpush1.msra.mxu0 %v2938
    %3387 = vmatprep.subr.mxu0 0.0
    %3388 = vmatpush1.msra.mxu0 %v2939
    %3389 = vmatprep.subr.mxu0 0.0
    %3390 = vmatpush1.msra.mxu0 0.0
    %3391 = vmatprep.subr.mxu0 0.0
    %3392 = vmatpush1.msra.mxu0 0.0
    %3393 = vmatprep.subr.mxu0 0.0
    %3394 = vmatpush1.msra.mxu0 0.0
    %3395 = vmatprep.subr.mxu0 0.0
    %3396 = vmatpush1.msra.mxu0 0.0
    %3397 = vmatprep.subr.mxu0 0.0
    %3398 = vmatpush1.msra.mxu0 0.0
    %3399 = vmatprep.subr.mxu0 0.0
    %3400 = vmatpush1.msra.mxu0 0.0
    %3401 = vmatprep.subr.mxu0 0.0
    %3402 = vmatpush1.msra.mxu0 0.0
    %3403 = vmatprep.subr.mxu0 0.0
    %3404 = vmatpush1.msra.mxu0 0.0
    %3405 = vmatprep.subr.mxu0 0.0
    %3406 = vmatpush1.msra.mxu0 0.0
    %3407 = vmatprep.subr.mxu0 0.0
    %3408 = vmatpush1.msra.mxu0 0.0
    %3409 = vmatprep.subr.mxu0 0.0
    %3410 = vmatpush1.msra.mxu0 0.0
    %3411 = vmatprep.subr.mxu0 0.0
    %3412 = vmatpush1.msra.mxu0 0.0
    %3413 = vmatprep.subr.mxu0 0.0
    %3414 = vmatpush1.msra.mxu0 0.0
    %3415 = vmatprep.subr.mxu0 0.0
    %3416 = vmatpush1.msra.mxu0 0.0
    %3417 = vmatprep.subr.mxu0 0.0
    %3418 = vmatpush1.msra.mxu0 0.0
    %3419 = vmatprep.subr.mxu0 0.0
    %3420 = vmatpush1.msra.mxu0 0.0
    %3421 = vmatprep.mubr.f32.mxu0 0.0
    %3422 = vmatmul.mubr.f32.gmra.mrb[0].mxu0 %v3101
    %v3423 = vpop.f32.mrb[0].mxu0
    %v3424 = vadd.f32 0.0, %v3423
    %v3425 = vpop.f32.mrb[0].mxu0
    %3426 = vmatprep.mubr.f32.mxu0 0.0
    %3427 = vmatmul.mubr.f32.gmra.mrb[0].mxu0 %v3102
    %v3428 = vpop.f32.mrb[0].mxu0
    %v3429 = vadd.f32 0.0, %v3428
    %v3430 = vpop.f32.mrb[0].mxu0
    %3431 = vmatprep.mubr.f32.mxu0 0.0
    %3432 = vmatmul.mubr.f32.gmra.mrb[0].mxu0 %v3103
    %v3433 = vpop.f32.mrb[0].mxu0
    %v3434 = vadd.f32 0.0, %v3433
    %v3435 = vpop.f32.mrb[0].mxu0
    %3436 = vmatprep.mubr.f32.mxu0 0.0
    %3437 = vmatmul.mubr.f32.gmra.mrb[0].mxu0 %v3104
    %v3438 = vpop.f32.mrb[0].mxu0
    %v3439 = vadd.f32 0.0, %v3438
    %v3440 = vpop.f32.mrb[0].mxu0
    %3441 = vmatprep.mubr.f32.mxu0 0.0
    %3442 = vmatmul.mubr.f32.gmra.mrb[0].mxu0 %v3105
    %v3443 = vpop.f32.mrb[0].mxu0
    %v3444 = vadd.f32 0.0, %v3443
    %v3445 = vpop.f32.mrb[0].mxu0
    %3446 = vmatprep.mubr.f32.mxu0 0.0
    %3447 = vmatmul.mubr.f32.gmra.mrb[0].mxu0 %v3106
    %v3448 = vpop.f32.mrb[0].mxu0
    %v3449 = vadd.f32 0.0, %v3448
    %v3450 = vpop.f32.mrb[0].mxu0
    %3451 = vmatprep.mubr.f32.mxu0 0.0
    %3452 = vmatmul.mubr.f32.gmra.mrb[0].mxu0 %v3107
    %v3453 = vpop.f32.mrb[0].mxu0
    %v3454 = vadd.f32 0.0, %v3453
    %v3455 = vpop.f32.mrb[0].mxu0
    %3456 = vmatprep.mubr.f32.mxu0 0.0
    %3457 = vmatmul.mubr.f32.gmra.mrb[0].mxu0 %v3108
    %v3458 = vpop.f32.mrb[0].mxu0
    %v3459 = vadd.f32 0.0, %v3458
    %v3460 = vpop.f32.mrb[0].mxu0
    %3461 = vmatprep.mubr.f32.mxu0 0.0
    %3462 = vmatmul.mubr.f32.gmra.mrb[0].mxu0 %v3109
    %v3463 = vpop.f32.mrb[0].mxu0
    %v3464 = vadd.f32 0.0, %v3463
    %v3465 = vpop.f32.mrb[0].mxu0
    %3466 = vmatprep.mubr.f32.mxu0 0.0
    %3467 = vmatmul.mubr.f32.gmra.mrb[0].mxu0 %v3110
    %v3468 = vpop.f32.mrb[0].mxu0
    %v3469 = vadd.f32 0.0, %v3468
    %v3470 = vpop.f32.mrb[0].mxu0
    %3471 = vmatprep.mubr.f32.mxu0 0.0
    %3472 = vmatmul.mubr.f32.gmra.mrb[0].mxu0 %v3111
    %v3473 = vpop.f32.mrb[0].mxu0
    %v3474 = vadd.f32 0.0, %v3473
    %v3475 = vpop.f32.mrb[0].mxu0
    %3476 = vmatprep.mubr.f32.mxu0 0.0
    %3477 = vmatmul.mubr.f32.gmra.mrb[0].mxu0 %v3112
    %v3478 = vpop.f32.mrb[0].mxu0
    %v3479 = vadd.f32 0.0, %v3478
    %v3480 = vpop.f32.mrb[0].mxu0
    %3481 = vmatprep.mubr.f32.mxu0 0.0
    %3482 = vmatmul.mubr.f32.gmra.mrb[0].mxu0 %v3113
    %v3483 = vpop.f32.mrb[0].mxu0
    %v3484 = vadd.f32 0.0, %v3483
    %v3485 = vpop.f32.mrb[0].mxu0
    %3486 = vmatprep.mubr.f32.mxu0 0.0
    %3487 = vmatmul.mubr.f32.gmra.mrb[0].mxu0 %v3114
    %v3488 = vpop.f32.mrb[0].mxu0
    %v3489 = vadd.f32 0.0, %v3488
    %v3490 = vpop.f32.mrb[0].mxu0
    %3491 = vmatprep.mubr.f32.mxu0 0.0
    %3492 = vmatmul.mubr.f32.gmra.mrb[0].mxu0 %v3115
    %v3493 = vpop.f32.mrb[0].mxu0
    %v3494 = vadd.f32 0.0, %v3493
    %v3495 = vpop.f32.mrb[0].mxu0
    %3496 = vmatprep.mubr.f32.mxu0 0.0
    %3497 = vmatmul.mubr.f32.gmra.mrb[0].mxu0 %v3116
    %v3498 = vpop.f32.mrb[0].mxu0
    %v3499 = vadd.f32 0.0, %v3498
    %v3500 = vpop.f32.mrb[0].mxu0
    %3501 = vmatprep.mubr.f32.mxu0 0.0
    %3502 = vmatmul.mubr.f32.gmra.mrb[0].mxu0 %v3117
    %v3503 = vpop.f32.mrb[0].mxu0
    %v3504 = vadd.f32 0.0, %v3503
    %v3505 = vpop.f32.mrb[0].mxu0
    %3506 = vmatprep.mubr.f32.mxu0 0.0
    %3507 = vmatmul.mubr.f32.gmra.mrb[0].mxu0 %v3118
    %v3508 = vpop.f32.mrb[0].mxu0
    %v3509 = vadd.f32 0.0, %v3508
    %v3510 = vpop.f32.mrb[0].mxu0
    %3511 = vmatprep.mubr.f32.mxu0 0.0
    %3512 = vmatmul.mubr.f32.gmra.mrb[0].mxu0 %v3119
    %v3513 = vpop.f32.mrb[0].mxu0
    %v3514 = vadd.f32 0.0, %v3513
    %v3515 = vpop.f32.mrb[0].mxu0
    %3516 = vmatprep.mubr.f32.mxu0 0.0
    %3517 = vmatmul.mubr.f32.gmra.mrb[0].mxu0 %v3120
    %v3518 = vpop.f32.mrb[0].mxu0
    %v3519 = vadd.f32 0.0, %v3518
    %v3520 = vpop.f32.mrb[0].mxu0
    %3521 = vmatprep.mubr.f32.mxu0 0.0
    %3522 = vmatmul.mubr.f32.gmra.mrb[0].mxu0 %v3121
    %v3523 = vpop.f32.mrb[0].mxu0
    %v3524 = vadd.f32 0.0, %v3523
    %v3525 = vpop.f32.mrb[0].mxu0
    %3526 = vmatprep.mubr.f32.mxu0 0.0
    %3527 = vmatmul.mubr.f32.gmra.mrb[0].mxu0 %v3122
    %v3528 = vpop.f32.mrb[0].mxu0
    %v3529 = vadd.f32 0.0, %v3528
    %v3530 = vpop.f32.mrb[0].mxu0
    %3531 = vmatprep.mubr.f32.mxu0 0.0
    %3532 = vmatmul.mubr.f32.gmra.mrb[0].mxu0 %v3123
    %v3533 = vpop.f32.mrb[0].mxu0
    %v3534 = vadd.f32 0.0, %v3533
    %v3535 = vpop.f32.mrb[0].mxu0
    %3536 = vmatprep.mubr.f32.mxu0 0.0
    %3537 = vmatmul.mubr.f32.gmra.mrb[0].mxu0 %v3124
    %v3538 = vpop.f32.mrb[0].mxu0
    %v3539 = vadd.f32 0.0, %v3538
    %v3540 = vpop.f32.mrb[0].mxu0
    %3541 = vmatprep.mubr.f32.mxu0 0.0
    %3542 = vmatmul.mubr.f32.gmra.mrb[0].mxu0 %v3125
    %v3543 = vpop.f32.mrb[0].mxu0
    %v3544 = vadd.f32 0.0, %v3543
    %v3545 = vpop.f32.mrb[0].mxu0
    %3546 = vmatprep.mubr.f32.mxu0 0.0
    %3547 = vmatmul.mubr.f32.gmra.mrb[0].mxu0 %v3126
    %v3548 = vpop.f32.mrb[0].mxu0
    %v3549 = vadd.f32 0.0, %v3548
    %v3550 = vpop.f32.mrb[0].mxu0
    %3551 = vmatprep.mubr.f32.mxu0 0.0
    %3552 = vmatmul.mubr.f32.gmra.mrb[0].mxu0 %v3127
    %v3553 = vpop.f32.mrb[0].mxu0
    %v3554 = vadd.f32 0.0, %v3553
    %v3555 = vpop.f32.mrb[0].mxu0
    %3556 = vmatprep.mubr.f32.mxu0 0.0
    %3557 = vmatmul.mubr.f32.gmra.mrb[0].mxu0 %v3128
    %v3558 = vpop.f32.mrb[0].mxu0
    %v3559 = vadd.f32 0.0, %v3558
    %v3560 = vpop.f32.mrb[0].mxu0
    %3561 = vmatprep.mubr.f32.mxu0 0.0
    %3562 = vmatmul.mubr.f32.gmra.mrb[0].mxu0 %v3129
    %v3563 = vpop.f32.mrb[0].mxu0
    %v3564 = vadd.f32 0.0, %v3563
    %v3565 = vpop.f32.mrb[0].mxu0
    %3566 = vmatprep.mubr.f32.mxu0 0.0
    %3567 = vmatmul.mubr.f32.gmra.mrb[0].mxu0 %v3130
    %v3568 = vpop.f32.mrb[0].mxu0
    %v3569 = vadd.f32 0.0, %v3568
    %v3570 = vpop.f32.mrb[0].mxu0
    %3571 = vmatprep.mubr.f32.mxu0 0.0
    %3572 = vmatmul.mubr.f32.gmra.mrb[0].mxu0 %v3131
    %v3573 = vpop.f32.mrb[0].mxu0
    %v3574 = vadd.f32 0.0, %v3573
    %v3575 = vpop.f32.mrb[0].mxu0
    %3576 = vmatprep.mubr.f32.mxu0 0.0
    %3577 = vmatmul.mubr.f32.gmra.mrb[0].mxu0 %v3132
    %v3578 = vpop.f32.mrb[0].mxu0
    %v3579 = vadd.f32 0.0, %v3578
    %v3580 = vpop.f32.mrb[0].mxu0
    %3581 = vmatprep.mubr.f32.mxu0 0.0
    %3582 = vmatmul.mubr.f32.gmra.mrb[0].mxu0 %v3133
    %v3583 = vpop.f32.mrb[0].mxu0
    %v3584 = vadd.f32 0.0, %v3583
    %v3585 = vpop.f32.mrb[0].mxu0
    %3586 = vmatprep.mubr.f32.mxu0 0.0
    %3587 = vmatmul.mubr.f32.gmra.mrb[0].mxu0 %v3134
    %v3588 = vpop.f32.mrb[0].mxu0
    %v3589 = vadd.f32 0.0, %v3588
    %v3590 = vpop.f32.mrb[0].mxu0
    %3591 = vmatprep.mubr.f32.mxu0 0.0
    %3592 = vmatmul.mubr.f32.gmra.mrb[0].mxu0 %v3135
    %v3593 = vpop.f32.mrb[0].mxu0
    %v3594 = vadd.f32 0.0, %v3593
    %v3595 = vpop.f32.mrb[0].mxu0
    %3596 = vmatprep.mubr.f32.mxu0 0.0
    %3597 = vmatmul.mubr.f32.gmra.mrb[0].mxu0 %v3136
    %v3598 = vpop.f32.mrb[0].mxu0
    %v3599 = vadd.f32 0.0, %v3598
    %v3600 = vpop.f32.mrb[0].mxu0
    %3601 = vmatprep.mubr.f32.mxu0 0.0
    %3602 = vmatmul.mubr.f32.gmra.mrb[0].mxu0 %v3137
    %v3603 = vpop.f32.mrb[0].mxu0
    %v3604 = vadd.f32 0.0, %v3603
    %v3605 = vpop.f32.mrb[0].mxu0
    %3606 = vmatprep.mubr.f32.mxu0 0.0
    %3607 = vmatmul.mubr.f32.gmra.mrb[0].mxu0 %v3138
    %v3608 = vpop.f32.mrb[0].mxu0
    %v3609 = vadd.f32 0.0, %v3608
    %v3610 = vpop.f32.mrb[0].mxu0
    %3611 = vmatprep.mubr.f32.mxu0 0.0
    %3612 = vmatmul.mubr.f32.gmra.mrb[0].mxu0 %v3139
    %v3613 = vpop.f32.mrb[0].mxu0
    %v3614 = vadd.f32 0.0, %v3613
    %v3615 = vpop.f32.mrb[0].mxu0
    %3616 = vmatprep.mubr.f32.mxu0 0.0
    %3617 = vmatmul.mubr.f32.gmra.mrb[0].mxu0 %v3140
    %v3618 = vpop.f32.mrb[0].mxu0
    %v3619 = vadd.f32 0.0, %v3618
    %v3620 = vpop.f32.mrb[0].mxu0
    %3621 = vmatprep.mubr.f32.mxu0 0.0
    %3622 = vmatmul.mubr.f32.gmra.mrb[0].mxu0 %v3141
    %v3623 = vpop.f32.mrb[0].mxu0
    %v3624 = vadd.f32 0.0, %v3623
    %v3625 = vpop.f32.mrb[0].mxu0
    %3626 = vmatprep.mubr.f32.mxu0 0.0
    %3627 = vmatmul.mubr.f32.gmra.mrb[0].mxu0 %v3142
    %v3628 = vpop.f32.mrb[0].mxu0
    %v3629 = vadd.f32 0.0, %v3628
    %v3630 = vpop.f32.mrb[0].mxu0
    %3631 = vmatprep.mubr.f32.mxu0 0.0
    %3632 = vmatmul.mubr.f32.gmra.mrb[0].mxu0 %v3143
    %v3633 = vpop.f32.mrb[0].mxu0
    %v3634 = vadd.f32 0.0, %v3633
    %v3635 = vpop.f32.mrb[0].mxu0
    %3636 = vmatprep.mubr.f32.mxu0 0.0
    %3637 = vmatmul.mubr.f32.gmra.mrb[0].mxu0 %v3144
    %v3638 = vpop.f32.mrb[0].mxu0
    %v3639 = vadd.f32 0.0, %v3638
    %v3640 = vpop.f32.mrb[0].mxu0
    %3641 = vmatprep.mubr.f32.mxu0 0.0
    %3642 = vmatmul.mubr.f32.gmra.mrb[0].mxu0 %v3145
    %v3643 = vpop.f32.mrb[0].mxu0
    %v3644 = vadd.f32 0.0, %v3643
    %v3645 = vpop.f32.mrb[0].mxu0
    %3646 = vmatprep.mubr.f32.mxu0 0.0
    %3647 = vmatmul.mubr.f32.gmra.mrb[0].mxu0 %v3146
    %v3648 = vpop.f32.mrb[0].mxu0
    %v3649 = vadd.f32 0.0, %v3648
    %v3650 = vpop.f32.mrb[0].mxu0
    %3651 = vmatprep.mubr.f32.mxu0 0.0
    %3652 = vmatmul.mubr.f32.gmra.mrb[0].mxu0 %v3147
    %v3653 = vpop.f32.mrb[0].mxu0
    %v3654 = vadd.f32 0.0, %v3653
    %v3655 = vpop.f32.mrb[0].mxu0
    %3656 = vmatprep.mubr.f32.mxu0 0.0
    %3657 = vmatmul.mubr.f32.gmra.mrb[0].mxu0 %v3148
    %v3658 = vpop.f32.mrb[0].mxu0
    %v3659 = vadd.f32 0.0, %v3658
    %v3660 = vpop.f32.mrb[0].mxu0
    %3661 = vmatprep.mubr.f32.mxu0 0.0
    %3662 = vmatmul.mubr.f32.gmra.mrb[0].mxu0 %v3149
    %v3663 = vpop.f32.mrb[0].mxu0
    %v3664 = vadd.f32 0.0, %v3663
    %v3665 = vpop.f32.mrb[0].mxu0
    %3666 = vmatprep.mubr.f32.mxu0 0.0
    %3667 = vmatmul.mubr.f32.gmra.mrb[0].mxu0 %v3150
    %v3668 = vpop.f32.mrb[0].mxu0
    %v3669 = vadd.f32 0.0, %v3668
    %v3670 = vpop.f32.mrb[0].mxu0
    %3671 = vmatprep.mubr.f32.mxu0 0.0
    %3672 = vmatmul.mubr.f32.gmra.mrb[0].mxu0 %v3151
    %v3673 = vpop.f32.mrb[0].mxu0
    %v3674 = vadd.f32 0.0, %v3673
    %v3675 = vpop.f32.mrb[0].mxu0
    %3676 = vmatprep.mubr.f32.mxu0 0.0
    %3677 = vmatmul.mubr.f32.gmra.mrb[0].mxu0 %v3152
    %v3678 = vpop.f32.mrb[0].mxu0
    %v3679 = vadd.f32 0.0, %v3678
    %v3680 = vpop.f32.mrb[0].mxu0
    %3681 = vmatprep.mubr.f32.mxu0 0.0
    %3682 = vmatmul.mubr.f32.gmra.mrb[0].mxu0 %v3153
    %v3683 = vpop.f32.mrb[0].mxu0
    %v3684 = vadd.f32 0.0, %v3683
    %v3685 = vpop.f32.mrb[0].mxu0
    %3686 = vmatprep.mubr.f32.mxu0 0.0
    %3687 = vmatmul.mubr.f32.gmra.mrb[0].mxu0 %v3154
    %v3688 = vpop.f32.mrb[0].mxu0
    %v3689 = vadd.f32 0.0, %v3688
    %v3690 = vpop.f32.mrb[0].mxu0
    %3691 = vmatprep.mubr.f32.mxu0 0.0
    %3692 = vmatmul.mubr.f32.gmra.mrb[0].mxu0 %v3155
    %v3693 = vpop.f32.mrb[0].mxu0
    %v3694 = vadd.f32 0.0, %v3693
    %v3695 = vpop.f32.mrb[0].mxu0
    %3696 = vmatprep.mubr.f32.mxu0 0.0
    %3697 = vmatmul.mubr.f32.gmra.mrb[0].mxu0 %v3156
    %v3698 = vpop.f32.mrb[0].mxu0
    %v3699 = vadd.f32 0.0, %v3698
    %v3700 = vpop.f32.mrb[0].mxu0
    %3701 = vmatprep.mubr.f32.mxu0 0.0
    %3702 = vmatmul.mubr.f32.gmra.mrb[0].mxu0 %v3157
    %v3703 = vpop.f32.mrb[0].mxu0
    %v3704 = vadd.f32 0.0, %v3703
    %v3705 = vpop.f32.mrb[0].mxu0
    %3706 = vmatprep.mubr.f32.mxu0 0.0
    %3707 = vmatmul.mubr.f32.gmra.mrb[0].mxu0 %v3158
    %v3708 = vpop.f32.mrb[0].mxu0
    %v3709 = vadd.f32 0.0, %v3708
    %v3710 = vpop.f32.mrb[0].mxu0
    %3711 = vmatprep.mubr.f32.mxu0 0.0
    %3712 = vmatmul.mubr.f32.gmra.mrb[0].mxu0 %v3159
    %v3713 = vpop.f32.mrb[0].mxu0
    %v3714 = vadd.f32 0.0, %v3713
    %v3715 = vpop.f32.mrb[0].mxu0
    %3716 = vmatprep.mubr.f32.mxu0 0.0
    %3717 = vmatmul.mubr.f32.gmra.mrb[0].mxu0 %v3160
    %v3718 = vpop.f32.mrb[0].mxu0
    %v3719 = vadd.f32 0.0, %v3718
    %v3720 = vpop.f32.mrb[0].mxu0
    %3721 = vmatprep.mubr.f32.mxu0 0.0
    %3722 = vmatmul.mubr.f32.gmra.mrb[0].mxu0 %v3161
    %v3723 = vpop.f32.mrb[0].mxu0
    %v3724 = vadd.f32 0.0, %v3723
    %v3725 = vpop.f32.mrb[0].mxu0
    %3726 = vmatprep.mubr.f32.mxu0 0.0
    %3727 = vmatmul.mubr.f32.gmra.mrb[0].mxu0 %v3162
    %v3728 = vpop.f32.mrb[0].mxu0
    %v3729 = vadd.f32 0.0, %v3728
    %v3730 = vpop.f32.mrb[0].mxu0
    %3731 = vmatprep.mubr.f32.mxu0 0.0
    %3732 = vmatmul.mubr.f32.gmra.mrb[0].mxu0 %v3163
    %v3733 = vpop.f32.mrb[0].mxu0
    %v3734 = vadd.f32 0.0, %v3733
    %v3735 = vpop.f32.mrb[0].mxu0
    %3736 = vmatprep.mubr.f32.mxu0 0.0
    %3737 = vmatmul.mubr.f32.gmra.mrb[0].mxu0 %v3164
    %v3738 = vpop.f32.mrb[0].mxu0
    %v3739 = vadd.f32 0.0, %v3738
    %v3740 = vpop.f32.mrb[0].mxu0
    %3741 = vdwg.mxu0
    %3742 = vmatprep.subr.mxu0 0.0
    %3743 = vmatpush1.msra.mxu0 %v2940
    %3744 = vmatprep.subr.mxu0 0.0
    %3745 = vmatpush1.msra.mxu0 %v2941
    %3746 = vmatprep.subr.mxu0 0.0
    %3747 = vmatpush1.msra.mxu0 %v2942
    %3748 = vmatprep.subr.mxu0 0.0
    %3749 = vmatpush1.msra.mxu0 %v2943
    %3750 = vmatprep.subr.mxu0 0.0
    %3751 = vmatpush1.msra.mxu0 %v2944
    %3752 = vmatprep.subr.mxu0 0.0
    %3753 = vmatpush1.msra.mxu0 %v2945
    %3754 = vmatprep.subr.mxu0 0.0
    %3755 = vmatpush1.msra.mxu0 %v2946
    %3756 = vmatprep.subr.mxu0 0.0
    %3757 = vmatpush1.msra.mxu0 %v2947
    %3758 = vmatprep.subr.mxu0 0.0
    %3759 = vmatpush1.msra.mxu0 %v2948
    %3760 = vmatprep.subr.mxu0 0.0
    %3761 = vmatpush1.msra.mxu0 %v2949
    %3762 = vmatprep.subr.mxu0 0.0
    %3763 = vmatpush1.msra.mxu0 %v2950
    %3764 = vmatprep.subr.mxu0 0.0
    %3765 = vmatpush1.msra.mxu0 %v2951
    %3766 = vmatprep.subr.mxu0 0.0
    %3767 = vmatpush1.msra.mxu0 %v2952
    %3768 = vmatprep.subr.mxu0 0.0
    %3769 = vmatpush1.msra.mxu0 %v2953
    %3770 = vmatprep.subr.mxu0 0.0
    %3771 = vmatpush1.msra.mxu0 %v2954
    %3772 = vmatprep.subr.mxu0 0.0
    %3773 = vmatpush1.msra.mxu0 %v2955
    %3774 = vmatprep.subr.mxu0 0.0
    %3775 = vmatpush1.msra.mxu0 0.0
    %3776 = vmatprep.subr.mxu0 0.0
    %3777 = vmatpush1.msra.mxu0 0.0
    %3778 = vmatprep.subr.mxu0 0.0
    %3779 = vmatpush1.msra.mxu0 0.0
    %3780 = vmatprep.subr.mxu0 0.0
    %3781 = vmatpush1.msra.mxu0 0.0
    %3782 = vmatprep.subr.mxu0 0.0
    %3783 = vmatpush1.msra.mxu0 0.0
    %3784 = vmatprep.subr.mxu0 0.0
    %3785 = vmatpush1.msra.mxu0 0.0
    %3786 = vmatprep.subr.mxu0 0.0
    %3787 = vmatpush1.msra.mxu0 0.0
    %3788 = vmatprep.subr.mxu0 0.0
    %3789 = vmatpush1.msra.mxu0 0.0
    %3790 = vmatprep.subr.mxu0 0.0
    %3791 = vmatpush1.msra.mxu0 0.0
    %3792 = vmatprep.subr.mxu0 0.0
    %3793 = vmatpush1.msra.mxu0 0.0
    %3794 = vmatprep.subr.mxu0 0.0
    %3795 = vmatpush1.msra.mxu0 0.0
    %3796 = vmatprep.subr.mxu0 0.0
    %3797 = vmatpush1.msra.mxu0 0.0
    %3798 = vmatprep.subr.mxu0 0.0
    %3799 = vmatpush1.msra.mxu0 0.0
    %3800 = vmatprep.subr.mxu0 0.0
    %3801 = vmatpush1.msra.mxu0 0.0
    %3802 = vmatprep.subr.mxu0 0.0
    %3803 = vmatpush1.msra.mxu0 0.0
    %3804 = vmatprep.subr.mxu0 0.0
    %3805 = vmatpush1.msra.mxu0 0.0
    %3806 = vmatprep.mubr.f32.mxu0 0.0
    %3807 = vmatmul.mubr.f32.gmra.mrb[0].mxu0 %v2860
    %v3808 = vpop.f32.mrb[0].mxu0
    %v3809 = vadd.f32 %v3424, %v3808
    %v3810 = vpop.f32.mrb[0].mxu0
    %3811 = vmatprep.mubr.f32.mxu0 0.0
    %3812 = vmatmul.mubr.f32.gmra.mrb[0].mxu0 %v2861
    %v3813 = vpop.f32.mrb[0].mxu0
    %v3814 = vadd.f32 %v3429, %v3813
    %v3815 = vpop.f32.mrb[0].mxu0
    %3816 = vmatprep.mubr.f32.mxu0 0.0
    %3817 = vmatmul.mubr.f32.gmra.mrb[0].mxu0 %v2862
    %v3818 = vpop.f32.mrb[0].mxu0
    %v3819 = vadd.f32 %v3434, %v3818
    %v3820 = vpop.f32.mrb[0].mxu0
    %3821 = vmatprep.mubr.f32.mxu0 0.0
    %3822 = vmatmul.mubr.f32.gmra.mrb[0].mxu0 %v2863
    %v3823 = vpop.f32.mrb[0].mxu0
    %v3824 = vadd.f32 %v3439, %v3823
    %v3825 = vpop.f32.mrb[0].mxu0
    %3826 = vmatprep.mubr.f32.mxu0 0.0
    %3827 = vmatmul.mubr.f32.gmra.mrb[0].mxu0 %v2864
    %v3828 = vpop.f32.mrb[0].mxu0
    %v3829 = vadd.f32 %v3444, %v3828
    %v3830 = vpop.f32.mrb[0].mxu0
    %3831 = vmatprep.mubr.f32.mxu0 0.0
    %3832 = vmatmul.mubr.f32.gmra.mrb[0].mxu0 %v2865
    %v3833 = vpop.f32.mrb[0].mxu0
    %v3834 = vadd.f32 %v3449, %v3833
    %v3835 = vpop.f32.mrb[0].mxu0
    %3836 = vmatprep.mubr.f32.mxu0 0.0
    %3837 = vmatmul.mubr.f32.gmra.mrb[0].mxu0 %v2866
    %v3838 = vpop.f32.mrb[0].mxu0
    %v3839 = vadd.f32 %v3454, %v3838
    %v3840 = vpop.f32.mrb[0].mxu0
    %3841 = vmatprep.mubr.f32.mxu0 0.0
    %3842 = vmatmul.mubr.f32.gmra.mrb[0].mxu0 %v2867
    %v3843 = vpop.f32.mrb[0].mxu0
    %v3844 = vadd.f32 %v3459, %v3843
    %v3845 = vpop.f32.mrb[0].mxu0
    %3846 = vmatprep.mubr.f32.mxu0 0.0
    %3847 = vmatmul.mubr.f32.gmra.mrb[0].mxu0 %v2868
    %v3848 = vpop.f32.mrb[0].mxu0
    %v3849 = vadd.f32 %v3464, %v3848
    %v3850 = vpop.f32.mrb[0].mxu0
    %3851 = vmatprep.mubr.f32.mxu0 0.0
    %3852 = vmatmul.mubr.f32.gmra.mrb[0].mxu0 %v2869
    %v3853 = vpop.f32.mrb[0].mxu0
    %v3854 = vadd.f32 %v3469, %v3853
    %v3855 = vpop.f32.mrb[0].mxu0
    %3856 = vmatprep.mubr.f32.mxu0 0.0
    %3857 = vmatmul.mubr.f32.gmra.mrb[0].mxu0 %v2870
    %v3858 = vpop.f32.mrb[0].mxu0
    %v3859 = vadd.f32 %v3474, %v3858
    %v3860 = vpop.f32.mrb[0].mxu0
    %3861 = vmatprep.mubr.f32.mxu0 0.0
    %3862 = vmatmul.mubr.f32.gmra.mrb[0].mxu0 %v2871
    %v3863 = vpop.f32.mrb[0].mxu0
    %v3864 = vadd.f32 %v3479, %v3863
    %v3865 = vpop.f32.mrb[0].mxu0
    %3866 = vmatprep.mubr.f32.mxu0 0.0
    %3867 = vmatmul.mubr.f32.gmra.mrb[0].mxu0 %v2872
    %v3868 = vpop.f32.mrb[0].mxu0
    %v3869 = vadd.f32 %v3484, %v3868
    %v3870 = vpop.f32.mrb[0].mxu0
    %3871 = vmatprep.mubr.f32.mxu0 0.0
    %3872 = vmatmul.mubr.f32.gmra.mrb[0].mxu0 %v2873
    %v3873 = vpop.f32.mrb[0].mxu0
    %v3874 = vadd.f32 %v3489, %v3873
    %v3875 = vpop.f32.mrb[0].mxu0
    %3876 = vmatprep.mubr.f32.mxu0 0.0
    %3877 = vmatmul.mubr.f32.gmra.mrb[0].mxu0 %v2874
    %v3878 = vpop.f32.mrb[0].mxu0
    %v3879 = vadd.f32 %v3494, %v3878
    %v3880 = vpop.f32.mrb[0].mxu0
    %3881 = vmatprep.mubr.f32.mxu0 0.0
    %3882 = vmatmul.mubr.f32.gmra.mrb[0].mxu0 %v2875
    %v3883 = vpop.f32.mrb[0].mxu0
    %v3884 = vadd.f32 %v3499, %v3883
    %v3885 = vpop.f32.mrb[0].mxu0
    %3886 = vmatprep.mubr.f32.mxu0 0.0
    %3887 = vmatmul.mubr.f32.gmra.mrb[0].mxu0 %v2876
    %v3888 = vpop.f32.mrb[0].mxu0
    %v3889 = vadd.f32 %v3504, %v3888
    %v3890 = vpop.f32.mrb[0].mxu0
    %3891 = vmatprep.mubr.f32.mxu0 0.0
    %3892 = vmatmul.mubr.f32.gmra.mrb[0].mxu0 %v2877
    %v3893 = vpop.f32.mrb[0].mxu0
    %v3894 = vadd.f32 %v3509, %v3893
    %v3895 = vpop.f32.mrb[0].mxu0
    %3896 = vmatprep.mubr.f32.mxu0 0.0
    %3897 = vmatmul.mubr.f32.gmra.mrb[0].mxu0 %v2878
    %v3898 = vpop.f32.mrb[0].mxu0
    %v3899 = vadd.f32 %v3514, %v3898
    %v3900 = vpop.f32.mrb[0].mxu0
    %3901 = vmatprep.mubr.f32.mxu0 0.0
    %3902 = vmatmul.mubr.f32.gmra.mrb[0].mxu0 %v2879
    %v3903 = vpop.f32.mrb[0].mxu0
    %v3904 = vadd.f32 %v3519, %v3903
    %v3905 = vpop.f32.mrb[0].mxu0
    %3906 = vmatprep.mubr.f32.mxu0 0.0
    %3907 = vmatmul.mubr.f32.gmra.mrb[0].mxu0 %v2880
    %v3908 = vpop.f32.mrb[0].mxu0
    %v3909 = vadd.f32 %v3524, %v3908
    %v3910 = vpop.f32.mrb[0].mxu0
    %3911 = vmatprep.mubr.f32.mxu0 0.0
    %3912 = vmatmul.mubr.f32.gmra.mrb[0].mxu0 %v2881
    %v3913 = vpop.f32.mrb[0].mxu0
    %v3914 = vadd.f32 %v3529, %v3913
    %v3915 = vpop.f32.mrb[0].mxu0
    %3916 = vmatprep.mubr.f32.mxu0 0.0
    %3917 = vmatmul.mubr.f32.gmra.mrb[0].mxu0 %v2882
    %v3918 = vpop.f32.mrb[0].mxu0
    %v3919 = vadd.f32 %v3534, %v3918
    %v3920 = vpop.f32.mrb[0].mxu0
    %3921 = vmatprep.mubr.f32.mxu0 0.0
    %3922 = vmatmul.mubr.f32.gmra.mrb[0].mxu0 %v2883
    %v3923 = vpop.f32.mrb[0].mxu0
    %v3924 = vadd.f32 %v3539, %v3923
    %v3925 = vpop.f32.mrb[0].mxu0
    %3926 = vmatprep.mubr.f32.mxu0 0.0
    %3927 = vmatmul.mubr.f32.gmra.mrb[0].mxu0 %v2884
    %v3928 = vpop.f32.mrb[0].mxu0
    %v3929 = vadd.f32 %v3544, %v3928
    %v3930 = vpop.f32.mrb[0].mxu0
    %3931 = vmatprep.mubr.f32.mxu0 0.0
    %3932 = vmatmul.mubr.f32.gmra.mrb[0].mxu0 %v2885
    %v3933 = vpop.f32.mrb[0].mxu0
    %v3934 = vadd.f32 %v3549, %v3933
    %v3935 = vpop.f32.mrb[0].mxu0
    %3936 = vmatprep.mubr.f32.mxu0 0.0
    %3937 = vmatmul.mubr.f32.gmra.mrb[0].mxu0 %v2886
    %v3938 = vpop.f32.mrb[0].mxu0
    %v3939 = vadd.f32 %v3554, %v3938
    %v3940 = vpop.f32.mrb[0].mxu0
    %3941 = vmatprep.mubr.f32.mxu0 0.0
    %3942 = vmatmul.mubr.f32.gmra.mrb[0].mxu0 %v2887
    %v3943 = vpop.f32.mrb[0].mxu0
    %v3944 = vadd.f32 %v3559, %v3943
    %v3945 = vpop.f32.mrb[0].mxu0
    %3946 = vmatprep.mubr.f32.mxu0 0.0
    %3947 = vmatmul.mubr.f32.gmra.mrb[0].mxu0 %v2888
    %v3948 = vpop.f32.mrb[0].mxu0
    %v3949 = vadd.f32 %v3564, %v3948
    %v3950 = vpop.f32.mrb[0].mxu0
    %3951 = vmatprep.mubr.f32.mxu0 0.0
    %3952 = vmatmul.mubr.f32.gmra.mrb[0].mxu0 %v2889
    %v3953 = vpop.f32.mrb[0].mxu0
    %v3954 = vadd.f32 %v3569, %v3953
    %v3955 = vpop.f32.mrb[0].mxu0
    %3956 = vmatprep.mubr.f32.mxu0 0.0
    %3957 = vmatmul.mubr.f32.gmra.mrb[0].mxu0 %v2890
    %v3958 = vpop.f32.mrb[0].mxu0
    %v3959 = vadd.f32 %v3574, %v3958
    %v3960 = vpop.f32.mrb[0].mxu0
    %3961 = vmatprep.mubr.f32.mxu0 0.0
    %3962 = vmatmul.mubr.f32.gmra.mrb[0].mxu0 %v2891
    %v3963 = vpop.f32.mrb[0].mxu0
    %v3964 = vadd.f32 %v3579, %v3963
    %v3965 = vpop.f32.mrb[0].mxu0
    %3966 = vmatprep.mubr.f32.mxu0 0.0
    %3967 = vmatmul.mubr.f32.gmra.mrb[0].mxu0 %v2892
    %v3968 = vpop.f32.mrb[0].mxu0
    %v3969 = vadd.f32 %v3584, %v3968
    %v3970 = vpop.f32.mrb[0].mxu0
    %3971 = vmatprep.mubr.f32.mxu0 0.0
    %3972 = vmatmul.mubr.f32.gmra.mrb[0].mxu0 %v2893
    %v3973 = vpop.f32.mrb[0].mxu0
    %v3974 = vadd.f32 %v3589, %v3973
    %v3975 = vpop.f32.mrb[0].mxu0
    %3976 = vmatprep.mubr.f32.mxu0 0.0
    %3977 = vmatmul.mubr.f32.gmra.mrb[0].mxu0 %v2894
    %v3978 = vpop.f32.mrb[0].mxu0
    %v3979 = vadd.f32 %v3594, %v3978
    %v3980 = vpop.f32.mrb[0].mxu0
    %3981 = vmatprep.mubr.f32.mxu0 0.0
    %3982 = vmatmul.mubr.f32.gmra.mrb[0].mxu0 %v2895
    %v3983 = vpop.f32.mrb[0].mxu0
    %v3984 = vadd.f32 %v3599, %v3983
    %v3985 = vpop.f32.mrb[0].mxu0
    %3986 = vmatprep.mubr.f32.mxu0 0.0
    %3987 = vmatmul.mubr.f32.gmra.mrb[0].mxu0 %v2896
    %v3988 = vpop.f32.mrb[0].mxu0
    %v3989 = vadd.f32 %v3604, %v3988
    %v3990 = vpop.f32.mrb[0].mxu0
    %3991 = vmatprep.mubr.f32.mxu0 0.0
    %3992 = vmatmul.mubr.f32.gmra.mrb[0].mxu0 %v2897
    %v3993 = vpop.f32.mrb[0].mxu0
    %v3994 = vadd.f32 %v3609, %v3993
    %v3995 = vpop.f32.mrb[0].mxu0
    %3996 = vmatprep.mubr.f32.mxu0 0.0
    %3997 = vmatmul.mubr.f32.gmra.mrb[0].mxu0 %v2898
    %v3998 = vpop.f32.mrb[0].mxu0
    %v3999 = vadd.f32 %v3614, %v3998
    %v4000 = vpop.f32.mrb[0].mxu0
    %4001 = vmatprep.mubr.f32.mxu0 0.0
    %4002 = vmatmul.mubr.f32.gmra.mrb[0].mxu0 %v2899
    %v4003 = vpop.f32.mrb[0].mxu0
    %v4004 = vadd.f32 %v3619, %v4003
    %v4005 = vpop.f32.mrb[0].mxu0
    %4006 = vmatprep.mubr.f32.mxu0 0.0
    %4007 = vmatmul.mubr.f32.gmra.mrb[0].mxu0 %v2900
    %v4008 = vpop.f32.mrb[0].mxu0
    %v4009 = vadd.f32 %v3624, %v4008
    %v4010 = vpop.f32.mrb[0].mxu0
    %4011 = vmatprep.mubr.f32.mxu0 0.0
    %4012 = vmatmul.mubr.f32.gmra.mrb[0].mxu0 %v2901
    %v4013 = vpop.f32.mrb[0].mxu0
    %v4014 = vadd.f32 %v3629, %v4013
    %v4015 = vpop.f32.mrb[0].mxu0
    %4016 = vmatprep.mubr.f32.mxu0 0.0
    %4017 = vmatmul.mubr.f32.gmra.mrb[0].mxu0 %v2902
    %v4018 = vpop.f32.mrb[0].mxu0
    %v4019 = vadd.f32 %v3634, %v4018
    %v4020 = vpop.f32.mrb[0].mxu0
    %4021 = vmatprep.mubr.f32.mxu0 0.0
    %4022 = vmatmul.mubr.f32.gmra.mrb[0].mxu0 %v2903
    %v4023 = vpop.f32.mrb[0].mxu0
    %v4024 = vadd.f32 %v3639, %v4023
    %v4025 = vpop.f32.mrb[0].mxu0
    %4026 = vmatprep.mubr.f32.mxu0 0.0
    %4027 = vmatmul.mubr.f32.gmra.mrb[0].mxu0 %v2904
    %v4028 = vpop.f32.mrb[0].mxu0
    %v4029 = vadd.f32 %v3644, %v4028
    %v4030 = vpop.f32.mrb[0].mxu0
    %4031 = vmatprep.mubr.f32.mxu0 0.0
    %4032 = vmatmul.mubr.f32.gmra.mrb[0].mxu0 %v2905
    %v4033 = vpop.f32.mrb[0].mxu0
    %v4034 = vadd.f32 %v3649, %v4033
    %v4035 = vpop.f32.mrb[0].mxu0
    %4036 = vmatprep.mubr.f32.mxu0 0.0
    %4037 = vmatmul.mubr.f32.gmra.mrb[0].mxu0 %v2906
    %v4038 = vpop.f32.mrb[0].mxu0
    %v4039 = vadd.f32 %v3654, %v4038
    %v4040 = vpop.f32.mrb[0].mxu0
    %4041 = vmatprep.mubr.f32.mxu0 0.0
    %4042 = vmatmul.mubr.f32.gmra.mrb[0].mxu0 %v2907
    %v4043 = vpop.f32.mrb[0].mxu0
    %v4044 = vadd.f32 %v3659, %v4043
    %v4045 = vpop.f32.mrb[0].mxu0
    %4046 = vmatprep.mubr.f32.mxu0 0.0
    %4047 = vmatmul.mubr.f32.gmra.mrb[0].mxu0 %v2908
    %v4048 = vpop.f32.mrb[0].mxu0
    %v4049 = vadd.f32 %v3664, %v4048
    %v4050 = vpop.f32.mrb[0].mxu0
    %4051 = vmatprep.mubr.f32.mxu0 0.0
    %4052 = vmatmul.mubr.f32.gmra.mrb[0].mxu0 %v2909
    %v4053 = vpop.f32.mrb[0].mxu0
    %v4054 = vadd.f32 %v3669, %v4053
    %v4055 = vpop.f32.mrb[0].mxu0
    %4056 = vmatprep.mubr.f32.mxu0 0.0
    %4057 = vmatmul.mubr.f32.gmra.mrb[0].mxu0 %v2910
    %v4058 = vpop.f32.mrb[0].mxu0
    %v4059 = vadd.f32 %v3674, %v4058
    %v4060 = vpop.f32.mrb[0].mxu0
    %4061 = vmatprep.mubr.f32.mxu0 0.0
    %4062 = vmatmul.mubr.f32.gmra.mrb[0].mxu0 %v2911
    %v4063 = vpop.f32.mrb[0].mxu0
    %v4064 = vadd.f32 %v3679, %v4063
    %v4065 = vpop.f32.mrb[0].mxu0
    %4066 = vmatprep.mubr.f32.mxu0 0.0
    %4067 = vmatmul.mubr.f32.gmra.mrb[0].mxu0 %v2912
    %v4068 = vpop.f32.mrb[0].mxu0
    %v4069 = vadd.f32 %v3684, %v4068
    %v4070 = vpop.f32.mrb[0].mxu0
    %4071 = vmatprep.mubr.f32.mxu0 0.0
    %4072 = vmatmul.mubr.f32.gmra.mrb[0].mxu0 %v2913
    %v4073 = vpop.f32.mrb[0].mxu0
    %v4074 = vadd.f32 %v3689, %v4073
    %v4075 = vpop.f32.mrb[0].mxu0
    %4076 = vmatprep.mubr.f32.mxu0 0.0
    %4077 = vmatmul.mubr.f32.gmra.mrb[0].mxu0 %v2914
    %v4078 = vpop.f32.mrb[0].mxu0
    %v4079 = vadd.f32 %v3694, %v4078
    %v4080 = vpop.f32.mrb[0].mxu0
    %4081 = vmatprep.mubr.f32.mxu0 0.0
    %4082 = vmatmul.mubr.f32.gmra.mrb[0].mxu0 %v2915
    %v4083 = vpop.f32.mrb[0].mxu0
    %v4084 = vadd.f32 %v3699, %v4083
    %v4085 = vpop.f32.mrb[0].mxu0
    %4086 = vmatprep.mubr.f32.mxu0 0.0
    %4087 = vmatmul.mubr.f32.gmra.mrb[0].mxu0 %v2916
    %v4088 = vpop.f32.mrb[0].mxu0
    %v4089 = vadd.f32 %v3704, %v4088
    %v4090 = vpop.f32.mrb[0].mxu0
    %4091 = vmatprep.mubr.f32.mxu0 0.0
    %4092 = vmatmul.mubr.f32.gmra.mrb[0].mxu0 %v2917
    %v4093 = vpop.f32.mrb[0].mxu0
    %v4094 = vadd.f32 %v3709, %v4093
    %v4095 = vpop.f32.mrb[0].mxu0
    %4096 = vmatprep.mubr.f32.mxu0 0.0
    %4097 = vmatmul.mubr.f32.gmra.mrb[0].mxu0 %v2918
    %v4098 = vpop.f32.mrb[0].mxu0
    %v4099 = vadd.f32 %v3714, %v4098
    %v4100 = vpop.f32.mrb[0].mxu0
    %4101 = vmatprep.mubr.f32.mxu0 0.0
    %4102 = vmatmul.mubr.f32.gmra.mrb[0].mxu0 %v2919
    %v4103 = vpop.f32.mrb[0].mxu0
    %v4104 = vadd.f32 %v3719, %v4103
    %v4105 = vpop.f32.mrb[0].mxu0
    %4106 = vmatprep.mubr.f32.mxu0 0.0
    %4107 = vmatmul.mubr.f32.gmra.mrb[0].mxu0 %v2920
    %v4108 = vpop.f32.mrb[0].mxu0
    %v4109 = vadd.f32 %v3724, %v4108
    %v4110 = vpop.f32.mrb[0].mxu0
    %4111 = vmatprep.mubr.f32.mxu0 0.0
    %4112 = vmatmul.mubr.f32.gmra.mrb[0].mxu0 %v2921
    %v4113 = vpop.f32.mrb[0].mxu0
    %v4114 = vadd.f32 %v3729, %v4113
    %v4115 = vpop.f32.mrb[0].mxu0
    %4116 = vmatprep.mubr.f32.mxu0 0.0
    %4117 = vmatmul.mubr.f32.gmra.mrb[0].mxu0 %v2922
    %v4118 = vpop.f32.mrb[0].mxu0
    %v4119 = vadd.f32 %v3734, %v4118
    %v4120 = vpop.f32.mrb[0].mxu0
    %4121 = vmatprep.mubr.f32.mxu0 0.0
    %4122 = vmatmul.mubr.f32.gmra.mrb[0].mxu0 %v2923
    %v4123 = vpop.f32.mrb[0].mxu0
    %v4124 = vadd.f32 %v3739, %v4123
    %v4125 = vpop.f32.mrb[0].mxu0
    %4126 = vdwg.mxu0
    %4127 = vmatprep.subr.mxu0 0.0
    %4128 = vmatpush1.msra.mxu0 %v2956
    %4129 = vmatprep.subr.mxu0 0.0
    %4130 = vmatpush1.msra.mxu0 %v2957
    %4131 = vmatprep.subr.mxu0 0.0
    %4132 = vmatpush1.msra.mxu0 %v2958
    %4133 = vmatprep.subr.mxu0 0.0
    %4134 = vmatpush1.msra.mxu0 %v2959
    %4135 = vmatprep.subr.mxu0 0.0
    %4136 = vmatpush1.msra.mxu0 %v2960
    %4137 = vmatprep.subr.mxu0 0.0
    %4138 = vmatpush1.msra.mxu0 %v2961
    %4139 = vmatprep.subr.mxu0 0.0
    %4140 = vmatpush1.msra.mxu0 %v2962
    %4141 = vmatprep.subr.mxu0 0.0
    %4142 = vmatpush1.msra.mxu0 %v2963
    %4143 = vmatprep.subr.mxu0 0.0
    %4144 = vmatpush1.msra.mxu0 %v2964
    %4145 = vmatprep.subr.mxu0 0.0
    %4146 = vmatpush1.msra.mxu0 %v2965
    %4147 = vmatprep.subr.mxu0 0.0
    %4148 = vmatpush1.msra.mxu0 %v2966
    %4149 = vmatprep.subr.mxu0 0.0
    %4150 = vmatpush1.msra.mxu0 %v2967
    %4151 = vmatprep.subr.mxu0 0.0
    %4152 = vmatpush1.msra.mxu0 %v2968
    %4153 = vmatprep.subr.mxu0 0.0
    %4154 = vmatpush1.msra.mxu0 %v2969
    %4155 = vmatprep.subr.mxu0 0.0
    %4156 = vmatpush1.msra.mxu0 %v2970
    %4157 = vmatprep.subr.mxu0 0.0
    %4158 = vmatpush1.msra.mxu0 %v2971
    %4159 = vmatprep.subr.mxu0 0.0
    %4160 = vmatpush1.msra.mxu0 0.0
    %4161 = vmatprep.subr.mxu0 0.0
    %4162 = vmatpush1.msra.mxu0 0.0
    %4163 = vmatprep.subr.mxu0 0.0
    %4164 = vmatpush1.msra.mxu0 0.0
    %4165 = vmatprep.subr.mxu0 0.0
    %4166 = vmatpush1.msra.mxu0 0.0
    %4167 = vmatprep.subr.mxu0 0.0
    %4168 = vmatpush1.msra.mxu0 0.0
    %4169 = vmatprep.subr.mxu0 0.0
    %4170 = vmatpush1.msra.mxu0 0.0
    %4171 = vmatprep.subr.mxu0 0.0
    %4172 = vmatpush1.msra.mxu0 0.0
    %4173 = vmatprep.subr.mxu0 0.0
    %4174 = vmatpush1.msra.mxu0 0.0
    %4175 = vmatprep.subr.mxu0 0.0
    %4176 = vmatpush1.msra.mxu0 0.0
    %4177 = vmatprep.subr.mxu0 0.0
    %4178 = vmatpush1.msra.mxu0 0.0
    %4179 = vmatprep.subr.mxu0 0.0
    %4180 = vmatpush1.msra.mxu0 0.0
    %4181 = vmatprep.subr.mxu0 0.0
    %4182 = vmatpush1.msra.mxu0 0.0
    %4183 = vmatprep.subr.mxu0 0.0
    %4184 = vmatpush1.msra.mxu0 0.0
    %4185 = vmatprep.subr.mxu0 0.0
    %4186 = vmatpush1.msra.mxu0 0.0
    %4187 = vmatprep.subr.mxu0 0.0
    %4188 = vmatpush1.msra.mxu0 0.0
    %4189 = vmatprep.subr.mxu0 0.0
    %4190 = vmatpush1.msra.mxu0 0.0
    %4191 = vmatprep.mubr.f32.mxu0 0.0
    %4192 = vmatmul.mubr.f32.gmra.mrb[0].mxu0 %v3293
    %v4193 = vpop.f32.mrb[0].mxu0
    %v4194 = vadd.f32 0.0, %v4193
    %v4195 = vpop.f32.mrb[0].mxu0
    %4196 = vmatprep.mubr.f32.mxu0 0.0
    %4197 = vmatmul.mubr.f32.gmra.mrb[0].mxu0 %v3294
    %v4198 = vpop.f32.mrb[0].mxu0
    %v4199 = vadd.f32 0.0, %v4198
    %v4200 = vpop.f32.mrb[0].mxu0
    %4201 = vmatprep.mubr.f32.mxu0 0.0
    %4202 = vmatmul.mubr.f32.gmra.mrb[0].mxu0 %v3295
    %v4203 = vpop.f32.mrb[0].mxu0
    %v4204 = vadd.f32 0.0, %v4203
    %v4205 = vpop.f32.mrb[0].mxu0
    %4206 = vmatprep.mubr.f32.mxu0 0.0
    %4207 = vmatmul.mubr.f32.gmra.mrb[0].mxu0 %v3296
    %v4208 = vpop.f32.mrb[0].mxu0
    %v4209 = vadd.f32 0.0, %v4208
    %v4210 = vpop.f32.mrb[0].mxu0
    %4211 = vmatprep.mubr.f32.mxu0 0.0
    %4212 = vmatmul.mubr.f32.gmra.mrb[0].mxu0 %v3297
    %v4213 = vpop.f32.mrb[0].mxu0
    %v4214 = vadd.f32 0.0, %v4213
    %v4215 = vpop.f32.mrb[0].mxu0
    %4216 = vmatprep.mubr.f32.mxu0 0.0
    %4217 = vmatmul.mubr.f32.gmra.mrb[0].mxu0 %v3298
    %v4218 = vpop.f32.mrb[0].mxu0
    %v4219 = vadd.f32 0.0, %v4218
    %v4220 = vpop.f32.mrb[0].mxu0
    %4221 = vmatprep.mubr.f32.mxu0 0.0
    %4222 = vmatmul.mubr.f32.gmra.mrb[0].mxu0 %v3299
    %v4223 = vpop.f32.mrb[0].mxu0
    %v4224 = vadd.f32 0.0, %v4223
    %v4225 = vpop.f32.mrb[0].mxu0
    %4226 = vmatprep.mubr.f32.mxu0 0.0
    %4227 = vmatmul.mubr.f32.gmra.mrb[0].mxu0 %v3300
    %v4228 = vpop.f32.mrb[0].mxu0
    %v4229 = vadd.f32 0.0, %v4228
    %v4230 = vpop.f32.mrb[0].mxu0
    %4231 = vmatprep.mubr.f32.mxu0 0.0
    %4232 = vmatmul.mubr.f32.gmra.mrb[0].mxu0 %v3301
    %v4233 = vpop.f32.mrb[0].mxu0
    %v4234 = vadd.f32 0.0, %v4233
    %v4235 = vpop.f32.mrb[0].mxu0
    %4236 = vmatprep.mubr.f32.mxu0 0.0
    %4237 = vmatmul.mubr.f32.gmra.mrb[0].mxu0 %v3302
    %v4238 = vpop.f32.mrb[0].mxu0
    %v4239 = vadd.f32 0.0, %v4238
    %v4240 = vpop.f32.mrb[0].mxu0
    %4241 = vmatprep.mubr.f32.mxu0 0.0
    %4242 = vmatmul.mubr.f32.gmra.mrb[0].mxu0 %v3303
    %v4243 = vpop.f32.mrb[0].mxu0
    %v4244 = vadd.f32 0.0, %v4243
    %v4245 = vpop.f32.mrb[0].mxu0
    %4246 = vmatprep.mubr.f32.mxu0 0.0
    %4247 = vmatmul.mubr.f32.gmra.mrb[0].mxu0 %v3304
    %v4248 = vpop.f32.mrb[0].mxu0
    %v4249 = vadd.f32 0.0, %v4248
    %v4250 = vpop.f32.mrb[0].mxu0
    %4251 = vmatprep.mubr.f32.mxu0 0.0
    %4252 = vmatmul.mubr.f32.gmra.mrb[0].mxu0 %v3305
    %v4253 = vpop.f32.mrb[0].mxu0
    %v4254 = vadd.f32 0.0, %v4253
    %v4255 = vpop.f32.mrb[0].mxu0
    %4256 = vmatprep.mubr.f32.mxu0 0.0
    %4257 = vmatmul.mubr.f32.gmra.mrb[0].mxu0 %v3306
    %v4258 = vpop.f32.mrb[0].mxu0
    %v4259 = vadd.f32 0.0, %v4258
    %v4260 = vpop.f32.mrb[0].mxu0
    %4261 = vmatprep.mubr.f32.mxu0 0.0
    %4262 = vmatmul.mubr.f32.gmra.mrb[0].mxu0 %v3307
    %v4263 = vpop.f32.mrb[0].mxu0
    %v4264 = vadd.f32 0.0, %v4263
    %v4265 = vpop.f32.mrb[0].mxu0
    %4266 = vmatprep.mubr.f32.mxu0 0.0
    %4267 = vmatmul.mubr.f32.gmra.mrb[0].mxu0 %v3308
    %v4268 = vpop.f32.mrb[0].mxu0
    %v4269 = vadd.f32 0.0, %v4268
    %v4270 = vpop.f32.mrb[0].mxu0
    %4271 = vmatprep.mubr.f32.mxu0 0.0
    %4272 = vmatmul.mubr.f32.gmra.mrb[0].mxu0 %v3309
    %v4273 = vpop.f32.mrb[0].mxu0
    %v4274 = vadd.f32 0.0, %v4273
    %v4275 = vpop.f32.mrb[0].mxu0
    %4276 = vmatprep.mubr.f32.mxu0 0.0
    %4277 = vmatmul.mubr.f32.gmra.mrb[0].mxu0 %v3310
    %v4278 = vpop.f32.mrb[0].mxu0
    %v4279 = vadd.f32 0.0, %v4278
    %v4280 = vpop.f32.mrb[0].mxu0
    %4281 = vmatprep.mubr.f32.mxu0 0.0
    %4282 = vmatmul.mubr.f32.gmra.mrb[0].mxu0 %v3311
    %v4283 = vpop.f32.mrb[0].mxu0
    %v4284 = vadd.f32 0.0, %v4283
    %v4285 = vpop.f32.mrb[0].mxu0
    %4286 = vmatprep.mubr.f32.mxu0 0.0
    %4287 = vmatmul.mubr.f32.gmra.mrb[0].mxu0 %v3312
    %v4288 = vpop.f32.mrb[0].mxu0
    %v4289 = vadd.f32 0.0, %v4288
    %v4290 = vpop.f32.mrb[0].mxu0
    %4291 = vmatprep.mubr.f32.mxu0 0.0
    %4292 = vmatmul.mubr.f32.gmra.mrb[0].mxu0 %v3313
    %v4293 = vpop.f32.mrb[0].mxu0
    %v4294 = vadd.f32 0.0, %v4293
    %v4295 = vpop.f32.mrb[0].mxu0
    %4296 = vmatprep.mubr.f32.mxu0 0.0
    %4297 = vmatmul.mubr.f32.gmra.mrb[0].mxu0 %v3314
    %v4298 = vpop.f32.mrb[0].mxu0
    %v4299 = vadd.f32 0.0, %v4298
    %v4300 = vpop.f32.mrb[0].mxu0
    %4301 = vmatprep.mubr.f32.mxu0 0.0
    %4302 = vmatmul.mubr.f32.gmra.mrb[0].mxu0 %v3315
    %v4303 = vpop.f32.mrb[0].mxu0
    %v4304 = vadd.f32 0.0, %v4303
    %v4305 = vpop.f32.mrb[0].mxu0
    %4306 = vmatprep.mubr.f32.mxu0 0.0
    %4307 = vmatmul.mubr.f32.gmra.mrb[0].mxu0 %v3316
    %v4308 = vpop.f32.mrb[0].mxu0
    %v4309 = vadd.f32 0.0, %v4308
    %v4310 = vpop.f32.mrb[0].mxu0
    %4311 = vmatprep.mubr.f32.mxu0 0.0
    %4312 = vmatmul.mubr.f32.gmra.mrb[0].mxu0 %v3317
    %v4313 = vpop.f32.mrb[0].mxu0
    %v4314 = vadd.f32 0.0, %v4313
    %v4315 = vpop.f32.mrb[0].mxu0
    %4316 = vmatprep.mubr.f32.mxu0 0.0
    %4317 = vmatmul.mubr.f32.gmra.mrb[0].mxu0 %v3318
    %v4318 = vpop.f32.mrb[0].mxu0
    %v4319 = vadd.f32 0.0, %v4318
    %v4320 = vpop.f32.mrb[0].mxu0
    %4321 = vmatprep.mubr.f32.mxu0 0.0
    %4322 = vmatmul.mubr.f32.gmra.mrb[0].mxu0 %v3319
    %v4323 = vpop.f32.mrb[0].mxu0
    %v4324 = vadd.f32 0.0, %v4323
    %v4325 = vpop.f32.mrb[0].mxu0
    %4326 = vmatprep.mubr.f32.mxu0 0.0
    %4327 = vmatmul.mubr.f32.gmra.mrb[0].mxu0 %v3320
    %v4328 = vpop.f32.mrb[0].mxu0
    %v4329 = vadd.f32 0.0, %v4328
    %v4330 = vpop.f32.mrb[0].mxu0
    %4331 = vmatprep.mubr.f32.mxu0 0.0
    %4332 = vmatmul.mubr.f32.gmra.mrb[0].mxu0 %v3321
    %v4333 = vpop.f32.mrb[0].mxu0
    %v4334 = vadd.f32 0.0, %v4333
    %v4335 = vpop.f32.mrb[0].mxu0
    %4336 = vmatprep.mubr.f32.mxu0 0.0
    %4337 = vmatmul.mubr.f32.gmra.mrb[0].mxu0 %v3322
    %v4338 = vpop.f32.mrb[0].mxu0
    %v4339 = vadd.f32 0.0, %v4338
    %v4340 = vpop.f32.mrb[0].mxu0
    %4341 = vmatprep.mubr.f32.mxu0 0.0
    %4342 = vmatmul.mubr.f32.gmra.mrb[0].mxu0 %v3323
    %v4343 = vpop.f32.mrb[0].mxu0
    %v4344 = vadd.f32 0.0, %v4343
    %v4345 = vpop.f32.mrb[0].mxu0
    %4346 = vmatprep.mubr.f32.mxu0 0.0
    %4347 = vmatmul.mubr.f32.gmra.mrb[0].mxu0 %v3324
    %v4348 = vpop.f32.mrb[0].mxu0
    %v4349 = vadd.f32 0.0, %v4348
    %v4350 = vpop.f32.mrb[0].mxu0
    %4351 = vmatprep.mubr.f32.mxu0 0.0
    %4352 = vmatmul.mubr.f32.gmra.mrb[0].mxu0 %v3325
    %v4353 = vpop.f32.mrb[0].mxu0
    %v4354 = vadd.f32 0.0, %v4353
    %v4355 = vpop.f32.mrb[0].mxu0
    %4356 = vmatprep.mubr.f32.mxu0 0.0
    %4357 = vmatmul.mubr.f32.gmra.mrb[0].mxu0 %v3326
    %v4358 = vpop.f32.mrb[0].mxu0
    %v4359 = vadd.f32 0.0, %v4358
    %v4360 = vpop.f32.mrb[0].mxu0
    %4361 = vmatprep.mubr.f32.mxu0 0.0
    %4362 = vmatmul.mubr.f32.gmra.mrb[0].mxu0 %v3327
    %v4363 = vpop.f32.mrb[0].mxu0
    %v4364 = vadd.f32 0.0, %v4363
    %v4365 = vpop.f32.mrb[0].mxu0
    %4366 = vmatprep.mubr.f32.mxu0 0.0
    %4367 = vmatmul.mubr.f32.gmra.mrb[0].mxu0 %v3328
    %v4368 = vpop.f32.mrb[0].mxu0
    %v4369 = vadd.f32 0.0, %v4368
    %v4370 = vpop.f32.mrb[0].mxu0
    %4371 = vmatprep.mubr.f32.mxu0 0.0
    %4372 = vmatmul.mubr.f32.gmra.mrb[0].mxu0 %v3329
    %v4373 = vpop.f32.mrb[0].mxu0
    %v4374 = vadd.f32 0.0, %v4373
    %v4375 = vpop.f32.mrb[0].mxu0
    %4376 = vmatprep.mubr.f32.mxu0 0.0
    %4377 = vmatmul.mubr.f32.gmra.mrb[0].mxu0 %v3330
    %v4378 = vpop.f32.mrb[0].mxu0
    %v4379 = vadd.f32 0.0, %v4378
    %v4380 = vpop.f32.mrb[0].mxu0
    %4381 = vmatprep.mubr.f32.mxu0 0.0
    %4382 = vmatmul.mubr.f32.gmra.mrb[0].mxu0 %v3331
    %v4383 = vpop.f32.mrb[0].mxu0
    %v4384 = vadd.f32 0.0, %v4383
    %v4385 = vpop.f32.mrb[0].mxu0
    %4386 = vmatprep.mubr.f32.mxu0 0.0
    %4387 = vmatmul.mubr.f32.gmra.mrb[0].mxu0 %v3332
    %v4388 = vpop.f32.mrb[0].mxu0
    %v4389 = vadd.f32 0.0, %v4388
    %v4390 = vpop.f32.mrb[0].mxu0
    %4391 = vmatprep.mubr.f32.mxu0 0.0
    %4392 = vmatmul.mubr.f32.gmra.mrb[0].mxu0 %v3333
    %v4393 = vpop.f32.mrb[0].mxu0
    %v4394 = vadd.f32 0.0, %v4393
    %v4395 = vpop.f32.mrb[0].mxu0
    %4396 = vmatprep.mubr.f32.mxu0 0.0
    %4397 = vmatmul.mubr.f32.gmra.mrb[0].mxu0 %v3334
    %v4398 = vpop.f32.mrb[0].mxu0
    %v4399 = vadd.f32 0.0, %v4398
    %v4400 = vpop.f32.mrb[0].mxu0
    %4401 = vmatprep.mubr.f32.mxu0 0.0
    %4402 = vmatmul.mubr.f32.gmra.mrb[0].mxu0 %v3335
    %v4403 = vpop.f32.mrb[0].mxu0
    %v4404 = vadd.f32 0.0, %v4403
    %v4405 = vpop.f32.mrb[0].mxu0
    %4406 = vmatprep.mubr.f32.mxu0 0.0
    %4407 = vmatmul.mubr.f32.gmra.mrb[0].mxu0 %v3336
    %v4408 = vpop.f32.mrb[0].mxu0
    %v4409 = vadd.f32 0.0, %v4408
    %v4410 = vpop.f32.mrb[0].mxu0
    %4411 = vmatprep.mubr.f32.mxu0 0.0
    %4412 = vmatmul.mubr.f32.gmra.mrb[0].mxu0 %v3337
    %v4413 = vpop.f32.mrb[0].mxu0
    %v4414 = vadd.f32 0.0, %v4413
    %v4415 = vpop.f32.mrb[0].mxu0
    %4416 = vmatprep.mubr.f32.mxu0 0.0
    %4417 = vmatmul.mubr.f32.gmra.mrb[0].mxu0 %v3338
    %v4418 = vpop.f32.mrb[0].mxu0
    %v4419 = vadd.f32 0.0, %v4418
    %v4420 = vpop.f32.mrb[0].mxu0
    %4421 = vmatprep.mubr.f32.mxu0 0.0
    %4422 = vmatmul.mubr.f32.gmra.mrb[0].mxu0 %v3339
    %v4423 = vpop.f32.mrb[0].mxu0
    %v4424 = vadd.f32 0.0, %v4423
    %v4425 = vpop.f32.mrb[0].mxu0
    %4426 = vmatprep.mubr.f32.mxu0 0.0
    %4427 = vmatmul.mubr.f32.gmra.mrb[0].mxu0 %v3340
    %v4428 = vpop.f32.mrb[0].mxu0
    %v4429 = vadd.f32 0.0, %v4428
    %v4430 = vpop.f32.mrb[0].mxu0
    %4431 = vmatprep.mubr.f32.mxu0 0.0
    %4432 = vmatmul.mubr.f32.gmra.mrb[0].mxu0 %v3341
    %v4433 = vpop.f32.mrb[0].mxu0
    %v4434 = vadd.f32 0.0, %v4433
    %v4435 = vpop.f32.mrb[0].mxu0
    %4436 = vmatprep.mubr.f32.mxu0 0.0
    %4437 = vmatmul.mubr.f32.gmra.mrb[0].mxu0 %v3342
    %v4438 = vpop.f32.mrb[0].mxu0
    %v4439 = vadd.f32 0.0, %v4438
    %v4440 = vpop.f32.mrb[0].mxu0
    %4441 = vmatprep.mubr.f32.mxu0 0.0
    %4442 = vmatmul.mubr.f32.gmra.mrb[0].mxu0 %v3343
    %v4443 = vpop.f32.mrb[0].mxu0
    %v4444 = vadd.f32 0.0, %v4443
    %v4445 = vpop.f32.mrb[0].mxu0
    %4446 = vmatprep.mubr.f32.mxu0 0.0
    %4447 = vmatmul.mubr.f32.gmra.mrb[0].mxu0 %v3344
    %v4448 = vpop.f32.mrb[0].mxu0
    %v4449 = vadd.f32 0.0, %v4448
    %v4450 = vpop.f32.mrb[0].mxu0
    %4451 = vmatprep.mubr.f32.mxu0 0.0
    %4452 = vmatmul.mubr.f32.gmra.mrb[0].mxu0 %v3345
    %v4453 = vpop.f32.mrb[0].mxu0
    %v4454 = vadd.f32 0.0, %v4453
    %v4455 = vpop.f32.mrb[0].mxu0
    %4456 = vmatprep.mubr.f32.mxu0 0.0
    %4457 = vmatmul.mubr.f32.gmra.mrb[0].mxu0 %v3346
    %v4458 = vpop.f32.mrb[0].mxu0
    %v4459 = vadd.f32 0.0, %v4458
    %v4460 = vpop.f32.mrb[0].mxu0
    %4461 = vmatprep.mubr.f32.mxu0 0.0
    %4462 = vmatmul.mubr.f32.gmra.mrb[0].mxu0 %v3347
    %v4463 = vpop.f32.mrb[0].mxu0
    %v4464 = vadd.f32 0.0, %v4463
    %v4465 = vpop.f32.mrb[0].mxu0
    %4466 = vmatprep.mubr.f32.mxu0 0.0
    %4467 = vmatmul.mubr.f32.gmra.mrb[0].mxu0 %v3348
    %v4468 = vpop.f32.mrb[0].mxu0
    %v4469 = vadd.f32 0.0, %v4468
    %v4470 = vpop.f32.mrb[0].mxu0
    %4471 = vmatprep.mubr.f32.mxu0 0.0
    %4472 = vmatmul.mubr.f32.gmra.mrb[0].mxu0 %v3349
    %v4473 = vpop.f32.mrb[0].mxu0
    %v4474 = vadd.f32 0.0, %v4473
    %v4475 = vpop.f32.mrb[0].mxu0
    %4476 = vmatprep.mubr.f32.mxu0 0.0
    %4477 = vmatmul.mubr.f32.gmra.mrb[0].mxu0 %v3350
    %v4478 = vpop.f32.mrb[0].mxu0
    %v4479 = vadd.f32 0.0, %v4478
    %v4480 = vpop.f32.mrb[0].mxu0
    %4481 = vmatprep.mubr.f32.mxu0 0.0
    %4482 = vmatmul.mubr.f32.gmra.mrb[0].mxu0 %v3351
    %v4483 = vpop.f32.mrb[0].mxu0
    %v4484 = vadd.f32 0.0, %v4483
    %v4485 = vpop.f32.mrb[0].mxu0
    %4486 = vmatprep.mubr.f32.mxu0 0.0
    %4487 = vmatmul.mubr.f32.gmra.mrb[0].mxu0 %v3352
    %v4488 = vpop.f32.mrb[0].mxu0
    %v4489 = vadd.f32 0.0, %v4488
    %v4490 = vpop.f32.mrb[0].mxu0
    %4491 = vmatprep.mubr.f32.mxu0 0.0
    %4492 = vmatmul.mubr.f32.gmra.mrb[0].mxu0 %v3353
    %v4493 = vpop.f32.mrb[0].mxu0
    %v4494 = vadd.f32 0.0, %v4493
    %v4495 = vpop.f32.mrb[0].mxu0
    %4496 = vmatprep.mubr.f32.mxu0 0.0
    %4497 = vmatmul.mubr.f32.gmra.mrb[0].mxu0 %v3354
    %v4498 = vpop.f32.mrb[0].mxu0
    %v4499 = vadd.f32 0.0, %v4498
    %v4500 = vpop.f32.mrb[0].mxu0
    %4501 = vmatprep.mubr.f32.mxu0 0.0
    %4502 = vmatmul.mubr.f32.gmra.mrb[0].mxu0 %v3355
    %v4503 = vpop.f32.mrb[0].mxu0
    %v4504 = vadd.f32 0.0, %v4503
    %v4505 = vpop.f32.mrb[0].mxu0
    %4506 = vmatprep.mubr.f32.mxu0 0.0
    %4507 = vmatmul.mubr.f32.gmra.mrb[0].mxu0 %v3356
    %v4508 = vpop.f32.mrb[0].mxu0
    %v4509 = vadd.f32 0.0, %v4508
    %v4510 = vpop.f32.mrb[0].mxu0
    %4511 = vdwg.mxu0
    %v4512 = vadd.f32 %v3809, %v4194
    %v4513 = vadd.f32 %v3814, %v4199
    %v4514 = vadd.f32 %v3819, %v4204
    %v4515 = vadd.f32 %v3824, %v4209
    %v4516 = vadd.f32 %v3829, %v4214
    %v4517 = vadd.f32 %v3834, %v4219
    %v4518 = vadd.f32 %v3839, %v4224
    %v4519 = vadd.f32 %v3844, %v4229
    %v4520 = vadd.f32 %v3849, %v4234
    %v4521 = vadd.f32 %v3854, %v4239
    %v4522 = vadd.f32 %v3859, %v4244
    %v4523 = vadd.f32 %v3864, %v4249
    %v4524 = vadd.f32 %v3869, %v4254
    %v4525 = vadd.f32 %v3874, %v4259
    %v4526 = vadd.f32 %v3879, %v4264
    %v4527 = vadd.f32 %v3884, %v4269
    %v4528 = vadd.f32 %v3889, %v4274
    %v4529 = vadd.f32 %v3894, %v4279
    %v4530 = vadd.f32 %v3899, %v4284
    %v4531 = vadd.f32 %v3904, %v4289
    %v4532 = vadd.f32 %v3909, %v4294
    %v4533 = vadd.f32 %v3914, %v4299
    %v4534 = vadd.f32 %v3919, %v4304
    %v4535 = vadd.f32 %v3924, %v4309
    %v4536 = vadd.f32 %v3929, %v4314
    %v4537 = vadd.f32 %v3934, %v4319
    %v4538 = vadd.f32 %v3939, %v4324
    %v4539 = vadd.f32 %v3944, %v4329
    %v4540 = vadd.f32 %v3949, %v4334
    %v4541 = vadd.f32 %v3954, %v4339
    %v4542 = vadd.f32 %v3959, %v4344
    %v4543 = vadd.f32 %v3964, %v4349
    %v4544 = vadd.f32 %v3969, %v4354
    %v4545 = vadd.f32 %v3974, %v4359
    %v4546 = vadd.f32 %v3979, %v4364
    %v4547 = vadd.f32 %v3984, %v4369
    %v4548 = vadd.f32 %v3989, %v4374
    %v4549 = vadd.f32 %v3994, %v4379
    %v4550 = vadd.f32 %v3999, %v4384
    %v4551 = vadd.f32 %v4004, %v4389
    %v4552 = vadd.f32 %v4009, %v4394
    %v4553 = vadd.f32 %v4014, %v4399
    %v4554 = vadd.f32 %v4019, %v4404
    %v4555 = vadd.f32 %v4024, %v4409
    %v4556 = vadd.f32 %v4029, %v4414
    %v4557 = vadd.f32 %v4034, %v4419
    %v4558 = vadd.f32 %v4039, %v4424
    %v4559 = vadd.f32 %v4044, %v4429
    %v4560 = vadd.f32 %v4049, %v4434
    %v4561 = vadd.f32 %v4054, %v4439
    %v4562 = vadd.f32 %v4059, %v4444
    %v4563 = vadd.f32 %v4064, %v4449
    %v4564 = vadd.f32 %v4069, %v4454
    %v4565 = vadd.f32 %v4074, %v4459
    %v4566 = vadd.f32 %v4079, %v4464
    %v4567 = vadd.f32 %v4084, %v4469
    %v4568 = vadd.f32 %v4089, %v4474
    %v4569 = vadd.f32 %v4094, %v4479
    %v4570 = vadd.f32 %v4099, %v4484
    %v4571 = vadd.f32 %v4104, %v4489
    %v4572 = vadd.f32 %v4109, %v4494
    %v4573 = vadd.f32 %v4114, %v4499
    %v4574 = vadd.f32 %v4119, %v4504
    %v4575 = vadd.f32 %v4124, %v4509
    %v4576 = vlaneseq
    %v4577 = vshrl.u32 %v4576, 7
    %v4578 = vsub.s32 0, %v4577
    %v4579 = vrot.slane %v2972, %v4578
    %v4580 = vadd.f32 %v4512, %v4579
    %v4581 = vadd.f32 %v4513, %v4579
    %v4582 = vadd.f32 %v4514, %v4579
    %v4583 = vadd.f32 %v4515, %v4579
    %v4584 = vadd.f32 %v4516, %v4579
    %v4585 = vadd.f32 %v4517, %v4579
    %v4586 = vadd.f32 %v4518, %v4579
    %v4587 = vadd.f32 %v4519, %v4579
    %v4588 = vadd.f32 %v4520, %v4579
    %v4589 = vadd.f32 %v4521, %v4579
    %v4590 = vadd.f32 %v4522, %v4579
    %v4591 = vadd.f32 %v4523, %v4579
    %v4592 = vadd.f32 %v4524, %v4579
    %v4593 = vadd.f32 %v4525, %v4579
    %v4594 = vadd.f32 %v4526, %v4579
    %v4595 = vadd.f32 %v4527, %v4579
    %v4596 = vadd.f32 %v4528, %v4579
    %v4597 = vadd.f32 %v4529, %v4579
    %v4598 = vadd.f32 %v4530, %v4579
    %v4599 = vadd.f32 %v4531, %v4579
    %v4600 = vadd.f32 %v4532, %v4579
    %v4601 = vadd.f32 %v4533, %v4579
    %v4602 = vadd.f32 %v4534, %v4579
    %v4603 = vadd.f32 %v4535, %v4579
    %v4604 = vadd.f32 %v4536, %v4579
    %v4605 = vadd.f32 %v4537, %v4579
    %v4606 = vadd.f32 %v4538, %v4579
    %v4607 = vadd.f32 %v4539, %v4579
    %v4608 = vadd.f32 %v4540, %v4579
    %v4609 = vadd.f32 %v4541, %v4579
    %v4610 = vadd.f32 %v4542, %v4579
    %v4611 = vadd.f32 %v4543, %v4579
    %v4612 = vadd.f32 %v4544, %v4579
    %v4613 = vadd.f32 %v4545, %v4579
    %v4614 = vadd.f32 %v4546, %v4579
    %v4615 = vadd.f32 %v4547, %v4579
    %v4616 = vadd.f32 %v4548, %v4579
    %v4617 = vadd.f32 %v4549, %v4579
    %v4618 = vadd.f32 %v4550, %v4579
    %v4619 = vadd.f32 %v4551, %v4579
    %v4620 = vadd.f32 %v4552, %v4579
    %v4621 = vadd.f32 %v4553, %v4579
    %v4622 = vadd.f32 %v4554, %v4579
    %v4623 = vadd.f32 %v4555, %v4579
    %v4624 = vadd.f32 %v4556, %v4579
    %v4625 = vadd.f32 %v4557, %v4579
    %v4626 = vadd.f32 %v4558, %v4579
    %v4627 = vadd.f32 %v4559, %v4579
    %v4628 = vadd.f32 %v4560, %v4579
    %v4629 = vadd.f32 %v4561, %v4579
    %v4630 = vadd.f32 %v4562, %v4579
    %v4631 = vadd.f32 %v4563, %v4579
    %v4632 = vadd.f32 %v4564, %v4579
    %v4633 = vadd.f32 %v4565, %v4579
    %v4634 = vadd.f32 %v4566, %v4579
    %v4635 = vadd.f32 %v4567, %v4579
    %v4636 = vadd.f32 %v4568, %v4579
    %v4637 = vadd.f32 %v4569, %v4579
    %v4638 = vadd.f32 %v4570, %v4579
    %v4639 = vadd.f32 %v4571, %v4579
    %v4640 = vadd.f32 %v4572, %v4579
    %v4641 = vadd.f32 %v4573, %v4579
    %v4642 = vadd.f32 %v4574, %v4579
    %v4643 = vadd.f32 %v4575, %v4579
    %v4644 = vmax.f32 %v4580, 0.0
    %v4645 = vmax.f32 %v4581, 0.0
    %v4646 = vmax.f32 %v4582, 0.0
    %v4647 = vmax.f32 %v4583, 0.0
    %v4648 = vmax.f32 %v4584, 0.0
    %v4649 = vmax.f32 %v4585, 0.0
    %v4650 = vmax.f32 %v4586, 0.0
    %v4651 = vmax.f32 %v4587, 0.0
    %v4652 = vmax.f32 %v4588, 0.0
    %v4653 = vmax.f32 %v4589, 0.0
    %v4654 = vmax.f32 %v4590, 0.0
    %v4655 = vmax.f32 %v4591, 0.0
    %v4656 = vmax.f32 %v4592, 0.0
    %v4657 = vmax.f32 %v4593, 0.0
    %v4658 = vmax.f32 %v4594, 0.0
    %v4659 = vmax.f32 %v4595, 0.0
    %v4660 = vmax.f32 %v4596, 0.0
    %v4661 = vmax.f32 %v4597, 0.0
    %v4662 = vmax.f32 %v4598, 0.0
    %v4663 = vmax.f32 %v4599, 0.0
    %v4664 = vmax.f32 %v4600, 0.0
    %v4665 = vmax.f32 %v4601, 0.0
    %v4666 = vmax.f32 %v4602, 0.0
    %v4667 = vmax.f32 %v4603, 0.0
    %v4668 = vmax.f32 %v4604, 0.0
    %v4669 = vmax.f32 %v4605, 0.0
    %v4670 = vmax.f32 %v4606, 0.0
    %v4671 = vmax.f32 %v4607, 0.0
    %v4672 = vmax.f32 %v4608, 0.0
    %v4673 = vmax.f32 %v4609, 0.0
    %v4674 = vmax.f32 %v4610, 0.0
    %v4675 = vmax.f32 %v4611, 0.0
    %v4676 = vmax.f32 %v4612, 0.0
    %v4677 = vmax.f32 %v4613, 0.0
    %v4678 = vmax.f32 %v4614, 0.0
    %v4679 = vmax.f32 %v4615, 0.0
    %v4680 = vmax.f32 %v4616, 0.0
    %v4681 = vmax.f32 %v4617, 0.0
    %v4682 = vmax.f32 %v4618, 0.0
    %v4683 = vmax.f32 %v4619, 0.0
    %v4684 = vmax.f32 %v4620, 0.0
    %v4685 = vmax.f32 %v4621, 0.0
    %v4686 = vmax.f32 %v4622, 0.0
    %v4687 = vmax.f32 %v4623, 0.0
    %v4688 = vmax.f32 %v4624, 0.0
    %v4689 = vmax.f32 %v4625, 0.0
    %v4690 = vmax.f32 %v4626, 0.0
    %v4691 = vmax.f32 %v4627, 0.0
    %v4692 = vmax.f32 %v4628, 0.0
    %v4693 = vmax.f32 %v4629, 0.0
    %v4694 = vmax.f32 %v4630, 0.0
    %v4695 = vmax.f32 %v4631, 0.0
    %v4696 = vmax.f32 %v4632, 0.0
    %v4697 = vmax.f32 %v4633, 0.0
    %v4698 = vmax.f32 %v4634, 0.0
    %v4699 = vmax.f32 %v4635, 0.0
    %v4700 = vmax.f32 %v4636, 0.0
    %v4701 = vmax.f32 %v4637, 0.0
    %v4702 = vmax.f32 %v4638, 0.0
    %v4703 = vmax.f32 %v4639, 0.0
    %v4704 = vmax.f32 %v4640, 0.0
    %v4705 = vmax.f32 %v4641, 0.0
    %v4706 = vmax.f32 %v4642, 0.0
    %v4707 = vmax.f32 %v4643, 0.0
    %v4708 = vld [vmem:[#allocation2 + $0x198] sm:$0xff]
    %v4709 = vld [vmem:[#allocation2 + $0x1a0] sm:$0xff]
    %v4710 = vld [vmem:[#allocation2 + $0x1a8] sm:$0xff]
    %v4711 = vld [vmem:[#allocation2 + $0x1b0] sm:$0xff]
    %v4712 = vld [vmem:[#allocation2 + $0x1b8] sm:$0xff]
    %v4713 = vld [vmem:[#allocation2 + $0x1c0] sm:$0xff]
    %v4714 = vld [vmem:[#allocation2 + $0x1c8] sm:$0xff]
    %v4715 = vld [vmem:[#allocation2 + $0x1d0] sm:$0xff]
    %v4716 = vld [vmem:[#allocation2 + $0x1d8] sm:$0xff]
    %v4717 = vld [vmem:[#allocation2 + $0x1e0] sm:$0xff]
    %v4718 = vld [vmem:[#allocation2 + $0x1e8] sm:$0xff]
    %v4719 = vld [vmem:[#allocation2 + $0x1f0] sm:$0xff]
    %v4720 = vld [vmem:[#allocation2 + $0x1f8] sm:$0xff]
    %v4721 = vld [vmem:[#allocation2 + $0x200] sm:$0xff]
    %v4722 = vld [vmem:[#allocation2 + $0x208] sm:$0xff]
    %v4723 = vld [vmem:[#allocation2 + $0x210] sm:$0xff]
    %v4724 = vld [vmem:[#allocation2 + $0x218] sm:$0xff]
    %v4725 = vld [vmem:[#allocation2 + $0x220] sm:$0xff]
    %v4726 = vld [vmem:[#allocation2 + $0x228] sm:$0xff]
    %v4727 = vld [vmem:[#allocation2 + $0x230] sm:$0xff]
    %v4728 = vld [vmem:[#allocation2 + $0x238] sm:$0xff]
    %v4729 = vld [vmem:[#allocation2 + $0x240] sm:$0xff]
    %v4730 = vld [vmem:[#allocation2 + $0x248] sm:$0xff]
    %v4731 = vld [vmem:[#allocation2 + $0x250] sm:$0xff]
    %v4732 = vld [vmem:[#allocation2 + $0x258] sm:$0xff]
    %v4733 = vld [vmem:[#allocation2 + $0x260] sm:$0xff]
    %v4734 = vld [vmem:[#allocation2 + $0x268] sm:$0xff]
    %v4735 = vld [vmem:[#allocation2 + $0x270] sm:$0xff]
    %v4736 = vld [vmem:[#allocation2 + $0x278] sm:$0xff]
    %v4737 = vld [vmem:[#allocation2 + $0x280] sm:$0xff]
    %v4738 = vld [vmem:[#allocation2 + $0x288] sm:$0xff]
    %v4739 = vld [vmem:[#allocation2 + $0x290] sm:$0xff]
    %v4740 = vld [vmem:[#allocation2 + $0x298] sm:$0xff]
    %v4741 = vld [vmem:[#allocation2 + $0x2a0] sm:$0xff]
    %v4742 = vld [vmem:[#allocation2 + $0x2a8] sm:$0xff]
    %v4743 = vld [vmem:[#allocation2 + $0x2b0] sm:$0xff]
    %v4744 = vld [vmem:[#allocation2 + $0x2b8] sm:$0xff]
    %v4745 = vld [vmem:[#allocation2 + $0x2c0] sm:$0xff]
    %v4746 = vld [vmem:[#allocation2 + $0x2c8] sm:$0xff]
    %v4747 = vld [vmem:[#allocation2 + $0x2d0] sm:$0xff]
    %v4748 = vld [vmem:[#allocation2 + $0x2d8] sm:$0xff]
    %v4749 = vld [vmem:[#allocation2 + $0x2e0] sm:$0xff]
    %v4750 = vld [vmem:[#allocation2 + $0x2e8] sm:$0xff]
    %v4751 = vld [vmem:[#allocation2 + $0x2f0] sm:$0xff]
    %v4752 = vld [vmem:[#allocation2 + $0x2f8] sm:$0xff]
    %v4753 = vld [vmem:[#allocation2 + $0x300] sm:$0xff]
    %v4754 = vld [vmem:[#allocation2 + $0x308] sm:$0xff]
    %v4755 = vld [vmem:[#allocation2 + $0x310] sm:$0xff]
    %v4756 = vld [vmem:[%s2 + $0x2] sm:$0x1]
    %v4757 = vrot.slane %v4644, 7
    %v4758 = vrot.slane %v4645, 7
    %v4759 = vrot.slane %v4646, 7
    %v4760 = vrot.slane %v4647, 7
    %v4761 = vrot.slane %v4648, 7
    %v4762 = vrot.slane %v4649, 7
    %v4763 = vrot.slane %v4650, 7
    %v4764 = vrot.slane %v4651, 7
    %v4765 = vrot.slane %v4652, 7
    %v4766 = vrot.slane %v4653, 7
    %v4767 = vrot.slane %v4654, 7
    %v4768 = vrot.slane %v4655, 7
    %v4769 = vrot.slane %v4656, 7
    %v4770 = vrot.slane %v4657, 7
    %v4771 = vrot.slane %v4658, 7
    %v4772 = vrot.slane %v4659, 7
    %v4773 = vrot.slane %v4660, 7
    %v4774 = vrot.slane %v4661, 7
    %v4775 = vrot.slane %v4662, 7
    %v4776 = vrot.slane %v4663, 7
    %v4777 = vrot.slane %v4664, 7
    %v4778 = vrot.slane %v4665, 7
    %v4779 = vrot.slane %v4666, 7
    %v4780 = vrot.slane %v4667, 7
    %v4781 = vrot.slane %v4668, 7
    %v4782 = vrot.slane %v4669, 7
    %v4783 = vrot.slane %v4670, 7
    %v4784 = vrot.slane %v4671, 7
    %v4785 = vrot.slane %v4672, 7
    %v4786 = vrot.slane %v4673, 7
    %v4787 = vrot.slane %v4674, 7
    %v4788 = vrot.slane %v4675, 7
    %v4789 = vrot.slane %v4676, 7
    %v4790 = vrot.slane %v4677, 7
    %v4791 = vrot.slane %v4678, 7
    %v4792 = vrot.slane %v4679, 7
    %v4793 = vrot.slane %v4680, 7
    %v4794 = vrot.slane %v4681, 7
    %v4795 = vrot.slane %v4682, 7
    %v4796 = vrot.slane %v4683, 7
    %v4797 = vrot.slane %v4684, 7
    %v4798 = vrot.slane %v4685, 7
    %v4799 = vrot.slane %v4686, 7
    %v4800 = vrot.slane %v4687, 7
    %v4801 = vrot.slane %v4688, 7
    %v4802 = vrot.slane %v4689, 7
    %v4803 = vrot.slane %v4690, 7
    %v4804 = vrot.slane %v4691, 7
    %v4805 = vrot.slane %v4692, 7
    %v4806 = vrot.slane %v4693, 7
    %v4807 = vrot.slane %v4694, 7
    %v4808 = vrot.slane %v4695, 7
    %v4809 = vrot.slane %v4696, 7
    %v4810 = vrot.slane %v4697, 7
    %v4811 = vrot.slane %v4698, 7
    %v4812 = vrot.slane %v4699, 7
    %v4813 = vrot.slane %v4700, 7
    %v4814 = vrot.slane %v4701, 7
    %v4815 = vrot.slane %v4702, 7
    %v4816 = vrot.slane %v4703, 7
    %v4817 = vrot.slane %v4704, 7
    %v4818 = vrot.slane %v4705, 7
    %v4819 = vrot.slane %v4706, 7
    %v4820 = vrot.slane %v4707, 7
    %v4821 = vsel %vm418, %v4819, %v4820
    %v4822 = vsel %vm418, %v4818, %v4819
    %v4823 = vsel %vm418, %v4817, %v4818
    %v4824 = vsel %vm418, %v4816, %v4817
    %v4825 = vsel %vm418, %v4815, %v4816
    %v4826 = vsel %vm418, %v4814, %v4815
    %v4827 = vsel %vm418, %v4813, %v4814
    %v4828 = vsel %vm418, %v4812, %v4813
    %v4829 = vsel %vm418, %v4811, %v4812
    %v4830 = vsel %vm418, %v4810, %v4811
    %v4831 = vsel %vm418, %v4809, %v4810
    %v4832 = vsel %vm418, %v4808, %v4809
    %v4833 = vsel %vm418, %v4807, %v4808
    %v4834 = vsel %vm418, %v4806, %v4807
    %v4835 = vsel %vm418, %v4805, %v4806
    %v4836 = vsel %vm418, %v4804, %v4805
    %v4837 = vsel %vm418, %v4803, %v4804
    %v4838 = vsel %vm418, %v4802, %v4803
    %v4839 = vsel %vm418, %v4801, %v4802
    %v4840 = vsel %vm418, %v4800, %v4801
    %v4841 = vsel %vm418, %v4799, %v4800
    %v4842 = vsel %vm418, %v4798, %v4799
    %v4843 = vsel %vm418, %v4797, %v4798
    %v4844 = vsel %vm418, %v4796, %v4797
    %v4845 = vsel %vm418, %v4795, %v4796
    %v4846 = vsel %vm418, %v4794, %v4795
    %v4847 = vsel %vm418, %v4793, %v4794
    %v4848 = vsel %vm418, %v4792, %v4793
    %v4849 = vsel %vm418, %v4791, %v4792
    %v4850 = vsel %vm418, %v4790, %v4791
    %v4851 = vsel %vm418, %v4789, %v4790
    %v4852 = vsel %vm418, %v4788, %v4789
    %v4853 = vsel %vm418, %v4787, %v4788
    %v4854 = vsel %vm418, %v4786, %v4787
    %v4855 = vsel %vm418, %v4785, %v4786
    %v4856 = vsel %vm418, %v4784, %v4785
    %v4857 = vsel %vm418, %v4783, %v4784
    %v4858 = vsel %vm418, %v4782, %v4783
    %v4859 = vsel %vm418, %v4781, %v4782
    %v4860 = vsel %vm418, %v4780, %v4781
    %v4861 = vsel %vm418, %v4779, %v4780
    %v4862 = vsel %vm418, %v4778, %v4779
    %v4863 = vsel %vm418, %v4777, %v4778
    %v4864 = vsel %vm418, %v4776, %v4777
    %v4865 = vsel %vm418, %v4775, %v4776
    %v4866 = vsel %vm418, %v4774, %v4775
    %v4867 = vsel %vm418, %v4773, %v4774
    %v4868 = vsel %vm418, %v4772, %v4773
    %v4869 = vsel %vm418, %v4771, %v4772
    %v4870 = vsel %vm418, %v4770, %v4771
    %v4871 = vsel %vm418, %v4769, %v4770
    %v4872 = vsel %vm418, %v4768, %v4769
    %v4873 = vsel %vm418, %v4767, %v4768
    %v4874 = vsel %vm418, %v4766, %v4767
    %v4875 = vsel %vm418, %v4765, %v4766
    %v4876 = vsel %vm418, %v4764, %v4765
    %v4877 = vsel %vm418, %v4763, %v4764
    %v4878 = vsel %vm418, %v4762, %v4763
    %v4879 = vsel %vm418, %v4761, %v4762
    %v4880 = vsel %vm418, %v4760, %v4761
    %v4881 = vsel %vm418, %v4759, %v4760
    %v4882 = vsel %vm418, %v4758, %v4759
    %v4883 = vsel %vm418, %v4757, %v4758
    %v4884 = vsel %vm418, %v4820, %v4757
    %v4885 = vsel %vm547, %v4884, 0.0
    %v4886 = vsel %vm548, %v4883, 0.0
    %v4887 = vsel %vm549, %v4882, 0.0
    %v4888 = vsel %vm550, %v4881, 0.0
    %v4889 = vsel %vm551, %v4880, 0.0
    %v4890 = vsel %vm552, %v4879, 0.0
    %v4891 = vsel %vm553, %v4878, 0.0
    %v4892 = vsel %vm554, %v4877, 0.0
    %v4893 = vsel %vm555, %v4876, 0.0
    %v4894 = vsel %vm556, %v4875, 0.0
    %v4895 = vsel %vm557, %v4874, 0.0
    %v4896 = vsel %vm558, %v4873, 0.0
    %v4897 = vsel %vm559, %v4872, 0.0
    %v4898 = vsel %vm560, %v4871, 0.0
    %v4899 = vsel %vm561, %v4870, 0.0
    %v4900 = vsel %vm562, %v4869, 0.0
    %v4901 = vsel %vm563, %v4868, 0.0
    %v4902 = vsel %vm564, %v4867, 0.0
    %v4903 = vsel %vm565, %v4866, 0.0
    %v4904 = vsel %vm566, %v4865, 0.0
    %v4905 = vsel %vm567, %v4864, 0.0
    %v4906 = vsel %vm568, %v4863, 0.0
    %v4907 = vsel %vm569, %v4862, 0.0
    %v4908 = vsel %vm570, %v4861, 0.0
    %v4909 = vsel %vm571, %v4860, 0.0
    %v4910 = vsel %vm572, %v4859, 0.0
    %v4911 = vsel %vm573, %v4858, 0.0
    %v4912 = vsel %vm574, %v4857, 0.0
    %v4913 = vsel %vm575, %v4856, 0.0
    %v4914 = vsel %vm576, %v4855, 0.0
    %v4915 = vsel %vm577, %v4854, 0.0
    %v4916 = vsel %vm578, %v4853, 0.0
    %v4917 = vsel %vm579, %v4852, 0.0
    %v4918 = vsel %vm580, %v4851, 0.0
    %v4919 = vsel %vm581, %v4850, 0.0
    %v4920 = vsel %vm582, %v4849, 0.0
    %v4921 = vsel %vm583, %v4848, 0.0
    %v4922 = vsel %vm584, %v4847, 0.0
    %v4923 = vsel %vm585, %v4846, 0.0
    %v4924 = vsel %vm586, %v4845, 0.0
    %v4925 = vsel %vm587, %v4844, 0.0
    %v4926 = vsel %vm588, %v4843, 0.0
    %v4927 = vsel %vm589, %v4842, 0.0
    %v4928 = vsel %vm590, %v4841, 0.0
    %v4929 = vsel %vm591, %v4840, 0.0
    %v4930 = vsel %vm592, %v4839, 0.0
    %v4931 = vsel %vm593, %v4838, 0.0
    %v4932 = vsel %vm594, %v4837, 0.0
    %v4933 = vsel %vm595, %v4836, 0.0
    %v4934 = vsel %vm596, %v4835, 0.0
    %v4935 = vsel %vm597, %v4834, 0.0
    %v4936 = vsel %vm598, %v4833, 0.0
    %v4937 = vsel %vm599, %v4832, 0.0
    %v4938 = vsel %vm600, %v4831, 0.0
    %v4939 = vsel %vm601, %v4830, 0.0
    %v4940 = vsel %vm602, %v4829, 0.0
    %v4941 = vsel %vm603, %v4828, 0.0
    %v4942 = vsel %vm604, %v4827, 0.0
    %v4943 = vsel %vm605, %v4826, 0.0
    %v4944 = vsel %vm606, %v4825, 0.0
    %v4945 = vsel %vm607, %v4824, 0.0
    %v4946 = vsel %vm608, %v4823, 0.0
    %v4947 = vsel %vm609, %v4822, 0.0
    %v4948 = vsel %vm610, %v4821, 0.0
    %v4949 = vrot.slane %v4644, 1
    %v4950 = vrot.slane %v4645, 1
    %v4951 = vrot.slane %v4646, 1
    %v4952 = vrot.slane %v4647, 1
    %v4953 = vrot.slane %v4648, 1
    %v4954 = vrot.slane %v4649, 1
    %v4955 = vrot.slane %v4650, 1
    %v4956 = vrot.slane %v4651, 1
    %v4957 = vrot.slane %v4652, 1
    %v4958 = vrot.slane %v4653, 1
    %v4959 = vrot.slane %v4654, 1
    %v4960 = vrot.slane %v4655, 1
    %v4961 = vrot.slane %v4656, 1
    %v4962 = vrot.slane %v4657, 1
    %v4963 = vrot.slane %v4658, 1
    %v4964 = vrot.slane %v4659, 1
    %v4965 = vrot.slane %v4660, 1
    %v4966 = vrot.slane %v4661, 1
    %v4967 = vrot.slane %v4662, 1
    %v4968 = vrot.slane %v4663, 1
    %v4969 = vrot.slane %v4664, 1
    %v4970 = vrot.slane %v4665, 1
    %v4971 = vrot.slane %v4666, 1
    %v4972 = vrot.slane %v4667, 1
    %v4973 = vrot.slane %v4668, 1
    %v4974 = vrot.slane %v4669, 1
    %v4975 = vrot.slane %v4670, 1
    %v4976 = vrot.slane %v4671, 1
    %v4977 = vrot.slane %v4672, 1
    %v4978 = vrot.slane %v4673, 1
    %v4979 = vrot.slane %v4674, 1
    %v4980 = vrot.slane %v4675, 1
    %v4981 = vrot.slane %v4676, 1
    %v4982 = vrot.slane %v4677, 1
    %v4983 = vrot.slane %v4678, 1
    %v4984 = vrot.slane %v4679, 1
    %v4985 = vrot.slane %v4680, 1
    %v4986 = vrot.slane %v4681, 1
    %v4987 = vrot.slane %v4682, 1
    %v4988 = vrot.slane %v4683, 1
    %v4989 = vrot.slane %v4684, 1
    %v4990 = vrot.slane %v4685, 1
    %v4991 = vrot.slane %v4686, 1
    %v4992 = vrot.slane %v4687, 1
    %v4993 = vrot.slane %v4688, 1
    %v4994 = vrot.slane %v4689, 1
    %v4995 = vrot.slane %v4690, 1
    %v4996 = vrot.slane %v4691, 1
    %v4997 = vrot.slane %v4692, 1
    %v4998 = vrot.slane %v4693, 1
    %v4999 = vrot.slane %v4694, 1
    %v5000 = vrot.slane %v4695, 1
    %v5001 = vrot.slane %v4696, 1
    %v5002 = vrot.slane %v4697, 1
    %v5003 = vrot.slane %v4698, 1
    %v5004 = vrot.slane %v4699, 1
    %v5005 = vrot.slane %v4700, 1
    %v5006 = vrot.slane %v4701, 1
    %v5007 = vrot.slane %v4702, 1
    %v5008 = vrot.slane %v4703, 1
    %v5009 = vrot.slane %v4704, 1
    %v5010 = vrot.slane %v4705, 1
    %v5011 = vrot.slane %v4706, 1
    %v5012 = vrot.slane %v4707, 1
    %v5013 = vsel %vm739, %v5011, %v5012
    %v5014 = vsel %vm739, %v5010, %v5011
    %v5015 = vsel %vm739, %v5009, %v5010
    %v5016 = vsel %vm739, %v5008, %v5009
    %v5017 = vsel %vm739, %v5007, %v5008
    %v5018 = vsel %vm739, %v5006, %v5007
    %v5019 = vsel %vm739, %v5005, %v5006
    %v5020 = vsel %vm739, %v5004, %v5005
    %v5021 = vsel %vm739, %v5003, %v5004
    %v5022 = vsel %vm739, %v5002, %v5003
    %v5023 = vsel %vm739, %v5001, %v5002
    %v5024 = vsel %vm739, %v5000, %v5001
    %v5025 = vsel %vm739, %v4999, %v5000
    %v5026 = vsel %vm739, %v4998, %v4999
    %v5027 = vsel %vm739, %v4997, %v4998
    %v5028 = vsel %vm739, %v4996, %v4997
    %v5029 = vsel %vm739, %v4995, %v4996
    %v5030 = vsel %vm739, %v4994, %v4995
    %v5031 = vsel %vm739, %v4993, %v4994
    %v5032 = vsel %vm739, %v4992, %v4993
    %v5033 = vsel %vm739, %v4991, %v4992
    %v5034 = vsel %vm739, %v4990, %v4991
    %v5035 = vsel %vm739, %v4989, %v4990
    %v5036 = vsel %vm739, %v4988, %v4989
    %v5037 = vsel %vm739, %v4987, %v4988
    %v5038 = vsel %vm739, %v4986, %v4987
    %v5039 = vsel %vm739, %v4985, %v4986
    %v5040 = vsel %vm739, %v4984, %v4985
    %v5041 = vsel %vm739, %v4983, %v4984
    %v5042 = vsel %vm739, %v4982, %v4983
    %v5043 = vsel %vm739, %v4981, %v4982
    %v5044 = vsel %vm739, %v4980, %v4981
    %v5045 = vsel %vm739, %v4979, %v4980
    %v5046 = vsel %vm739, %v4978, %v4979
    %v5047 = vsel %vm739, %v4977, %v4978
    %v5048 = vsel %vm739, %v4976, %v4977
    %v5049 = vsel %vm739, %v4975, %v4976
    %v5050 = vsel %vm739, %v4974, %v4975
    %v5051 = vsel %vm739, %v4973, %v4974
    %v5052 = vsel %vm739, %v4972, %v4973
    %v5053 = vsel %vm739, %v4971, %v4972
    %v5054 = vsel %vm739, %v4970, %v4971
    %v5055 = vsel %vm739, %v4969, %v4970
    %v5056 = vsel %vm739, %v4968, %v4969
    %v5057 = vsel %vm739, %v4967, %v4968
    %v5058 = vsel %vm739, %v4966, %v4967
    %v5059 = vsel %vm739, %v4965, %v4966
    %v5060 = vsel %vm739, %v4964, %v4965
    %v5061 = vsel %vm739, %v4963, %v4964
    %v5062 = vsel %vm739, %v4962, %v4963
    %v5063 = vsel %vm739, %v4961, %v4962
    %v5064 = vsel %vm739, %v4960, %v4961
    %v5065 = vsel %vm739, %v4959, %v4960
    %v5066 = vsel %vm739, %v4958, %v4959
    %v5067 = vsel %vm739, %v4957, %v4958
    %v5068 = vsel %vm739, %v4956, %v4957
    %v5069 = vsel %vm739, %v4955, %v4956
    %v5070 = vsel %vm739, %v4954, %v4955
    %v5071 = vsel %vm739, %v4953, %v4954
    %v5072 = vsel %vm739, %v4952, %v4953
    %v5073 = vsel %vm739, %v4951, %v4952
    %v5074 = vsel %vm739, %v4950, %v4951
    %v5075 = vsel %vm739, %v4949, %v4950
    %v5076 = vsel %vm739, %v5012, %v4949
    %v5077 = vsel %vm868, %v5075, 0.0
    %v5078 = vsel %vm869, %v5074, 0.0
    %v5079 = vsel %vm870, %v5073, 0.0
    %v5080 = vsel %vm871, %v5072, 0.0
    %v5081 = vsel %vm872, %v5071, 0.0
    %v5082 = vsel %vm873, %v5070, 0.0
    %v5083 = vsel %vm874, %v5069, 0.0
    %v5084 = vsel %vm875, %v5068, 0.0
    %v5085 = vsel %vm876, %v5067, 0.0
    %v5086 = vsel %vm877, %v5066, 0.0
    %v5087 = vsel %vm878, %v5065, 0.0
    %v5088 = vsel %vm879, %v5064, 0.0
    %v5089 = vsel %vm880, %v5063, 0.0
    %v5090 = vsel %vm881, %v5062, 0.0
    %v5091 = vsel %vm882, %v5061, 0.0
    %v5092 = vsel %vm883, %v5060, 0.0
    %v5093 = vsel %vm884, %v5059, 0.0
    %v5094 = vsel %vm885, %v5058, 0.0
    %v5095 = vsel %vm886, %v5057, 0.0
    %v5096 = vsel %vm887, %v5056, 0.0
    %v5097 = vsel %vm888, %v5055, 0.0
    %v5098 = vsel %vm889, %v5054, 0.0
    %v5099 = vsel %vm890, %v5053, 0.0
    %v5100 = vsel %vm891, %v5052, 0.0
    %v5101 = vsel %vm892, %v5051, 0.0
    %v5102 = vsel %vm893, %v5050, 0.0
    %v5103 = vsel %vm894, %v5049, 0.0
    %v5104 = vsel %vm895, %v5048, 0.0
    %v5105 = vsel %vm896, %v5047, 0.0
    %v5106 = vsel %vm897, %v5046, 0.0
    %v5107 = vsel %vm898, %v5045, 0.0
    %v5108 = vsel %vm899, %v5044, 0.0
    %v5109 = vsel %vm900, %v5043, 0.0
    %v5110 = vsel %vm901, %v5042, 0.0
    %v5111 = vsel %vm902, %v5041, 0.0
    %v5112 = vsel %vm903, %v5040, 0.0
    %v5113 = vsel %vm904, %v5039, 0.0
    %v5114 = vsel %vm905, %v5038, 0.0
    %v5115 = vsel %vm906, %v5037, 0.0
    %v5116 = vsel %vm907, %v5036, 0.0
    %v5117 = vsel %vm908, %v5035, 0.0
    %v5118 = vsel %vm909, %v5034, 0.0
    %v5119 = vsel %vm910, %v5033, 0.0
    %v5120 = vsel %vm911, %v5032, 0.0
    %v5121 = vsel %vm912, %v5031, 0.0
    %v5122 = vsel %vm913, %v5030, 0.0
    %v5123 = vsel %vm914, %v5029, 0.0
    %v5124 = vsel %vm915, %v5028, 0.0
    %v5125 = vsel %vm916, %v5027, 0.0
    %v5126 = vsel %vm917, %v5026, 0.0
    %v5127 = vsel %vm918, %v5025, 0.0
    %v5128 = vsel %vm919, %v5024, 0.0
    %v5129 = vsel %vm920, %v5023, 0.0
    %v5130 = vsel %vm921, %v5022, 0.0
    %v5131 = vsel %vm922, %v5021, 0.0
    %v5132 = vsel %vm923, %v5020, 0.0
    %v5133 = vsel %vm924, %v5019, 0.0
    %v5134 = vsel %vm925, %v5018, 0.0
    %v5135 = vsel %vm926, %v5017, 0.0
    %v5136 = vsel %vm927, %v5016, 0.0
    %v5137 = vsel %vm928, %v5015, 0.0
    %v5138 = vsel %vm929, %v5014, 0.0
    %v5139 = vsel %vm930, %v5013, 0.0
    %v5140 = vsel %vm931, %v5076, 0.0
    %5141 = vmatprep.subr.mxu0 0.0
    %5142 = vmatpush1.msra.mxu0 %v4708
    %5143 = vmatprep.subr.mxu0 0.0
    %5144 = vmatpush1.msra.mxu0 %v4709
    %5145 = vmatprep.subr.mxu0 0.0
    %5146 = vmatpush1.msra.mxu0 %v4710
    %5147 = vmatprep.subr.mxu0 0.0
    %5148 = vmatpush1.msra.mxu0 %v4711
    %5149 = vmatprep.subr.mxu0 0.0
    %5150 = vmatpush1.msra.mxu0 %v4712
    %5151 = vmatprep.subr.mxu0 0.0
    %5152 = vmatpush1.msra.mxu0 %v4713
    %5153 = vmatprep.subr.mxu0 0.0
    %5154 = vmatpush1.msra.mxu0 %v4714
    %5155 = vmatprep.subr.mxu0 0.0
    %5156 = vmatpush1.msra.mxu0 %v4715
    %5157 = vmatprep.subr.mxu0 0.0
    %5158 = vmatpush1.msra.mxu0 %v4716
    %5159 = vmatprep.subr.mxu0 0.0
    %5160 = vmatpush1.msra.mxu0 %v4717
    %5161 = vmatprep.subr.mxu0 0.0
    %5162 = vmatpush1.msra.mxu0 %v4718
    %5163 = vmatprep.subr.mxu0 0.0
    %5164 = vmatpush1.msra.mxu0 %v4719
    %5165 = vmatprep.subr.mxu0 0.0
    %5166 = vmatpush1.msra.mxu0 %v4720
    %5167 = vmatprep.subr.mxu0 0.0
    %5168 = vmatpush1.msra.mxu0 %v4721
    %5169 = vmatprep.subr.mxu0 0.0
    %5170 = vmatpush1.msra.mxu0 %v4722
    %5171 = vmatprep.subr.mxu0 0.0
    %5172 = vmatpush1.msra.mxu0 %v4723
    %5173 = vmatprep.subr.mxu0 0.0
    %5174 = vmatpush1.msra.mxu0 0.0
    %5175 = vmatprep.subr.mxu0 0.0
    %5176 = vmatpush1.msra.mxu0 0.0
    %5177 = vmatprep.subr.mxu0 0.0
    %5178 = vmatpush1.msra.mxu0 0.0
    %5179 = vmatprep.subr.mxu0 0.0
    %5180 = vmatpush1.msra.mxu0 0.0
    %5181 = vmatprep.subr.mxu0 0.0
    %5182 = vmatpush1.msra.mxu0 0.0
    %5183 = vmatprep.subr.mxu0 0.0
    %5184 = vmatpush1.msra.mxu0 0.0
    %5185 = vmatprep.subr.mxu0 0.0
    %5186 = vmatpush1.msra.mxu0 0.0
    %5187 = vmatprep.subr.mxu0 0.0
    %5188 = vmatpush1.msra.mxu0 0.0
    %5189 = vmatprep.subr.mxu0 0.0
    %5190 = vmatpush1.msra.mxu0 0.0
    %5191 = vmatprep.subr.mxu0 0.0
    %5192 = vmatpush1.msra.mxu0 0.0
    %5193 = vmatprep.subr.mxu0 0.0
    %5194 = vmatpush1.msra.mxu0 0.0
    %5195 = vmatprep.subr.mxu0 0.0
    %5196 = vmatpush1.msra.mxu0 0.0
    %5197 = vmatprep.subr.mxu0 0.0
    %5198 = vmatpush1.msra.mxu0 0.0
    %5199 = vmatprep.subr.mxu0 0.0
    %5200 = vmatpush1.msra.mxu0 0.0
    %5201 = vmatprep.subr.mxu0 0.0
    %5202 = vmatpush1.msra.mxu0 0.0
    %5203 = vmatprep.subr.mxu0 0.0
    %5204 = vmatpush1.msra.mxu0 0.0
    %5205 = vmatprep.mubr.f32.mxu0 0.0
    %5206 = vmatmul.mubr.f32.gmra.mrb[0].mxu0 %v4885
    %v5207 = vpop.f32.mrb[0].mxu0
    %v5208 = vadd.f32 0.0, %v5207
    %v5209 = vpop.f32.mrb[0].mxu0
    %5210 = vmatprep.mubr.f32.mxu0 0.0
    %5211 = vmatmul.mubr.f32.gmra.mrb[0].mxu0 %v4886
    %v5212 = vpop.f32.mrb[0].mxu0
    %v5213 = vadd.f32 0.0, %v5212
    %v5214 = vpop.f32.mrb[0].mxu0
    %5215 = vmatprep.mubr.f32.mxu0 0.0
    %5216 = vmatmul.mubr.f32.gmra.mrb[0].mxu0 %v4887
    %v5217 = vpop.f32.mrb[0].mxu0
    %v5218 = vadd.f32 0.0, %v5217
    %v5219 = vpop.f32.mrb[0].mxu0
    %5220 = vmatprep.mubr.f32.mxu0 0.0
    %5221 = vmatmul.mubr.f32.gmra.mrb[0].mxu0 %v4888
    %v5222 = vpop.f32.mrb[0].mxu0
    %v5223 = vadd.f32 0.0, %v5222
    %v5224 = vpop.f32.mrb[0].mxu0
    %5225 = vmatprep.mubr.f32.mxu0 0.0
    %5226 = vmatmul.mubr.f32.gmra.mrb[0].mxu0 %v4889
    %v5227 = vpop.f32.mrb[0].mxu0
    %v5228 = vadd.f32 0.0, %v5227
    %v5229 = vpop.f32.mrb[0].mxu0
    %5230 = vmatprep.mubr.f32.mxu0 0.0
    %5231 = vmatmul.mubr.f32.gmra.mrb[0].mxu0 %v4890
    %v5232 = vpop.f32.mrb[0].mxu0
    %v5233 = vadd.f32 0.0, %v5232
    %v5234 = vpop.f32.mrb[0].mxu0
    %5235 = vmatprep.mubr.f32.mxu0 0.0
    %5236 = vmatmul.mubr.f32.gmra.mrb[0].mxu0 %v4891
    %v5237 = vpop.f32.mrb[0].mxu0
    %v5238 = vadd.f32 0.0, %v5237
    %v5239 = vpop.f32.mrb[0].mxu0
    %5240 = vmatprep.mubr.f32.mxu0 0.0
    %5241 = vmatmul.mubr.f32.gmra.mrb[0].mxu0 %v4892
    %v5242 = vpop.f32.mrb[0].mxu0
    %v5243 = vadd.f32 0.0, %v5242
    %v5244 = vpop.f32.mrb[0].mxu0
    %5245 = vmatprep.mubr.f32.mxu0 0.0
    %5246 = vmatmul.mubr.f32.gmra.mrb[0].mxu0 %v4893
    %v5247 = vpop.f32.mrb[0].mxu0
    %v5248 = vadd.f32 0.0, %v5247
    %v5249 = vpop.f32.mrb[0].mxu0
    %5250 = vmatprep.mubr.f32.mxu0 0.0
    %5251 = vmatmul.mubr.f32.gmra.mrb[0].mxu0 %v4894
    %v5252 = vpop.f32.mrb[0].mxu0
    %v5253 = vadd.f32 0.0, %v5252
    %v5254 = vpop.f32.mrb[0].mxu0
    %5255 = vmatprep.mubr.f32.mxu0 0.0
    %5256 = vmatmul.mubr.f32.gmra.mrb[0].mxu0 %v4895
    %v5257 = vpop.f32.mrb[0].mxu0
    %v5258 = vadd.f32 0.0, %v5257
    %v5259 = vpop.f32.mrb[0].mxu0
    %5260 = vmatprep.mubr.f32.mxu0 0.0
    %5261 = vmatmul.mubr.f32.gmra.mrb[0].mxu0 %v4896
    %v5262 = vpop.f32.mrb[0].mxu0
    %v5263 = vadd.f32 0.0, %v5262
    %v5264 = vpop.f32.mrb[0].mxu0
    %5265 = vmatprep.mubr.f32.mxu0 0.0
    %5266 = vmatmul.mubr.f32.gmra.mrb[0].mxu0 %v4897
    %v5267 = vpop.f32.mrb[0].mxu0
    %v5268 = vadd.f32 0.0, %v5267
    %v5269 = vpop.f32.mrb[0].mxu0
    %5270 = vmatprep.mubr.f32.mxu0 0.0
    %5271 = vmatmul.mubr.f32.gmra.mrb[0].mxu0 %v4898
    %v5272 = vpop.f32.mrb[0].mxu0
    %v5273 = vadd.f32 0.0, %v5272
    %v5274 = vpop.f32.mrb[0].mxu0
    %5275 = vmatprep.mubr.f32.mxu0 0.0
    %5276 = vmatmul.mubr.f32.gmra.mrb[0].mxu0 %v4899
    %v5277 = vpop.f32.mrb[0].mxu0
    %v5278 = vadd.f32 0.0, %v5277
    %v5279 = vpop.f32.mrb[0].mxu0
    %5280 = vmatprep.mubr.f32.mxu0 0.0
    %5281 = vmatmul.mubr.f32.gmra.mrb[0].mxu0 %v4900
    %v5282 = vpop.f32.mrb[0].mxu0
    %v5283 = vadd.f32 0.0, %v5282
    %v5284 = vpop.f32.mrb[0].mxu0
    %5285 = vmatprep.mubr.f32.mxu0 0.0
    %5286 = vmatmul.mubr.f32.gmra.mrb[0].mxu0 %v4901
    %v5287 = vpop.f32.mrb[0].mxu0
    %v5288 = vadd.f32 0.0, %v5287
    %v5289 = vpop.f32.mrb[0].mxu0
    %5290 = vmatprep.mubr.f32.mxu0 0.0
    %5291 = vmatmul.mubr.f32.gmra.mrb[0].mxu0 %v4902
    %v5292 = vpop.f32.mrb[0].mxu0
    %v5293 = vadd.f32 0.0, %v5292
    %v5294 = vpop.f32.mrb[0].mxu0
    %5295 = vmatprep.mubr.f32.mxu0 0.0
    %5296 = vmatmul.mubr.f32.gmra.mrb[0].mxu0 %v4903
    %v5297 = vpop.f32.mrb[0].mxu0
    %v5298 = vadd.f32 0.0, %v5297
    %v5299 = vpop.f32.mrb[0].mxu0
    %5300 = vmatprep.mubr.f32.mxu0 0.0
    %5301 = vmatmul.mubr.f32.gmra.mrb[0].mxu0 %v4904
    %v5302 = vpop.f32.mrb[0].mxu0
    %v5303 = vadd.f32 0.0, %v5302
    %v5304 = vpop.f32.mrb[0].mxu0
    %5305 = vmatprep.mubr.f32.mxu0 0.0
    %5306 = vmatmul.mubr.f32.gmra.mrb[0].mxu0 %v4905
    %v5307 = vpop.f32.mrb[0].mxu0
    %v5308 = vadd.f32 0.0, %v5307
    %v5309 = vpop.f32.mrb[0].mxu0
    %5310 = vmatprep.mubr.f32.mxu0 0.0
    %5311 = vmatmul.mubr.f32.gmra.mrb[0].mxu0 %v4906
    %v5312 = vpop.f32.mrb[0].mxu0
    %v5313 = vadd.f32 0.0, %v5312
    %v5314 = vpop.f32.mrb[0].mxu0
    %5315 = vmatprep.mubr.f32.mxu0 0.0
    %5316 = vmatmul.mubr.f32.gmra.mrb[0].mxu0 %v4907
    %v5317 = vpop.f32.mrb[0].mxu0
    %v5318 = vadd.f32 0.0, %v5317
    %v5319 = vpop.f32.mrb[0].mxu0
    %5320 = vmatprep.mubr.f32.mxu0 0.0
    %5321 = vmatmul.mubr.f32.gmra.mrb[0].mxu0 %v4908
    %v5322 = vpop.f32.mrb[0].mxu0
    %v5323 = vadd.f32 0.0, %v5322
    %v5324 = vpop.f32.mrb[0].mxu0
    %5325 = vmatprep.mubr.f32.mxu0 0.0
    %5326 = vmatmul.mubr.f32.gmra.mrb[0].mxu0 %v4909
    %v5327 = vpop.f32.mrb[0].mxu0
    %v5328 = vadd.f32 0.0, %v5327
    %v5329 = vpop.f32.mrb[0].mxu0
    %5330 = vmatprep.mubr.f32.mxu0 0.0
    %5331 = vmatmul.mubr.f32.gmra.mrb[0].mxu0 %v4910
    %v5332 = vpop.f32.mrb[0].mxu0
    %v5333 = vadd.f32 0.0, %v5332
    %v5334 = vpop.f32.mrb[0].mxu0
    %5335 = vmatprep.mubr.f32.mxu0 0.0
    %5336 = vmatmul.mubr.f32.gmra.mrb[0].mxu0 %v4911
    %v5337 = vpop.f32.mrb[0].mxu0
    %v5338 = vadd.f32 0.0, %v5337
    %v5339 = vpop.f32.mrb[0].mxu0
    %5340 = vmatprep.mubr.f32.mxu0 0.0
    %5341 = vmatmul.mubr.f32.gmra.mrb[0].mxu0 %v4912
    %v5342 = vpop.f32.mrb[0].mxu0
    %v5343 = vadd.f32 0.0, %v5342
    %v5344 = vpop.f32.mrb[0].mxu0
    %5345 = vmatprep.mubr.f32.mxu0 0.0
    %5346 = vmatmul.mubr.f32.gmra.mrb[0].mxu0 %v4913
    %v5347 = vpop.f32.mrb[0].mxu0
    %v5348 = vadd.f32 0.0, %v5347
    %v5349 = vpop.f32.mrb[0].mxu0
    %5350 = vmatprep.mubr.f32.mxu0 0.0
    %5351 = vmatmul.mubr.f32.gmra.mrb[0].mxu0 %v4914
    %v5352 = vpop.f32.mrb[0].mxu0
    %v5353 = vadd.f32 0.0, %v5352
    %v5354 = vpop.f32.mrb[0].mxu0
    %5355 = vmatprep.mubr.f32.mxu0 0.0
    %5356 = vmatmul.mubr.f32.gmra.mrb[0].mxu0 %v4915
    %v5357 = vpop.f32.mrb[0].mxu0
    %v5358 = vadd.f32 0.0, %v5357
    %v5359 = vpop.f32.mrb[0].mxu0
    %5360 = vmatprep.mubr.f32.mxu0 0.0
    %5361 = vmatmul.mubr.f32.gmra.mrb[0].mxu0 %v4916
    %v5362 = vpop.f32.mrb[0].mxu0
    %v5363 = vadd.f32 0.0, %v5362
    %v5364 = vpop.f32.mrb[0].mxu0
    %5365 = vmatprep.mubr.f32.mxu0 0.0
    %5366 = vmatmul.mubr.f32.gmra.mrb[0].mxu0 %v4917
    %v5367 = vpop.f32.mrb[0].mxu0
    %v5368 = vadd.f32 0.0, %v5367
    %v5369 = vpop.f32.mrb[0].mxu0
    %5370 = vmatprep.mubr.f32.mxu0 0.0
    %5371 = vmatmul.mubr.f32.gmra.mrb[0].mxu0 %v4918
    %v5372 = vpop.f32.mrb[0].mxu0
    %v5373 = vadd.f32 0.0, %v5372
    %v5374 = vpop.f32.mrb[0].mxu0
    %5375 = vmatprep.mubr.f32.mxu0 0.0
    %5376 = vmatmul.mubr.f32.gmra.mrb[0].mxu0 %v4919
    %v5377 = vpop.f32.mrb[0].mxu0
    %v5378 = vadd.f32 0.0, %v5377
    %v5379 = vpop.f32.mrb[0].mxu0
    %5380 = vmatprep.mubr.f32.mxu0 0.0
    %5381 = vmatmul.mubr.f32.gmra.mrb[0].mxu0 %v4920
    %v5382 = vpop.f32.mrb[0].mxu0
    %v5383 = vadd.f32 0.0, %v5382
    %v5384 = vpop.f32.mrb[0].mxu0
    %5385 = vmatprep.mubr.f32.mxu0 0.0
    %5386 = vmatmul.mubr.f32.gmra.mrb[0].mxu0 %v4921
    %v5387 = vpop.f32.mrb[0].mxu0
    %v5388 = vadd.f32 0.0, %v5387
    %v5389 = vpop.f32.mrb[0].mxu0
    %5390 = vmatprep.mubr.f32.mxu0 0.0
    %5391 = vmatmul.mubr.f32.gmra.mrb[0].mxu0 %v4922
    %v5392 = vpop.f32.mrb[0].mxu0
    %v5393 = vadd.f32 0.0, %v5392
    %v5394 = vpop.f32.mrb[0].mxu0
    %5395 = vmatprep.mubr.f32.mxu0 0.0
    %5396 = vmatmul.mubr.f32.gmra.mrb[0].mxu0 %v4923
    %v5397 = vpop.f32.mrb[0].mxu0
    %v5398 = vadd.f32 0.0, %v5397
    %v5399 = vpop.f32.mrb[0].mxu0
    %5400 = vmatprep.mubr.f32.mxu0 0.0
    %5401 = vmatmul.mubr.f32.gmra.mrb[0].mxu0 %v4924
    %v5402 = vpop.f32.mrb[0].mxu0
    %v5403 = vadd.f32 0.0, %v5402
    %v5404 = vpop.f32.mrb[0].mxu0
    %5405 = vmatprep.mubr.f32.mxu0 0.0
    %5406 = vmatmul.mubr.f32.gmra.mrb[0].mxu0 %v4925
    %v5407 = vpop.f32.mrb[0].mxu0
    %v5408 = vadd.f32 0.0, %v5407
    %v5409 = vpop.f32.mrb[0].mxu0
    %5410 = vmatprep.mubr.f32.mxu0 0.0
    %5411 = vmatmul.mubr.f32.gmra.mrb[0].mxu0 %v4926
    %v5412 = vpop.f32.mrb[0].mxu0
    %v5413 = vadd.f32 0.0, %v5412
    %v5414 = vpop.f32.mrb[0].mxu0
    %5415 = vmatprep.mubr.f32.mxu0 0.0
    %5416 = vmatmul.mubr.f32.gmra.mrb[0].mxu0 %v4927
    %v5417 = vpop.f32.mrb[0].mxu0
    %v5418 = vadd.f32 0.0, %v5417
    %v5419 = vpop.f32.mrb[0].mxu0
    %5420 = vmatprep.mubr.f32.mxu0 0.0
    %5421 = vmatmul.mubr.f32.gmra.mrb[0].mxu0 %v4928
    %v5422 = vpop.f32.mrb[0].mxu0
    %v5423 = vadd.f32 0.0, %v5422
    %v5424 = vpop.f32.mrb[0].mxu0
    %5425 = vmatprep.mubr.f32.mxu0 0.0
    %5426 = vmatmul.mubr.f32.gmra.mrb[0].mxu0 %v4929
    %v5427 = vpop.f32.mrb[0].mxu0
    %v5428 = vadd.f32 0.0, %v5427
    %v5429 = vpop.f32.mrb[0].mxu0
    %5430 = vmatprep.mubr.f32.mxu0 0.0
    %5431 = vmatmul.mubr.f32.gmra.mrb[0].mxu0 %v4930
    %v5432 = vpop.f32.mrb[0].mxu0
    %v5433 = vadd.f32 0.0, %v5432
    %v5434 = vpop.f32.mrb[0].mxu0
    %5435 = vmatprep.mubr.f32.mxu0 0.0
    %5436 = vmatmul.mubr.f32.gmra.mrb[0].mxu0 %v4931
    %v5437 = vpop.f32.mrb[0].mxu0
    %v5438 = vadd.f32 0.0, %v5437
    %v5439 = vpop.f32.mrb[0].mxu0
    %5440 = vmatprep.mubr.f32.mxu0 0.0
    %5441 = vmatmul.mubr.f32.gmra.mrb[0].mxu0 %v4932
    %v5442 = vpop.f32.mrb[0].mxu0
    %v5443 = vadd.f32 0.0, %v5442
    %v5444 = vpop.f32.mrb[0].mxu0
    %5445 = vmatprep.mubr.f32.mxu0 0.0
    %5446 = vmatmul.mubr.f32.gmra.mrb[0].mxu0 %v4933
    %v5447 = vpop.f32.mrb[0].mxu0
    %v5448 = vadd.f32 0.0, %v5447
    %v5449 = vpop.f32.mrb[0].mxu0
    %5450 = vmatprep.mubr.f32.mxu0 0.0
    %5451 = vmatmul.mubr.f32.gmra.mrb[0].mxu0 %v4934
    %v5452 = vpop.f32.mrb[0].mxu0
    %v5453 = vadd.f32 0.0, %v5452
    %v5454 = vpop.f32.mrb[0].mxu0
    %5455 = vmatprep.mubr.f32.mxu0 0.0
    %5456 = vmatmul.mubr.f32.gmra.mrb[0].mxu0 %v4935
    %v5457 = vpop.f32.mrb[0].mxu0
    %v5458 = vadd.f32 0.0, %v5457
    %v5459 = vpop.f32.mrb[0].mxu0
    %5460 = vmatprep.mubr.f32.mxu0 0.0
    %5461 = vmatmul.mubr.f32.gmra.mrb[0].mxu0 %v4936
    %v5462 = vpop.f32.mrb[0].mxu0
    %v5463 = vadd.f32 0.0, %v5462
    %v5464 = vpop.f32.mrb[0].mxu0
    %5465 = vmatprep.mubr.f32.mxu0 0.0
    %5466 = vmatmul.mubr.f32.gmra.mrb[0].mxu0 %v4937
    %v5467 = vpop.f32.mrb[0].mxu0
    %v5468 = vadd.f32 0.0, %v5467
    %v5469 = vpop.f32.mrb[0].mxu0
    %5470 = vmatprep.mubr.f32.mxu0 0.0
    %5471 = vmatmul.mubr.f32.gmra.mrb[0].mxu0 %v4938
    %v5472 = vpop.f32.mrb[0].mxu0
    %v5473 = vadd.f32 0.0, %v5472
    %v5474 = vpop.f32.mrb[0].mxu0
    %5475 = vmatprep.mubr.f32.mxu0 0.0
    %5476 = vmatmul.mubr.f32.gmra.mrb[0].mxu0 %v4939
    %v5477 = vpop.f32.mrb[0].mxu0
    %v5478 = vadd.f32 0.0, %v5477
    %v5479 = vpop.f32.mrb[0].mxu0
    %5480 = vmatprep.mubr.f32.mxu0 0.0
    %5481 = vmatmul.mubr.f32.gmra.mrb[0].mxu0 %v4940
    %v5482 = vpop.f32.mrb[0].mxu0
    %v5483 = vadd.f32 0.0, %v5482
    %v5484 = vpop.f32.mrb[0].mxu0
    %5485 = vmatprep.mubr.f32.mxu0 0.0
    %5486 = vmatmul.mubr.f32.gmra.mrb[0].mxu0 %v4941
    %v5487 = vpop.f32.mrb[0].mxu0
    %v5488 = vadd.f32 0.0, %v5487
    %v5489 = vpop.f32.mrb[0].mxu0
    %5490 = vmatprep.mubr.f32.mxu0 0.0
    %5491 = vmatmul.mubr.f32.gmra.mrb[0].mxu0 %v4942
    %v5492 = vpop.f32.mrb[0].mxu0
    %v5493 = vadd.f32 0.0, %v5492
    %v5494 = vpop.f32.mrb[0].mxu0
    %5495 = vmatprep.mubr.f32.mxu0 0.0
    %5496 = vmatmul.mubr.f32.gmra.mrb[0].mxu0 %v4943
    %v5497 = vpop.f32.mrb[0].mxu0
    %v5498 = vadd.f32 0.0, %v5497
    %v5499 = vpop.f32.mrb[0].mxu0
    %5500 = vmatprep.mubr.f32.mxu0 0.0
    %5501 = vmatmul.mubr.f32.gmra.mrb[0].mxu0 %v4944
    %v5502 = vpop.f32.mrb[0].mxu0
    %v5503 = vadd.f32 0.0, %v5502
    %v5504 = vpop.f32.mrb[0].mxu0
    %5505 = vmatprep.mubr.f32.mxu0 0.0
    %5506 = vmatmul.mubr.f32.gmra.mrb[0].mxu0 %v4945
    %v5507 = vpop.f32.mrb[0].mxu0
    %v5508 = vadd.f32 0.0, %v5507
    %v5509 = vpop.f32.mrb[0].mxu0
    %5510 = vmatprep.mubr.f32.mxu0 0.0
    %5511 = vmatmul.mubr.f32.gmra.mrb[0].mxu0 %v4946
    %v5512 = vpop.f32.mrb[0].mxu0
    %v5513 = vadd.f32 0.0, %v5512
    %v5514 = vpop.f32.mrb[0].mxu0
    %5515 = vmatprep.mubr.f32.mxu0 0.0
    %5516 = vmatmul.mubr.f32.gmra.mrb[0].mxu0 %v4947
    %v5517 = vpop.f32.mrb[0].mxu0
    %v5518 = vadd.f32 0.0, %v5517
    %v5519 = vpop.f32.mrb[0].mxu0
    %5520 = vmatprep.mubr.f32.mxu0 0.0
    %5521 = vmatmul.mubr.f32.gmra.mrb[0].mxu0 %v4948
    %v5522 = vpop.f32.mrb[0].mxu0
    %v5523 = vadd.f32 0.0, %v5522
    %v5524 = vpop.f32.mrb[0].mxu0
    %5525 = vdwg.mxu0
    %5526 = vmatprep.subr.mxu0 0.0
    %5527 = vmatpush1.msra.mxu0 %v4724
    %5528 = vmatprep.subr.mxu0 0.0
    %5529 = vmatpush1.msra.mxu0 %v4725
    %5530 = vmatprep.subr.mxu0 0.0
    %5531 = vmatpush1.msra.mxu0 %v4726
    %5532 = vmatprep.subr.mxu0 0.0
    %5533 = vmatpush1.msra.mxu0 %v4727
    %5534 = vmatprep.subr.mxu0 0.0
    %5535 = vmatpush1.msra.mxu0 %v4728
    %5536 = vmatprep.subr.mxu0 0.0
    %5537 = vmatpush1.msra.mxu0 %v4729
    %5538 = vmatprep.subr.mxu0 0.0
    %5539 = vmatpush1.msra.mxu0 %v4730
    %5540 = vmatprep.subr.mxu0 0.0
    %5541 = vmatpush1.msra.mxu0 %v4731
    %5542 = vmatprep.subr.mxu0 0.0
    %5543 = vmatpush1.msra.mxu0 %v4732
    %5544 = vmatprep.subr.mxu0 0.0
    %5545 = vmatpush1.msra.mxu0 %v4733
    %5546 = vmatprep.subr.mxu0 0.0
    %5547 = vmatpush1.msra.mxu0 %v4734
    %5548 = vmatprep.subr.mxu0 0.0
    %5549 = vmatpush1.msra.mxu0 %v4735
    %5550 = vmatprep.subr.mxu0 0.0
    %5551 = vmatpush1.msra.mxu0 %v4736
    %5552 = vmatprep.subr.mxu0 0.0
    %5553 = vmatpush1.msra.mxu0 %v4737
    %5554 = vmatprep.subr.mxu0 0.0
    %5555 = vmatpush1.msra.mxu0 %v4738
    %5556 = vmatprep.subr.mxu0 0.0
    %5557 = vmatpush1.msra.mxu0 %v4739
    %5558 = vmatprep.subr.mxu0 0.0
    %5559 = vmatpush1.msra.mxu0 0.0
    %5560 = vmatprep.subr.mxu0 0.0
    %5561 = vmatpush1.msra.mxu0 0.0
    %5562 = vmatprep.subr.mxu0 0.0
    %5563 = vmatpush1.msra.mxu0 0.0
    %5564 = vmatprep.subr.mxu0 0.0
    %5565 = vmatpush1.msra.mxu0 0.0
    %5566 = vmatprep.subr.mxu0 0.0
    %5567 = vmatpush1.msra.mxu0 0.0
    %5568 = vmatprep.subr.mxu0 0.0
    %5569 = vmatpush1.msra.mxu0 0.0
    %5570 = vmatprep.subr.mxu0 0.0
    %5571 = vmatpush1.msra.mxu0 0.0
    %5572 = vmatprep.subr.mxu0 0.0
    %5573 = vmatpush1.msra.mxu0 0.0
    %5574 = vmatprep.subr.mxu0 0.0
    %5575 = vmatpush1.msra.mxu0 0.0
    %5576 = vmatprep.subr.mxu0 0.0
    %5577 = vmatpush1.msra.mxu0 0.0
    %5578 = vmatprep.subr.mxu0 0.0
    %5579 = vmatpush1.msra.mxu0 0.0
    %5580 = vmatprep.subr.mxu0 0.0
    %5581 = vmatpush1.msra.mxu0 0.0
    %5582 = vmatprep.subr.mxu0 0.0
    %5583 = vmatpush1.msra.mxu0 0.0
    %5584 = vmatprep.subr.mxu0 0.0
    %5585 = vmatpush1.msra.mxu0 0.0
    %5586 = vmatprep.subr.mxu0 0.0
    %5587 = vmatpush1.msra.mxu0 0.0
    %5588 = vmatprep.subr.mxu0 0.0
    %5589 = vmatpush1.msra.mxu0 0.0
    %5590 = vmatprep.mubr.f32.mxu0 0.0
    %5591 = vmatmul.mubr.f32.gmra.mrb[0].mxu0 %v4644
    %v5592 = vpop.f32.mrb[0].mxu0
    %v5593 = vadd.f32 %v5208, %v5592
    %v5594 = vpop.f32.mrb[0].mxu0
    %5595 = vmatprep.mubr.f32.mxu0 0.0
    %5596 = vmatmul.mubr.f32.gmra.mrb[0].mxu0 %v4645
    %v5597 = vpop.f32.mrb[0].mxu0
    %v5598 = vadd.f32 %v5213, %v5597
    %v5599 = vpop.f32.mrb[0].mxu0
    %5600 = vmatprep.mubr.f32.mxu0 0.0
    %5601 = vmatmul.mubr.f32.gmra.mrb[0].mxu0 %v4646
    %v5602 = vpop.f32.mrb[0].mxu0
    %v5603 = vadd.f32 %v5218, %v5602
    %v5604 = vpop.f32.mrb[0].mxu0
    %5605 = vmatprep.mubr.f32.mxu0 0.0
    %5606 = vmatmul.mubr.f32.gmra.mrb[0].mxu0 %v4647
    %v5607 = vpop.f32.mrb[0].mxu0
    %v5608 = vadd.f32 %v5223, %v5607
    %v5609 = vpop.f32.mrb[0].mxu0
    %5610 = vmatprep.mubr.f32.mxu0 0.0
    %5611 = vmatmul.mubr.f32.gmra.mrb[0].mxu0 %v4648
    %v5612 = vpop.f32.mrb[0].mxu0
    %v5613 = vadd.f32 %v5228, %v5612
    %v5614 = vpop.f32.mrb[0].mxu0
    %5615 = vmatprep.mubr.f32.mxu0 0.0
    %5616 = vmatmul.mubr.f32.gmra.mrb[0].mxu0 %v4649
    %v5617 = vpop.f32.mrb[0].mxu0
    %v5618 = vadd.f32 %v5233, %v5617
    %v5619 = vpop.f32.mrb[0].mxu0
    %5620 = vmatprep.mubr.f32.mxu0 0.0
    %5621 = vmatmul.mubr.f32.gmra.mrb[0].mxu0 %v4650
    %v5622 = vpop.f32.mrb[0].mxu0
    %v5623 = vadd.f32 %v5238, %v5622
    %v5624 = vpop.f32.mrb[0].mxu0
    %5625 = vmatprep.mubr.f32.mxu0 0.0
    %5626 = vmatmul.mubr.f32.gmra.mrb[0].mxu0 %v4651
    %v5627 = vpop.f32.mrb[0].mxu0
    %v5628 = vadd.f32 %v5243, %v5627
    %v5629 = vpop.f32.mrb[0].mxu0
    %5630 = vmatprep.mubr.f32.mxu0 0.0
    %5631 = vmatmul.mubr.f32.gmra.mrb[0].mxu0 %v4652
    %v5632 = vpop.f32.mrb[0].mxu0
    %v5633 = vadd.f32 %v5248, %v5632
    %v5634 = vpop.f32.mrb[0].mxu0
    %5635 = vmatprep.mubr.f32.mxu0 0.0
    %5636 = vmatmul.mubr.f32.gmra.mrb[0].mxu0 %v4653
    %v5637 = vpop.f32.mrb[0].mxu0
    %v5638 = vadd.f32 %v5253, %v5637
    %v5639 = vpop.f32.mrb[0].mxu0
    %5640 = vmatprep.mubr.f32.mxu0 0.0
    %5641 = vmatmul.mubr.f32.gmra.mrb[0].mxu0 %v4654
    %v5642 = vpop.f32.mrb[0].mxu0
    %v5643 = vadd.f32 %v5258, %v5642
    %v5644 = vpop.f32.mrb[0].mxu0
    %5645 = vmatprep.mubr.f32.mxu0 0.0
    %5646 = vmatmul.mubr.f32.gmra.mrb[0].mxu0 %v4655
    %v5647 = vpop.f32.mrb[0].mxu0
    %v5648 = vadd.f32 %v5263, %v5647
    %v5649 = vpop.f32.mrb[0].mxu0
    %5650 = vmatprep.mubr.f32.mxu0 0.0
    %5651 = vmatmul.mubr.f32.gmra.mrb[0].mxu0 %v4656
    %v5652 = vpop.f32.mrb[0].mxu0
    %v5653 = vadd.f32 %v5268, %v5652
    %v5654 = vpop.f32.mrb[0].mxu0
    %5655 = vmatprep.mubr.f32.mxu0 0.0
    %5656 = vmatmul.mubr.f32.gmra.mrb[0].mxu0 %v4657
    %v5657 = vpop.f32.mrb[0].mxu0
    %v5658 = vadd.f32 %v5273, %v5657
    %v5659 = vpop.f32.mrb[0].mxu0
    %5660 = vmatprep.mubr.f32.mxu0 0.0
    %5661 = vmatmul.mubr.f32.gmra.mrb[0].mxu0 %v4658
    %v5662 = vpop.f32.mrb[0].mxu0
    %v5663 = vadd.f32 %v5278, %v5662
    %v5664 = vpop.f32.mrb[0].mxu0
    %5665 = vmatprep.mubr.f32.mxu0 0.0
    %5666 = vmatmul.mubr.f32.gmra.mrb[0].mxu0 %v4659
    %v5667 = vpop.f32.mrb[0].mxu0
    %v5668 = vadd.f32 %v5283, %v5667
    %v5669 = vpop.f32.mrb[0].mxu0
    %5670 = vmatprep.mubr.f32.mxu0 0.0
    %5671 = vmatmul.mubr.f32.gmra.mrb[0].mxu0 %v4660
    %v5672 = vpop.f32.mrb[0].mxu0
    %v5673 = vadd.f32 %v5288, %v5672
    %v5674 = vpop.f32.mrb[0].mxu0
    %5675 = vmatprep.mubr.f32.mxu0 0.0
    %5676 = vmatmul.mubr.f32.gmra.mrb[0].mxu0 %v4661
    %v5677 = vpop.f32.mrb[0].mxu0
    %v5678 = vadd.f32 %v5293, %v5677
    %v5679 = vpop.f32.mrb[0].mxu0
    %5680 = vmatprep.mubr.f32.mxu0 0.0
    %5681 = vmatmul.mubr.f32.gmra.mrb[0].mxu0 %v4662
    %v5682 = vpop.f32.mrb[0].mxu0
    %v5683 = vadd.f32 %v5298, %v5682
    %v5684 = vpop.f32.mrb[0].mxu0
    %5685 = vmatprep.mubr.f32.mxu0 0.0
    %5686 = vmatmul.mubr.f32.gmra.mrb[0].mxu0 %v4663
    %v5687 = vpop.f32.mrb[0].mxu0
    %v5688 = vadd.f32 %v5303, %v5687
    %v5689 = vpop.f32.mrb[0].mxu0
    %5690 = vmatprep.mubr.f32.mxu0 0.0
    %5691 = vmatmul.mubr.f32.gmra.mrb[0].mxu0 %v4664
    %v5692 = vpop.f32.mrb[0].mxu0
    %v5693 = vadd.f32 %v5308, %v5692
    %v5694 = vpop.f32.mrb[0].mxu0
    %5695 = vmatprep.mubr.f32.mxu0 0.0
    %5696 = vmatmul.mubr.f32.gmra.mrb[0].mxu0 %v4665
    %v5697 = vpop.f32.mrb[0].mxu0
    %v5698 = vadd.f32 %v5313, %v5697
    %v5699 = vpop.f32.mrb[0].mxu0
    %5700 = vmatprep.mubr.f32.mxu0 0.0
    %5701 = vmatmul.mubr.f32.gmra.mrb[0].mxu0 %v4666
    %v5702 = vpop.f32.mrb[0].mxu0
    %v5703 = vadd.f32 %v5318, %v5702
    %v5704 = vpop.f32.mrb[0].mxu0
    %5705 = vmatprep.mubr.f32.mxu0 0.0
    %5706 = vmatmul.mubr.f32.gmra.mrb[0].mxu0 %v4667
    %v5707 = vpop.f32.mrb[0].mxu0
    %v5708 = vadd.f32 %v5323, %v5707
    %v5709 = vpop.f32.mrb[0].mxu0
    %5710 = vmatprep.mubr.f32.mxu0 0.0
    %5711 = vmatmul.mubr.f32.gmra.mrb[0].mxu0 %v4668
    %v5712 = vpop.f32.mrb[0].mxu0
    %v5713 = vadd.f32 %v5328, %v5712
    %v5714 = vpop.f32.mrb[0].mxu0
    %5715 = vmatprep.mubr.f32.mxu0 0.0
    %5716 = vmatmul.mubr.f32.gmra.mrb[0].mxu0 %v4669
    %v5717 = vpop.f32.mrb[0].mxu0
    %v5718 = vadd.f32 %v5333, %v5717
    %v5719 = vpop.f32.mrb[0].mxu0
    %5720 = vmatprep.mubr.f32.mxu0 0.0
    %5721 = vmatmul.mubr.f32.gmra.mrb[0].mxu0 %v4670
    %v5722 = vpop.f32.mrb[0].mxu0
    %v5723 = vadd.f32 %v5338, %v5722
    %v5724 = vpop.f32.mrb[0].mxu0
    %5725 = vmatprep.mubr.f32.mxu0 0.0
    %5726 = vmatmul.mubr.f32.gmra.mrb[0].mxu0 %v4671
    %v5727 = vpop.f32.mrb[0].mxu0
    %v5728 = vadd.f32 %v5343, %v5727
    %v5729 = vpop.f32.mrb[0].mxu0
    %5730 = vmatprep.mubr.f32.mxu0 0.0
    %5731 = vmatmul.mubr.f32.gmra.mrb[0].mxu0 %v4672
    %v5732 = vpop.f32.mrb[0].mxu0
    %v5733 = vadd.f32 %v5348, %v5732
    %v5734 = vpop.f32.mrb[0].mxu0
    %5735 = vmatprep.mubr.f32.mxu0 0.0
    %5736 = vmatmul.mubr.f32.gmra.mrb[0].mxu0 %v4673
    %v5737 = vpop.f32.mrb[0].mxu0
    %v5738 = vadd.f32 %v5353, %v5737
    %v5739 = vpop.f32.mrb[0].mxu0
    %5740 = vmatprep.mubr.f32.mxu0 0.0
    %5741 = vmatmul.mubr.f32.gmra.mrb[0].mxu0 %v4674
    %v5742 = vpop.f32.mrb[0].mxu0
    %v5743 = vadd.f32 %v5358, %v5742
    %v5744 = vpop.f32.mrb[0].mxu0
    %5745 = vmatprep.mubr.f32.mxu0 0.0
    %5746 = vmatmul.mubr.f32.gmra.mrb[0].mxu0 %v4675
    %v5747 = vpop.f32.mrb[0].mxu0
    %v5748 = vadd.f32 %v5363, %v5747
    %v5749 = vpop.f32.mrb[0].mxu0
    %5750 = vmatprep.mubr.f32.mxu0 0.0
    %5751 = vmatmul.mubr.f32.gmra.mrb[0].mxu0 %v4676
    %v5752 = vpop.f32.mrb[0].mxu0
    %v5753 = vadd.f32 %v5368, %v5752
    %v5754 = vpop.f32.mrb[0].mxu0
    %5755 = vmatprep.mubr.f32.mxu0 0.0
    %5756 = vmatmul.mubr.f32.gmra.mrb[0].mxu0 %v4677
    %v5757 = vpop.f32.mrb[0].mxu0
    %v5758 = vadd.f32 %v5373, %v5757
    %v5759 = vpop.f32.mrb[0].mxu0
    %5760 = vmatprep.mubr.f32.mxu0 0.0
    %5761 = vmatmul.mubr.f32.gmra.mrb[0].mxu0 %v4678
    %v5762 = vpop.f32.mrb[0].mxu0
    %v5763 = vadd.f32 %v5378, %v5762
    %v5764 = vpop.f32.mrb[0].mxu0
    %5765 = vmatprep.mubr.f32.mxu0 0.0
    %5766 = vmatmul.mubr.f32.gmra.mrb[0].mxu0 %v4679
    %v5767 = vpop.f32.mrb[0].mxu0
    %v5768 = vadd.f32 %v5383, %v5767
    %v5769 = vpop.f32.mrb[0].mxu0
    %5770 = vmatprep.mubr.f32.mxu0 0.0
    %5771 = vmatmul.mubr.f32.gmra.mrb[0].mxu0 %v4680
    %v5772 = vpop.f32.mrb[0].mxu0
    %v5773 = vadd.f32 %v5388, %v5772
    %v5774 = vpop.f32.mrb[0].mxu0
    %5775 = vmatprep.mubr.f32.mxu0 0.0
    %5776 = vmatmul.mubr.f32.gmra.mrb[0].mxu0 %v4681
    %v5777 = vpop.f32.mrb[0].mxu0
    %v5778 = vadd.f32 %v5393, %v5777
    %v5779 = vpop.f32.mrb[0].mxu0
    %5780 = vmatprep.mubr.f32.mxu0 0.0
    %5781 = vmatmul.mubr.f32.gmra.mrb[0].mxu0 %v4682
    %v5782 = vpop.f32.mrb[0].mxu0
    %v5783 = vadd.f32 %v5398, %v5782
    %v5784 = vpop.f32.mrb[0].mxu0
    %5785 = vmatprep.mubr.f32.mxu0 0.0
    %5786 = vmatmul.mubr.f32.gmra.mrb[0].mxu0 %v4683
    %v5787 = vpop.f32.mrb[0].mxu0
    %v5788 = vadd.f32 %v5403, %v5787
    %v5789 = vpop.f32.mrb[0].mxu0
    %5790 = vmatprep.mubr.f32.mxu0 0.0
    %5791 = vmatmul.mubr.f32.gmra.mrb[0].mxu0 %v4684
    %v5792 = vpop.f32.mrb[0].mxu0
    %v5793 = vadd.f32 %v5408, %v5792
    %v5794 = vpop.f32.mrb[0].mxu0
    %5795 = vmatprep.mubr.f32.mxu0 0.0
    %5796 = vmatmul.mubr.f32.gmra.mrb[0].mxu0 %v4685
    %v5797 = vpop.f32.mrb[0].mxu0
    %v5798 = vadd.f32 %v5413, %v5797
    %v5799 = vpop.f32.mrb[0].mxu0
    %5800 = vmatprep.mubr.f32.mxu0 0.0
    %5801 = vmatmul.mubr.f32.gmra.mrb[0].mxu0 %v4686
    %v5802 = vpop.f32.mrb[0].mxu0
    %v5803 = vadd.f32 %v5418, %v5802
    %v5804 = vpop.f32.mrb[0].mxu0
    %5805 = vmatprep.mubr.f32.mxu0 0.0
    %5806 = vmatmul.mubr.f32.gmra.mrb[0].mxu0 %v4687
    %v5807 = vpop.f32.mrb[0].mxu0
    %v5808 = vadd.f32 %v5423, %v5807
    %v5809 = vpop.f32.mrb[0].mxu0
    %5810 = vmatprep.mubr.f32.mxu0 0.0
    %5811 = vmatmul.mubr.f32.gmra.mrb[0].mxu0 %v4688
    %v5812 = vpop.f32.mrb[0].mxu0
    %v5813 = vadd.f32 %v5428, %v5812
    %v5814 = vpop.f32.mrb[0].mxu0
    %5815 = vmatprep.mubr.f32.mxu0 0.0
    %5816 = vmatmul.mubr.f32.gmra.mrb[0].mxu0 %v4689
    %v5817 = vpop.f32.mrb[0].mxu0
    %v5818 = vadd.f32 %v5433, %v5817
    %v5819 = vpop.f32.mrb[0].mxu0
    %5820 = vmatprep.mubr.f32.mxu0 0.0
    %5821 = vmatmul.mubr.f32.gmra.mrb[0].mxu0 %v4690
    %v5822 = vpop.f32.mrb[0].mxu0
    %v5823 = vadd.f32 %v5438, %v5822
    %v5824 = vpop.f32.mrb[0].mxu0
    %5825 = vmatprep.mubr.f32.mxu0 0.0
    %5826 = vmatmul.mubr.f32.gmra.mrb[0].mxu0 %v4691
    %v5827 = vpop.f32.mrb[0].mxu0
    %v5828 = vadd.f32 %v5443, %v5827
    %v5829 = vpop.f32.mrb[0].mxu0
    %5830 = vmatprep.mubr.f32.mxu0 0.0
    %5831 = vmatmul.mubr.f32.gmra.mrb[0].mxu0 %v4692
    %v5832 = vpop.f32.mrb[0].mxu0
    %v5833 = vadd.f32 %v5448, %v5832
    %v5834 = vpop.f32.mrb[0].mxu0
    %5835 = vmatprep.mubr.f32.mxu0 0.0
    %5836 = vmatmul.mubr.f32.gmra.mrb[0].mxu0 %v4693
    %v5837 = vpop.f32.mrb[0].mxu0
    %v5838 = vadd.f32 %v5453, %v5837
    %v5839 = vpop.f32.mrb[0].mxu0
    %5840 = vmatprep.mubr.f32.mxu0 0.0
    %5841 = vmatmul.mubr.f32.gmra.mrb[0].mxu0 %v4694
    %v5842 = vpop.f32.mrb[0].mxu0
    %v5843 = vadd.f32 %v5458, %v5842
    %v5844 = vpop.f32.mrb[0].mxu0
    %5845 = vmatprep.mubr.f32.mxu0 0.0
    %5846 = vmatmul.mubr.f32.gmra.mrb[0].mxu0 %v4695
    %v5847 = vpop.f32.mrb[0].mxu0
    %v5848 = vadd.f32 %v5463, %v5847
    %v5849 = vpop.f32.mrb[0].mxu0
    %5850 = vmatprep.mubr.f32.mxu0 0.0
    %5851 = vmatmul.mubr.f32.gmra.mrb[0].mxu0 %v4696
    %v5852 = vpop.f32.mrb[0].mxu0
    %v5853 = vadd.f32 %v5468, %v5852
    %v5854 = vpop.f32.mrb[0].mxu0
    %5855 = vmatprep.mubr.f32.mxu0 0.0
    %5856 = vmatmul.mubr.f32.gmra.mrb[0].mxu0 %v4697
    %v5857 = vpop.f32.mrb[0].mxu0
    %v5858 = vadd.f32 %v5473, %v5857
    %v5859 = vpop.f32.mrb[0].mxu0
    %5860 = vmatprep.mubr.f32.mxu0 0.0
    %5861 = vmatmul.mubr.f32.gmra.mrb[0].mxu0 %v4698
    %v5862 = vpop.f32.mrb[0].mxu0
    %v5863 = vadd.f32 %v5478, %v5862
    %v5864 = vpop.f32.mrb[0].mxu0
    %5865 = vmatprep.mubr.f32.mxu0 0.0
    %5866 = vmatmul.mubr.f32.gmra.mrb[0].mxu0 %v4699
    %v5867 = vpop.f32.mrb[0].mxu0
    %v5868 = vadd.f32 %v5483, %v5867
    %v5869 = vpop.f32.mrb[0].mxu0
    %5870 = vmatprep.mubr.f32.mxu0 0.0
    %5871 = vmatmul.mubr.f32.gmra.mrb[0].mxu0 %v4700
    %v5872 = vpop.f32.mrb[0].mxu0
    %v5873 = vadd.f32 %v5488, %v5872
    %v5874 = vpop.f32.mrb[0].mxu0
    %5875 = vmatprep.mubr.f32.mxu0 0.0
    %5876 = vmatmul.mubr.f32.gmra.mrb[0].mxu0 %v4701
    %v5877 = vpop.f32.mrb[0].mxu0
    %v5878 = vadd.f32 %v5493, %v5877
    %v5879 = vpop.f32.mrb[0].mxu0
    %5880 = vmatprep.mubr.f32.mxu0 0.0
    %5881 = vmatmul.mubr.f32.gmra.mrb[0].mxu0 %v4702
    %v5882 = vpop.f32.mrb[0].mxu0
    %v5883 = vadd.f32 %v5498, %v5882
    %v5884 = vpop.f32.mrb[0].mxu0
    %5885 = vmatprep.mubr.f32.mxu0 0.0
    %5886 = vmatmul.mubr.f32.gmra.mrb[0].mxu0 %v4703
    %v5887 = vpop.f32.mrb[0].mxu0
    %v5888 = vadd.f32 %v5503, %v5887
    %v5889 = vpop.f32.mrb[0].mxu0
    %5890 = vmatprep.mubr.f32.mxu0 0.0
    %5891 = vmatmul.mubr.f32.gmra.mrb[0].mxu0 %v4704
    %v5892 = vpop.f32.mrb[0].mxu0
    %v5893 = vadd.f32 %v5508, %v5892
    %v5894 = vpop.f32.mrb[0].mxu0
    %5895 = vmatprep.mubr.f32.mxu0 0.0
    %5896 = vmatmul.mubr.f32.gmra.mrb[0].mxu0 %v4705
    %v5897 = vpop.f32.mrb[0].mxu0
    %v5898 = vadd.f32 %v5513, %v5897
    %v5899 = vpop.f32.mrb[0].mxu0
    %5900 = vmatprep.mubr.f32.mxu0 0.0
    %5901 = vmatmul.mubr.f32.gmra.mrb[0].mxu0 %v4706
    %v5902 = vpop.f32.mrb[0].mxu0
    %v5903 = vadd.f32 %v5518, %v5902
    %v5904 = vpop.f32.mrb[0].mxu0
    %5905 = vmatprep.mubr.f32.mxu0 0.0
    %5906 = vmatmul.mubr.f32.gmra.mrb[0].mxu0 %v4707
    %v5907 = vpop.f32.mrb[0].mxu0
    %v5908 = vadd.f32 %v5523, %v5907
    %v5909 = vpop.f32.mrb[0].mxu0
    %5910 = vdwg.mxu0
    %5911 = vmatprep.subr.mxu0 0.0
    %5912 = vmatpush1.msra.mxu0 %v4740
    %5913 = vmatprep.subr.mxu0 0.0
    %5914 = vmatpush1.msra.mxu0 %v4741
    %5915 = vmatprep.subr.mxu0 0.0
    %5916 = vmatpush1.msra.mxu0 %v4742
    %5917 = vmatprep.subr.mxu0 0.0
    %5918 = vmatpush1.msra.mxu0 %v4743
    %5919 = vmatprep.subr.mxu0 0.0
    %5920 = vmatpush1.msra.mxu0 %v4744
    %5921 = vmatprep.subr.mxu0 0.0
    %5922 = vmatpush1.msra.mxu0 %v4745
    %5923 = vmatprep.subr.mxu0 0.0
    %5924 = vmatpush1.msra.mxu0 %v4746
    %5925 = vmatprep.subr.mxu0 0.0
    %5926 = vmatpush1.msra.mxu0 %v4747
    %5927 = vmatprep.subr.mxu0 0.0
    %5928 = vmatpush1.msra.mxu0 %v4748
    %5929 = vmatprep.subr.mxu0 0.0
    %5930 = vmatpush1.msra.mxu0 %v4749
    %5931 = vmatprep.subr.mxu0 0.0
    %5932 = vmatpush1.msra.mxu0 %v4750
    %5933 = vmatprep.subr.mxu0 0.0
    %5934 = vmatpush1.msra.mxu0 %v4751
    %5935 = vmatprep.subr.mxu0 0.0
    %5936 = vmatpush1.msra.mxu0 %v4752
    %5937 = vmatprep.subr.mxu0 0.0
    %5938 = vmatpush1.msra.mxu0 %v4753
    %5939 = vmatprep.subr.mxu0 0.0
    %5940 = vmatpush1.msra.mxu0 %v4754
    %5941 = vmatprep.subr.mxu0 0.0
    %5942 = vmatpush1.msra.mxu0 %v4755
    %5943 = vmatprep.subr.mxu0 0.0
    %5944 = vmatpush1.msra.mxu0 0.0
    %5945 = vmatprep.subr.mxu0 0.0
    %5946 = vmatpush1.msra.mxu0 0.0
    %5947 = vmatprep.subr.mxu0 0.0
    %5948 = vmatpush1.msra.mxu0 0.0
    %5949 = vmatprep.subr.mxu0 0.0
    %5950 = vmatpush1.msra.mxu0 0.0
    %5951 = vmatprep.subr.mxu0 0.0
    %5952 = vmatpush1.msra.mxu0 0.0
    %5953 = vmatprep.subr.mxu0 0.0
    %5954 = vmatpush1.msra.mxu0 0.0
    %5955 = vmatprep.subr.mxu0 0.0
    %5956 = vmatpush1.msra.mxu0 0.0
    %5957 = vmatprep.subr.mxu0 0.0
    %5958 = vmatpush1.msra.mxu0 0.0
    %5959 = vmatprep.subr.mxu0 0.0
    %5960 = vmatpush1.msra.mxu0 0.0
    %5961 = vmatprep.subr.mxu0 0.0
    %5962 = vmatpush1.msra.mxu0 0.0
    %5963 = vmatprep.subr.mxu0 0.0
    %5964 = vmatpush1.msra.mxu0 0.0
    %5965 = vmatprep.subr.mxu0 0.0
    %5966 = vmatpush1.msra.mxu0 0.0
    %5967 = vmatprep.subr.mxu0 0.0
    %5968 = vmatpush1.msra.mxu0 0.0
    %5969 = vmatprep.subr.mxu0 0.0
    %5970 = vmatpush1.msra.mxu0 0.0
    %5971 = vmatprep.subr.mxu0 0.0
    %5972 = vmatpush1.msra.mxu0 0.0
    %5973 = vmatprep.subr.mxu0 0.0
    %5974 = vmatpush1.msra.mxu0 0.0
    %5975 = vmatprep.mubr.f32.mxu0 0.0
    %5976 = vmatmul.mubr.f32.gmra.mrb[0].mxu0 %v5077
    %v5977 = vpop.f32.mrb[0].mxu0
    %v5978 = vadd.f32 0.0, %v5977
    %v5979 = vpop.f32.mrb[0].mxu0
    %5980 = vmatprep.mubr.f32.mxu0 0.0
    %5981 = vmatmul.mubr.f32.gmra.mrb[0].mxu0 %v5078
    %v5982 = vpop.f32.mrb[0].mxu0
    %v5983 = vadd.f32 0.0, %v5982
    %v5984 = vpop.f32.mrb[0].mxu0
    %5985 = vmatprep.mubr.f32.mxu0 0.0
    %5986 = vmatmul.mubr.f32.gmra.mrb[0].mxu0 %v5079
    %v5987 = vpop.f32.mrb[0].mxu0
    %v5988 = vadd.f32 0.0, %v5987
    %v5989 = vpop.f32.mrb[0].mxu0
    %5990 = vmatprep.mubr.f32.mxu0 0.0
    %5991 = vmatmul.mubr.f32.gmra.mrb[0].mxu0 %v5080
    %v5992 = vpop.f32.mrb[0].mxu0
    %v5993 = vadd.f32 0.0, %v5992
    %v5994 = vpop.f32.mrb[0].mxu0
    %5995 = vmatprep.mubr.f32.mxu0 0.0
    %5996 = vmatmul.mubr.f32.gmra.mrb[0].mxu0 %v5081
    %v5997 = vpop.f32.mrb[0].mxu0
    %v5998 = vadd.f32 0.0, %v5997
    %v5999 = vpop.f32.mrb[0].mxu0
    %6000 = vmatprep.mubr.f32.mxu0 0.0
    %6001 = vmatmul.mubr.f32.gmra.mrb[0].mxu0 %v5082
    %v6002 = vpop.f32.mrb[0].mxu0
    %v6003 = vadd.f32 0.0, %v6002
    %v6004 = vpop.f32.mrb[0].mxu0
    %6005 = vmatprep.mubr.f32.mxu0 0.0
    %6006 = vmatmul.mubr.f32.gmra.mrb[0].mxu0 %v5083
    %v6007 = vpop.f32.mrb[0].mxu0
    %v6008 = vadd.f32 0.0, %v6007
    %v6009 = vpop.f32.mrb[0].mxu0
    %6010 = vmatprep.mubr.f32.mxu0 0.0
    %6011 = vmatmul.mubr.f32.gmra.mrb[0].mxu0 %v5084
    %v6012 = vpop.f32.mrb[0].mxu0
    %v6013 = vadd.f32 0.0, %v6012
    %v6014 = vpop.f32.mrb[0].mxu0
    %6015 = vmatprep.mubr.f32.mxu0 0.0
    %6016 = vmatmul.mubr.f32.gmra.mrb[0].mxu0 %v5085
    %v6017 = vpop.f32.mrb[0].mxu0
    %v6018 = vadd.f32 0.0, %v6017
    %v6019 = vpop.f32.mrb[0].mxu0
    %6020 = vmatprep.mubr.f32.mxu0 0.0
    %6021 = vmatmul.mubr.f32.gmra.mrb[0].mxu0 %v5086
    %v6022 = vpop.f32.mrb[0].mxu0
    %v6023 = vadd.f32 0.0, %v6022
    %v6024 = vpop.f32.mrb[0].mxu0
    %6025 = vmatprep.mubr.f32.mxu0 0.0
    %6026 = vmatmul.mubr.f32.gmra.mrb[0].mxu0 %v5087
    %v6027 = vpop.f32.mrb[0].mxu0
    %v6028 = vadd.f32 0.0, %v6027
    %v6029 = vpop.f32.mrb[0].mxu0
    %6030 = vmatprep.mubr.f32.mxu0 0.0
    %6031 = vmatmul.mubr.f32.gmra.mrb[0].mxu0 %v5088
    %v6032 = vpop.f32.mrb[0].mxu0
    %v6033 = vadd.f32 0.0, %v6032
    %v6034 = vpop.f32.mrb[0].mxu0
    %6035 = vmatprep.mubr.f32.mxu0 0.0
    %6036 = vmatmul.mubr.f32.gmra.mrb[0].mxu0 %v5089
    %v6037 = vpop.f32.mrb[0].mxu0
    %v6038 = vadd.f32 0.0, %v6037
    %v6039 = vpop.f32.mrb[0].mxu0
    %6040 = vmatprep.mubr.f32.mxu0 0.0
    %6041 = vmatmul.mubr.f32.gmra.mrb[0].mxu0 %v5090
    %v6042 = vpop.f32.mrb[0].mxu0
    %v6043 = vadd.f32 0.0, %v6042
    %v6044 = vpop.f32.mrb[0].mxu0
    %6045 = vmatprep.mubr.f32.mxu0 0.0
    %6046 = vmatmul.mubr.f32.gmra.mrb[0].mxu0 %v5091
    %v6047 = vpop.f32.mrb[0].mxu0
    %v6048 = vadd.f32 0.0, %v6047
    %v6049 = vpop.f32.mrb[0].mxu0
    %6050 = vmatprep.mubr.f32.mxu0 0.0
    %6051 = vmatmul.mubr.f32.gmra.mrb[0].mxu0 %v5092
    %v6052 = vpop.f32.mrb[0].mxu0
    %v6053 = vadd.f32 0.0, %v6052
    %v6054 = vpop.f32.mrb[0].mxu0
    %6055 = vmatprep.mubr.f32.mxu0 0.0
    %6056 = vmatmul.mubr.f32.gmra.mrb[0].mxu0 %v5093
    %v6057 = vpop.f32.mrb[0].mxu0
    %v6058 = vadd.f32 0.0, %v6057
    %v6059 = vpop.f32.mrb[0].mxu0
    %6060 = vmatprep.mubr.f32.mxu0 0.0
    %6061 = vmatmul.mubr.f32.gmra.mrb[0].mxu0 %v5094
    %v6062 = vpop.f32.mrb[0].mxu0
    %v6063 = vadd.f32 0.0, %v6062
    %v6064 = vpop.f32.mrb[0].mxu0
    %6065 = vmatprep.mubr.f32.mxu0 0.0
    %6066 = vmatmul.mubr.f32.gmra.mrb[0].mxu0 %v5095
    %v6067 = vpop.f32.mrb[0].mxu0
    %v6068 = vadd.f32 0.0, %v6067
    %v6069 = vpop.f32.mrb[0].mxu0
    %6070 = vmatprep.mubr.f32.mxu0 0.0
    %6071 = vmatmul.mubr.f32.gmra.mrb[0].mxu0 %v5096
    %v6072 = vpop.f32.mrb[0].mxu0
    %v6073 = vadd.f32 0.0, %v6072
    %v6074 = vpop.f32.mrb[0].mxu0
    %6075 = vmatprep.mubr.f32.mxu0 0.0
    %6076 = vmatmul.mubr.f32.gmra.mrb[0].mxu0 %v5097
    %v6077 = vpop.f32.mrb[0].mxu0
    %v6078 = vadd.f32 0.0, %v6077
    %v6079 = vpop.f32.mrb[0].mxu0
    %6080 = vmatprep.mubr.f32.mxu0 0.0
    %6081 = vmatmul.mubr.f32.gmra.mrb[0].mxu0 %v5098
    %v6082 = vpop.f32.mrb[0].mxu0
    %v6083 = vadd.f32 0.0, %v6082
    %v6084 = vpop.f32.mrb[0].mxu0
    %6085 = vmatprep.mubr.f32.mxu0 0.0
    %6086 = vmatmul.mubr.f32.gmra.mrb[0].mxu0 %v5099
    %v6087 = vpop.f32.mrb[0].mxu0
    %v6088 = vadd.f32 0.0, %v6087
    %v6089 = vpop.f32.mrb[0].mxu0
    %6090 = vmatprep.mubr.f32.mxu0 0.0
    %6091 = vmatmul.mubr.f32.gmra.mrb[0].mxu0 %v5100
    %v6092 = vpop.f32.mrb[0].mxu0
    %v6093 = vadd.f32 0.0, %v6092
    %v6094 = vpop.f32.mrb[0].mxu0
    %6095 = vmatprep.mubr.f32.mxu0 0.0
    %6096 = vmatmul.mubr.f32.gmra.mrb[0].mxu0 %v5101
    %v6097 = vpop.f32.mrb[0].mxu0
    %v6098 = vadd.f32 0.0, %v6097
    %v6099 = vpop.f32.mrb[0].mxu0
    %6100 = vmatprep.mubr.f32.mxu0 0.0
    %6101 = vmatmul.mubr.f32.gmra.mrb[0].mxu0 %v5102
    %v6102 = vpop.f32.mrb[0].mxu0
    %v6103 = vadd.f32 0.0, %v6102
    %v6104 = vpop.f32.mrb[0].mxu0
    %6105 = vmatprep.mubr.f32.mxu0 0.0
    %6106 = vmatmul.mubr.f32.gmra.mrb[0].mxu0 %v5103
    %v6107 = vpop.f32.mrb[0].mxu0
    %v6108 = vadd.f32 0.0, %v6107
    %v6109 = vpop.f32.mrb[0].mxu0
    %6110 = vmatprep.mubr.f32.mxu0 0.0
    %6111 = vmatmul.mubr.f32.gmra.mrb[0].mxu0 %v5104
    %v6112 = vpop.f32.mrb[0].mxu0
    %v6113 = vadd.f32 0.0, %v6112
    %v6114 = vpop.f32.mrb[0].mxu0
    %6115 = vmatprep.mubr.f32.mxu0 0.0
    %6116 = vmatmul.mubr.f32.gmra.mrb[0].mxu0 %v5105
    %v6117 = vpop.f32.mrb[0].mxu0
    %v6118 = vadd.f32 0.0, %v6117
    %v6119 = vpop.f32.mrb[0].mxu0
    %6120 = vmatprep.mubr.f32.mxu0 0.0
    %6121 = vmatmul.mubr.f32.gmra.mrb[0].mxu0 %v5106
    %v6122 = vpop.f32.mrb[0].mxu0
    %v6123 = vadd.f32 0.0, %v6122
    %v6124 = vpop.f32.mrb[0].mxu0
    %6125 = vmatprep.mubr.f32.mxu0 0.0
    %6126 = vmatmul.mubr.f32.gmra.mrb[0].mxu0 %v5107
    %v6127 = vpop.f32.mrb[0].mxu0
    %v6128 = vadd.f32 0.0, %v6127
    %v6129 = vpop.f32.mrb[0].mxu0
    %6130 = vmatprep.mubr.f32.mxu0 0.0
    %6131 = vmatmul.mubr.f32.gmra.mrb[0].mxu0 %v5108
    %v6132 = vpop.f32.mrb[0].mxu0
    %v6133 = vadd.f32 0.0, %v6132
    %v6134 = vpop.f32.mrb[0].mxu0
    %6135 = vmatprep.mubr.f32.mxu0 0.0
    %6136 = vmatmul.mubr.f32.gmra.mrb[0].mxu0 %v5109
    %v6137 = vpop.f32.mrb[0].mxu0
    %v6138 = vadd.f32 0.0, %v6137
    %v6139 = vpop.f32.mrb[0].mxu0
    %6140 = vmatprep.mubr.f32.mxu0 0.0
    %6141 = vmatmul.mubr.f32.gmra.mrb[0].mxu0 %v5110
    %v6142 = vpop.f32.mrb[0].mxu0
    %v6143 = vadd.f32 0.0, %v6142
    %v6144 = vpop.f32.mrb[0].mxu0
    %6145 = vmatprep.mubr.f32.mxu0 0.0
    %6146 = vmatmul.mubr.f32.gmra.mrb[0].mxu0 %v5111
    %v6147 = vpop.f32.mrb[0].mxu0
    %v6148 = vadd.f32 0.0, %v6147
    %v6149 = vpop.f32.mrb[0].mxu0
    %6150 = vmatprep.mubr.f32.mxu0 0.0
    %6151 = vmatmul.mubr.f32.gmra.mrb[0].mxu0 %v5112
    %v6152 = vpop.f32.mrb[0].mxu0
    %v6153 = vadd.f32 0.0, %v6152
    %v6154 = vpop.f32.mrb[0].mxu0
    %6155 = vmatprep.mubr.f32.mxu0 0.0
    %6156 = vmatmul.mubr.f32.gmra.mrb[0].mxu0 %v5113
    %v6157 = vpop.f32.mrb[0].mxu0
    %v6158 = vadd.f32 0.0, %v6157
    %v6159 = vpop.f32.mrb[0].mxu0
    %6160 = vmatprep.mubr.f32.mxu0 0.0
    %6161 = vmatmul.mubr.f32.gmra.mrb[0].mxu0 %v5114
    %v6162 = vpop.f32.mrb[0].mxu0
    %v6163 = vadd.f32 0.0, %v6162
    %v6164 = vpop.f32.mrb[0].mxu0
    %6165 = vmatprep.mubr.f32.mxu0 0.0
    %6166 = vmatmul.mubr.f32.gmra.mrb[0].mxu0 %v5115
    %v6167 = vpop.f32.mrb[0].mxu0
    %v6168 = vadd.f32 0.0, %v6167
    %v6169 = vpop.f32.mrb[0].mxu0
    %6170 = vmatprep.mubr.f32.mxu0 0.0
    %6171 = vmatmul.mubr.f32.gmra.mrb[0].mxu0 %v5116
    %v6172 = vpop.f32.mrb[0].mxu0
    %v6173 = vadd.f32 0.0, %v6172
    %v6174 = vpop.f32.mrb[0].mxu0
    %6175 = vmatprep.mubr.f32.mxu0 0.0
    %6176 = vmatmul.mubr.f32.gmra.mrb[0].mxu0 %v5117
    %v6177 = vpop.f32.mrb[0].mxu0
    %v6178 = vadd.f32 0.0, %v6177
    %v6179 = vpop.f32.mrb[0].mxu0
    %6180 = vmatprep.mubr.f32.mxu0 0.0
    %6181 = vmatmul.mubr.f32.gmra.mrb[0].mxu0 %v5118
    %v6182 = vpop.f32.mrb[0].mxu0
    %v6183 = vadd.f32 0.0, %v6182
    %v6184 = vpop.f32.mrb[0].mxu0
    %6185 = vmatprep.mubr.f32.mxu0 0.0
    %6186 = vmatmul.mubr.f32.gmra.mrb[0].mxu0 %v5119
    %v6187 = vpop.f32.mrb[0].mxu0
    %v6188 = vadd.f32 0.0, %v6187
    %v6189 = vpop.f32.mrb[0].mxu0
    %6190 = vmatprep.mubr.f32.mxu0 0.0
    %6191 = vmatmul.mubr.f32.gmra.mrb[0].mxu0 %v5120
    %v6192 = vpop.f32.mrb[0].mxu0
    %v6193 = vadd.f32 0.0, %v6192
    %v6194 = vpop.f32.mrb[0].mxu0
    %6195 = vmatprep.mubr.f32.mxu0 0.0
    %6196 = vmatmul.mubr.f32.gmra.mrb[0].mxu0 %v5121
    %v6197 = vpop.f32.mrb[0].mxu0
    %v6198 = vadd.f32 0.0, %v6197
    %v6199 = vpop.f32.mrb[0].mxu0
    %6200 = vmatprep.mubr.f32.mxu0 0.0
    %6201 = vmatmul.mubr.f32.gmra.mrb[0].mxu0 %v5122
    %v6202 = vpop.f32.mrb[0].mxu0
    %v6203 = vadd.f32 0.0, %v6202
    %v6204 = vpop.f32.mrb[0].mxu0
    %6205 = vmatprep.mubr.f32.mxu0 0.0
    %6206 = vmatmul.mubr.f32.gmra.mrb[0].mxu0 %v5123
    %v6207 = vpop.f32.mrb[0].mxu0
    %v6208 = vadd.f32 0.0, %v6207
    %v6209 = vpop.f32.mrb[0].mxu0
    %6210 = vmatprep.mubr.f32.mxu0 0.0
    %6211 = vmatmul.mubr.f32.gmra.mrb[0].mxu0 %v5124
    %v6212 = vpop.f32.mrb[0].mxu0
    %v6213 = vadd.f32 0.0, %v6212
    %v6214 = vpop.f32.mrb[0].mxu0
    %6215 = vmatprep.mubr.f32.mxu0 0.0
    %6216 = vmatmul.mubr.f32.gmra.mrb[0].mxu0 %v5125
    %v6217 = vpop.f32.mrb[0].mxu0
    %v6218 = vadd.f32 0.0, %v6217
    %v6219 = vpop.f32.mrb[0].mxu0
    %6220 = vmatprep.mubr.f32.mxu0 0.0
    %6221 = vmatmul.mubr.f32.gmra.mrb[0].mxu0 %v5126
    %v6222 = vpop.f32.mrb[0].mxu0
    %v6223 = vadd.f32 0.0, %v6222
    %v6224 = vpop.f32.mrb[0].mxu0
    %6225 = vmatprep.mubr.f32.mxu0 0.0
    %6226 = vmatmul.mubr.f32.gmra.mrb[0].mxu0 %v5127
    %v6227 = vpop.f32.mrb[0].mxu0
    %v6228 = vadd.f32 0.0, %v6227
    %v6229 = vpop.f32.mrb[0].mxu0
    %6230 = vmatprep.mubr.f32.mxu0 0.0
    %6231 = vmatmul.mubr.f32.gmra.mrb[0].mxu0 %v5128
    %v6232 = vpop.f32.mrb[0].mxu0
    %v6233 = vadd.f32 0.0, %v6232
    %v6234 = vpop.f32.mrb[0].mxu0
    %6235 = vmatprep.mubr.f32.mxu0 0.0
    %6236 = vmatmul.mubr.f32.gmra.mrb[0].mxu0 %v5129
    %v6237 = vpop.f32.mrb[0].mxu0
    %v6238 = vadd.f32 0.0, %v6237
    %v6239 = vpop.f32.mrb[0].mxu0
    %6240 = vmatprep.mubr.f32.mxu0 0.0
    %6241 = vmatmul.mubr.f32.gmra.mrb[0].mxu0 %v5130
    %v6242 = vpop.f32.mrb[0].mxu0
    %v6243 = vadd.f32 0.0, %v6242
    %v6244 = vpop.f32.mrb[0].mxu0
    %6245 = vmatprep.mubr.f32.mxu0 0.0
    %6246 = vmatmul.mubr.f32.gmra.mrb[0].mxu0 %v5131
    %v6247 = vpop.f32.mrb[0].mxu0
    %v6248 = vadd.f32 0.0, %v6247
    %v6249 = vpop.f32.mrb[0].mxu0
    %6250 = vmatprep.mubr.f32.mxu0 0.0
    %6251 = vmatmul.mubr.f32.gmra.mrb[0].mxu0 %v5132
    %v6252 = vpop.f32.mrb[0].mxu0
    %v6253 = vadd.f32 0.0, %v6252
    %v6254 = vpop.f32.mrb[0].mxu0
    %6255 = vmatprep.mubr.f32.mxu0 0.0
    %6256 = vmatmul.mubr.f32.gmra.mrb[0].mxu0 %v5133
    %v6257 = vpop.f32.mrb[0].mxu0
    %v6258 = vadd.f32 0.0, %v6257
    %v6259 = vpop.f32.mrb[0].mxu0
    %6260 = vmatprep.mubr.f32.mxu0 0.0
    %6261 = vmatmul.mubr.f32.gmra.mrb[0].mxu0 %v5134
    %v6262 = vpop.f32.mrb[0].mxu0
    %v6263 = vadd.f32 0.0, %v6262
    %v6264 = vpop.f32.mrb[0].mxu0
    %6265 = vmatprep.mubr.f32.mxu0 0.0
    %6266 = vmatmul.mubr.f32.gmra.mrb[0].mxu0 %v5135
    %v6267 = vpop.f32.mrb[0].mxu0
    %v6268 = vadd.f32 0.0, %v6267
    %v6269 = vpop.f32.mrb[0].mxu0
    %6270 = vmatprep.mubr.f32.mxu0 0.0
    %6271 = vmatmul.mubr.f32.gmra.mrb[0].mxu0 %v5136
    %v6272 = vpop.f32.mrb[0].mxu0
    %v6273 = vadd.f32 0.0, %v6272
    %v6274 = vpop.f32.mrb[0].mxu0
    %6275 = vmatprep.mubr.f32.mxu0 0.0
    %6276 = vmatmul.mubr.f32.gmra.mrb[0].mxu0 %v5137
    %v6277 = vpop.f32.mrb[0].mxu0
    %v6278 = vadd.f32 0.0, %v6277
    %v6279 = vpop.f32.mrb[0].mxu0
    %6280 = vmatprep.mubr.f32.mxu0 0.0
    %6281 = vmatmul.mubr.f32.gmra.mrb[0].mxu0 %v5138
    %v6282 = vpop.f32.mrb[0].mxu0
    %v6283 = vadd.f32 0.0, %v6282
    %v6284 = vpop.f32.mrb[0].mxu0
    %6285 = vmatprep.mubr.f32.mxu0 0.0
    %6286 = vmatmul.mubr.f32.gmra.mrb[0].mxu0 %v5139
    %v6287 = vpop.f32.mrb[0].mxu0
    %v6288 = vadd.f32 0.0, %v6287
    %v6289 = vpop.f32.mrb[0].mxu0
    %6290 = vmatprep.mubr.f32.mxu0 0.0
    %6291 = vmatmul.mubr.f32.gmra.mrb[0].mxu0 %v5140
    %v6292 = vpop.f32.mrb[0].mxu0
    %v6293 = vadd.f32 0.0, %v6292
    %v6294 = vpop.f32.mrb[0].mxu0
    %6295 = vdwg.mxu0
    %v6296 = vadd.f32 %v5593, %v5978
    %v6297 = vadd.f32 %v5598, %v5983
    %v6298 = vadd.f32 %v5603, %v5988
    %v6299 = vadd.f32 %v5608, %v5993
    %v6300 = vadd.f32 %v5613, %v5998
    %v6301 = vadd.f32 %v5618, %v6003
    %v6302 = vadd.f32 %v5623, %v6008
    %v6303 = vadd.f32 %v5628, %v6013
    %v6304 = vadd.f32 %v5633, %v6018
    %v6305 = vadd.f32 %v5638, %v6023
    %v6306 = vadd.f32 %v5643, %v6028
    %v6307 = vadd.f32 %v5648, %v6033
    %v6308 = vadd.f32 %v5653, %v6038
    %v6309 = vadd.f32 %v5658, %v6043
    %v6310 = vadd.f32 %v5663, %v6048
    %v6311 = vadd.f32 %v5668, %v6053
    %v6312 = vadd.f32 %v5673, %v6058
    %v6313 = vadd.f32 %v5678, %v6063
    %v6314 = vadd.f32 %v5683, %v6068
    %v6315 = vadd.f32 %v5688, %v6073
    %v6316 = vadd.f32 %v5693, %v6078
    %v6317 = vadd.f32 %v5698, %v6083
    %v6318 = vadd.f32 %v5703, %v6088
    %v6319 = vadd.f32 %v5708, %v6093
    %v6320 = vadd.f32 %v5713, %v6098
    %v6321 = vadd.f32 %v5718, %v6103
    %v6322 = vadd.f32 %v5723, %v6108
    %v6323 = vadd.f32 %v5728, %v6113
    %v6324 = vadd.f32 %v5733, %v6118
    %v6325 = vadd.f32 %v5738, %v6123
    %v6326 = vadd.f32 %v5743, %v6128
    %v6327 = vadd.f32 %v5748, %v6133
    %v6328 = vadd.f32 %v5753, %v6138
    %v6329 = vadd.f32 %v5758, %v6143
    %v6330 = vadd.f32 %v5763, %v6148
    %v6331 = vadd.f32 %v5768, %v6153
    %v6332 = vadd.f32 %v5773, %v6158
    %v6333 = vadd.f32 %v5778, %v6163
    %v6334 = vadd.f32 %v5783, %v6168
    %v6335 = vadd.f32 %v5788, %v6173
    %v6336 = vadd.f32 %v5793, %v6178
    %v6337 = vadd.f32 %v5798, %v6183
    %v6338 = vadd.f32 %v5803, %v6188
    %v6339 = vadd.f32 %v5808, %v6193
    %v6340 = vadd.f32 %v5813, %v6198
    %v6341 = vadd.f32 %v5818, %v6203
    %v6342 = vadd.f32 %v5823, %v6208
    %v6343 = vadd.f32 %v5828, %v6213
    %v6344 = vadd.f32 %v5833, %v6218
    %v6345 = vadd.f32 %v5838, %v6223
    %v6346 = vadd.f32 %v5843, %v6228
    %v6347 = vadd.f32 %v5848, %v6233
    %v6348 = vadd.f32 %v5853, %v6238
    %v6349 = vadd.f32 %v5858, %v6243
    %v6350 = vadd.f32 %v5863, %v6248
    %v6351 = vadd.f32 %v5868, %v6253
    %v6352 = vadd.f32 %v5873, %v6258
    %v6353 = vadd.f32 %v5878, %v6263
    %v6354 = vadd.f32 %v5883, %v6268
    %v6355 = vadd.f32 %v5888, %v6273
    %v6356 = vadd.f32 %v5893, %v6278
    %v6357 = vadd.f32 %v5898, %v6283
    %v6358 = vadd.f32 %v5903, %v6288
    %v6359 = vadd.f32 %v5908, %v6293
    %v6360 = vlaneseq
    %v6361 = vshrl.u32 %v6360, 7
    %v6362 = vsub.s32 0, %v6361
    %v6363 = vrot.slane %v4756, %v6362
    %v6364 = vadd.f32 %v6296, %v6363
    %v6365 = vadd.f32 %v6297, %v6363
    %v6366 = vadd.f32 %v6298, %v6363
    %v6367 = vadd.f32 %v6299, %v6363
    %v6368 = vadd.f32 %v6300, %v6363
    %v6369 = vadd.f32 %v6301, %v6363
    %v6370 = vadd.f32 %v6302, %v6363
    %v6371 = vadd.f32 %v6303, %v6363
    %v6372 = vadd.f32 %v6304, %v6363
    %v6373 = vadd.f32 %v6305, %v6363
    %v6374 = vadd.f32 %v6306, %v6363
    %v6375 = vadd.f32 %v6307, %v6363
    %v6376 = vadd.f32 %v6308, %v6363
    %v6377 = vadd.f32 %v6309, %v6363
    %v6378 = vadd.f32 %v6310, %v6363
    %v6379 = vadd.f32 %v6311, %v6363
    %v6380 = vadd.f32 %v6312, %v6363
    %v6381 = vadd.f32 %v6313, %v6363
    %v6382 = vadd.f32 %v6314, %v6363
    %v6383 = vadd.f32 %v6315, %v6363
    %v6384 = vadd.f32 %v6316, %v6363
    %v6385 = vadd.f32 %v6317, %v6363
    %v6386 = vadd.f32 %v6318, %v6363
    %v6387 = vadd.f32 %v6319, %v6363
    %v6388 = vadd.f32 %v6320, %v6363
    %v6389 = vadd.f32 %v6321, %v6363
    %v6390 = vadd.f32 %v6322, %v6363
    %v6391 = vadd.f32 %v6323, %v6363
    %v6392 = vadd.f32 %v6324, %v6363
    %v6393 = vadd.f32 %v6325, %v6363
    %v6394 = vadd.f32 %v6326, %v6363
    %v6395 = vadd.f32 %v6327, %v6363
    %v6396 = vadd.f32 %v6328, %v6363
    %v6397 = vadd.f32 %v6329, %v6363
    %v6398 = vadd.f32 %v6330, %v6363
    %v6399 = vadd.f32 %v6331, %v6363
    %v6400 = vadd.f32 %v6332, %v6363
    %v6401 = vadd.f32 %v6333, %v6363
    %v6402 = vadd.f32 %v6334, %v6363
    %v6403 = vadd.f32 %v6335, %v6363
    %v6404 = vadd.f32 %v6336, %v6363
    %v6405 = vadd.f32 %v6337, %v6363
    %v6406 = vadd.f32 %v6338, %v6363
    %v6407 = vadd.f32 %v6339, %v6363
    %v6408 = vadd.f32 %v6340, %v6363
    %v6409 = vadd.f32 %v6341, %v6363
    %v6410 = vadd.f32 %v6342, %v6363
    %v6411 = vadd.f32 %v6343, %v6363
    %v6412 = vadd.f32 %v6344, %v6363
    %v6413 = vadd.f32 %v6345, %v6363
    %v6414 = vadd.f32 %v6346, %v6363
    %v6415 = vadd.f32 %v6347, %v6363
    %v6416 = vadd.f32 %v6348, %v6363
    %v6417 = vadd.f32 %v6349, %v6363
    %v6418 = vadd.f32 %v6350, %v6363
    %v6419 = vadd.f32 %v6351, %v6363
    %v6420 = vadd.f32 %v6352, %v6363
    %v6421 = vadd.f32 %v6353, %v6363
    %v6422 = vadd.f32 %v6354, %v6363
    %v6423 = vadd.f32 %v6355, %v6363
    %v6424 = vadd.f32 %v6356, %v6363
    %v6425 = vadd.f32 %v6357, %v6363
    %v6426 = vadd.f32 %v6358, %v6363
    %v6427 = vadd.f32 %v6359, %v6363
    %v6428 = vmax.f32 %v6364, 0.0
    %v6429 = vmax.f32 %v6365, 0.0
    %v6430 = vmax.f32 %v6366, 0.0
    %v6431 = vmax.f32 %v6367, 0.0
    %v6432 = vmax.f32 %v6368, 0.0
    %v6433 = vmax.f32 %v6369, 0.0
    %v6434 = vmax.f32 %v6370, 0.0
    %v6435 = vmax.f32 %v6371, 0.0
    %v6436 = vmax.f32 %v6372, 0.0
    %v6437 = vmax.f32 %v6373, 0.0
    %v6438 = vmax.f32 %v6374, 0.0
    %v6439 = vmax.f32 %v6375, 0.0
    %v6440 = vmax.f32 %v6376, 0.0
    %v6441 = vmax.f32 %v6377, 0.0
    %v6442 = vmax.f32 %v6378, 0.0
    %v6443 = vmax.f32 %v6379, 0.0
    %v6444 = vmax.f32 %v6380, 0.0
    %v6445 = vmax.f32 %v6381, 0.0
    %v6446 = vmax.f32 %v6382, 0.0
    %v6447 = vmax.f32 %v6383, 0.0
    %v6448 = vmax.f32 %v6384, 0.0
    %v6449 = vmax.f32 %v6385, 0.0
    %v6450 = vmax.f32 %v6386, 0.0
    %v6451 = vmax.f32 %v6387, 0.0
    %v6452 = vmax.f32 %v6388, 0.0
    %v6453 = vmax.f32 %v6389, 0.0
    %v6454 = vmax.f32 %v6390, 0.0
    %v6455 = vmax.f32 %v6391, 0.0
    %v6456 = vmax.f32 %v6392, 0.0
    %v6457 = vmax.f32 %v6393, 0.0
    %v6458 = vmax.f32 %v6394, 0.0
    %v6459 = vmax.f32 %v6395, 0.0
    %v6460 = vmax.f32 %v6396, 0.0
    %v6461 = vmax.f32 %v6397, 0.0
    %v6462 = vmax.f32 %v6398, 0.0
    %v6463 = vmax.f32 %v6399, 0.0
    %v6464 = vmax.f32 %v6400, 0.0
    %v6465 = vmax.f32 %v6401, 0.0
    %v6466 = vmax.f32 %v6402, 0.0
    %v6467 = vmax.f32 %v6403, 0.0
    %v6468 = vmax.f32 %v6404, 0.0
    %v6469 = vmax.f32 %v6405, 0.0
    %v6470 = vmax.f32 %v6406, 0.0
    %v6471 = vmax.f32 %v6407, 0.0
    %v6472 = vmax.f32 %v6408, 0.0
    %v6473 = vmax.f32 %v6409, 0.0
    %v6474 = vmax.f32 %v6410, 0.0
    %v6475 = vmax.f32 %v6411, 0.0
    %v6476 = vmax.f32 %v6412, 0.0
    %v6477 = vmax.f32 %v6413, 0.0
    %v6478 = vmax.f32 %v6414, 0.0
    %v6479 = vmax.f32 %v6415, 0.0
    %v6480 = vmax.f32 %v6416, 0.0
    %v6481 = vmax.f32 %v6417, 0.0
    %v6482 = vmax.f32 %v6418, 0.0
    %v6483 = vmax.f32 %v6419, 0.0
    %v6484 = vmax.f32 %v6420, 0.0
    %v6485 = vmax.f32 %v6421, 0.0
    %v6486 = vmax.f32 %v6422, 0.0
    %v6487 = vmax.f32 %v6423, 0.0
    %v6488 = vmax.f32 %v6424, 0.0
    %v6489 = vmax.f32 %v6425, 0.0
    %v6490 = vmax.f32 %v6426, 0.0
    %v6491 = vmax.f32 %v6427, 0.0
    %v6492 = vld [vmem:[#allocation2 + $0x198] sm:$0xff]
    %v6493 = vld [vmem:[#allocation2 + $0x1a0] sm:$0xff]
    %v6494 = vld [vmem:[#allocation2 + $0x1a8] sm:$0xff]
    %v6495 = vld [vmem:[#allocation2 + $0x1b0] sm:$0xff]
    %v6496 = vld [vmem:[#allocation2 + $0x1b8] sm:$0xff]
    %v6497 = vld [vmem:[#allocation2 + $0x1c0] sm:$0xff]
    %v6498 = vld [vmem:[#allocation2 + $0x1c8] sm:$0xff]
    %v6499 = vld [vmem:[#allocation2 + $0x1d0] sm:$0xff]
    %v6500 = vld [vmem:[#allocation2 + $0x218] sm:$0xff]
    %v6501 = vld [vmem:[#allocation2 + $0x220] sm:$0xff]
    %v6502 = vld [vmem:[#allocation2 + $0x228] sm:$0xff]
    %v6503 = vld [vmem:[#allocation2 + $0x230] sm:$0xff]
    %v6504 = vld [vmem:[#allocation2 + $0x238] sm:$0xff]
    %v6505 = vld [vmem:[#allocation2 + $0x240] sm:$0xff]
    %v6506 = vld [vmem:[#allocation2 + $0x248] sm:$0xff]
    %v6507 = vld [vmem:[#allocation2 + $0x250] sm:$0xff]
    %v6508 = vld [vmem:[%s2 + $0x3] sm:$0x1]
    %v6509 = vrot.slane %v6428, 7
    %v6510 = vrot.slane %v6429, 7
    %v6511 = vrot.slane %v6430, 7
    %v6512 = vrot.slane %v6431, 7
    %v6513 = vrot.slane %v6432, 7
    %v6514 = vrot.slane %v6433, 7
    %v6515 = vrot.slane %v6434, 7
    %v6516 = vrot.slane %v6435, 7
    %v6517 = vrot.slane %v6436, 7
    %v6518 = vrot.slane %v6437, 7
    %v6519 = vrot.slane %v6438, 7
    %v6520 = vrot.slane %v6439, 7
    %v6521 = vrot.slane %v6440, 7
    %v6522 = vrot.slane %v6441, 7
    %v6523 = vrot.slane %v6442, 7
    %v6524 = vrot.slane %v6443, 7
    %v6525 = vrot.slane %v6444, 7
    %v6526 = vrot.slane %v6445, 7
    %v6527 = vrot.slane %v6446, 7
    %v6528 = vrot.slane %v6447, 7
    %v6529 = vrot.slane %v6448, 7
    %v6530 = vrot.slane %v6449, 7
    %v6531 = vrot.slane %v6450, 7
    %v6532 = vrot.slane %v6451, 7
    %v6533 = vrot.slane %v6452, 7
    %v6534 = vrot.slane %v6453, 7
    %v6535 = vrot.slane %v6454, 7
    %v6536 = vrot.slane %v6455, 7
    %v6537 = vrot.slane %v6456, 7
    %v6538 = vrot.slane %v6457, 7
    %v6539 = vrot.slane %v6458, 7
    %v6540 = vrot.slane %v6459, 7
    %v6541 = vrot.slane %v6460, 7
    %v6542 = vrot.slane %v6461, 7
    %v6543 = vrot.slane %v6462, 7
    %v6544 = vrot.slane %v6463, 7
    %v6545 = vrot.slane %v6464, 7
    %v6546 = vrot.slane %v6465, 7
    %v6547 = vrot.slane %v6466, 7
    %v6548 = vrot.slane %v6467, 7
    %v6549 = vrot.slane %v6468, 7
    %v6550 = vrot.slane %v6469, 7
    %v6551 = vrot.slane %v6470, 7
    %v6552 = vrot.slane %v6471, 7
    %v6553 = vrot.slane %v6472, 7
    %v6554 = vrot.slane %v6473, 7
    %v6555 = vrot.slane %v6474, 7
    %v6556 = vrot.slane %v6475, 7
    %v6557 = vrot.slane %v6476, 7
    %v6558 = vrot.slane %v6477, 7
    %v6559 = vrot.slane %v6478, 7
    %v6560 = vrot.slane %v6479, 7
    %v6561 = vrot.slane %v6480, 7
    %v6562 = vrot.slane %v6481, 7
    %v6563 = vrot.slane %v6482, 7
    %v6564 = vrot.slane %v6483, 7
    %v6565 = vrot.slane %v6484, 7
    %v6566 = vrot.slane %v6485, 7
    %v6567 = vrot.slane %v6486, 7
    %v6568 = vrot.slane %v6487, 7
    %v6569 = vrot.slane %v6488, 7
    %v6570 = vrot.slane %v6489, 7
    %v6571 = vrot.slane %v6490, 7
    %v6572 = vrot.slane %v6491, 7
    %v6573 = vsel %vm418, %v6571, %v6572
    %v6574 = vsel %vm418, %v6570, %v6571
    %v6575 = vsel %vm418, %v6569, %v6570
    %v6576 = vsel %vm418, %v6568, %v6569
    %v6577 = vsel %vm418, %v6567, %v6568
    %v6578 = vsel %vm418, %v6566, %v6567
    %v6579 = vsel %vm418, %v6565, %v6566
    %v6580 = vsel %vm418, %v6564, %v6565
    %v6581 = vsel %vm418, %v6563, %v6564
    %v6582 = vsel %vm418, %v6562, %v6563
    %v6583 = vsel %vm418, %v6561, %v6562
    %v6584 = vsel %vm418, %v6560, %v6561
    %v6585 = vsel %vm418, %v6559, %v6560
    %v6586 = vsel %vm418, %v6558, %v6559
    %v6587 = vsel %vm418, %v6557, %v6558
    %v6588 = vsel %vm418, %v6556, %v6557
    %v6589 = vsel %vm418, %v6555, %v6556
    %v6590 = vsel %vm418, %v6554, %v6555
    %v6591 = vsel %vm418, %v6553, %v6554
    %v6592 = vsel %vm418, %v6552, %v6553
    %v6593 = vsel %vm418, %v6551, %v6552
    %v6594 = vsel %vm418, %v6550, %v6551
    %v6595 = vsel %vm418, %v6549, %v6550
    %v6596 = vsel %vm418, %v6548, %v6549
    %v6597 = vsel %vm418, %v6547, %v6548
    %v6598 = vsel %vm418, %v6546, %v6547
    %v6599 = vsel %vm418, %v6545, %v6546
    %v6600 = vsel %vm418, %v6544, %v6545
    %v6601 = vsel %vm418, %v6543, %v6544
    %v6602 = vsel %vm418, %v6542, %v6543
    %v6603 = vsel %vm418, %v6541, %v6542
    %v6604 = vsel %vm418, %v6540, %v6541
    %v6605 = vsel %vm418, %v6539, %v6540
    %v6606 = vsel %vm418, %v6538, %v6539
    %v6607 = vsel %vm418, %v6537, %v6538
    %v6608 = vsel %vm418, %v6536, %v6537
    %v6609 = vsel %vm418, %v6535, %v6536
    %v6610 = vsel %vm418, %v6534, %v6535
    %v6611 = vsel %vm418, %v6533, %v6534
    %v6612 = vsel %vm418, %v6532, %v6533
    %v6613 = vsel %vm418, %v6531, %v6532
    %v6614 = vsel %vm418, %v6530, %v6531
    %v6615 = vsel %vm418, %v6529, %v6530
    %v6616 = vsel %vm418, %v6528, %v6529
    %v6617 = vsel %vm418, %v6527, %v6528
    %v6618 = vsel %vm418, %v6526, %v6527
    %v6619 = vsel %vm418, %v6525, %v6526
    %v6620 = vsel %vm418, %v6524, %v6525
    %v6621 = vsel %vm418, %v6523, %v6524
    %v6622 = vsel %vm418, %v6522, %v6523
    %v6623 = vsel %vm418, %v6521, %v6522
    %v6624 = vsel %vm418, %v6520, %v6521
    %v6625 = vsel %vm418, %v6519, %v6520
    %v6626 = vsel %vm418, %v6518, %v6519
    %v6627 = vsel %vm418, %v6517, %v6518
    %v6628 = vsel %vm418, %v6516, %v6517
    %v6629 = vsel %vm418, %v6515, %v6516
    %v6630 = vsel %vm418, %v6514, %v6515
    %v6631 = vsel %vm418, %v6513, %v6514
    %v6632 = vsel %vm418, %v6512, %v6513
    %v6633 = vsel %vm418, %v6511, %v6512
    %v6634 = vsel %vm418, %v6510, %v6511
    %v6635 = vsel %vm418, %v6509, %v6510
    %v6636 = vsel %vm418, %v6572, %v6509
    %v6637 = vsel %vm547, %v6636, 0.0
    %v6638 = vsel %vm548, %v6635, 0.0
    %v6639 = vsel %vm549, %v6634, 0.0
    %v6640 = vsel %vm550, %v6633, 0.0
    %v6641 = vsel %vm551, %v6632, 0.0
    %v6642 = vsel %vm552, %v6631, 0.0
    %v6643 = vsel %vm553, %v6630, 0.0
    %v6644 = vsel %vm554, %v6629, 0.0
    %v6645 = vsel %vm555, %v6628, 0.0
    %v6646 = vsel %vm556, %v6627, 0.0
    %v6647 = vsel %vm557, %v6626, 0.0
    %v6648 = vsel %vm558, %v6625, 0.0
    %v6649 = vsel %vm559, %v6624, 0.0
    %v6650 = vsel %vm560, %v6623, 0.0
    %v6651 = vsel %vm561, %v6622, 0.0
    %v6652 = vsel %vm562, %v6621, 0.0
    %v6653 = vsel %vm563, %v6620, 0.0
    %v6654 = vsel %vm564, %v6619, 0.0
    %v6655 = vsel %vm565, %v6618, 0.0
    %v6656 = vsel %vm566, %v6617, 0.0
    %v6657 = vsel %vm567, %v6616, 0.0
    %v6658 = vsel %vm568, %v6615, 0.0
    %v6659 = vsel %vm569, %v6614, 0.0
    %v6660 = vsel %vm570, %v6613, 0.0
    %v6661 = vsel %vm571, %v6612, 0.0
    %v6662 = vsel %vm572, %v6611, 0.0
    %v6663 = vsel %vm573, %v6610, 0.0
    %v6664 = vsel %vm574, %v6609, 0.0
    %v6665 = vsel %vm575, %v6608, 0.0
    %v6666 = vsel %vm576, %v6607, 0.0
    %v6667 = vsel %vm577, %v6606, 0.0
    %v6668 = vsel %vm578, %v6605, 0.0
    %v6669 = vsel %vm579, %v6604, 0.0
    %v6670 = vsel %vm580, %v6603, 0.0
    %v6671 = vsel %vm581, %v6602, 0.0
    %v6672 = vsel %vm582, %v6601, 0.0
    %v6673 = vsel %vm583, %v6600, 0.0
    %v6674 = vsel %vm584, %v6599, 0.0
    %v6675 = vsel %vm585, %v6598, 0.0
    %v6676 = vsel %vm586, %v6597, 0.0
    %v6677 = vsel %vm587, %v6596, 0.0
    %v6678 = vsel %vm588, %v6595, 0.0
    %v6679 = vsel %vm589, %v6594, 0.0
    %v6680 = vsel %vm590, %v6593, 0.0
    %v6681 = vsel %vm591, %v6592, 0.0
    %v6682 = vsel %vm592, %v6591, 0.0
    %v6683 = vsel %vm593, %v6590, 0.0
    %v6684 = vsel %vm594, %v6589, 0.0
    %v6685 = vsel %vm595, %v6588, 0.0
    %v6686 = vsel %vm596, %v6587, 0.0
    %v6687 = vsel %vm597, %v6586, 0.0
    %v6688 = vsel %vm598, %v6585, 0.0
    %v6689 = vsel %vm599, %v6584, 0.0
    %v6690 = vsel %vm600, %v6583, 0.0
    %v6691 = vsel %vm601, %v6582, 0.0
    %v6692 = vsel %vm602, %v6581, 0.0
    %v6693 = vsel %vm603, %v6580, 0.0
    %v6694 = vsel %vm604, %v6579, 0.0
    %v6695 = vsel %vm605, %v6578, 0.0
    %v6696 = vsel %vm606, %v6577, 0.0
    %v6697 = vsel %vm607, %v6576, 0.0
    %v6698 = vsel %vm608, %v6575, 0.0
    %v6699 = vsel %vm609, %v6574, 0.0
    %v6700 = vsel %vm610, %v6573, 0.0
    %v6701 = vrot.slane %v6428, 1
    %v6702 = vrot.slane %v6429, 1
    %v6703 = vrot.slane %v6430, 1
    %v6704 = vrot.slane %v6431, 1
    %v6705 = vrot.slane %v6432, 1
    %v6706 = vrot.slane %v6433, 1
    %v6707 = vrot.slane %v6434, 1
    %v6708 = vrot.slane %v6435, 1
    %v6709 = vrot.slane %v6436, 1
    %v6710 = vrot.slane %v6437, 1
    %v6711 = vrot.slane %v6438, 1
    %v6712 = vrot.slane %v6439, 1
    %v6713 = vrot.slane %v6440, 1
    %v6714 = vrot.slane %v6441, 1
    %v6715 = vrot.slane %v6442, 1
    %v6716 = vrot.slane %v6443, 1
    %v6717 = vrot.slane %v6444, 1
    %v6718 = vrot.slane %v6445, 1
    %v6719 = vrot.slane %v6446, 1
    %v6720 = vrot.slane %v6447, 1
    %v6721 = vrot.slane %v6448, 1
    %v6722 = vrot.slane %v6449, 1
    %v6723 = vrot.slane %v6450, 1
    %v6724 = vrot.slane %v6451, 1
    %v6725 = vrot.slane %v6452, 1
    %v6726 = vrot.slane %v6453, 1
    %v6727 = vrot.slane %v6454, 1
    %v6728 = vrot.slane %v6455, 1
    %v6729 = vrot.slane %v6456, 1
    %v6730 = vrot.slane %v6457, 1
    %v6731 = vrot.slane %v6458, 1
    %v6732 = vrot.slane %v6459, 1
    %v6733 = vrot.slane %v6460, 1
    %v6734 = vrot.slane %v6461, 1
    %v6735 = vrot.slane %v6462, 1
    %v6736 = vrot.slane %v6463, 1
    %v6737 = vrot.slane %v6464, 1
    %v6738 = vrot.slane %v6465, 1
    %v6739 = vrot.slane %v6466, 1
    %v6740 = vrot.slane %v6467, 1
    %v6741 = vrot.slane %v6468, 1
    %v6742 = vrot.slane %v6469, 1
    %v6743 = vrot.slane %v6470, 1
    %v6744 = vrot.slane %v6471, 1
    %v6745 = vrot.slane %v6472, 1
    %v6746 = vrot.slane %v6473, 1
    %v6747 = vrot.slane %v6474, 1
    %v6748 = vrot.slane %v6475, 1
    %v6749 = vrot.slane %v6476, 1
    %v6750 = vrot.slane %v6477, 1
    %v6751 = vrot.slane %v6478, 1
    %v6752 = vrot.slane %v6479, 1
    %v6753 = vrot.slane %v6480, 1
    %v6754 = vrot.slane %v6481, 1
    %v6755 = vrot.slane %v6482, 1
    %v6756 = vrot.slane %v6483, 1
    %v6757 = vrot.slane %v6484, 1
    %v6758 = vrot.slane %v6485, 1
    %v6759 = vrot.slane %v6486, 1
    %v6760 = vrot.slane %v6487, 1
    %v6761 = vrot.slane %v6488, 1
    %v6762 = vrot.slane %v6489, 1
    %v6763 = vrot.slane %v6490, 1
    %v6764 = vrot.slane %v6491, 1
    %v6765 = vsel %vm739, %v6763, %v6764
    %v6766 = vsel %vm739, %v6762, %v6763
    %v6767 = vsel %vm739, %v6761, %v6762
    %v6768 = vsel %vm739, %v6760, %v6761
    %v6769 = vsel %vm739, %v6759, %v6760
    %v6770 = vsel %vm739, %v6758, %v6759
    %v6771 = vsel %vm739, %v6757, %v6758
    %v6772 = vsel %vm739, %v6756, %v6757
    %v6773 = vsel %vm739, %v6755, %v6756
    %v6774 = vsel %vm739, %v6754, %v6755
    %v6775 = vsel %vm739, %v6753, %v6754
    %v6776 = vsel %vm739, %v6752, %v6753
    %v6777 = vsel %vm739, %v6751, %v6752
    %v6778 = vsel %vm739, %v6750, %v6751
    %v6779 = vsel %vm739, %v6749, %v6750
    %v6780 = vsel %vm739, %v6748, %v6749
    %v6781 = vsel %vm739, %v6747, %v6748
    %v6782 = vsel %vm739, %v6746, %v6747
    %v6783 = vsel %vm739, %v6745, %v6746
    %v6784 = vsel %vm739, %v6744, %v6745
    %v6785 = vsel %vm739, %v6743, %v6744
    %v6786 = vsel %vm739, %v6742, %v6743
    %v6787 = vsel %vm739, %v6741, %v6742
    %v6788 = vsel %vm739, %v6740, %v6741
    %v6789 = vsel %vm739, %v6739, %v6740
    %v6790 = vsel %vm739, %v6738, %v6739
    %v6791 = vsel %vm739, %v6737, %v6738
    %v6792 = vsel %vm739, %v6736, %v6737
    %v6793 = vsel %vm739, %v6735, %v6736
    %v6794 = vsel %vm739, %v6734, %v6735
    %v6795 = vsel %vm739, %v6733, %v6734
    %v6796 = vsel %vm739, %v6732, %v6733
    %v6797 = vsel %vm739, %v6731, %v6732
    %v6798 = vsel %vm739, %v6730, %v6731
    %v6799 = vsel %vm739, %v6729, %v6730
    %v6800 = vsel %vm739, %v6728, %v6729
    %v6801 = vsel %vm739, %v6727, %v6728
    %v6802 = vsel %vm739, %v6726, %v6727
    %v6803 = vsel %vm739, %v6725, %v6726
    %v6804 = vsel %vm739, %v6724, %v6725
    %v6805 = vsel %vm739, %v6723, %v6724
    %v6806 = vsel %vm739, %v6722, %v6723
    %v6807 = vsel %vm739, %v6721, %v6722
    %v6808 = vsel %vm739, %v6720, %v6721
    %v6809 = vsel %vm739, %v6719, %v6720
    %v6810 = vsel %vm739, %v6718, %v6719
    %v6811 = vsel %vm739, %v6717, %v6718
    %v6812 = vsel %vm739, %v6716, %v6717
    %v6813 = vsel %vm739, %v6715, %v6716
    %v6814 = vsel %vm739, %v6714, %v6715
    %v6815 = vsel %vm739, %v6713, %v6714
    %v6816 = vsel %vm739, %v6712, %v6713
    %v6817 = vsel %vm739, %v6711, %v6712
    %v6818 = vsel %vm739, %v6710, %v6711
    %v6819 = vsel %vm739, %v6709, %v6710
    %v6820 = vsel %vm739, %v6708, %v6709
    %v6821 = vsel %vm739, %v6707, %v6708
    %v6822 = vsel %vm739, %v6706, %v6707
    %v6823 = vsel %vm739, %v6705, %v6706
    %v6824 = vsel %vm739, %v6704, %v6705
    %v6825 = vsel %vm739, %v6703, %v6704
    %v6826 = vsel %vm739, %v6702, %v6703
    %v6827 = vsel %vm739, %v6701, %v6702
    %v6828 = vsel %vm739, %v6764, %v6701
    %v6829 = vsel %vm868, %v6827, 0.0
    %v6830 = vsel %vm869, %v6826, 0.0
    %v6831 = vsel %vm870, %v6825, 0.0
    %v6832 = vsel %vm871, %v6824, 0.0
    %v6833 = vsel %vm872, %v6823, 0.0
    %v6834 = vsel %vm873, %v6822, 0.0
    %v6835 = vsel %vm874, %v6821, 0.0
    %v6836 = vsel %vm875, %v6820, 0.0
    %v6837 = vsel %vm876, %v6819, 0.0
    %v6838 = vsel %vm877, %v6818, 0.0
    %v6839 = vsel %vm878, %v6817, 0.0
    %v6840 = vsel %vm879, %v6816, 0.0
    %v6841 = vsel %vm880, %v6815, 0.0
    %v6842 = vsel %vm881, %v6814, 0.0
    %v6843 = vsel %vm882, %v6813, 0.0
    %v6844 = vsel %vm883, %v6812, 0.0
    %v6845 = vsel %vm884, %v6811, 0.0
    %v6846 = vsel %vm885, %v6810, 0.0
    %v6847 = vsel %vm886, %v6809, 0.0
    %v6848 = vsel %vm887, %v6808, 0.0
    %v6849 = vsel %vm888, %v6807, 0.0
    %v6850 = vsel %vm889, %v6806, 0.0
    %v6851 = vsel %vm890, %v6805, 0.0
    %v6852 = vsel %vm891, %v6804, 0.0
    %v6853 = vsel %vm892, %v6803, 0.0
    %v6854 = vsel %vm893, %v6802, 0.0
    %v6855 = vsel %vm894, %v6801, 0.0
    %v6856 = vsel %vm895, %v6800, 0.0
    %v6857 = vsel %vm896, %v6799, 0.0
    %v6858 = vsel %vm897, %v6798, 0.0
    %v6859 = vsel %vm898, %v6797, 0.0
    %v6860 = vsel %vm899, %v6796, 0.0
    %v6861 = vsel %vm900, %v6795, 0.0
    %v6862 = vsel %vm901, %v6794, 0.0
    %v6863 = vsel %vm902, %v6793, 0.0
    %v6864 = vsel %vm903, %v6792, 0.0
    %v6865 = vsel %vm904, %v6791, 0.0
    %v6866 = vsel %vm905, %v6790, 0.0
    %v6867 = vsel %vm906, %v6789, 0.0
    %v6868 = vsel %vm907, %v6788, 0.0
    %v6869 = vsel %vm908, %v6787, 0.0
    %v6870 = vsel %vm909, %v6786, 0.0
    %v6871 = vsel %vm910, %v6785, 0.0
    %v6872 = vsel %vm911, %v6784, 0.0
    %v6873 = vsel %vm912, %v6783, 0.0
    %v6874 = vsel %vm913, %v6782, 0.0
    %v6875 = vsel %vm914, %v6781, 0.0
    %v6876 = vsel %vm915, %v6780, 0.0
    %v6877 = vsel %vm916, %v6779, 0.0
    %v6878 = vsel %vm917, %v6778, 0.0
    %v6879 = vsel %vm918, %v6777, 0.0
    %v6880 = vsel %vm919, %v6776, 0.0
    %v6881 = vsel %vm920, %v6775, 0.0
    %v6882 = vsel %vm921, %v6774, 0.0
    %v6883 = vsel %vm922, %v6773, 0.0
    %v6884 = vsel %vm923, %v6772, 0.0
    %v6885 = vsel %vm924, %v6771, 0.0
    %v6886 = vsel %vm925, %v6770, 0.0
    %v6887 = vsel %vm926, %v6769, 0.0
    %v6888 = vsel %vm927, %v6768, 0.0
    %v6889 = vsel %vm928, %v6767, 0.0
    %v6890 = vsel %vm929, %v6766, 0.0
    %v6891 = vsel %vm930, %v6765, 0.0
    %v6892 = vsel %vm931, %v6828, 0.0
    %6901 = vrot.lane.b32.xlu0 %v6492, 64
    %v6902 = vpop.permute.xlu0 %6901
    %6903 = vrot.lane.b32.xlu0 %v6493, 64
    %v6904 = vpop.permute.xlu0 %6903
    %6905 = vrot.lane.b32.xlu0 %v6494, 64
    %v6906 = vpop.permute.xlu0 %6905
    %6907 = vrot.lane.b32.xlu0 %v6495, 64
    %v6908 = vpop.permute.xlu0 %6907
    %6909 = vrot.lane.b32.xlu0 %v6496, 64
    %v6910 = vpop.permute.xlu0 %6909
    %6911 = vrot.lane.b32.xlu0 %v6497, 64
    %v6912 = vpop.permute.xlu0 %6911
    %6913 = vrot.lane.b32.xlu0 %v6498, 64
    %v6914 = vpop.permute.xlu0 %6913
    %6915 = vrot.lane.b32.xlu0 %v6499, 64
    %v6916 = vpop.permute.xlu0 %6915
    %vm6925 = vcmask 523264
    %v6927 = vsel %vm6925, %v6637, 0
    %v6930 = vsel %vm6925, %v6638, 0
    %v6933 = vsel %vm6925, %v6639, 0
    %v6936 = vsel %vm6925, %v6640, 0
    %v6939 = vsel %vm6925, %v6641, 0
    %v6942 = vsel %vm6925, %v6642, 0
    %v6945 = vsel %vm6925, %v6643, 0
    %v6948 = vsel %vm6925, %v6644, 0
    %v6951 = vsel %vm6925, %v6645, 0
    %v6954 = vsel %vm6925, %v6646, 0
    %v6957 = vsel %vm6925, %v6647, 0
    %v6960 = vsel %vm6925, %v6648, 0
    %v6963 = vsel %vm6925, %v6649, 0
    %v6966 = vsel %vm6925, %v6650, 0
    %v6969 = vsel %vm6925, %v6651, 0
    %v6972 = vsel %vm6925, %v6652, 0
    %v6975 = vsel %vm6925, %v6653, 0
    %v6978 = vsel %vm6925, %v6654, 0
    %v6981 = vsel %vm6925, %v6655, 0
    %v6984 = vsel %vm6925, %v6656, 0
    %v6987 = vsel %vm6925, %v6657, 0
    %v6990 = vsel %vm6925, %v6658, 0
    %v6993 = vsel %vm6925, %v6659, 0
    %v6996 = vsel %vm6925, %v6660, 0
    %v6999 = vsel %vm6925, %v6661, 0
    %v7002 = vsel %vm6925, %v6662, 0
    %v7005 = vsel %vm6925, %v6663, 0
    %v7008 = vsel %vm6925, %v6664, 0
    %v7011 = vsel %vm6925, %v6665, 0
    %v7014 = vsel %vm6925, %v6666, 0
    %v7017 = vsel %vm6925, %v6667, 0
    %v7020 = vsel %vm6925, %v6668, 0
    %v7023 = vsel %vm6925, %v6669, 0
    %v7026 = vsel %vm6925, %v6670, 0
    %v7029 = vsel %vm6925, %v6671, 0
    %v7032 = vsel %vm6925, %v6672, 0
    %v7035 = vsel %vm6925, %v6673, 0
    %v7038 = vsel %vm6925, %v6674, 0
    %v7041 = vsel %vm6925, %v6675, 0
    %v7044 = vsel %vm6925, %v6676, 0
    %v7047 = vsel %vm6925, %v6677, 0
    %v7050 = vsel %vm6925, %v6678, 0
    %v7053 = vsel %vm6925, %v6679, 0
    %v7056 = vsel %vm6925, %v6680, 0
    %v7059 = vsel %vm6925, %v6681, 0
    %v7062 = vsel %vm6925, %v6682, 0
    %v7065 = vsel %vm6925, %v6683, 0
    %v7068 = vsel %vm6925, %v6684, 0
    %v7071 = vsel %vm6925, %v6685, 0
    %v7074 = vsel %vm6925, %v6686, 0
    %v7077 = vsel %vm6925, %v6687, 0
    %v7080 = vsel %vm6925, %v6688, 0
    %v7083 = vsel %vm6925, %v6689, 0
    %v7086 = vsel %vm6925, %v6690, 0
    %v7089 = vsel %vm6925, %v6691, 0
    %v7092 = vsel %vm6925, %v6692, 0
    %v7095 = vsel %vm6925, %v6693, 0
    %v7098 = vsel %vm6925, %v6694, 0
    %v7101 = vsel %vm6925, %v6695, 0
    %v7104 = vsel %vm6925, %v6696, 0
    %v7107 = vsel %vm6925, %v6697, 0
    %v7110 = vsel %vm6925, %v6698, 0
    %v7113 = vsel %vm6925, %v6699, 0
    %v7116 = vsel %vm6925, %v6700, 0
    %7118 = vmatprep.subr.mxu0 0.0
    %7119 = vmatpush1.msra.mxu0 %v6902
    %7120 = vmatprep.subr.mxu0 0.0
    %7121 = vmatpush1.msra.mxu0 %v6904
    %7122 = vmatprep.subr.mxu0 0.0
    %7123 = vmatpush1.msra.mxu0 %v6906
    %7124 = vmatprep.subr.mxu0 0.0
    %7125 = vmatpush1.msra.mxu0 %v6908
    %7126 = vmatprep.subr.mxu0 0.0
    %7127 = vmatpush1.msra.mxu0 %v6910
    %7128 = vmatprep.subr.mxu0 0.0
    %7129 = vmatpush1.msra.mxu0 %v6912
    %7130 = vmatprep.subr.mxu0 0.0
    %7131 = vmatpush1.msra.mxu0 %v6914
    %7132 = vmatprep.subr.mxu0 0.0
    %7133 = vmatpush1.msra.mxu0 %v6916
    %7134 = vmatprep.subr.mxu0 0.0
    %7135 = vmatpush1.msra.mxu0 0.0
    %7136 = vmatprep.subr.mxu0 0.0
    %7137 = vmatpush1.msra.mxu0 0.0
    %7138 = vmatprep.subr.mxu0 0.0
    %7139 = vmatpush1.msra.mxu0 0.0
    %7140 = vmatprep.subr.mxu0 0.0
    %7141 = vmatpush1.msra.mxu0 0.0
    %7142 = vmatprep.subr.mxu0 0.0
    %7143 = vmatpush1.msra.mxu0 0.0
    %7144 = vmatprep.subr.mxu0 0.0
    %7145 = vmatpush1.msra.mxu0 0.0
    %7146 = vmatprep.subr.mxu0 0.0
    %7147 = vmatpush1.msra.mxu0 0.0
    %7148 = vmatprep.subr.mxu0 0.0
    %7149 = vmatpush1.msra.mxu0 0.0
    %7150 = vmatprep.subr.mxu0 0.0
    %7151 = vmatpush1.msra.mxu0 0.0
    %7152 = vmatprep.subr.mxu0 0.0
    %7153 = vmatpush1.msra.mxu0 0.0
    %7154 = vmatprep.subr.mxu0 0.0
    %7155 = vmatpush1.msra.mxu0 0.0
    %7156 = vmatprep.subr.mxu0 0.0
    %7157 = vmatpush1.msra.mxu0 0.0
    %7158 = vmatprep.subr.mxu0 0.0
    %7159 = vmatpush1.msra.mxu0 0.0
    %7160 = vmatprep.subr.mxu0 0.0
    %7161 = vmatpush1.msra.mxu0 0.0
    %7162 = vmatprep.subr.mxu0 0.0
    %7163 = vmatpush1.msra.mxu0 0.0
    %7164 = vmatprep.subr.mxu0 0.0
    %7165 = vmatpush1.msra.mxu0 0.0
    %7166 = vmatprep.subr.mxu0 0.0
    %7167 = vmatpush1.msra.mxu0 0.0
    %7168 = vmatprep.subr.mxu0 0.0
    %7169 = vmatpush1.msra.mxu0 0.0
    %7170 = vmatprep.subr.mxu0 0.0
    %7171 = vmatpush1.msra.mxu0 0.0
    %7172 = vmatprep.subr.mxu0 0.0
    %7173 = vmatpush1.msra.mxu0 0.0
    %7174 = vmatprep.subr.mxu0 0.0
    %7175 = vmatpush1.msra.mxu0 0.0
    %7176 = vmatprep.subr.mxu0 0.0
    %7177 = vmatpush1.msra.mxu0 0.0
    %7178 = vmatprep.subr.mxu0 0.0
    %7179 = vmatpush1.msra.mxu0 0.0
    %7180 = vmatprep.subr.mxu0 0.0
    %7181 = vmatpush1.msra.mxu0 0.0
    %7182 = vmatprep.mubr.f32.mxu0 0.0
    %7183 = vmatmul.mubr.f32.gmra.mrb[0].mxu0 %v6927
    %v7184 = vpop.f32.mrb[0].mxu0
    %v7185 = vadd.f32 0.0, %v7184
    %v7186 = vpop.f32.mrb[0].mxu0
    %7187 = vmatprep.mubr.f32.mxu0 0.0
    %7188 = vmatmul.mubr.f32.gmra.mrb[0].mxu0 %v6930
    %v7189 = vpop.f32.mrb[0].mxu0
    %v7190 = vadd.f32 0.0, %v7189
    %v7191 = vpop.f32.mrb[0].mxu0
    %7192 = vmatprep.mubr.f32.mxu0 0.0
    %7193 = vmatmul.mubr.f32.gmra.mrb[0].mxu0 %v6933
    %v7194 = vpop.f32.mrb[0].mxu0
    %v7195 = vadd.f32 0.0, %v7194
    %v7196 = vpop.f32.mrb[0].mxu0
    %7197 = vmatprep.mubr.f32.mxu0 0.0
    %7198 = vmatmul.mubr.f32.gmra.mrb[0].mxu0 %v6936
    %v7199 = vpop.f32.mrb[0].mxu0
    %v7200 = vadd.f32 0.0, %v7199
    %v7201 = vpop.f32.mrb[0].mxu0
    %7202 = vmatprep.mubr.f32.mxu0 0.0
    %7203 = vmatmul.mubr.f32.gmra.mrb[0].mxu0 %v6939
    %v7204 = vpop.f32.mrb[0].mxu0
    %v7205 = vadd.f32 0.0, %v7204
    %v7206 = vpop.f32.mrb[0].mxu0
    %7207 = vmatprep.mubr.f32.mxu0 0.0
    %7208 = vmatmul.mubr.f32.gmra.mrb[0].mxu0 %v6942
    %v7209 = vpop.f32.mrb[0].mxu0
    %v7210 = vadd.f32 0.0, %v7209
    %v7211 = vpop.f32.mrb[0].mxu0
    %7212 = vmatprep.mubr.f32.mxu0 0.0
    %7213 = vmatmul.mubr.f32.gmra.mrb[0].mxu0 %v6945
    %v7214 = vpop.f32.mrb[0].mxu0
    %v7215 = vadd.f32 0.0, %v7214
    %v7216 = vpop.f32.mrb[0].mxu0
    %7217 = vmatprep.mubr.f32.mxu0 0.0
    %7218 = vmatmul.mubr.f32.gmra.mrb[0].mxu0 %v6948
    %v7219 = vpop.f32.mrb[0].mxu0
    %v7220 = vadd.f32 0.0, %v7219
    %v7221 = vpop.f32.mrb[0].mxu0
    %7222 = vmatprep.mubr.f32.mxu0 0.0
    %7223 = vmatmul.mubr.f32.gmra.mrb[0].mxu0 %v6951
    %v7224 = vpop.f32.mrb[0].mxu0
    %v7225 = vadd.f32 0.0, %v7224
    %v7226 = vpop.f32.mrb[0].mxu0
    %7227 = vmatprep.mubr.f32.mxu0 0.0
    %7228 = vmatmul.mubr.f32.gmra.mrb[0].mxu0 %v6954
    %v7229 = vpop.f32.mrb[0].mxu0
    %v7230 = vadd.f32 0.0, %v7229
    %v7231 = vpop.f32.mrb[0].mxu0
    %7232 = vmatprep.mubr.f32.mxu0 0.0
    %7233 = vmatmul.mubr.f32.gmra.mrb[0].mxu0 %v6957
    %v7234 = vpop.f32.mrb[0].mxu0
    %v7235 = vadd.f32 0.0, %v7234
    %v7236 = vpop.f32.mrb[0].mxu0
    %7237 = vmatprep.mubr.f32.mxu0 0.0
    %7238 = vmatmul.mubr.f32.gmra.mrb[0].mxu0 %v6960
    %v7239 = vpop.f32.mrb[0].mxu0
    %v7240 = vadd.f32 0.0, %v7239
    %v7241 = vpop.f32.mrb[0].mxu0
    %7242 = vmatprep.mubr.f32.mxu0 0.0
    %7243 = vmatmul.mubr.f32.gmra.mrb[0].mxu0 %v6963
    %v7244 = vpop.f32.mrb[0].mxu0
    %v7245 = vadd.f32 0.0, %v7244
    %v7246 = vpop.f32.mrb[0].mxu0
    %7247 = vmatprep.mubr.f32.mxu0 0.0
    %7248 = vmatmul.mubr.f32.gmra.mrb[0].mxu0 %v6966
    %v7249 = vpop.f32.mrb[0].mxu0
    %v7250 = vadd.f32 0.0, %v7249
    %v7251 = vpop.f32.mrb[0].mxu0
    %7252 = vmatprep.mubr.f32.mxu0 0.0
    %7253 = vmatmul.mubr.f32.gmra.mrb[0].mxu0 %v6969
    %v7254 = vpop.f32.mrb[0].mxu0
    %v7255 = vadd.f32 0.0, %v7254
    %v7256 = vpop.f32.mrb[0].mxu0
    %7257 = vmatprep.mubr.f32.mxu0 0.0
    %7258 = vmatmul.mubr.f32.gmra.mrb[0].mxu0 %v6972
    %v7259 = vpop.f32.mrb[0].mxu0
    %v7260 = vadd.f32 0.0, %v7259
    %v7261 = vpop.f32.mrb[0].mxu0
    %7262 = vmatprep.mubr.f32.mxu0 0.0
    %7263 = vmatmul.mubr.f32.gmra.mrb[0].mxu0 %v6975
    %v7264 = vpop.f32.mrb[0].mxu0
    %v7265 = vadd.f32 0.0, %v7264
    %v7266 = vpop.f32.mrb[0].mxu0
    %7267 = vmatprep.mubr.f32.mxu0 0.0
    %7268 = vmatmul.mubr.f32.gmra.mrb[0].mxu0 %v6978
    %v7269 = vpop.f32.mrb[0].mxu0
    %v7270 = vadd.f32 0.0, %v7269
    %v7271 = vpop.f32.mrb[0].mxu0
    %7272 = vmatprep.mubr.f32.mxu0 0.0
    %7273 = vmatmul.mubr.f32.gmra.mrb[0].mxu0 %v6981
    %v7274 = vpop.f32.mrb[0].mxu0
    %v7275 = vadd.f32 0.0, %v7274
    %v7276 = vpop.f32.mrb[0].mxu0
    %7277 = vmatprep.mubr.f32.mxu0 0.0
    %7278 = vmatmul.mubr.f32.gmra.mrb[0].mxu0 %v6984
    %v7279 = vpop.f32.mrb[0].mxu0
    %v7280 = vadd.f32 0.0, %v7279
    %v7281 = vpop.f32.mrb[0].mxu0
    %7282 = vmatprep.mubr.f32.mxu0 0.0
    %7283 = vmatmul.mubr.f32.gmra.mrb[0].mxu0 %v6987
    %v7284 = vpop.f32.mrb[0].mxu0
    %v7285 = vadd.f32 0.0, %v7284
    %v7286 = vpop.f32.mrb[0].mxu0
    %7287 = vmatprep.mubr.f32.mxu0 0.0
    %7288 = vmatmul.mubr.f32.gmra.mrb[0].mxu0 %v6990
    %v7289 = vpop.f32.mrb[0].mxu0
    %v7290 = vadd.f32 0.0, %v7289
    %v7291 = vpop.f32.mrb[0].mxu0
    %7292 = vmatprep.mubr.f32.mxu0 0.0
    %7293 = vmatmul.mubr.f32.gmra.mrb[0].mxu0 %v6993
    %v7294 = vpop.f32.mrb[0].mxu0
    %v7295 = vadd.f32 0.0, %v7294
    %v7296 = vpop.f32.mrb[0].mxu0
    %7297 = vmatprep.mubr.f32.mxu0 0.0
    %7298 = vmatmul.mubr.f32.gmra.mrb[0].mxu0 %v6996
    %v7299 = vpop.f32.mrb[0].mxu0
    %v7300 = vadd.f32 0.0, %v7299
    %v7301 = vpop.f32.mrb[0].mxu0
    %7302 = vmatprep.mubr.f32.mxu0 0.0
    %7303 = vmatmul.mubr.f32.gmra.mrb[0].mxu0 %v6999
    %v7304 = vpop.f32.mrb[0].mxu0
    %v7305 = vadd.f32 0.0, %v7304
    %v7306 = vpop.f32.mrb[0].mxu0
    %7307 = vmatprep.mubr.f32.mxu0 0.0
    %7308 = vmatmul.mubr.f32.gmra.mrb[0].mxu0 %v7002
    %v7309 = vpop.f32.mrb[0].mxu0
    %v7310 = vadd.f32 0.0, %v7309
    %v7311 = vpop.f32.mrb[0].mxu0
    %7312 = vmatprep.mubr.f32.mxu0 0.0
    %7313 = vmatmul.mubr.f32.gmra.mrb[0].mxu0 %v7005
    %v7314 = vpop.f32.mrb[0].mxu0
    %v7315 = vadd.f32 0.0, %v7314
    %v7316 = vpop.f32.mrb[0].mxu0
    %7317 = vmatprep.mubr.f32.mxu0 0.0
    %7318 = vmatmul.mubr.f32.gmra.mrb[0].mxu0 %v7008
    %v7319 = vpop.f32.mrb[0].mxu0
    %v7320 = vadd.f32 0.0, %v7319
    %v7321 = vpop.f32.mrb[0].mxu0
    %7322 = vmatprep.mubr.f32.mxu0 0.0
    %7323 = vmatmul.mubr.f32.gmra.mrb[0].mxu0 %v7011
    %v7324 = vpop.f32.mrb[0].mxu0
    %v7325 = vadd.f32 0.0, %v7324
    %v7326 = vpop.f32.mrb[0].mxu0
    %7327 = vmatprep.mubr.f32.mxu0 0.0
    %7328 = vmatmul.mubr.f32.gmra.mrb[0].mxu0 %v7014
    %v7329 = vpop.f32.mrb[0].mxu0
    %v7330 = vadd.f32 0.0, %v7329
    %v7331 = vpop.f32.mrb[0].mxu0
    %7332 = vmatprep.mubr.f32.mxu0 0.0
    %7333 = vmatmul.mubr.f32.gmra.mrb[0].mxu0 %v7017
    %v7334 = vpop.f32.mrb[0].mxu0
    %v7335 = vadd.f32 0.0, %v7334
    %v7336 = vpop.f32.mrb[0].mxu0
    %7337 = vmatprep.mubr.f32.mxu0 0.0
    %7338 = vmatmul.mubr.f32.gmra.mrb[0].mxu0 %v7020
    %v7339 = vpop.f32.mrb[0].mxu0
    %v7340 = vadd.f32 0.0, %v7339
    %v7341 = vpop.f32.mrb[0].mxu0
    %7342 = vmatprep.mubr.f32.mxu0 0.0
    %7343 = vmatmul.mubr.f32.gmra.mrb[0].mxu0 %v7023
    %v7344 = vpop.f32.mrb[0].mxu0
    %v7345 = vadd.f32 0.0, %v7344
    %v7346 = vpop.f32.mrb[0].mxu0
    %7347 = vmatprep.mubr.f32.mxu0 0.0
    %7348 = vmatmul.mubr.f32.gmra.mrb[0].mxu0 %v7026
    %v7349 = vpop.f32.mrb[0].mxu0
    %v7350 = vadd.f32 0.0, %v7349
    %v7351 = vpop.f32.mrb[0].mxu0
    %7352 = vmatprep.mubr.f32.mxu0 0.0
    %7353 = vmatmul.mubr.f32.gmra.mrb[0].mxu0 %v7029
    %v7354 = vpop.f32.mrb[0].mxu0
    %v7355 = vadd.f32 0.0, %v7354
    %v7356 = vpop.f32.mrb[0].mxu0
    %7357 = vmatprep.mubr.f32.mxu0 0.0
    %7358 = vmatmul.mubr.f32.gmra.mrb[0].mxu0 %v7032
    %v7359 = vpop.f32.mrb[0].mxu0
    %v7360 = vadd.f32 0.0, %v7359
    %v7361 = vpop.f32.mrb[0].mxu0
    %7362 = vmatprep.mubr.f32.mxu0 0.0
    %7363 = vmatmul.mubr.f32.gmra.mrb[0].mxu0 %v7035
    %v7364 = vpop.f32.mrb[0].mxu0
    %v7365 = vadd.f32 0.0, %v7364
    %v7366 = vpop.f32.mrb[0].mxu0
    %7367 = vmatprep.mubr.f32.mxu0 0.0
    %7368 = vmatmul.mubr.f32.gmra.mrb[0].mxu0 %v7038
    %v7369 = vpop.f32.mrb[0].mxu0
    %v7370 = vadd.f32 0.0, %v7369
    %v7371 = vpop.f32.mrb[0].mxu0
    %7372 = vmatprep.mubr.f32.mxu0 0.0
    %7373 = vmatmul.mubr.f32.gmra.mrb[0].mxu0 %v7041
    %v7374 = vpop.f32.mrb[0].mxu0
    %v7375 = vadd.f32 0.0, %v7374
    %v7376 = vpop.f32.mrb[0].mxu0
    %7377 = vmatprep.mubr.f32.mxu0 0.0
    %7378 = vmatmul.mubr.f32.gmra.mrb[0].mxu0 %v7044
    %v7379 = vpop.f32.mrb[0].mxu0
    %v7380 = vadd.f32 0.0, %v7379
    %v7381 = vpop.f32.mrb[0].mxu0
    %7382 = vmatprep.mubr.f32.mxu0 0.0
    %7383 = vmatmul.mubr.f32.gmra.mrb[0].mxu0 %v7047
    %v7384 = vpop.f32.mrb[0].mxu0
    %v7385 = vadd.f32 0.0, %v7384
    %v7386 = vpop.f32.mrb[0].mxu0
    %7387 = vmatprep.mubr.f32.mxu0 0.0
    %7388 = vmatmul.mubr.f32.gmra.mrb[0].mxu0 %v7050
    %v7389 = vpop.f32.mrb[0].mxu0
    %v7390 = vadd.f32 0.0, %v7389
    %v7391 = vpop.f32.mrb[0].mxu0
    %7392 = vmatprep.mubr.f32.mxu0 0.0
    %7393 = vmatmul.mubr.f32.gmra.mrb[0].mxu0 %v7053
    %v7394 = vpop.f32.mrb[0].mxu0
    %v7395 = vadd.f32 0.0, %v7394
    %v7396 = vpop.f32.mrb[0].mxu0
    %7397 = vmatprep.mubr.f32.mxu0 0.0
    %7398 = vmatmul.mubr.f32.gmra.mrb[0].mxu0 %v7056
    %v7399 = vpop.f32.mrb[0].mxu0
    %v7400 = vadd.f32 0.0, %v7399
    %v7401 = vpop.f32.mrb[0].mxu0
    %7402 = vmatprep.mubr.f32.mxu0 0.0
    %7403 = vmatmul.mubr.f32.gmra.mrb[0].mxu0 %v7059
    %v7404 = vpop.f32.mrb[0].mxu0
    %v7405 = vadd.f32 0.0, %v7404
    %v7406 = vpop.f32.mrb[0].mxu0
    %7407 = vmatprep.mubr.f32.mxu0 0.0
    %7408 = vmatmul.mubr.f32.gmra.mrb[0].mxu0 %v7062
    %v7409 = vpop.f32.mrb[0].mxu0
    %v7410 = vadd.f32 0.0, %v7409
    %v7411 = vpop.f32.mrb[0].mxu0
    %7412 = vmatprep.mubr.f32.mxu0 0.0
    %7413 = vmatmul.mubr.f32.gmra.mrb[0].mxu0 %v7065
    %v7414 = vpop.f32.mrb[0].mxu0
    %v7415 = vadd.f32 0.0, %v7414
    %v7416 = vpop.f32.mrb[0].mxu0
    %7417 = vmatprep.mubr.f32.mxu0 0.0
    %7418 = vmatmul.mubr.f32.gmra.mrb[0].mxu0 %v7068
    %v7419 = vpop.f32.mrb[0].mxu0
    %v7420 = vadd.f32 0.0, %v7419
    %v7421 = vpop.f32.mrb[0].mxu0
    %7422 = vmatprep.mubr.f32.mxu0 0.0
    %7423 = vmatmul.mubr.f32.gmra.mrb[0].mxu0 %v7071
    %v7424 = vpop.f32.mrb[0].mxu0
    %v7425 = vadd.f32 0.0, %v7424
    %v7426 = vpop.f32.mrb[0].mxu0
    %7427 = vmatprep.mubr.f32.mxu0 0.0
    %7428 = vmatmul.mubr.f32.gmra.mrb[0].mxu0 %v7074
    %v7429 = vpop.f32.mrb[0].mxu0
    %v7430 = vadd.f32 0.0, %v7429
    %v7431 = vpop.f32.mrb[0].mxu0
    %7432 = vmatprep.mubr.f32.mxu0 0.0
    %7433 = vmatmul.mubr.f32.gmra.mrb[0].mxu0 %v7077
    %v7434 = vpop.f32.mrb[0].mxu0
    %v7435 = vadd.f32 0.0, %v7434
    %v7436 = vpop.f32.mrb[0].mxu0
    %7437 = vmatprep.mubr.f32.mxu0 0.0
    %7438 = vmatmul.mubr.f32.gmra.mrb[0].mxu0 %v7080
    %v7439 = vpop.f32.mrb[0].mxu0
    %v7440 = vadd.f32 0.0, %v7439
    %v7441 = vpop.f32.mrb[0].mxu0
    %7442 = vmatprep.mubr.f32.mxu0 0.0
    %7443 = vmatmul.mubr.f32.gmra.mrb[0].mxu0 %v7083
    %v7444 = vpop.f32.mrb[0].mxu0
    %v7445 = vadd.f32 0.0, %v7444
    %v7446 = vpop.f32.mrb[0].mxu0
    %7447 = vmatprep.mubr.f32.mxu0 0.0
    %7448 = vmatmul.mubr.f32.gmra.mrb[0].mxu0 %v7086
    %v7449 = vpop.f32.mrb[0].mxu0
    %v7450 = vadd.f32 0.0, %v7449
    %v7451 = vpop.f32.mrb[0].mxu0
    %7452 = vmatprep.mubr.f32.mxu0 0.0
    %7453 = vmatmul.mubr.f32.gmra.mrb[0].mxu0 %v7089
    %v7454 = vpop.f32.mrb[0].mxu0
    %v7455 = vadd.f32 0.0, %v7454
    %v7456 = vpop.f32.mrb[0].mxu0
    %7457 = vmatprep.mubr.f32.mxu0 0.0
    %7458 = vmatmul.mubr.f32.gmra.mrb[0].mxu0 %v7092
    %v7459 = vpop.f32.mrb[0].mxu0
    %v7460 = vadd.f32 0.0, %v7459
    %v7461 = vpop.f32.mrb[0].mxu0
    %7462 = vmatprep.mubr.f32.mxu0 0.0
    %7463 = vmatmul.mubr.f32.gmra.mrb[0].mxu0 %v7095
    %v7464 = vpop.f32.mrb[0].mxu0
    %v7465 = vadd.f32 0.0, %v7464
    %v7466 = vpop.f32.mrb[0].mxu0
    %7467 = vmatprep.mubr.f32.mxu0 0.0
    %7468 = vmatmul.mubr.f32.gmra.mrb[0].mxu0 %v7098
    %v7469 = vpop.f32.mrb[0].mxu0
    %v7470 = vadd.f32 0.0, %v7469
    %v7471 = vpop.f32.mrb[0].mxu0
    %7472 = vmatprep.mubr.f32.mxu0 0.0
    %7473 = vmatmul.mubr.f32.gmra.mrb[0].mxu0 %v7101
    %v7474 = vpop.f32.mrb[0].mxu0
    %v7475 = vadd.f32 0.0, %v7474
    %v7476 = vpop.f32.mrb[0].mxu0
    %7477 = vmatprep.mubr.f32.mxu0 0.0
    %7478 = vmatmul.mubr.f32.gmra.mrb[0].mxu0 %v7104
    %v7479 = vpop.f32.mrb[0].mxu0
    %v7480 = vadd.f32 0.0, %v7479
    %v7481 = vpop.f32.mrb[0].mxu0
    %7482 = vmatprep.mubr.f32.mxu0 0.0
    %7483 = vmatmul.mubr.f32.gmra.mrb[0].mxu0 %v7107
    %v7484 = vpop.f32.mrb[0].mxu0
    %v7485 = vadd.f32 0.0, %v7484
    %v7486 = vpop.f32.mrb[0].mxu0
    %7487 = vmatprep.mubr.f32.mxu0 0.0
    %7488 = vmatmul.mubr.f32.gmra.mrb[0].mxu0 %v7110
    %v7489 = vpop.f32.mrb[0].mxu0
    %v7490 = vadd.f32 0.0, %v7489
    %v7491 = vpop.f32.mrb[0].mxu0
    %7492 = vmatprep.mubr.f32.mxu0 0.0
    %7493 = vmatmul.mubr.f32.gmra.mrb[0].mxu0 %v7113
    %v7494 = vpop.f32.mrb[0].mxu0
    %v7495 = vadd.f32 0.0, %v7494
    %v7496 = vpop.f32.mrb[0].mxu0
    %7497 = vmatprep.mubr.f32.mxu0 0.0
    %7498 = vmatmul.mubr.f32.gmra.mrb[0].mxu0 %v7116
    %v7499 = vpop.f32.mrb[0].mxu0
    %v7500 = vadd.f32 0.0, %v7499
    %v7501 = vpop.f32.mrb[0].mxu0
    %7502 = vdwg.mxu0
    %7511 = vrot.lane.b32.xlu0 %v4716, 64
    %v7512 = vpop.permute.xlu0 %7511
    %7513 = vrot.lane.b32.xlu0 %v4717, 64
    %v7514 = vpop.permute.xlu0 %7513
    %7515 = vrot.lane.b32.xlu0 %v4718, 64
    %v7516 = vpop.permute.xlu0 %7515
    %7517 = vrot.lane.b32.xlu0 %v4719, 64
    %v7518 = vpop.permute.xlu0 %7517
    %7519 = vrot.lane.b32.xlu0 %v4720, 64
    %v7520 = vpop.permute.xlu0 %7519
    %7521 = vrot.lane.b32.xlu0 %v4721, 64
    %v7522 = vpop.permute.xlu0 %7521
    %7523 = vrot.lane.b32.xlu0 %v4722, 64
    %v7524 = vpop.permute.xlu0 %7523
    %7525 = vrot.lane.b32.xlu0 %v4723, 64
    %v7526 = vpop.permute.xlu0 %7525
    %v7536 = vsel %vm6925, %v6428, 0
    %v7539 = vsel %vm6925, %v6429, 0
    %v7542 = vsel %vm6925, %v6430, 0
    %v7545 = vsel %vm6925, %v6431, 0
    %v7548 = vsel %vm6925, %v6432, 0
    %v7551 = vsel %vm6925, %v6433, 0
    %v7554 = vsel %vm6925, %v6434, 0
    %v7557 = vsel %vm6925, %v6435, 0
    %v7560 = vsel %vm6925, %v6436, 0
    %v7563 = vsel %vm6925, %v6437, 0
    %v7566 = vsel %vm6925, %v6438, 0
    %v7569 = vsel %vm6925, %v6439, 0
    %v7572 = vsel %vm6925, %v6440, 0
    %v7575 = vsel %vm6925, %v6441, 0
    %v7578 = vsel %vm6925, %v6442, 0
    %v7581 = vsel %vm6925, %v6443, 0
    %v7584 = vsel %vm6925, %v6444, 0
    %v7587 = vsel %vm6925, %v6445, 0
    %v7590 = vsel %vm6925, %v6446, 0
    %v7593 = vsel %vm6925, %v6447, 0
    %v7596 = vsel %vm6925, %v6448, 0
    %v7599 = vsel %vm6925, %v6449, 0
    %v7602 = vsel %vm6925, %v6450, 0
    %v7605 = vsel %vm6925, %v6451, 0
    %v7608 = vsel %vm6925, %v6452, 0
    %v7611 = vsel %vm6925, %v6453, 0
    %v7614 = vsel %vm6925, %v6454, 0
    %v7617 = vsel %vm6925, %v6455, 0
    %v7620 = vsel %vm6925, %v6456, 0
    %v7623 = vsel %vm6925, %v6457, 0
    %v7626 = vsel %vm6925, %v6458, 0
    %v7629 = vsel %vm6925, %v6459, 0
    %v7632 = vsel %vm6925, %v6460, 0
    %v7635 = vsel %vm6925, %v6461, 0
    %v7638 = vsel %vm6925, %v6462, 0
    %v7641 = vsel %vm6925, %v6463, 0
    %v7644 = vsel %vm6925, %v6464, 0
    %v7647 = vsel %vm6925, %v6465, 0
    %v7650 = vsel %vm6925, %v6466, 0
    %v7653 = vsel %vm6925, %v6467, 0
    %v7656 = vsel %vm6925, %v6468, 0
    %v7659 = vsel %vm6925, %v6469, 0
    %v7662 = vsel %vm6925, %v6470, 0
    %v7665 = vsel %vm6925, %v6471, 0
    %v7668 = vsel %vm6925, %v6472, 0
    %v7671 = vsel %vm6925, %v6473, 0
    %v7674 = vsel %vm6925, %v6474, 0
    %v7677 = vsel %vm6925, %v6475, 0
    %v7680 = vsel %vm6925, %v6476, 0
    %v7683 = vsel %vm6925, %v6477, 0
    %v7686 = vsel %vm6925, %v6478, 0
    %v7689 = vsel %vm6925, %v6479, 0
    %v7692 = vsel %vm6925, %v6480, 0
    %v7695 = vsel %vm6925, %v6481, 0
    %v7698 = vsel %vm6925, %v6482, 0
    %v7701 = vsel %vm6925, %v6483, 0
    %v7704 = vsel %vm6925, %v6484, 0
    %v7707 = vsel %vm6925, %v6485, 0
    %v7710 = vsel %vm6925, %v6486, 0
    %v7713 = vsel %vm6925, %v6487, 0
    %v7716 = vsel %vm6925, %v6488, 0
    %v7719 = vsel %vm6925, %v6489, 0
    %v7722 = vsel %vm6925, %v6490, 0
    %v7725 = vsel %vm6925, %v6491, 0
    %7727 = vmatprep.subr.mxu0 0.0
    %7728 = vmatpush1.msra.mxu0 %v7512
    %7729 = vmatprep.subr.mxu0 0.0
    %7730 = vmatpush1.msra.mxu0 %v7514
    %7731 = vmatprep.subr.mxu0 0.0
    %7732 = vmatpush1.msra.mxu0 %v7516
    %7733 = vmatprep.subr.mxu0 0.0
    %7734 = vmatpush1.msra.mxu0 %v7518
    %7735 = vmatprep.subr.mxu0 0.0
    %7736 = vmatpush1.msra.mxu0 %v7520
    %7737 = vmatprep.subr.mxu0 0.0
    %7738 = vmatpush1.msra.mxu0 %v7522
    %7739 = vmatprep.subr.mxu0 0.0
    %7740 = vmatpush1.msra.mxu0 %v7524
    %7741 = vmatprep.subr.mxu0 0.0
    %7742 = vmatpush1.msra.mxu0 %v7526
    %7743 = vmatprep.subr.mxu0 0.0
    %7744 = vmatpush1.msra.mxu0 0.0
    %7745 = vmatprep.subr.mxu0 0.0
    %7746 = vmatpush1.msra.mxu0 0.0
    %7747 = vmatprep.subr.mxu0 0.0
    %7748 = vmatpush1.msra.mxu0 0.0
    %7749 = vmatprep.subr.mxu0 0.0
    %7750 = vmatpush1.msra.mxu0 0.0
    %7751 = vmatprep.subr.mxu0 0.0
    %7752 = vmatpush1.msra.mxu0 0.0
    %7753 = vmatprep.subr.mxu0 0.0
    %7754 = vmatpush1.msra.mxu0 0.0
    %7755 = vmatprep.subr.mxu0 0.0
    %7756 = vmatpush1.msra.mxu0 0.0
    %7757 = vmatprep.subr.mxu0 0.0
    %7758 = vmatpush1.msra.mxu0 0.0
    %7759 = vmatprep.subr.mxu0 0.0
    %7760 = vmatpush1.msra.mxu0 0.0
    %7761 = vmatprep.subr.mxu0 0.0
    %7762 = vmatpush1.msra.mxu0 0.0
    %7763 = vmatprep.subr.mxu0 0.0
    %7764 = vmatpush1.msra.mxu0 0.0
    %7765 = vmatprep.subr.mxu0 0.0
    %7766 = vmatpush1.msra.mxu0 0.0
    %7767 = vmatprep.subr.mxu0 0.0
    %7768 = vmatpush1.msra.mxu0 0.0
    %7769 = vmatprep.subr.mxu0 0.0
    %7770 = vmatpush1.msra.mxu0 0.0
    %7771 = vmatprep.subr.mxu0 0.0
    %7772 = vmatpush1.msra.mxu0 0.0
    %7773 = vmatprep.subr.mxu0 0.0
    %7774 = vmatpush1.msra.mxu0 0.0
    %7775 = vmatprep.subr.mxu0 0.0
    %7776 = vmatpush1.msra.mxu0 0.0
    %7777 = vmatprep.subr.mxu0 0.0
    %7778 = vmatpush1.msra.mxu0 0.0
    %7779 = vmatprep.subr.mxu0 0.0
    %7780 = vmatpush1.msra.mxu0 0.0
    %7781 = vmatprep.subr.mxu0 0.0
    %7782 = vmatpush1.msra.mxu0 0.0
    %7783 = vmatprep.subr.mxu0 0.0
    %7784 = vmatpush1.msra.mxu0 0.0
    %7785 = vmatprep.subr.mxu0 0.0
    %7786 = vmatpush1.msra.mxu0 0.0
    %7787 = vmatprep.subr.mxu0 0.0
    %7788 = vmatpush1.msra.mxu0 0.0
    %7789 = vmatprep.subr.mxu0 0.0
    %7790 = vmatpush1.msra.mxu0 0.0
    %7791 = vmatprep.mubr.f32.mxu0 0.0
    %7792 = vmatmul.mubr.f32.gmra.mrb[0].mxu0 %v7536
    %v7793 = vpop.f32.mrb[0].mxu0
    %v7794 = vadd.f32 %v7185, %v7793
    %v7795 = vpop.f32.mrb[0].mxu0
    %7796 = vmatprep.mubr.f32.mxu0 0.0
    %7797 = vmatmul.mubr.f32.gmra.mrb[0].mxu0 %v7539
    %v7798 = vpop.f32.mrb[0].mxu0
    %v7799 = vadd.f32 %v7190, %v7798
    %v7800 = vpop.f32.mrb[0].mxu0
    %7801 = vmatprep.mubr.f32.mxu0 0.0
    %7802 = vmatmul.mubr.f32.gmra.mrb[0].mxu0 %v7542
    %v7803 = vpop.f32.mrb[0].mxu0
    %v7804 = vadd.f32 %v7195, %v7803
    %v7805 = vpop.f32.mrb[0].mxu0
    %7806 = vmatprep.mubr.f32.mxu0 0.0
    %7807 = vmatmul.mubr.f32.gmra.mrb[0].mxu0 %v7545
    %v7808 = vpop.f32.mrb[0].mxu0
    %v7809 = vadd.f32 %v7200, %v7808
    %v7810 = vpop.f32.mrb[0].mxu0
    %7811 = vmatprep.mubr.f32.mxu0 0.0
    %7812 = vmatmul.mubr.f32.gmra.mrb[0].mxu0 %v7548
    %v7813 = vpop.f32.mrb[0].mxu0
    %v7814 = vadd.f32 %v7205, %v7813
    %v7815 = vpop.f32.mrb[0].mxu0
    %7816 = vmatprep.mubr.f32.mxu0 0.0
    %7817 = vmatmul.mubr.f32.gmra.mrb[0].mxu0 %v7551
    %v7818 = vpop.f32.mrb[0].mxu0
    %v7819 = vadd.f32 %v7210, %v7818
    %v7820 = vpop.f32.mrb[0].mxu0
    %7821 = vmatprep.mubr.f32.mxu0 0.0
    %7822 = vmatmul.mubr.f32.gmra.mrb[0].mxu0 %v7554
    %v7823 = vpop.f32.mrb[0].mxu0
    %v7824 = vadd.f32 %v7215, %v7823
    %v7825 = vpop.f32.mrb[0].mxu0
    %7826 = vmatprep.mubr.f32.mxu0 0.0
    %7827 = vmatmul.mubr.f32.gmra.mrb[0].mxu0 %v7557
    %v7828 = vpop.f32.mrb[0].mxu0
    %v7829 = vadd.f32 %v7220, %v7828
    %v7830 = vpop.f32.mrb[0].mxu0
    %7831 = vmatprep.mubr.f32.mxu0 0.0
    %7832 = vmatmul.mubr.f32.gmra.mrb[0].mxu0 %v7560
    %v7833 = vpop.f32.mrb[0].mxu0
    %v7834 = vadd.f32 %v7225, %v7833
    %v7835 = vpop.f32.mrb[0].mxu0
    %7836 = vmatprep.mubr.f32.mxu0 0.0
    %7837 = vmatmul.mubr.f32.gmra.mrb[0].mxu0 %v7563
    %v7838 = vpop.f32.mrb[0].mxu0
    %v7839 = vadd.f32 %v7230, %v7838
    %v7840 = vpop.f32.mrb[0].mxu0
    %7841 = vmatprep.mubr.f32.mxu0 0.0
    %7842 = vmatmul.mubr.f32.gmra.mrb[0].mxu0 %v7566
    %v7843 = vpop.f32.mrb[0].mxu0
    %v7844 = vadd.f32 %v7235, %v7843
    %v7845 = vpop.f32.mrb[0].mxu0
    %7846 = vmatprep.mubr.f32.mxu0 0.0
    %7847 = vmatmul.mubr.f32.gmra.mrb[0].mxu0 %v7569
    %v7848 = vpop.f32.mrb[0].mxu0
    %v7849 = vadd.f32 %v7240, %v7848
    %v7850 = vpop.f32.mrb[0].mxu0
    %7851 = vmatprep.mubr.f32.mxu0 0.0
    %7852 = vmatmul.mubr.f32.gmra.mrb[0].mxu0 %v7572
    %v7853 = vpop.f32.mrb[0].mxu0
    %v7854 = vadd.f32 %v7245, %v7853
    %v7855 = vpop.f32.mrb[0].mxu0
    %7856 = vmatprep.mubr.f32.mxu0 0.0
    %7857 = vmatmul.mubr.f32.gmra.mrb[0].mxu0 %v7575
    %v7858 = vpop.f32.mrb[0].mxu0
    %v7859 = vadd.f32 %v7250, %v7858
    %v7860 = vpop.f32.mrb[0].mxu0
    %7861 = vmatprep.mubr.f32.mxu0 0.0
    %7862 = vmatmul.mubr.f32.gmra.mrb[0].mxu0 %v7578
    %v7863 = vpop.f32.mrb[0].mxu0
    %v7864 = vadd.f32 %v7255, %v7863
    %v7865 = vpop.f32.mrb[0].mxu0
    %7866 = vmatprep.mubr.f32.mxu0 0.0
    %7867 = vmatmul.mubr.f32.gmra.mrb[0].mxu0 %v7581
    %v7868 = vpop.f32.mrb[0].mxu0
    %v7869 = vadd.f32 %v7260, %v7868
    %v7870 = vpop.f32.mrb[0].mxu0
    %7871 = vmatprep.mubr.f32.mxu0 0.0
    %7872 = vmatmul.mubr.f32.gmra.mrb[0].mxu0 %v7584
    %v7873 = vpop.f32.mrb[0].mxu0
    %v7874 = vadd.f32 %v7265, %v7873
    %v7875 = vpop.f32.mrb[0].mxu0
    %7876 = vmatprep.mubr.f32.mxu0 0.0
    %7877 = vmatmul.mubr.f32.gmra.mrb[0].mxu0 %v7587
    %v7878 = vpop.f32.mrb[0].mxu0
    %v7879 = vadd.f32 %v7270, %v7878
    %v7880 = vpop.f32.mrb[0].mxu0
    %7881 = vmatprep.mubr.f32.mxu0 0.0
    %7882 = vmatmul.mubr.f32.gmra.mrb[0].mxu0 %v7590
    %v7883 = vpop.f32.mrb[0].mxu0
    %v7884 = vadd.f32 %v7275, %v7883
    %v7885 = vpop.f32.mrb[0].mxu0
    %7886 = vmatprep.mubr.f32.mxu0 0.0
    %7887 = vmatmul.mubr.f32.gmra.mrb[0].mxu0 %v7593
    %v7888 = vpop.f32.mrb[0].mxu0
    %v7889 = vadd.f32 %v7280, %v7888
    %v7890 = vpop.f32.mrb[0].mxu0
    %7891 = vmatprep.mubr.f32.mxu0 0.0
    %7892 = vmatmul.mubr.f32.gmra.mrb[0].mxu0 %v7596
    %v7893 = vpop.f32.mrb[0].mxu0
    %v7894 = vadd.f32 %v7285, %v7893
    %v7895 = vpop.f32.mrb[0].mxu0
    %7896 = vmatprep.mubr.f32.mxu0 0.0
    %7897 = vmatmul.mubr.f32.gmra.mrb[0].mxu0 %v7599
    %v7898 = vpop.f32.mrb[0].mxu0
    %v7899 = vadd.f32 %v7290, %v7898
    %v7900 = vpop.f32.mrb[0].mxu0
    %7901 = vmatprep.mubr.f32.mxu0 0.0
    %7902 = vmatmul.mubr.f32.gmra.mrb[0].mxu0 %v7602
    %v7903 = vpop.f32.mrb[0].mxu0
    %v7904 = vadd.f32 %v7295, %v7903
    %v7905 = vpop.f32.mrb[0].mxu0
    %7906 = vmatprep.mubr.f32.mxu0 0.0
    %7907 = vmatmul.mubr.f32.gmra.mrb[0].mxu0 %v7605
    %v7908 = vpop.f32.mrb[0].mxu0
    %v7909 = vadd.f32 %v7300, %v7908
    %v7910 = vpop.f32.mrb[0].mxu0
    %7911 = vmatprep.mubr.f32.mxu0 0.0
    %7912 = vmatmul.mubr.f32.gmra.mrb[0].mxu0 %v7608
    %v7913 = vpop.f32.mrb[0].mxu0
    %v7914 = vadd.f32 %v7305, %v7913
    %v7915 = vpop.f32.mrb[0].mxu0
    %7916 = vmatprep.mubr.f32.mxu0 0.0
    %7917 = vmatmul.mubr.f32.gmra.mrb[0].mxu0 %v7611
    %v7918 = vpop.f32.mrb[0].mxu0
    %v7919 = vadd.f32 %v7310, %v7918
    %v7920 = vpop.f32.mrb[0].mxu0
    %7921 = vmatprep.mubr.f32.mxu0 0.0
    %7922 = vmatmul.mubr.f32.gmra.mrb[0].mxu0 %v7614
    %v7923 = vpop.f32.mrb[0].mxu0
    %v7924 = vadd.f32 %v7315, %v7923
    %v7925 = vpop.f32.mrb[0].mxu0
    %7926 = vmatprep.mubr.f32.mxu0 0.0
    %7927 = vmatmul.mubr.f32.gmra.mrb[0].mxu0 %v7617
    %v7928 = vpop.f32.mrb[0].mxu0
    %v7929 = vadd.f32 %v7320, %v7928
    %v7930 = vpop.f32.mrb[0].mxu0
    %7931 = vmatprep.mubr.f32.mxu0 0.0
    %7932 = vmatmul.mubr.f32.gmra.mrb[0].mxu0 %v7620
    %v7933 = vpop.f32.mrb[0].mxu0
    %v7934 = vadd.f32 %v7325, %v7933
    %v7935 = vpop.f32.mrb[0].mxu0
    %7936 = vmatprep.mubr.f32.mxu0 0.0
    %7937 = vmatmul.mubr.f32.gmra.mrb[0].mxu0 %v7623
    %v7938 = vpop.f32.mrb[0].mxu0
    %v7939 = vadd.f32 %v7330, %v7938
    %v7940 = vpop.f32.mrb[0].mxu0
    %7941 = vmatprep.mubr.f32.mxu0 0.0
    %7942 = vmatmul.mubr.f32.gmra.mrb[0].mxu0 %v7626
    %v7943 = vpop.f32.mrb[0].mxu0
    %v7944 = vadd.f32 %v7335, %v7943
    %v7945 = vpop.f32.mrb[0].mxu0
    %7946 = vmatprep.mubr.f32.mxu0 0.0
    %7947 = vmatmul.mubr.f32.gmra.mrb[0].mxu0 %v7629
    %v7948 = vpop.f32.mrb[0].mxu0
    %v7949 = vadd.f32 %v7340, %v7948
    %v7950 = vpop.f32.mrb[0].mxu0
    %7951 = vmatprep.mubr.f32.mxu0 0.0
    %7952 = vmatmul.mubr.f32.gmra.mrb[0].mxu0 %v7632
    %v7953 = vpop.f32.mrb[0].mxu0
    %v7954 = vadd.f32 %v7345, %v7953
    %v7955 = vpop.f32.mrb[0].mxu0
    %7956 = vmatprep.mubr.f32.mxu0 0.0
    %7957 = vmatmul.mubr.f32.gmra.mrb[0].mxu0 %v7635
    %v7958 = vpop.f32.mrb[0].mxu0
    %v7959 = vadd.f32 %v7350, %v7958
    %v7960 = vpop.f32.mrb[0].mxu0
    %7961 = vmatprep.mubr.f32.mxu0 0.0
    %7962 = vmatmul.mubr.f32.gmra.mrb[0].mxu0 %v7638
    %v7963 = vpop.f32.mrb[0].mxu0
    %v7964 = vadd.f32 %v7355, %v7963
    %v7965 = vpop.f32.mrb[0].mxu0
    %7966 = vmatprep.mubr.f32.mxu0 0.0
    %7967 = vmatmul.mubr.f32.gmra.mrb[0].mxu0 %v7641
    %v7968 = vpop.f32.mrb[0].mxu0
    %v7969 = vadd.f32 %v7360, %v7968
    %v7970 = vpop.f32.mrb[0].mxu0
    %7971 = vmatprep.mubr.f32.mxu0 0.0
    %7972 = vmatmul.mubr.f32.gmra.mrb[0].mxu0 %v7644
    %v7973 = vpop.f32.mrb[0].mxu0
    %v7974 = vadd.f32 %v7365, %v7973
    %v7975 = vpop.f32.mrb[0].mxu0
    %7976 = vmatprep.mubr.f32.mxu0 0.0
    %7977 = vmatmul.mubr.f32.gmra.mrb[0].mxu0 %v7647
    %v7978 = vpop.f32.mrb[0].mxu0
    %v7979 = vadd.f32 %v7370, %v7978
    %v7980 = vpop.f32.mrb[0].mxu0
    %7981 = vmatprep.mubr.f32.mxu0 0.0
    %7982 = vmatmul.mubr.f32.gmra.mrb[0].mxu0 %v7650
    %v7983 = vpop.f32.mrb[0].mxu0
    %v7984 = vadd.f32 %v7375, %v7983
    %v7985 = vpop.f32.mrb[0].mxu0
    %7986 = vmatprep.mubr.f32.mxu0 0.0
    %7987 = vmatmul.mubr.f32.gmra.mrb[0].mxu0 %v7653
    %v7988 = vpop.f32.mrb[0].mxu0
    %v7989 = vadd.f32 %v7380, %v7988
    %v7990 = vpop.f32.mrb[0].mxu0
    %7991 = vmatprep.mubr.f32.mxu0 0.0
    %7992 = vmatmul.mubr.f32.gmra.mrb[0].mxu0 %v7656
    %v7993 = vpop.f32.mrb[0].mxu0
    %v7994 = vadd.f32 %v7385, %v7993
    %v7995 = vpop.f32.mrb[0].mxu0
    %7996 = vmatprep.mubr.f32.mxu0 0.0
    %7997 = vmatmul.mubr.f32.gmra.mrb[0].mxu0 %v7659
    %v7998 = vpop.f32.mrb[0].mxu0
    %v7999 = vadd.f32 %v7390, %v7998
    %v8000 = vpop.f32.mrb[0].mxu0
    %8001 = vmatprep.mubr.f32.mxu0 0.0
    %8002 = vmatmul.mubr.f32.gmra.mrb[0].mxu0 %v7662
    %v8003 = vpop.f32.mrb[0].mxu0
    %v8004 = vadd.f32 %v7395, %v8003
    %v8005 = vpop.f32.mrb[0].mxu0
    %8006 = vmatprep.mubr.f32.mxu0 0.0
    %8007 = vmatmul.mubr.f32.gmra.mrb[0].mxu0 %v7665
    %v8008 = vpop.f32.mrb[0].mxu0
    %v8009 = vadd.f32 %v7400, %v8008
    %v8010 = vpop.f32.mrb[0].mxu0
    %8011 = vmatprep.mubr.f32.mxu0 0.0
    %8012 = vmatmul.mubr.f32.gmra.mrb[0].mxu0 %v7668
    %v8013 = vpop.f32.mrb[0].mxu0
    %v8014 = vadd.f32 %v7405, %v8013
    %v8015 = vpop.f32.mrb[0].mxu0
    %8016 = vmatprep.mubr.f32.mxu0 0.0
    %8017 = vmatmul.mubr.f32.gmra.mrb[0].mxu0 %v7671
    %v8018 = vpop.f32.mrb[0].mxu0
    %v8019 = vadd.f32 %v7410, %v8018
    %v8020 = vpop.f32.mrb[0].mxu0
    %8021 = vmatprep.mubr.f32.mxu0 0.0
    %8022 = vmatmul.mubr.f32.gmra.mrb[0].mxu0 %v7674
    %v8023 = vpop.f32.mrb[0].mxu0
    %v8024 = vadd.f32 %v7415, %v8023
    %v8025 = vpop.f32.mrb[0].mxu0
    %8026 = vmatprep.mubr.f32.mxu0 0.0
    %8027 = vmatmul.mubr.f32.gmra.mrb[0].mxu0 %v7677
    %v8028 = vpop.f32.mrb[0].mxu0
    %v8029 = vadd.f32 %v7420, %v8028
    %v8030 = vpop.f32.mrb[0].mxu0
    %8031 = vmatprep.mubr.f32.mxu0 0.0
    %8032 = vmatmul.mubr.f32.gmra.mrb[0].mxu0 %v7680
    %v8033 = vpop.f32.mrb[0].mxu0
    %v8034 = vadd.f32 %v7425, %v8033
    %v8035 = vpop.f32.mrb[0].mxu0
    %8036 = vmatprep.mubr.f32.mxu0 0.0
    %8037 = vmatmul.mubr.f32.gmra.mrb[0].mxu0 %v7683
    %v8038 = vpop.f32.mrb[0].mxu0
    %v8039 = vadd.f32 %v7430, %v8038
    %v8040 = vpop.f32.mrb[0].mxu0
    %8041 = vmatprep.mubr.f32.mxu0 0.0
    %8042 = vmatmul.mubr.f32.gmra.mrb[0].mxu0 %v7686
    %v8043 = vpop.f32.mrb[0].mxu0
    %v8044 = vadd.f32 %v7435, %v8043
    %v8045 = vpop.f32.mrb[0].mxu0
    %8046 = vmatprep.mubr.f32.mxu0 0.0
    %8047 = vmatmul.mubr.f32.gmra.mrb[0].mxu0 %v7689
    %v8048 = vpop.f32.mrb[0].mxu0
    %v8049 = vadd.f32 %v7440, %v8048
    %v8050 = vpop.f32.mrb[0].mxu0
    %8051 = vmatprep.mubr.f32.mxu0 0.0
    %8052 = vmatmul.mubr.f32.gmra.mrb[0].mxu0 %v7692
    %v8053 = vpop.f32.mrb[0].mxu0
    %v8054 = vadd.f32 %v7445, %v8053
    %v8055 = vpop.f32.mrb[0].mxu0
    %8056 = vmatprep.mubr.f32.mxu0 0.0
    %8057 = vmatmul.mubr.f32.gmra.mrb[0].mxu0 %v7695
    %v8058 = vpop.f32.mrb[0].mxu0
    %v8059 = vadd.f32 %v7450, %v8058
    %v8060 = vpop.f32.mrb[0].mxu0
    %8061 = vmatprep.mubr.f32.mxu0 0.0
    %8062 = vmatmul.mubr.f32.gmra.mrb[0].mxu0 %v7698
    %v8063 = vpop.f32.mrb[0].mxu0
    %v8064 = vadd.f32 %v7455, %v8063
    %v8065 = vpop.f32.mrb[0].mxu0
    %8066 = vmatprep.mubr.f32.mxu0 0.0
    %8067 = vmatmul.mubr.f32.gmra.mrb[0].mxu0 %v7701
    %v8068 = vpop.f32.mrb[0].mxu0
    %v8069 = vadd.f32 %v7460, %v8068
    %v8070 = vpop.f32.mrb[0].mxu0
    %8071 = vmatprep.mubr.f32.mxu0 0.0
    %8072 = vmatmul.mubr.f32.gmra.mrb[0].mxu0 %v7704
    %v8073 = vpop.f32.mrb[0].mxu0
    %v8074 = vadd.f32 %v7465, %v8073
    %v8075 = vpop.f32.mrb[0].mxu0
    %8076 = vmatprep.mubr.f32.mxu0 0.0
    %8077 = vmatmul.mubr.f32.gmra.mrb[0].mxu0 %v7707
    %v8078 = vpop.f32.mrb[0].mxu0
    %v8079 = vadd.f32 %v7470, %v8078
    %v8080 = vpop.f32.mrb[0].mxu0
    %8081 = vmatprep.mubr.f32.mxu0 0.0
    %8082 = vmatmul.mubr.f32.gmra.mrb[0].mxu0 %v7710
    %v8083 = vpop.f32.mrb[0].mxu0
    %v8084 = vadd.f32 %v7475, %v8083
    %v8085 = vpop.f32.mrb[0].mxu0
    %8086 = vmatprep.mubr.f32.mxu0 0.0
    %8087 = vmatmul.mubr.f32.gmra.mrb[0].mxu0 %v7713
    %v8088 = vpop.f32.mrb[0].mxu0
    %v8089 = vadd.f32 %v7480, %v8088
    %v8090 = vpop.f32.mrb[0].mxu0
    %8091 = vmatprep.mubr.f32.mxu0 0.0
    %8092 = vmatmul.mubr.f32.gmra.mrb[0].mxu0 %v7716
    %v8093 = vpop.f32.mrb[0].mxu0
    %v8094 = vadd.f32 %v7485, %v8093
    %v8095 = vpop.f32.mrb[0].mxu0
    %8096 = vmatprep.mubr.f32.mxu0 0.0
    %8097 = vmatmul.mubr.f32.gmra.mrb[0].mxu0 %v7719
    %v8098 = vpop.f32.mrb[0].mxu0
    %v8099 = vadd.f32 %v7490, %v8098
    %v8100 = vpop.f32.mrb[0].mxu0
    %8101 = vmatprep.mubr.f32.mxu0 0.0
    %8102 = vmatmul.mubr.f32.gmra.mrb[0].mxu0 %v7722
    %v8103 = vpop.f32.mrb[0].mxu0
    %v8104 = vadd.f32 %v7495, %v8103
    %v8105 = vpop.f32.mrb[0].mxu0
    %8106 = vmatprep.mubr.f32.mxu0 0.0
    %8107 = vmatmul.mubr.f32.gmra.mrb[0].mxu0 %v7725
    %v8108 = vpop.f32.mrb[0].mxu0
    %v8109 = vadd.f32 %v7500, %v8108
    %v8110 = vpop.f32.mrb[0].mxu0
    %8111 = vdwg.mxu0
    %8120 = vrot.lane.b32.xlu0 %v6500, 64
    %v8121 = vpop.permute.xlu0 %8120
    %8122 = vrot.lane.b32.xlu0 %v6501, 64
    %v8123 = vpop.permute.xlu0 %8122
    %8124 = vrot.lane.b32.xlu0 %v6502, 64
    %v8125 = vpop.permute.xlu0 %8124
    %8126 = vrot.lane.b32.xlu0 %v6503, 64
    %v8127 = vpop.permute.xlu0 %8126
    %8128 = vrot.lane.b32.xlu0 %v6504, 64
    %v8129 = vpop.permute.xlu0 %8128
    %8130 = vrot.lane.b32.xlu0 %v6505, 64
    %v8131 = vpop.permute.xlu0 %8130
    %8132 = vrot.lane.b32.xlu0 %v6506, 64
    %v8133 = vpop.permute.xlu0 %8132
    %8134 = vrot.lane.b32.xlu0 %v6507, 64
    %v8135 = vpop.permute.xlu0 %8134
    %v8145 = vsel %vm6925, %v6829, 0
    %v8148 = vsel %vm6925, %v6830, 0
    %v8151 = vsel %vm6925, %v6831, 0
    %v8154 = vsel %vm6925, %v6832, 0
    %v8157 = vsel %vm6925, %v6833, 0
    %v8160 = vsel %vm6925, %v6834, 0
    %v8163 = vsel %vm6925, %v6835, 0
    %v8166 = vsel %vm6925, %v6836, 0
    %v8169 = vsel %vm6925, %v6837, 0
    %v8172 = vsel %vm6925, %v6838, 0
    %v8175 = vsel %vm6925, %v6839, 0
    %v8178 = vsel %vm6925, %v6840, 0
    %v8181 = vsel %vm6925, %v6841, 0
    %v8184 = vsel %vm6925, %v6842, 0
    %v8187 = vsel %vm6925, %v6843, 0
    %v8190 = vsel %vm6925, %v6844, 0
    %v8193 = vsel %vm6925, %v6845, 0
    %v8196 = vsel %vm6925, %v6846, 0
    %v8199 = vsel %vm6925, %v6847, 0
    %v8202 = vsel %vm6925, %v6848, 0
    %v8205 = vsel %vm6925, %v6849, 0
    %v8208 = vsel %vm6925, %v6850, 0
    %v8211 = vsel %vm6925, %v6851, 0
    %v8214 = vsel %vm6925, %v6852, 0
    %v8217 = vsel %vm6925, %v6853, 0
    %v8220 = vsel %vm6925, %v6854, 0
    %v8223 = vsel %vm6925, %v6855, 0
    %v8226 = vsel %vm6925, %v6856, 0
    %v8229 = vsel %vm6925, %v6857, 0
    %v8232 = vsel %vm6925, %v6858, 0
    %v8235 = vsel %vm6925, %v6859, 0
    %v8238 = vsel %vm6925, %v6860, 0
    %v8241 = vsel %vm6925, %v6861, 0
    %v8244 = vsel %vm6925, %v6862, 0
    %v8247 = vsel %vm6925, %v6863, 0
    %v8250 = vsel %vm6925, %v6864, 0
    %v8253 = vsel %vm6925, %v6865, 0
    %v8256 = vsel %vm6925, %v6866, 0
    %v8259 = vsel %vm6925, %v6867, 0
    %v8262 = vsel %vm6925, %v6868, 0
    %v8265 = vsel %vm6925, %v6869, 0
    %v8268 = vsel %vm6925, %v6870, 0
    %v8271 = vsel %vm6925, %v6871, 0
    %v8274 = vsel %vm6925, %v6872, 0
    %v8277 = vsel %vm6925, %v6873, 0
    %v8280 = vsel %vm6925, %v6874, 0
    %v8283 = vsel %vm6925, %v6875, 0
    %v8286 = vsel %vm6925, %v6876, 0
    %v8289 = vsel %vm6925, %v6877, 0
    %v8292 = vsel %vm6925, %v6878, 0
    %v8295 = vsel %vm6925, %v6879, 0
    %v8298 = vsel %vm6925, %v6880, 0
    %v8301 = vsel %vm6925, %v6881, 0
    %v8304 = vsel %vm6925, %v6882, 0
    %v8307 = vsel %vm6925, %v6883, 0
    %v8310 = vsel %vm6925, %v6884, 0
    %v8313 = vsel %vm6925, %v6885, 0
    %v8316 = vsel %vm6925, %v6886, 0
    %v8319 = vsel %vm6925, %v6887, 0
    %v8322 = vsel %vm6925, %v6888, 0
    %v8325 = vsel %vm6925, %v6889, 0
    %v8328 = vsel %vm6925, %v6890, 0
    %v8331 = vsel %vm6925, %v6891, 0
    %v8334 = vsel %vm6925, %v6892, 0
    %8336 = vmatprep.subr.mxu0 0.0
    %8337 = vmatpush1.msra.mxu0 %v8121
    %8338 = vmatprep.subr.mxu0 0.0
    %8339 = vmatpush1.msra.mxu0 %v8123
    %8340 = vmatprep.subr.mxu0 0.0
    %8341 = vmatpush1.msra.mxu0 %v8125
    %8342 = vmatprep.subr.mxu0 0.0
    %8343 = vmatpush1.msra.mxu0 %v8127
    %8344 = vmatprep.subr.mxu0 0.0
    %8345 = vmatpush1.msra.mxu0 %v8129
    %8346 = vmatprep.subr.mxu0 0.0
    %8347 = vmatpush1.msra.mxu0 %v8131
    %8348 = vmatprep.subr.mxu0 0.0
    %8349 = vmatpush1.msra.mxu0 %v8133
    %8350 = vmatprep.subr.mxu0 0.0
    %8351 = vmatpush1.msra.mxu0 %v8135
    %8352 = vmatprep.subr.mxu0 0.0
    %8353 = vmatpush1.msra.mxu0 0.0
    %8354 = vmatprep.subr.mxu0 0.0
    %8355 = vmatpush1.msra.mxu0 0.0
    %8356 = vmatprep.subr.mxu0 0.0
    %8357 = vmatpush1.msra.mxu0 0.0
    %8358 = vmatprep.subr.mxu0 0.0
    %8359 = vmatpush1.msra.mxu0 0.0
    %8360 = vmatprep.subr.mxu0 0.0
    %8361 = vmatpush1.msra.mxu0 0.0
    %8362 = vmatprep.subr.mxu0 0.0
    %8363 = vmatpush1.msra.mxu0 0.0
    %8364 = vmatprep.subr.mxu0 0.0
    %8365 = vmatpush1.msra.mxu0 0.0
    %8366 = vmatprep.subr.mxu0 0.0
    %8367 = vmatpush1.msra.mxu0 0.0
    %8368 = vmatprep.subr.mxu0 0.0
    %8369 = vmatpush1.msra.mxu0 0.0
    %8370 = vmatprep.subr.mxu0 0.0
    %8371 = vmatpush1.msra.mxu0 0.0
    %8372 = vmatprep.subr.mxu0 0.0
    %8373 = vmatpush1.msra.mxu0 0.0
    %8374 = vmatprep.subr.mxu0 0.0
    %8375 = vmatpush1.msra.mxu0 0.0
    %8376 = vmatprep.subr.mxu0 0.0
    %8377 = vmatpush1.msra.mxu0 0.0
    %8378 = vmatprep.subr.mxu0 0.0
    %8379 = vmatpush1.msra.mxu0 0.0
    %8380 = vmatprep.subr.mxu0 0.0
    %8381 = vmatpush1.msra.mxu0 0.0
    %8382 = vmatprep.subr.mxu0 0.0
    %8383 = vmatpush1.msra.mxu0 0.0
    %8384 = vmatprep.subr.mxu0 0.0
    %8385 = vmatpush1.msra.mxu0 0.0
    %8386 = vmatprep.subr.mxu0 0.0
    %8387 = vmatpush1.msra.mxu0 0.0
    %8388 = vmatprep.subr.mxu0 0.0
    %8389 = vmatpush1.msra.mxu0 0.0
    %8390 = vmatprep.subr.mxu0 0.0
    %8391 = vmatpush1.msra.mxu0 0.0
    %8392 = vmatprep.subr.mxu0 0.0
    %8393 = vmatpush1.msra.mxu0 0.0
    %8394 = vmatprep.subr.mxu0 0.0
    %8395 = vmatpush1.msra.mxu0 0.0
    %8396 = vmatprep.subr.mxu0 0.0
    %8397 = vmatpush1.msra.mxu0 0.0
    %8398 = vmatprep.subr.mxu0 0.0
    %8399 = vmatpush1.msra.mxu0 0.0
    %8400 = vmatprep.mubr.f32.mxu0 0.0
    %8401 = vmatmul.mubr.f32.gmra.mrb[0].mxu0 %v8145
    %v8402 = vpop.f32.mrb[0].mxu0
    %v8403 = vadd.f32 0.0, %v8402
    %v8404 = vpop.f32.mrb[0].mxu0
    %8405 = vmatprep.mubr.f32.mxu0 0.0
    %8406 = vmatmul.mubr.f32.gmra.mrb[0].mxu0 %v8148
    %v8407 = vpop.f32.mrb[0].mxu0
    %v8408 = vadd.f32 0.0, %v8407
    %v8409 = vpop.f32.mrb[0].mxu0
    %8410 = vmatprep.mubr.f32.mxu0 0.0
    %8411 = vmatmul.mubr.f32.gmra.mrb[0].mxu0 %v8151
    %v8412 = vpop.f32.mrb[0].mxu0
    %v8413 = vadd.f32 0.0, %v8412
    %v8414 = vpop.f32.mrb[0].mxu0
    %8415 = vmatprep.mubr.f32.mxu0 0.0
    %8416 = vmatmul.mubr.f32.gmra.mrb[0].mxu0 %v8154
    %v8417 = vpop.f32.mrb[0].mxu0
    %v8418 = vadd.f32 0.0, %v8417
    %v8419 = vpop.f32.mrb[0].mxu0
    %8420 = vmatprep.mubr.f32.mxu0 0.0
    %8421 = vmatmul.mubr.f32.gmra.mrb[0].mxu0 %v8157
    %v8422 = vpop.f32.mrb[0].mxu0
    %v8423 = vadd.f32 0.0, %v8422
    %v8424 = vpop.f32.mrb[0].mxu0
    %8425 = vmatprep.mubr.f32.mxu0 0.0
    %8426 = vmatmul.mubr.f32.gmra.mrb[0].mxu0 %v8160
    %v8427 = vpop.f32.mrb[0].mxu0
    %v8428 = vadd.f32 0.0, %v8427
    %v8429 = vpop.f32.mrb[0].mxu0
    %8430 = vmatprep.mubr.f32.mxu0 0.0
    %8431 = vmatmul.mubr.f32.gmra.mrb[0].mxu0 %v8163
    %v8432 = vpop.f32.mrb[0].mxu0
    %v8433 = vadd.f32 0.0, %v8432
    %v8434 = vpop.f32.mrb[0].mxu0
    %8435 = vmatprep.mubr.f32.mxu0 0.0
    %8436 = vmatmul.mubr.f32.gmra.mrb[0].mxu0 %v8166
    %v8437 = vpop.f32.mrb[0].mxu0
    %v8438 = vadd.f32 0.0, %v8437
    %v8439 = vpop.f32.mrb[0].mxu0
    %8440 = vmatprep.mubr.f32.mxu0 0.0
    %8441 = vmatmul.mubr.f32.gmra.mrb[0].mxu0 %v8169
    %v8442 = vpop.f32.mrb[0].mxu0
    %v8443 = vadd.f32 0.0, %v8442
    %v8444 = vpop.f32.mrb[0].mxu0
    %8445 = vmatprep.mubr.f32.mxu0 0.0
    %8446 = vmatmul.mubr.f32.gmra.mrb[0].mxu0 %v8172
    %v8447 = vpop.f32.mrb[0].mxu0
    %v8448 = vadd.f32 0.0, %v8447
    %v8449 = vpop.f32.mrb[0].mxu0
    %8450 = vmatprep.mubr.f32.mxu0 0.0
    %8451 = vmatmul.mubr.f32.gmra.mrb[0].mxu0 %v8175
    %v8452 = vpop.f32.mrb[0].mxu0
    %v8453 = vadd.f32 0.0, %v8452
    %v8454 = vpop.f32.mrb[0].mxu0
    %8455 = vmatprep.mubr.f32.mxu0 0.0
    %8456 = vmatmul.mubr.f32.gmra.mrb[0].mxu0 %v8178
    %v8457 = vpop.f32.mrb[0].mxu0
    %v8458 = vadd.f32 0.0, %v8457
    %v8459 = vpop.f32.mrb[0].mxu0
    %8460 = vmatprep.mubr.f32.mxu0 0.0
    %8461 = vmatmul.mubr.f32.gmra.mrb[0].mxu0 %v8181
    %v8462 = vpop.f32.mrb[0].mxu0
    %v8463 = vadd.f32 0.0, %v8462
    %v8464 = vpop.f32.mrb[0].mxu0
    %8465 = vmatprep.mubr.f32.mxu0 0.0
    %8466 = vmatmul.mubr.f32.gmra.mrb[0].mxu0 %v8184
    %v8467 = vpop.f32.mrb[0].mxu0
    %v8468 = vadd.f32 0.0, %v8467
    %v8469 = vpop.f32.mrb[0].mxu0
    %8470 = vmatprep.mubr.f32.mxu0 0.0
    %8471 = vmatmul.mubr.f32.gmra.mrb[0].mxu0 %v8187
    %v8472 = vpop.f32.mrb[0].mxu0
    %v8473 = vadd.f32 0.0, %v8472
    %v8474 = vpop.f32.mrb[0].mxu0
    %8475 = vmatprep.mubr.f32.mxu0 0.0
    %8476 = vmatmul.mubr.f32.gmra.mrb[0].mxu0 %v8190
    %v8477 = vpop.f32.mrb[0].mxu0
    %v8478 = vadd.f32 0.0, %v8477
    %v8479 = vpop.f32.mrb[0].mxu0
    %8480 = vmatprep.mubr.f32.mxu0 0.0
    %8481 = vmatmul.mubr.f32.gmra.mrb[0].mxu0 %v8193
    %v8482 = vpop.f32.mrb[0].mxu0
    %v8483 = vadd.f32 0.0, %v8482
    %v8484 = vpop.f32.mrb[0].mxu0
    %8485 = vmatprep.mubr.f32.mxu0 0.0
    %8486 = vmatmul.mubr.f32.gmra.mrb[0].mxu0 %v8196
    %v8487 = vpop.f32.mrb[0].mxu0
    %v8488 = vadd.f32 0.0, %v8487
    %v8489 = vpop.f32.mrb[0].mxu0
    %8490 = vmatprep.mubr.f32.mxu0 0.0
    %8491 = vmatmul.mubr.f32.gmra.mrb[0].mxu0 %v8199
    %v8492 = vpop.f32.mrb[0].mxu0
    %v8493 = vadd.f32 0.0, %v8492
    %v8494 = vpop.f32.mrb[0].mxu0
    %8495 = vmatprep.mubr.f32.mxu0 0.0
    %8496 = vmatmul.mubr.f32.gmra.mrb[0].mxu0 %v8202
    %v8497 = vpop.f32.mrb[0].mxu0
    %v8498 = vadd.f32 0.0, %v8497
    %v8499 = vpop.f32.mrb[0].mxu0
    %8500 = vmatprep.mubr.f32.mxu0 0.0
    %8501 = vmatmul.mubr.f32.gmra.mrb[0].mxu0 %v8205
    %v8502 = vpop.f32.mrb[0].mxu0
    %v8503 = vadd.f32 0.0, %v8502
    %v8504 = vpop.f32.mrb[0].mxu0
    %8505 = vmatprep.mubr.f32.mxu0 0.0
    %8506 = vmatmul.mubr.f32.gmra.mrb[0].mxu0 %v8208
    %v8507 = vpop.f32.mrb[0].mxu0
    %v8508 = vadd.f32 0.0, %v8507
    %v8509 = vpop.f32.mrb[0].mxu0
    %8510 = vmatprep.mubr.f32.mxu0 0.0
    %8511 = vmatmul.mubr.f32.gmra.mrb[0].mxu0 %v8211
    %v8512 = vpop.f32.mrb[0].mxu0
    %v8513 = vadd.f32 0.0, %v8512
    %v8514 = vpop.f32.mrb[0].mxu0
    %8515 = vmatprep.mubr.f32.mxu0 0.0
    %8516 = vmatmul.mubr.f32.gmra.mrb[0].mxu0 %v8214
    %v8517 = vpop.f32.mrb[0].mxu0
    %v8518 = vadd.f32 0.0, %v8517
    %v8519 = vpop.f32.mrb[0].mxu0
    %8520 = vmatprep.mubr.f32.mxu0 0.0
    %8521 = vmatmul.mubr.f32.gmra.mrb[0].mxu0 %v8217
    %v8522 = vpop.f32.mrb[0].mxu0
    %v8523 = vadd.f32 0.0, %v8522
    %v8524 = vpop.f32.mrb[0].mxu0
    %8525 = vmatprep.mubr.f32.mxu0 0.0
    %8526 = vmatmul.mubr.f32.gmra.mrb[0].mxu0 %v8220
    %v8527 = vpop.f32.mrb[0].mxu0
    %v8528 = vadd.f32 0.0, %v8527
    %v8529 = vpop.f32.mrb[0].mxu0
    %8530 = vmatprep.mubr.f32.mxu0 0.0
    %8531 = vmatmul.mubr.f32.gmra.mrb[0].mxu0 %v8223
    %v8532 = vpop.f32.mrb[0].mxu0
    %v8533 = vadd.f32 0.0, %v8532
    %v8534 = vpop.f32.mrb[0].mxu0
    %8535 = vmatprep.mubr.f32.mxu0 0.0
    %8536 = vmatmul.mubr.f32.gmra.mrb[0].mxu0 %v8226
    %v8537 = vpop.f32.mrb[0].mxu0
    %v8538 = vadd.f32 0.0, %v8537
    %v8539 = vpop.f32.mrb[0].mxu0
    %8540 = vmatprep.mubr.f32.mxu0 0.0
    %8541 = vmatmul.mubr.f32.gmra.mrb[0].mxu0 %v8229
    %v8542 = vpop.f32.mrb[0].mxu0
    %v8543 = vadd.f32 0.0, %v8542
    %v8544 = vpop.f32.mrb[0].mxu0
    %8545 = vmatprep.mubr.f32.mxu0 0.0
    %8546 = vmatmul.mubr.f32.gmra.mrb[0].mxu0 %v8232
    %v8547 = vpop.f32.mrb[0].mxu0
    %v8548 = vadd.f32 0.0, %v8547
    %v8549 = vpop.f32.mrb[0].mxu0
    %8550 = vmatprep.mubr.f32.mxu0 0.0
    %8551 = vmatmul.mubr.f32.gmra.mrb[0].mxu0 %v8235
    %v8552 = vpop.f32.mrb[0].mxu0
    %v8553 = vadd.f32 0.0, %v8552
    %v8554 = vpop.f32.mrb[0].mxu0
    %8555 = vmatprep.mubr.f32.mxu0 0.0
    %8556 = vmatmul.mubr.f32.gmra.mrb[0].mxu0 %v8238
    %v8557 = vpop.f32.mrb[0].mxu0
    %v8558 = vadd.f32 0.0, %v8557
    %v8559 = vpop.f32.mrb[0].mxu0
    %8560 = vmatprep.mubr.f32.mxu0 0.0
    %8561 = vmatmul.mubr.f32.gmra.mrb[0].mxu0 %v8241
    %v8562 = vpop.f32.mrb[0].mxu0
    %v8563 = vadd.f32 0.0, %v8562
    %v8564 = vpop.f32.mrb[0].mxu0
    %8565 = vmatprep.mubr.f32.mxu0 0.0
    %8566 = vmatmul.mubr.f32.gmra.mrb[0].mxu0 %v8244
    %v8567 = vpop.f32.mrb[0].mxu0
    %v8568 = vadd.f32 0.0, %v8567
    %v8569 = vpop.f32.mrb[0].mxu0
    %8570 = vmatprep.mubr.f32.mxu0 0.0
    %8571 = vmatmul.mubr.f32.gmra.mrb[0].mxu0 %v8247
    %v8572 = vpop.f32.mrb[0].mxu0
    %v8573 = vadd.f32 0.0, %v8572
    %v8574 = vpop.f32.mrb[0].mxu0
    %8575 = vmatprep.mubr.f32.mxu0 0.0
    %8576 = vmatmul.mubr.f32.gmra.mrb[0].mxu0 %v8250
    %v8577 = vpop.f32.mrb[0].mxu0
    %v8578 = vadd.f32 0.0, %v8577
    %v8579 = vpop.f32.mrb[0].mxu0
    %8580 = vmatprep.mubr.f32.mxu0 0.0
    %8581 = vmatmul.mubr.f32.gmra.mrb[0].mxu0 %v8253
    %v8582 = vpop.f32.mrb[0].mxu0
    %v8583 = vadd.f32 0.0, %v8582
    %v8584 = vpop.f32.mrb[0].mxu0
    %8585 = vmatprep.mubr.f32.mxu0 0.0
    %8586 = vmatmul.mubr.f32.gmra.mrb[0].mxu0 %v8256
    %v8587 = vpop.f32.mrb[0].mxu0
    %v8588 = vadd.f32 0.0, %v8587
    %v8589 = vpop.f32.mrb[0].mxu0
    %8590 = vmatprep.mubr.f32.mxu0 0.0
    %8591 = vmatmul.mubr.f32.gmra.mrb[0].mxu0 %v8259
    %v8592 = vpop.f32.mrb[0].mxu0
    %v8593 = vadd.f32 0.0, %v8592
    %v8594 = vpop.f32.mrb[0].mxu0
    %8595 = vmatprep.mubr.f32.mxu0 0.0
    %8596 = vmatmul.mubr.f32.gmra.mrb[0].mxu0 %v8262
    %v8597 = vpop.f32.mrb[0].mxu0
    %v8598 = vadd.f32 0.0, %v8597
    %v8599 = vpop.f32.mrb[0].mxu0
    %8600 = vmatprep.mubr.f32.mxu0 0.0
    %8601 = vmatmul.mubr.f32.gmra.mrb[0].mxu0 %v8265
    %v8602 = vpop.f32.mrb[0].mxu0
    %v8603 = vadd.f32 0.0, %v8602
    %v8604 = vpop.f32.mrb[0].mxu0
    %8605 = vmatprep.mubr.f32.mxu0 0.0
    %8606 = vmatmul.mubr.f32.gmra.mrb[0].mxu0 %v8268
    %v8607 = vpop.f32.mrb[0].mxu0
    %v8608 = vadd.f32 0.0, %v8607
    %v8609 = vpop.f32.mrb[0].mxu0
    %8610 = vmatprep.mubr.f32.mxu0 0.0
    %8611 = vmatmul.mubr.f32.gmra.mrb[0].mxu0 %v8271
    %v8612 = vpop.f32.mrb[0].mxu0
    %v8613 = vadd.f32 0.0, %v8612
    %v8614 = vpop.f32.mrb[0].mxu0
    %8615 = vmatprep.mubr.f32.mxu0 0.0
    %8616 = vmatmul.mubr.f32.gmra.mrb[0].mxu0 %v8274
    %v8617 = vpop.f32.mrb[0].mxu0
    %v8618 = vadd.f32 0.0, %v8617
    %v8619 = vpop.f32.mrb[0].mxu0
    %8620 = vmatprep.mubr.f32.mxu0 0.0
    %8621 = vmatmul.mubr.f32.gmra.mrb[0].mxu0 %v8277
    %v8622 = vpop.f32.mrb[0].mxu0
    %v8623 = vadd.f32 0.0, %v8622
    %v8624 = vpop.f32.mrb[0].mxu0
    %8625 = vmatprep.mubr.f32.mxu0 0.0
    %8626 = vmatmul.mubr.f32.gmra.mrb[0].mxu0 %v8280
    %v8627 = vpop.f32.mrb[0].mxu0
    %v8628 = vadd.f32 0.0, %v8627
    %v8629 = vpop.f32.mrb[0].mxu0
    %8630 = vmatprep.mubr.f32.mxu0 0.0
    %8631 = vmatmul.mubr.f32.gmra.mrb[0].mxu0 %v8283
    %v8632 = vpop.f32.mrb[0].mxu0
    %v8633 = vadd.f32 0.0, %v8632
    %v8634 = vpop.f32.mrb[0].mxu0
    %8635 = vmatprep.mubr.f32.mxu0 0.0
    %8636 = vmatmul.mubr.f32.gmra.mrb[0].mxu0 %v8286
    %v8637 = vpop.f32.mrb[0].mxu0
    %v8638 = vadd.f32 0.0, %v8637
    %v8639 = vpop.f32.mrb[0].mxu0
    %8640 = vmatprep.mubr.f32.mxu0 0.0
    %8641 = vmatmul.mubr.f32.gmra.mrb[0].mxu0 %v8289
    %v8642 = vpop.f32.mrb[0].mxu0
    %v8643 = vadd.f32 0.0, %v8642
    %v8644 = vpop.f32.mrb[0].mxu0
    %8645 = vmatprep.mubr.f32.mxu0 0.0
    %8646 = vmatmul.mubr.f32.gmra.mrb[0].mxu0 %v8292
    %v8647 = vpop.f32.mrb[0].mxu0
    %v8648 = vadd.f32 0.0, %v8647
    %v8649 = vpop.f32.mrb[0].mxu0
    %8650 = vmatprep.mubr.f32.mxu0 0.0
    %8651 = vmatmul.mubr.f32.gmra.mrb[0].mxu0 %v8295
    %v8652 = vpop.f32.mrb[0].mxu0
    %v8653 = vadd.f32 0.0, %v8652
    %v8654 = vpop.f32.mrb[0].mxu0
    %8655 = vmatprep.mubr.f32.mxu0 0.0
    %8656 = vmatmul.mubr.f32.gmra.mrb[0].mxu0 %v8298
    %v8657 = vpop.f32.mrb[0].mxu0
    %v8658 = vadd.f32 0.0, %v8657
    %v8659 = vpop.f32.mrb[0].mxu0
    %8660 = vmatprep.mubr.f32.mxu0 0.0
    %8661 = vmatmul.mubr.f32.gmra.mrb[0].mxu0 %v8301
    %v8662 = vpop.f32.mrb[0].mxu0
    %v8663 = vadd.f32 0.0, %v8662
    %v8664 = vpop.f32.mrb[0].mxu0
    %8665 = vmatprep.mubr.f32.mxu0 0.0
    %8666 = vmatmul.mubr.f32.gmra.mrb[0].mxu0 %v8304
    %v8667 = vpop.f32.mrb[0].mxu0
    %v8668 = vadd.f32 0.0, %v8667
    %v8669 = vpop.f32.mrb[0].mxu0
    %8670 = vmatprep.mubr.f32.mxu0 0.0
    %8671 = vmatmul.mubr.f32.gmra.mrb[0].mxu0 %v8307
    %v8672 = vpop.f32.mrb[0].mxu0
    %v8673 = vadd.f32 0.0, %v8672
    %v8674 = vpop.f32.mrb[0].mxu0
    %8675 = vmatprep.mubr.f32.mxu0 0.0
    %8676 = vmatmul.mubr.f32.gmra.mrb[0].mxu0 %v8310
    %v8677 = vpop.f32.mrb[0].mxu0
    %v8678 = vadd.f32 0.0, %v8677
    %v8679 = vpop.f32.mrb[0].mxu0
    %8680 = vmatprep.mubr.f32.mxu0 0.0
    %8681 = vmatmul.mubr.f32.gmra.mrb[0].mxu0 %v8313
    %v8682 = vpop.f32.mrb[0].mxu0
    %v8683 = vadd.f32 0.0, %v8682
    %v8684 = vpop.f32.mrb[0].mxu0
    %8685 = vmatprep.mubr.f32.mxu0 0.0
    %8686 = vmatmul.mubr.f32.gmra.mrb[0].mxu0 %v8316
    %v8687 = vpop.f32.mrb[0].mxu0
    %v8688 = vadd.f32 0.0, %v8687
    %v8689 = vpop.f32.mrb[0].mxu0
    %8690 = vmatprep.mubr.f32.mxu0 0.0
    %8691 = vmatmul.mubr.f32.gmra.mrb[0].mxu0 %v8319
    %v8692 = vpop.f32.mrb[0].mxu0
    %v8693 = vadd.f32 0.0, %v8692
    %v8694 = vpop.f32.mrb[0].mxu0
    %8695 = vmatprep.mubr.f32.mxu0 0.0
    %8696 = vmatmul.mubr.f32.gmra.mrb[0].mxu0 %v8322
    %v8697 = vpop.f32.mrb[0].mxu0
    %v8698 = vadd.f32 0.0, %v8697
    %v8699 = vpop.f32.mrb[0].mxu0
    %8700 = vmatprep.mubr.f32.mxu0 0.0
    %8701 = vmatmul.mubr.f32.gmra.mrb[0].mxu0 %v8325
    %v8702 = vpop.f32.mrb[0].mxu0
    %v8703 = vadd.f32 0.0, %v8702
    %v8704 = vpop.f32.mrb[0].mxu0
    %8705 = vmatprep.mubr.f32.mxu0 0.0
    %8706 = vmatmul.mubr.f32.gmra.mrb[0].mxu0 %v8328
    %v8707 = vpop.f32.mrb[0].mxu0
    %v8708 = vadd.f32 0.0, %v8707
    %v8709 = vpop.f32.mrb[0].mxu0
    %8710 = vmatprep.mubr.f32.mxu0 0.0
    %8711 = vmatmul.mubr.f32.gmra.mrb[0].mxu0 %v8331
    %v8712 = vpop.f32.mrb[0].mxu0
    %v8713 = vadd.f32 0.0, %v8712
    %v8714 = vpop.f32.mrb[0].mxu0
    %8715 = vmatprep.mubr.f32.mxu0 0.0
    %8716 = vmatmul.mubr.f32.gmra.mrb[0].mxu0 %v8334
    %v8717 = vpop.f32.mrb[0].mxu0
    %v8718 = vadd.f32 0.0, %v8717
    %v8719 = vpop.f32.mrb[0].mxu0
    %8720 = vdwg.mxu0
    %v8721 = vadd.f32 %v7794, %v8403
    %v8722 = vadd.f32 %v7799, %v8408
    %v8723 = vadd.f32 %v7804, %v8413
    %v8724 = vadd.f32 %v7809, %v8418
    %v8725 = vadd.f32 %v7814, %v8423
    %v8726 = vadd.f32 %v7819, %v8428
    %v8727 = vadd.f32 %v7824, %v8433
    %v8728 = vadd.f32 %v7829, %v8438
    %v8729 = vadd.f32 %v7834, %v8443
    %v8730 = vadd.f32 %v7839, %v8448
    %v8731 = vadd.f32 %v7844, %v8453
    %v8732 = vadd.f32 %v7849, %v8458
    %v8733 = vadd.f32 %v7854, %v8463
    %v8734 = vadd.f32 %v7859, %v8468
    %v8735 = vadd.f32 %v7864, %v8473
    %v8736 = vadd.f32 %v7869, %v8478
    %v8737 = vadd.f32 %v7874, %v8483
    %v8738 = vadd.f32 %v7879, %v8488
    %v8739 = vadd.f32 %v7884, %v8493
    %v8740 = vadd.f32 %v7889, %v8498
    %v8741 = vadd.f32 %v7894, %v8503
    %v8742 = vadd.f32 %v7899, %v8508
    %v8743 = vadd.f32 %v7904, %v8513
    %v8744 = vadd.f32 %v7909, %v8518
    %v8745 = vadd.f32 %v7914, %v8523
    %v8746 = vadd.f32 %v7919, %v8528
    %v8747 = vadd.f32 %v7924, %v8533
    %v8748 = vadd.f32 %v7929, %v8538
    %v8749 = vadd.f32 %v7934, %v8543
    %v8750 = vadd.f32 %v7939, %v8548
    %v8751 = vadd.f32 %v7944, %v8553
    %v8752 = vadd.f32 %v7949, %v8558
    %v8753 = vadd.f32 %v7954, %v8563
    %v8754 = vadd.f32 %v7959, %v8568
    %v8755 = vadd.f32 %v7964, %v8573
    %v8756 = vadd.f32 %v7969, %v8578
    %v8757 = vadd.f32 %v7974, %v8583
    %v8758 = vadd.f32 %v7979, %v8588
    %v8759 = vadd.f32 %v7984, %v8593
    %v8760 = vadd.f32 %v7989, %v8598
    %v8761 = vadd.f32 %v7994, %v8603
    %v8762 = vadd.f32 %v7999, %v8608
    %v8763 = vadd.f32 %v8004, %v8613
    %v8764 = vadd.f32 %v8009, %v8618
    %v8765 = vadd.f32 %v8014, %v8623
    %v8766 = vadd.f32 %v8019, %v8628
    %v8767 = vadd.f32 %v8024, %v8633
    %v8768 = vadd.f32 %v8029, %v8638
    %v8769 = vadd.f32 %v8034, %v8643
    %v8770 = vadd.f32 %v8039, %v8648
    %v8771 = vadd.f32 %v8044, %v8653
    %v8772 = vadd.f32 %v8049, %v8658
    %v8773 = vadd.f32 %v8054, %v8663
    %v8774 = vadd.f32 %v8059, %v8668
    %v8775 = vadd.f32 %v8064, %v8673
    %v8776 = vadd.f32 %v8069, %v8678
    %v8777 = vadd.f32 %v8074, %v8683
    %v8778 = vadd.f32 %v8079, %v8688
    %v8779 = vadd.f32 %v8084, %v8693
    %v8780 = vadd.f32 %v8089, %v8698
    %v8781 = vadd.f32 %v8094, %v8703
    %v8782 = vadd.f32 %v8099, %v8708
    %v8783 = vadd.f32 %v8104, %v8713
    %v8784 = vadd.f32 %v8109, %v8718
    %v8785 = vlaneseq
    %v8786 = vshrl.u32 %v8785, 7
    %v8787 = vsub.s32 0, %v8786
    %v8788 = vrot.slane %v6508, %v8787
    %v8789 = vadd.f32 %v8721, %v8788
    %v8790 = vadd.f32 %v8722, %v8788
    %v8791 = vadd.f32 %v8723, %v8788
    %v8792 = vadd.f32 %v8724, %v8788
    %v8793 = vadd.f32 %v8725, %v8788
    %v8794 = vadd.f32 %v8726, %v8788
    %v8795 = vadd.f32 %v8727, %v8788
    %v8796 = vadd.f32 %v8728, %v8788
    %v8797 = vadd.f32 %v8729, %v8788
    %v8798 = vadd.f32 %v8730, %v8788
    %v8799 = vadd.f32 %v8731, %v8788
    %v8800 = vadd.f32 %v8732, %v8788
    %v8801 = vadd.f32 %v8733, %v8788
    %v8802 = vadd.f32 %v8734, %v8788
    %v8803 = vadd.f32 %v8735, %v8788
    %v8804 = vadd.f32 %v8736, %v8788
    %v8805 = vadd.f32 %v8737, %v8788
    %v8806 = vadd.f32 %v8738, %v8788
    %v8807 = vadd.f32 %v8739, %v8788
    %v8808 = vadd.f32 %v8740, %v8788
    %v8809 = vadd.f32 %v8741, %v8788
    %v8810 = vadd.f32 %v8742, %v8788
    %v8811 = vadd.f32 %v8743, %v8788
    %v8812 = vadd.f32 %v8744, %v8788
    %v8813 = vadd.f32 %v8745, %v8788
    %v8814 = vadd.f32 %v8746, %v8788
    %v8815 = vadd.f32 %v8747, %v8788
    %v8816 = vadd.f32 %v8748, %v8788
    %v8817 = vadd.f32 %v8749, %v8788
    %v8818 = vadd.f32 %v8750, %v8788
    %v8819 = vadd.f32 %v8751, %v8788
    %v8820 = vadd.f32 %v8752, %v8788
    %v8821 = vadd.f32 %v8753, %v8788
    %v8822 = vadd.f32 %v8754, %v8788
    %v8823 = vadd.f32 %v8755, %v8788
    %v8824 = vadd.f32 %v8756, %v8788
    %v8825 = vadd.f32 %v8757, %v8788
    %v8826 = vadd.f32 %v8758, %v8788
    %v8827 = vadd.f32 %v8759, %v8788
    %v8828 = vadd.f32 %v8760, %v8788
    %v8829 = vadd.f32 %v8761, %v8788
    %v8830 = vadd.f32 %v8762, %v8788
    %v8831 = vadd.f32 %v8763, %v8788
    %v8832 = vadd.f32 %v8764, %v8788
    %v8833 = vadd.f32 %v8765, %v8788
    %v8834 = vadd.f32 %v8766, %v8788
    %v8835 = vadd.f32 %v8767, %v8788
    %v8836 = vadd.f32 %v8768, %v8788
    %v8837 = vadd.f32 %v8769, %v8788
    %v8838 = vadd.f32 %v8770, %v8788
    %v8839 = vadd.f32 %v8771, %v8788
    %v8840 = vadd.f32 %v8772, %v8788
    %v8841 = vadd.f32 %v8773, %v8788
    %v8842 = vadd.f32 %v8774, %v8788
    %v8843 = vadd.f32 %v8775, %v8788
    %v8844 = vadd.f32 %v8776, %v8788
    %v8845 = vadd.f32 %v8777, %v8788
    %v8846 = vadd.f32 %v8778, %v8788
    %v8847 = vadd.f32 %v8779, %v8788
    %v8848 = vadd.f32 %v8780, %v8788
    %v8849 = vadd.f32 %v8781, %v8788
    %v8850 = vadd.f32 %v8782, %v8788
    %v8851 = vadd.f32 %v8783, %v8788
    %v8852 = vadd.f32 %v8784, %v8788
    %v8853 = vmax.f32 %v8789, 0.0
    %v8854 = vmax.f32 %v8790, 0.0
    %v8855 = vmax.f32 %v8791, 0.0
    %v8856 = vmax.f32 %v8792, 0.0
    %v8857 = vmax.f32 %v8793, 0.0
    %v8858 = vmax.f32 %v8794, 0.0
    %v8859 = vmax.f32 %v8795, 0.0
    %v8860 = vmax.f32 %v8796, 0.0
    %v8861 = vmax.f32 %v8797, 0.0
    %v8862 = vmax.f32 %v8798, 0.0
    %v8863 = vmax.f32 %v8799, 0.0
    %v8864 = vmax.f32 %v8800, 0.0
    %v8865 = vmax.f32 %v8801, 0.0
    %v8866 = vmax.f32 %v8802, 0.0
    %v8867 = vmax.f32 %v8803, 0.0
    %v8868 = vmax.f32 %v8804, 0.0
    %v8869 = vmax.f32 %v8805, 0.0
    %v8870 = vmax.f32 %v8806, 0.0
    %v8871 = vmax.f32 %v8807, 0.0
    %v8872 = vmax.f32 %v8808, 0.0
    %v8873 = vmax.f32 %v8809, 0.0
    %v8874 = vmax.f32 %v8810, 0.0
    %v8875 = vmax.f32 %v8811, 0.0
    %v8876 = vmax.f32 %v8812, 0.0
    %v8877 = vmax.f32 %v8813, 0.0
    %v8878 = vmax.f32 %v8814, 0.0
    %v8879 = vmax.f32 %v8815, 0.0
    %v8880 = vmax.f32 %v8816, 0.0
    %v8881 = vmax.f32 %v8817, 0.0
    %v8882 = vmax.f32 %v8818, 0.0
    %v8883 = vmax.f32 %v8819, 0.0
    %v8884 = vmax.f32 %v8820, 0.0
    %v8885 = vmax.f32 %v8821, 0.0
    %v8886 = vmax.f32 %v8822, 0.0
    %v8887 = vmax.f32 %v8823, 0.0
    %v8888 = vmax.f32 %v8824, 0.0
    %v8889 = vmax.f32 %v8825, 0.0
    %v8890 = vmax.f32 %v8826, 0.0
    %v8891 = vmax.f32 %v8827, 0.0
    %v8892 = vmax.f32 %v8828, 0.0
    %v8893 = vmax.f32 %v8829, 0.0
    %v8894 = vmax.f32 %v8830, 0.0
    %v8895 = vmax.f32 %v8831, 0.0
    %v8896 = vmax.f32 %v8832, 0.0
    %v8897 = vmax.f32 %v8833, 0.0
    %v8898 = vmax.f32 %v8834, 0.0
    %v8899 = vmax.f32 %v8835, 0.0
    %v8900 = vmax.f32 %v8836, 0.0
    %v8901 = vmax.f32 %v8837, 0.0
    %v8902 = vmax.f32 %v8838, 0.0
    %v8903 = vmax.f32 %v8839, 0.0
    %v8904 = vmax.f32 %v8840, 0.0
    %v8905 = vmax.f32 %v8841, 0.0
    %v8906 = vmax.f32 %v8842, 0.0
    %v8907 = vmax.f32 %v8843, 0.0
    %v8908 = vmax.f32 %v8844, 0.0
    %v8909 = vmax.f32 %v8845, 0.0
    %v8910 = vmax.f32 %v8846, 0.0
    %v8911 = vmax.f32 %v8847, 0.0
    %v8912 = vmax.f32 %v8848, 0.0
    %v8913 = vmax.f32 %v8849, 0.0
    %v8914 = vmax.f32 %v8850, 0.0
    %v8915 = vmax.f32 %v8851, 0.0
    %v8916 = vmax.f32 %v8852, 0.0
    %v8917 = vld [vmem:[#allocation2 + $0x258] sm:$0xff]
    %v8918 = vld [vmem:[#allocation2 + $0x260] sm:$0xff]
    %v8919 = vld [vmem:[#allocation2 + $0x268] sm:$0xff]
    %v8920 = vld [vmem:[#allocation2 + $0x270] sm:$0xff]
    %v8921 = vld [vmem:[#allocation2 + $0x278] sm:$0xff]
    %v8922 = vld [vmem:[#allocation2 + $0x280] sm:$0xff]
    %v8923 = vld [vmem:[#allocation2 + $0x288] sm:$0xff]
    %v8924 = vld [vmem:[#allocation2 + $0x290] sm:$0xff]
    %8949 = vrot.lane.b32.xlu0 %v8917, 64
    %v8950 = vpop.permute.xlu0 %8949
    %8951 = vrot.lane.b32.xlu0 %v8918, 64
    %v8952 = vpop.permute.xlu0 %8951
    %8953 = vrot.lane.b32.xlu0 %v8919, 64
    %v8954 = vpop.permute.xlu0 %8953
    %8955 = vrot.lane.b32.xlu0 %v8920, 64
    %v8956 = vpop.permute.xlu0 %8955
    %8957 = vrot.lane.b32.xlu0 %v8921, 64
    %v8958 = vpop.permute.xlu0 %8957
    %8959 = vrot.lane.b32.xlu0 %v8922, 64
    %v8960 = vpop.permute.xlu0 %8959
    %8961 = vrot.lane.b32.xlu0 %v8923, 64
    %v8962 = vpop.permute.xlu0 %8961
    %8963 = vrot.lane.b32.xlu0 %v8924, 64
    %v8964 = vpop.permute.xlu0 %8963
    %8965 = vrot.lane.b32.xlu0 %v4740, 64
    %v8966 = vpop.permute.xlu0 %8965
    %8967 = vrot.lane.b32.xlu0 %v4741, 64
    %v8968 = vpop.permute.xlu0 %8967
    %8969 = vrot.lane.b32.xlu0 %v4742, 64
    %v8970 = vpop.permute.xlu0 %8969
    %8971 = vrot.lane.b32.xlu0 %v4743, 64
    %v8972 = vpop.permute.xlu0 %8971
    %8973 = vrot.lane.b32.xlu0 %v4744, 64
    %v8974 = vpop.permute.xlu0 %8973
    %8975 = vrot.lane.b32.xlu0 %v4745, 64
    %v8976 = vpop.permute.xlu0 %8975
    %8977 = vrot.lane.b32.xlu0 %v4746, 64
    %v8978 = vpop.permute.xlu0 %8977
    %8979 = vrot.lane.b32.xlu0 %v4747, 64
    %v8980 = vpop.permute.xlu0 %8979
    %8981 = vrot.lane.b32.xlu0 %v4748, 64
    %v8982 = vpop.permute.xlu0 %8981
    %8983 = vrot.lane.b32.xlu0 %v4749, 64
    %v8984 = vpop.permute.xlu0 %8983
    %8985 = vrot.lane.b32.xlu0 %v4750, 64
    %v8986 = vpop.permute.xlu0 %8985
    %8987 = vrot.lane.b32.xlu0 %v4751, 64
    %v8988 = vpop.permute.xlu0 %8987
    %8989 = vrot.lane.b32.xlu0 %v4752, 64
    %v8990 = vpop.permute.xlu0 %8989
    %8991 = vrot.lane.b32.xlu0 %v4753, 64
    %v8992 = vpop.permute.xlu0 %8991
    %8993 = vrot.lane.b32.xlu0 %v4754, 64
    %v8994 = vpop.permute.xlu0 %8993
    %8995 = vrot.lane.b32.xlu0 %v4755, 64
    %v8996 = vpop.permute.xlu0 %8995
    %9021 = vrot.lane.b32.xlu0 %v8917, 96
    %v9022 = vpop.permute.xlu0 %9021
    %9023 = vrot.lane.b32.xlu0 %v8918, 96
    %v9024 = vpop.permute.xlu0 %9023
    %9025 = vrot.lane.b32.xlu0 %v8919, 96
    %v9026 = vpop.permute.xlu0 %9025
    %9027 = vrot.lane.b32.xlu0 %v8920, 96
    %v9028 = vpop.permute.xlu0 %9027
    %9029 = vrot.lane.b32.xlu0 %v8921, 96
    %v9030 = vpop.permute.xlu0 %9029
    %9031 = vrot.lane.b32.xlu0 %v8922, 96
    %v9032 = vpop.permute.xlu0 %9031
    %9033 = vrot.lane.b32.xlu0 %v8923, 96
    %v9034 = vpop.permute.xlu0 %9033
    %9035 = vrot.lane.b32.xlu0 %v8924, 96
    %v9036 = vpop.permute.xlu0 %9035
    %9037 = vrot.lane.b32.xlu0 %v4740, 96
    %v9038 = vpop.permute.xlu0 %9037
    %9039 = vrot.lane.b32.xlu0 %v4741, 96
    %v9040 = vpop.permute.xlu0 %9039
    %9041 = vrot.lane.b32.xlu0 %v4742, 96
    %v9042 = vpop.permute.xlu0 %9041
    %9043 = vrot.lane.b32.xlu0 %v4743, 96
    %v9044 = vpop.permute.xlu0 %9043
    %9045 = vrot.lane.b32.xlu0 %v4744, 96
    %v9046 = vpop.permute.xlu0 %9045
    %9047 = vrot.lane.b32.xlu0 %v4745, 96
    %v9048 = vpop.permute.xlu0 %9047
    %9049 = vrot.lane.b32.xlu0 %v4746, 96
    %v9050 = vpop.permute.xlu0 %9049
    %9051 = vrot.lane.b32.xlu0 %v4747, 96
    %v9052 = vpop.permute.xlu0 %9051
    %9053 = vrot.lane.b32.xlu0 %v4748, 96
    %v9054 = vpop.permute.xlu0 %9053
    %9055 = vrot.lane.b32.xlu0 %v4749, 96
    %v9056 = vpop.permute.xlu0 %9055
    %9057 = vrot.lane.b32.xlu0 %v4750, 96
    %v9058 = vpop.permute.xlu0 %9057
    %9059 = vrot.lane.b32.xlu0 %v4751, 96
    %v9060 = vpop.permute.xlu0 %9059
    %9061 = vrot.lane.b32.xlu0 %v4752, 96
    %v9062 = vpop.permute.xlu0 %9061
    %9063 = vrot.lane.b32.xlu0 %v4753, 96
    %v9064 = vpop.permute.xlu0 %9063
    %9065 = vrot.lane.b32.xlu0 %v4754, 96
    %v9066 = vpop.permute.xlu0 %9065
    %9067 = vrot.lane.b32.xlu0 %v4755, 96
    %v9068 = vpop.permute.xlu0 %9067
    %9093 = vrot.lane.b32.xlu0 %v8917, 32
    %v9094 = vpop.permute.xlu0 %9093
    %9095 = vrot.lane.b32.xlu0 %v8918, 32
    %v9096 = vpop.permute.xlu0 %9095
    %9097 = vrot.lane.b32.xlu0 %v8919, 32
    %v9098 = vpop.permute.xlu0 %9097
    %9099 = vrot.lane.b32.xlu0 %v8920, 32
    %v9100 = vpop.permute.xlu0 %9099
    %9101 = vrot.lane.b32.xlu0 %v8921, 32
    %v9102 = vpop.permute.xlu0 %9101
    %9103 = vrot.lane.b32.xlu0 %v8922, 32
    %v9104 = vpop.permute.xlu0 %9103
    %9105 = vrot.lane.b32.xlu0 %v8923, 32
    %v9106 = vpop.permute.xlu0 %9105
    %9107 = vrot.lane.b32.xlu0 %v8924, 32
    %v9108 = vpop.permute.xlu0 %9107
    %9109 = vrot.lane.b32.xlu0 %v4740, 32
    %v9110 = vpop.permute.xlu0 %9109
    %9111 = vrot.lane.b32.xlu0 %v4741, 32
    %v9112 = vpop.permute.xlu0 %9111
    %9113 = vrot.lane.b32.xlu0 %v4742, 32
    %v9114 = vpop.permute.xlu0 %9113
    %9115 = vrot.lane.b32.xlu0 %v4743, 32
    %v9116 = vpop.permute.xlu0 %9115
    %9117 = vrot.lane.b32.xlu0 %v4744, 32
    %v9118 = vpop.permute.xlu0 %9117
    %9119 = vrot.lane.b32.xlu0 %v4745, 32
    %v9120 = vpop.permute.xlu0 %9119
    %9121 = vrot.lane.b32.xlu0 %v4746, 32
    %v9122 = vpop.permute.xlu0 %9121
    %9123 = vrot.lane.b32.xlu0 %v4747, 32
    %v9124 = vpop.permute.xlu0 %9123
    %9125 = vrot.lane.b32.xlu0 %v4748, 32
    %v9126 = vpop.permute.xlu0 %9125
    %9127 = vrot.lane.b32.xlu0 %v4749, 32
    %v9128 = vpop.permute.xlu0 %9127
    %9129 = vrot.lane.b32.xlu0 %v4750, 32
    %v9130 = vpop.permute.xlu0 %9129
    %9131 = vrot.lane.b32.xlu0 %v4751, 32
    %v9132 = vpop.permute.xlu0 %9131
    %9133 = vrot.lane.b32.xlu0 %v4752, 32
    %v9134 = vpop.permute.xlu0 %9133
    %9135 = vrot.lane.b32.xlu0 %v4753, 32
    %v9136 = vpop.permute.xlu0 %9135
    %9137 = vrot.lane.b32.xlu0 %v4754, 32
    %v9138 = vpop.permute.xlu0 %9137
    %9139 = vrot.lane.b32.xlu0 %v4755, 32
    %v9140 = vpop.permute.xlu0 %9139
    %vm9165 = vcmask 261120
    %v9166 = vsel %vm9165, %v8950, %v9022
    %v9167 = vsel %vm9165, %v8952, %v9024
    %v9168 = vsel %vm9165, %v8954, %v9026
    %v9169 = vsel %vm9165, %v8956, %v9028
    %v9170 = vsel %vm9165, %v8958, %v9030
    %v9171 = vsel %vm9165, %v8960, %v9032
    %v9172 = vsel %vm9165, %v8962, %v9034
    %v9173 = vsel %vm9165, %v8964, %v9036
    %v9174 = vsel %vm9165, %v8966, %v9038
    %v9175 = vsel %vm9165, %v8968, %v9040
    %v9176 = vsel %vm9165, %v8970, %v9042
    %v9177 = vsel %vm9165, %v8972, %v9044
    %v9178 = vsel %vm9165, %v8974, %v9046
    %v9179 = vsel %vm9165, %v8976, %v9048
    %v9180 = vsel %vm9165, %v8978, %v9050
    %v9181 = vsel %vm9165, %v8980, %v9052
    %v9182 = vsel %vm9165, %v8982, %v9054
    %v9183 = vsel %vm9165, %v8984, %v9056
    %v9184 = vsel %vm9165, %v8986, %v9058
    %v9185 = vsel %vm9165, %v8988, %v9060
    %v9186 = vsel %vm9165, %v8990, %v9062
    %v9187 = vsel %vm9165, %v8992, %v9064
    %v9188 = vsel %vm9165, %v8994, %v9066
    %v9189 = vsel %vm9165, %v8996, %v9068
    %v9190 = vsel %vm6925, %v9166, %v8917
    %v9191 = vsel %vm6925, %v9167, %v8918
    %v9192 = vsel %vm6925, %v9168, %v8919
    %v9193 = vsel %vm6925, %v9169, %v8920
    %v9194 = vsel %vm6925, %v9170, %v8921
    %v9195 = vsel %vm6925, %v9171, %v8922
    %v9196 = vsel %vm6925, %v9172, %v8923
    %v9197 = vsel %vm6925, %v9173, %v8924
    %v9198 = vsel %vm6925, %v9174, %v4740
    %v9199 = vsel %vm6925, %v9175, %v4741
    %v9200 = vsel %vm6925, %v9176, %v4742
    %v9201 = vsel %vm6925, %v9177, %v4743
    %v9202 = vsel %vm6925, %v9178, %v4744
    %v9203 = vsel %vm6925, %v9179, %v4745
    %v9204 = vsel %vm6925, %v9180, %v4746
    %v9205 = vsel %vm6925, %v9181, %v4747
    %v9206 = vsel %vm6925, %v9182, %v4748
    %v9207 = vsel %vm6925, %v9183, %v4749
    %v9208 = vsel %vm6925, %v9184, %v4750
    %v9209 = vsel %vm6925, %v9185, %v4751
    %v9210 = vsel %vm6925, %v9186, %v4752
    %v9211 = vsel %vm6925, %v9187, %v4753
    %v9212 = vsel %vm6925, %v9188, %v4754
    %v9213 = vsel %vm6925, %v9189, %v4755
    %vm9214 = vcmask 785408
    %v9215 = vsel %vm9214, %v9190, %v9094
    %v9216 = vsel %vm9214, %v9191, %v9096
    %v9217 = vsel %vm9214, %v9192, %v9098
    %v9218 = vsel %vm9214, %v9193, %v9100
    %v9219 = vsel %vm9214, %v9194, %v9102
    %v9220 = vsel %vm9214, %v9195, %v9104
    %v9221 = vsel %vm9214, %v9196, %v9106
    %v9222 = vsel %vm9214, %v9197, %v9108
    %v9223 = vsel %vm9214, %v9198, %v9110
    %v9224 = vsel %vm9214, %v9199, %v9112
    %v9225 = vsel %vm9214, %v9200, %v9114
    %v9226 = vsel %vm9214, %v9201, %v9116
    %v9227 = vsel %vm9214, %v9202, %v9118
    %v9228 = vsel %vm9214, %v9203, %v9120
    %v9229 = vsel %vm9214, %v9204, %v9122
    %v9230 = vsel %vm9214, %v9205, %v9124
    %v9231 = vsel %vm9214, %v9206, %v9126
    %v9232 = vsel %vm9214, %v9207, %v9128
    %v9233 = vsel %vm9214, %v9208, %v9130
    %v9234 = vsel %vm9214, %v9209, %v9132
    %v9235 = vsel %vm9214, %v9210, %v9134
    %v9236 = vsel %vm9214, %v9211, %v9136
    %v9237 = vsel %vm9214, %v9212, %v9138
    %v9238 = vsel %vm9214, %v9213, %v9140
    %v9239 = vld [vmem:[%s2 + $0x4] sm:$0x1]
    %9241 = vrot.lane.b32.xlu0 %v9239, 32
    %v9242 = vpop.permute.xlu0 %9241
    %9244 = vrot.lane.b32.xlu0 %v9239, 64
    %v9245 = vpop.permute.xlu0 %9244
    %9247 = vrot.lane.b32.xlu0 %v9239, 96
    %v9248 = vpop.permute.xlu0 %9247
    %v9250 = vsel %vm9165, %v9239, %v9242
    %v9251 = vsel %vm6925, %v9250, %v9245
    %v9252 = vsel %vm9214, %v9251, %v9248
    %v9253 = vrot.slane %v8853, 7
    %v9254 = vrot.slane %v8854, 7
    %v9255 = vrot.slane %v8855, 7
    %v9256 = vrot.slane %v8856, 7
    %v9257 = vrot.slane %v8857, 7
    %v9258 = vrot.slane %v8858, 7
    %v9259 = vrot.slane %v8859, 7
    %v9260 = vrot.slane %v8860, 7
    %v9261 = vrot.slane %v8861, 7
    %v9262 = vrot.slane %v8862, 7
    %v9263 = vrot.slane %v8863, 7
    %v9264 = vrot.slane %v8864, 7
    %v9265 = vrot.slane %v8865, 7
    %v9266 = vrot.slane %v8866, 7
    %v9267 = vrot.slane %v8867, 7
    %v9268 = vrot.slane %v8868, 7
    %v9269 = vrot.slane %v8869, 7
    %v9270 = vrot.slane %v8870, 7
    %v9271 = vrot.slane %v8871, 7
    %v9272 = vrot.slane %v8872, 7
    %v9273 = vrot.slane %v8873, 7
    %v9274 = vrot.slane %v8874, 7
    %v9275 = vrot.slane %v8875, 7
    %v9276 = vrot.slane %v8876, 7
    %v9277 = vrot.slane %v8877, 7
    %v9278 = vrot.slane %v8878, 7
    %v9279 = vrot.slane %v8879, 7
    %v9280 = vrot.slane %v8880, 7
    %v9281 = vrot.slane %v8881, 7
    %v9282 = vrot.slane %v8882, 7
    %v9283 = vrot.slane %v8883, 7
    %v9284 = vrot.slane %v8884, 7
    %v9285 = vrot.slane %v8885, 7
    %v9286 = vrot.slane %v8886, 7
    %v9287 = vrot.slane %v8887, 7
    %v9288 = vrot.slane %v8888, 7
    %v9289 = vrot.slane %v8889, 7
    %v9290 = vrot.slane %v8890, 7
    %v9291 = vrot.slane %v8891, 7
    %v9292 = vrot.slane %v8892, 7
    %v9293 = vrot.slane %v8893, 7
    %v9294 = vrot.slane %v8894, 7
    %v9295 = vrot.slane %v8895, 7
    %v9296 = vrot.slane %v8896, 7
    %v9297 = vrot.slane %v8897, 7
    %v9298 = vrot.slane %v8898, 7
    %v9299 = vrot.slane %v8899, 7
    %v9300 = vrot.slane %v8900, 7
    %v9301 = vrot.slane %v8901, 7
    %v9302 = vrot.slane %v8902, 7
    %v9303 = vrot.slane %v8903, 7
    %v9304 = vrot.slane %v8904, 7
    %v9305 = vrot.slane %v8905, 7
    %v9306 = vrot.slane %v8906, 7
    %v9307 = vrot.slane %v8907, 7
    %v9308 = vrot.slane %v8908, 7
    %v9309 = vrot.slane %v8909, 7
    %v9310 = vrot.slane %v8910, 7
    %v9311 = vrot.slane %v8911, 7
    %v9312 = vrot.slane %v8912, 7
    %v9313 = vrot.slane %v8913, 7
    %v9314 = vrot.slane %v8914, 7
    %v9315 = vrot.slane %v8915, 7
    %v9316 = vrot.slane %v8916, 7
    %v9317 = vsel %vm418, %v9315, %v9316
    %v9318 = vsel %vm418, %v9314, %v9315
    %v9319 = vsel %vm418, %v9313, %v9314
    %v9320 = vsel %vm418, %v9312, %v9313
    %v9321 = vsel %vm418, %v9311, %v9312
    %v9322 = vsel %vm418, %v9310, %v9311
    %v9323 = vsel %vm418, %v9309, %v9310
    %v9324 = vsel %vm418, %v9308, %v9309
    %v9325 = vsel %vm418, %v9307, %v9308
    %v9326 = vsel %vm418, %v9306, %v9307
    %v9327 = vsel %vm418, %v9305, %v9306
    %v9328 = vsel %vm418, %v9304, %v9305
    %v9329 = vsel %vm418, %v9303, %v9304
    %v9330 = vsel %vm418, %v9302, %v9303
    %v9331 = vsel %vm418, %v9301, %v9302
    %v9332 = vsel %vm418, %v9300, %v9301
    %v9333 = vsel %vm418, %v9299, %v9300
    %v9334 = vsel %vm418, %v9298, %v9299
    %v9335 = vsel %vm418, %v9297, %v9298
    %v9336 = vsel %vm418, %v9296, %v9297
    %v9337 = vsel %vm418, %v9295, %v9296
    %v9338 = vsel %vm418, %v9294, %v9295
    %v9339 = vsel %vm418, %v9293, %v9294
    %v9340 = vsel %vm418, %v9292, %v9293
    %v9341 = vsel %vm418, %v9291, %v9292
    %v9342 = vsel %vm418, %v9290, %v9291
    %v9343 = vsel %vm418, %v9289, %v9290
    %v9344 = vsel %vm418, %v9288, %v9289
    %v9345 = vsel %vm418, %v9287, %v9288
    %v9346 = vsel %vm418, %v9286, %v9287
    %v9347 = vsel %vm418, %v9285, %v9286
    %v9348 = vsel %vm418, %v9284, %v9285
    %v9349 = vsel %vm418, %v9283, %v9284
    %v9350 = vsel %vm418, %v9282, %v9283
    %v9351 = vsel %vm418, %v9281, %v9282
    %v9352 = vsel %vm418, %v9280, %v9281
    %v9353 = vsel %vm418, %v9279, %v9280
    %v9354 = vsel %vm418, %v9278, %v9279
    %v9355 = vsel %vm418, %v9277, %v9278
    %v9356 = vsel %vm418, %v9276, %v9277
    %v9357 = vsel %vm418, %v9275, %v9276
    %v9358 = vsel %vm418, %v9274, %v9275
    %v9359 = vsel %vm418, %v9273, %v9274
    %v9360 = vsel %vm418, %v9272, %v9273
    %v9361 = vsel %vm418, %v9271, %v9272
    %v9362 = vsel %vm418, %v9270, %v9271
    %v9363 = vsel %vm418, %v9269, %v9270
    %v9364 = vsel %vm418, %v9268, %v9269
    %v9365 = vsel %vm418, %v9267, %v9268
    %v9366 = vsel %vm418, %v9266, %v9267
    %v9367 = vsel %vm418, %v9265, %v9266
    %v9368 = vsel %vm418, %v9264, %v9265
    %v9369 = vsel %vm418, %v9263, %v9264
    %v9370 = vsel %vm418, %v9262, %v9263
    %v9371 = vsel %vm418, %v9261, %v9262
    %v9372 = vsel %vm418, %v9260, %v9261
    %v9373 = vsel %vm418, %v9259, %v9260
    %v9374 = vsel %vm418, %v9258, %v9259
    %v9375 = vsel %vm418, %v9257, %v9258
    %v9376 = vsel %vm418, %v9256, %v9257
    %v9377 = vsel %vm418, %v9255, %v9256
    %v9378 = vsel %vm418, %v9254, %v9255
    %v9379 = vsel %vm418, %v9253, %v9254
    %v9380 = vsel %vm418, %v9316, %v9253
    %v9381 = vsel %vm547, %v9380, 0.0
    %v9382 = vsel %vm548, %v9379, 0.0
    %v9383 = vsel %vm549, %v9378, 0.0
    %v9384 = vsel %vm550, %v9377, 0.0
    %v9385 = vsel %vm551, %v9376, 0.0
    %v9386 = vsel %vm552, %v9375, 0.0
    %v9387 = vsel %vm553, %v9374, 0.0
    %v9388 = vsel %vm554, %v9373, 0.0
    %v9389 = vsel %vm555, %v9372, 0.0
    %v9390 = vsel %vm556, %v9371, 0.0
    %v9391 = vsel %vm557, %v9370, 0.0
    %v9392 = vsel %vm558, %v9369, 0.0
    %v9393 = vsel %vm559, %v9368, 0.0
    %v9394 = vsel %vm560, %v9367, 0.0
    %v9395 = vsel %vm561, %v9366, 0.0
    %v9396 = vsel %vm562, %v9365, 0.0
    %v9397 = vsel %vm563, %v9364, 0.0
    %v9398 = vsel %vm564, %v9363, 0.0
    %v9399 = vsel %vm565, %v9362, 0.0
    %v9400 = vsel %vm566, %v9361, 0.0
    %v9401 = vsel %vm567, %v9360, 0.0
    %v9402 = vsel %vm568, %v9359, 0.0
    %v9403 = vsel %vm569, %v9358, 0.0
    %v9404 = vsel %vm570, %v9357, 0.0
    %v9405 = vsel %vm571, %v9356, 0.0
    %v9406 = vsel %vm572, %v9355, 0.0
    %v9407 = vsel %vm573, %v9354, 0.0
    %v9408 = vsel %vm574, %v9353, 0.0
    %v9409 = vsel %vm575, %v9352, 0.0
    %v9410 = vsel %vm576, %v9351, 0.0
    %v9411 = vsel %vm577, %v9350, 0.0
    %v9412 = vsel %vm578, %v9349, 0.0
    %v9413 = vsel %vm579, %v9348, 0.0
    %v9414 = vsel %vm580, %v9347, 0.0
    %v9415 = vsel %vm581, %v9346, 0.0
    %v9416 = vsel %vm582, %v9345, 0.0
    %v9417 = vsel %vm583, %v9344, 0.0
    %v9418 = vsel %vm584, %v9343, 0.0
    %v9419 = vsel %vm585, %v9342, 0.0
    %v9420 = vsel %vm586, %v9341, 0.0
    %v9421 = vsel %vm587, %v9340, 0.0
    %v9422 = vsel %vm588, %v9339, 0.0
    %v9423 = vsel %vm589, %v9338, 0.0
    %v9424 = vsel %vm590, %v9337, 0.0
    %v9425 = vsel %vm591, %v9336, 0.0
    %v9426 = vsel %vm592, %v9335, 0.0
    %v9427 = vsel %vm593, %v9334, 0.0
    %v9428 = vsel %vm594, %v9333, 0.0
    %v9429 = vsel %vm595, %v9332, 0.0
    %v9430 = vsel %vm596, %v9331, 0.0
    %v9431 = vsel %vm597, %v9330, 0.0
    %v9432 = vsel %vm598, %v9329, 0.0
    %v9433 = vsel %vm599, %v9328, 0.0
    %v9434 = vsel %vm600, %v9327, 0.0
    %v9435 = vsel %vm601, %v9326, 0.0
    %v9436 = vsel %vm602, %v9325, 0.0
    %v9437 = vsel %vm603, %v9324, 0.0
    %v9438 = vsel %vm604, %v9323, 0.0
    %v9439 = vsel %vm605, %v9322, 0.0
    %v9440 = vsel %vm606, %v9321, 0.0
    %v9441 = vsel %vm607, %v9320, 0.0
    %v9442 = vsel %vm608, %v9319, 0.0
    %v9443 = vsel %vm609, %v9318, 0.0
    %v9444 = vsel %vm610, %v9317, 0.0
    %v9445 = vrot.slane %v8853, 1
    %v9446 = vrot.slane %v8854, 1
    %v9447 = vrot.slane %v8855, 1
    %v9448 = vrot.slane %v8856, 1
    %v9449 = vrot.slane %v8857, 1
    %v9450 = vrot.slane %v8858, 1
    %v9451 = vrot.slane %v8859, 1
    %v9452 = vrot.slane %v8860, 1
    %v9453 = vrot.slane %v8861, 1
    %v9454 = vrot.slane %v8862, 1
    %v9455 = vrot.slane %v8863, 1
    %v9456 = vrot.slane %v8864, 1
    %v9457 = vrot.slane %v8865, 1
    %v9458 = vrot.slane %v8866, 1
    %v9459 = vrot.slane %v8867, 1
    %v9460 = vrot.slane %v8868, 1
    %v9461 = vrot.slane %v8869, 1
    %v9462 = vrot.slane %v8870, 1
    %v9463 = vrot.slane %v8871, 1
    %v9464 = vrot.slane %v8872, 1
    %v9465 = vrot.slane %v8873, 1
    %v9466 = vrot.slane %v8874, 1
    %v9467 = vrot.slane %v8875, 1
    %v9468 = vrot.slane %v8876, 1
    %v9469 = vrot.slane %v8877, 1
    %v9470 = vrot.slane %v8878, 1
    %v9471 = vrot.slane %v8879, 1
    %v9472 = vrot.slane %v8880, 1
    %v9473 = vrot.slane %v8881, 1
    %v9474 = vrot.slane %v8882, 1
    %v9475 = vrot.slane %v8883, 1
    %v9476 = vrot.slane %v8884, 1
    %v9477 = vrot.slane %v8885, 1
    %v9478 = vrot.slane %v8886, 1
    %v9479 = vrot.slane %v8887, 1
    %v9480 = vrot.slane %v8888, 1
    %v9481 = vrot.slane %v8889, 1
    %v9482 = vrot.slane %v8890, 1
    %v9483 = vrot.slane %v8891, 1
    %v9484 = vrot.slane %v8892, 1
    %v9485 = vrot.slane %v8893, 1
    %v9486 = vrot.slane %v8894, 1
    %v9487 = vrot.slane %v8895, 1
    %v9488 = vrot.slane %v8896, 1
    %v9489 = vrot.slane %v8897, 1
    %v9490 = vrot.slane %v8898, 1
    %v9491 = vrot.slane %v8899, 1
    %v9492 = vrot.slane %v8900, 1
    %v9493 = vrot.slane %v8901, 1
    %v9494 = vrot.slane %v8902, 1
    %v9495 = vrot.slane %v8903, 1
    %v9496 = vrot.slane %v8904, 1
    %v9497 = vrot.slane %v8905, 1
    %v9498 = vrot.slane %v8906, 1
    %v9499 = vrot.slane %v8907, 1
    %v9500 = vrot.slane %v8908, 1
    %v9501 = vrot.slane %v8909, 1
    %v9502 = vrot.slane %v8910, 1
    %v9503 = vrot.slane %v8911, 1
    %v9504 = vrot.slane %v8912, 1
    %v9505 = vrot.slane %v8913, 1
    %v9506 = vrot.slane %v8914, 1
    %v9507 = vrot.slane %v8915, 1
    %v9508 = vrot.slane %v8916, 1
    %v9509 = vsel %vm739, %v9507, %v9508
    %v9510 = vsel %vm739, %v9506, %v9507
    %v9511 = vsel %vm739, %v9505, %v9506
    %v9512 = vsel %vm739, %v9504, %v9505
    %v9513 = vsel %vm739, %v9503, %v9504
    %v9514 = vsel %vm739, %v9502, %v9503
    %v9515 = vsel %vm739, %v9501, %v9502
    %v9516 = vsel %vm739, %v9500, %v9501
    %v9517 = vsel %vm739, %v9499, %v9500
    %v9518 = vsel %vm739, %v9498, %v9499
    %v9519 = vsel %vm739, %v9497, %v9498
    %v9520 = vsel %vm739, %v9496, %v9497
    %v9521 = vsel %vm739, %v9495, %v9496
    %v9522 = vsel %vm739, %v9494, %v9495
    %v9523 = vsel %vm739, %v9493, %v9494
    %v9524 = vsel %vm739, %v9492, %v9493
    %v9525 = vsel %vm739, %v9491, %v9492
    %v9526 = vsel %vm739, %v9490, %v9491
    %v9527 = vsel %vm739, %v9489, %v9490
    %v9528 = vsel %vm739, %v9488, %v9489
    %v9529 = vsel %vm739, %v9487, %v9488
    %v9530 = vsel %vm739, %v9486, %v9487
    %v9531 = vsel %vm739, %v9485, %v9486
    %v9532 = vsel %vm739, %v9484, %v9485
    %v9533 = vsel %vm739, %v9483, %v9484
    %v9534 = vsel %vm739, %v9482, %v9483
    %v9535 = vsel %vm739, %v9481, %v9482
    %v9536 = vsel %vm739, %v9480, %v9481
    %v9537 = vsel %vm739, %v9479, %v9480
    %v9538 = vsel %vm739, %v9478, %v9479
    %v9539 = vsel %vm739, %v9477, %v9478
    %v9540 = vsel %vm739, %v9476, %v9477
    %v9541 = vsel %vm739, %v9475, %v9476
    %v9542 = vsel %vm739, %v9474, %v9475
    %v9543 = vsel %vm739, %v9473, %v9474
    %v9544 = vsel %vm739, %v9472, %v9473
    %v9545 = vsel %vm739, %v9471, %v9472
    %v9546 = vsel %vm739, %v9470, %v9471
    %v9547 = vsel %vm739, %v9469, %v9470
    %v9548 = vsel %vm739, %v9468, %v9469
    %v9549 = vsel %vm739, %v9467, %v9468
    %v9550 = vsel %vm739, %v9466, %v9467
    %v9551 = vsel %vm739, %v9465, %v9466
    %v9552 = vsel %vm739, %v9464, %v9465
    %v9553 = vsel %vm739, %v9463, %v9464
    %v9554 = vsel %vm739, %v9462, %v9463
    %v9555 = vsel %vm739, %v9461, %v9462
    %v9556 = vsel %vm739, %v9460, %v9461
    %v9557 = vsel %vm739, %v9459, %v9460
    %v9558 = vsel %vm739, %v9458, %v9459
    %v9559 = vsel %vm739, %v9457, %v9458
    %v9560 = vsel %vm739, %v9456, %v9457
    %v9561 = vsel %vm739, %v9455, %v9456
    %v9562 = vsel %vm739, %v9454, %v9455
    %v9563 = vsel %vm739, %v9453, %v9454
    %v9564 = vsel %vm739, %v9452, %v9453
    %v9565 = vsel %vm739, %v9451, %v9452
    %v9566 = vsel %vm739, %v9450, %v9451
    %v9567 = vsel %vm739, %v9449, %v9450
    %v9568 = vsel %vm739, %v9448, %v9449
    %v9569 = vsel %vm739, %v9447, %v9448
    %v9570 = vsel %vm739, %v9446, %v9447
    %v9571 = vsel %vm739, %v9445, %v9446
    %v9572 = vsel %vm739, %v9508, %v9445
    %v9573 = vsel %vm868, %v9571, 0.0
    %v9574 = vsel %vm869, %v9570, 0.0
    %v9575 = vsel %vm870, %v9569, 0.0
    %v9576 = vsel %vm871, %v9568, 0.0
    %v9577 = vsel %vm872, %v9567, 0.0
    %v9578 = vsel %vm873, %v9566, 0.0
    %v9579 = vsel %vm874, %v9565, 0.0
    %v9580 = vsel %vm875, %v9564, 0.0
    %v9581 = vsel %vm876, %v9563, 0.0
    %v9582 = vsel %vm877, %v9562, 0.0
    %v9583 = vsel %vm878, %v9561, 0.0
    %v9584 = vsel %vm879, %v9560, 0.0
    %v9585 = vsel %vm880, %v9559, 0.0
    %v9586 = vsel %vm881, %v9558, 0.0
    %v9587 = vsel %vm882, %v9557, 0.0
    %v9588 = vsel %vm883, %v9556, 0.0
    %v9589 = vsel %vm884, %v9555, 0.0
    %v9590 = vsel %vm885, %v9554, 0.0
    %v9591 = vsel %vm886, %v9553, 0.0
    %v9592 = vsel %vm887, %v9552, 0.0
    %v9593 = vsel %vm888, %v9551, 0.0
    %v9594 = vsel %vm889, %v9550, 0.0
    %v9595 = vsel %vm890, %v9549, 0.0
    %v9596 = vsel %vm891, %v9548, 0.0
    %v9597 = vsel %vm892, %v9547, 0.0
    %v9598 = vsel %vm893, %v9546, 0.0
    %v9599 = vsel %vm894, %v9545, 0.0
    %v9600 = vsel %vm895, %v9544, 0.0
    %v9601 = vsel %vm896, %v9543, 0.0
    %v9602 = vsel %vm897, %v9542, 0.0
    %v9603 = vsel %vm898, %v9541, 0.0
    %v9604 = vsel %vm899, %v9540, 0.0
    %v9605 = vsel %vm900, %v9539, 0.0
    %v9606 = vsel %vm901, %v9538, 0.0
    %v9607 = vsel %vm902, %v9537, 0.0
    %v9608 = vsel %vm903, %v9536, 0.0
    %v9609 = vsel %vm904, %v9535, 0.0
    %v9610 = vsel %vm905, %v9534, 0.0
    %v9611 = vsel %vm906, %v9533, 0.0
    %v9612 = vsel %vm907, %v9532, 0.0
    %v9613 = vsel %vm908, %v9531, 0.0
    %v9614 = vsel %vm909, %v9530, 0.0
    %v9615 = vsel %vm910, %v9529, 0.0
    %v9616 = vsel %vm911, %v9528, 0.0
    %v9617 = vsel %vm912, %v9527, 0.0
    %v9618 = vsel %vm913, %v9526, 0.0
    %v9619 = vsel %vm914, %v9525, 0.0
    %v9620 = vsel %vm915, %v9524, 0.0
    %v9621 = vsel %vm916, %v9523, 0.0
    %v9622 = vsel %vm917, %v9522, 0.0
    %v9623 = vsel %vm918, %v9521, 0.0
    %v9624 = vsel %vm919, %v9520, 0.0
    %v9625 = vsel %vm920, %v9519, 0.0
    %v9626 = vsel %vm921, %v9518, 0.0
    %v9627 = vsel %vm922, %v9517, 0.0
    %v9628 = vsel %vm923, %v9516, 0.0
    %v9629 = vsel %vm924, %v9515, 0.0
    %v9630 = vsel %vm925, %v9514, 0.0
    %v9631 = vsel %vm926, %v9513, 0.0
    %v9632 = vsel %vm927, %v9512, 0.0
    %v9633 = vsel %vm928, %v9511, 0.0
    %v9634 = vsel %vm929, %v9510, 0.0
    %v9635 = vsel %vm930, %v9509, 0.0
    %v9636 = vsel %vm931, %v9572, 0.0
    %v9638 = vsel %vm6925, %v9381, 0
    %v9641 = vsel %vm6925, %v9382, 0
    %v9644 = vsel %vm6925, %v9383, 0
    %v9647 = vsel %vm6925, %v9384, 0
    %v9650 = vsel %vm6925, %v9385, 0
    %v9653 = vsel %vm6925, %v9386, 0
    %v9656 = vsel %vm6925, %v9387, 0
    %v9659 = vsel %vm6925, %v9388, 0
    %v9662 = vsel %vm6925, %v9389, 0
    %v9665 = vsel %vm6925, %v9390, 0
    %v9668 = vsel %vm6925, %v9391, 0
    %v9671 = vsel %vm6925, %v9392, 0
    %v9674 = vsel %vm6925, %v9393, 0
    %v9677 = vsel %vm6925, %v9394, 0
    %v9680 = vsel %vm6925, %v9395, 0
    %v9683 = vsel %vm6925, %v9396, 0
    %v9686 = vsel %vm6925, %v9397, 0
    %v9689 = vsel %vm6925, %v9398, 0
    %v9692 = vsel %vm6925, %v9399, 0
    %v9695 = vsel %vm6925, %v9400, 0
    %v9698 = vsel %vm6925, %v9401, 0
    %v9701 = vsel %vm6925, %v9402, 0
    %v9704 = vsel %vm6925, %v9403, 0
    %v9707 = vsel %vm6925, %v9404, 0
    %v9710 = vsel %vm6925, %v9405, 0
    %v9713 = vsel %vm6925, %v9406, 0
    %v9716 = vsel %vm6925, %v9407, 0
    %v9719 = vsel %vm6925, %v9408, 0
    %v9722 = vsel %vm6925, %v9409, 0
    %v9725 = vsel %vm6925, %v9410, 0
    %v9728 = vsel %vm6925, %v9411, 0
    %v9731 = vsel %vm6925, %v9412, 0
    %v9734 = vsel %vm6925, %v9413, 0
    %v9737 = vsel %vm6925, %v9414, 0
    %v9740 = vsel %vm6925, %v9415, 0
    %v9743 = vsel %vm6925, %v9416, 0
    %v9746 = vsel %vm6925, %v9417, 0
    %v9749 = vsel %vm6925, %v9418, 0
    %v9752 = vsel %vm6925, %v9419, 0
    %v9755 = vsel %vm6925, %v9420, 0
    %v9758 = vsel %vm6925, %v9421, 0
    %v9761 = vsel %vm6925, %v9422, 0
    %v9764 = vsel %vm6925, %v9423, 0
    %v9767 = vsel %vm6925, %v9424, 0
    %v9770 = vsel %vm6925, %v9425, 0
    %v9773 = vsel %vm6925, %v9426, 0
    %v9776 = vsel %vm6925, %v9427, 0
    %v9779 = vsel %vm6925, %v9428, 0
    %v9782 = vsel %vm6925, %v9429, 0
    %v9785 = vsel %vm6925, %v9430, 0
    %v9788 = vsel %vm6925, %v9431, 0
    %v9791 = vsel %vm6925, %v9432, 0
    %v9794 = vsel %vm6925, %v9433, 0
    %v9797 = vsel %vm6925, %v9434, 0
    %v9800 = vsel %vm6925, %v9435, 0
    %v9803 = vsel %vm6925, %v9436, 0
    %v9806 = vsel %vm6925, %v9437, 0
    %v9809 = vsel %vm6925, %v9438, 0
    %v9812 = vsel %vm6925, %v9439, 0
    %v9815 = vsel %vm6925, %v9440, 0
    %v9818 = vsel %vm6925, %v9441, 0
    %v9821 = vsel %vm6925, %v9442, 0
    %v9824 = vsel %vm6925, %v9443, 0
    %v9827 = vsel %vm6925, %v9444, 0
    %9829 = vmatprep.subr.mxu0 %v9215
    %9830 = vmatpush1.msra.mxu0 %v9215
    %9831 = vmatprep.subr.mxu0 %v9216
    %9832 = vmatpush1.msra.mxu0 %v9216
    %9833 = vmatprep.subr.mxu0 %v9217
    %9834 = vmatpush1.msra.mxu0 %v9217
    %9835 = vmatprep.subr.mxu0 %v9218
    %9836 = vmatpush1.msra.mxu0 %v9218
    %9837 = vmatprep.subr.mxu0 %v9219
    %9838 = vmatpush1.msra.mxu0 %v9219
    %9839 = vmatprep.subr.mxu0 %v9220
    %9840 = vmatpush1.msra.mxu0 %v9220
    %9841 = vmatprep.subr.mxu0 %v9221
    %9842 = vmatpush1.msra.mxu0 %v9221
    %9843 = vmatprep.subr.mxu0 %v9222
    %9844 = vmatpush1.msra.mxu0 %v9222
    %9845 = vmatprep.subr.mxu0 0.0
    %9846 = vmatpush1.msra.mxu0 0.0
    %9847 = vmatprep.subr.mxu0 0.0
    %9848 = vmatpush1.msra.mxu0 0.0
    %9849 = vmatprep.subr.mxu0 0.0
    %9850 = vmatpush1.msra.mxu0 0.0
    %9851 = vmatprep.subr.mxu0 0.0
    %9852 = vmatpush1.msra.mxu0 0.0
    %9853 = vmatprep.subr.mxu0 0.0
    %9854 = vmatpush1.msra.mxu0 0.0
    %9855 = vmatprep.subr.mxu0 0.0
    %9856 = vmatpush1.msra.mxu0 0.0
    %9857 = vmatprep.subr.mxu0 0.0
    %9858 = vmatpush1.msra.mxu0 0.0
    %9859 = vmatprep.subr.mxu0 0.0
    %9860 = vmatpush1.msra.mxu0 0.0
    %9861 = vmatprep.subr.mxu0 0.0
    %9862 = vmatpush1.msra.mxu0 0.0
    %9863 = vmatprep.subr.mxu0 0.0
    %9864 = vmatpush1.msra.mxu0 0.0
    %9865 = vmatprep.subr.mxu0 0.0
    %9866 = vmatpush1.msra.mxu0 0.0
    %9867 = vmatprep.subr.mxu0 0.0
    %9868 = vmatpush1.msra.mxu0 0.0
    %9869 = vmatprep.subr.mxu0 0.0
    %9870 = vmatpush1.msra.mxu0 0.0
    %9871 = vmatprep.subr.mxu0 0.0
    %9872 = vmatpush1.msra.mxu0 0.0
    %9873 = vmatprep.subr.mxu0 0.0
    %9874 = vmatpush1.msra.mxu0 0.0
    %9875 = vmatprep.subr.mxu0 0.0
    %9876 = vmatpush1.msra.mxu0 0.0
    %9877 = vmatprep.subr.mxu0 0.0
    %9878 = vmatpush1.msra.mxu0 0.0
    %9879 = vmatprep.subr.mxu0 0.0
    %9880 = vmatpush1.msra.mxu0 0.0
    %9881 = vmatprep.subr.mxu0 0.0
    %9882 = vmatpush1.msra.mxu0 0.0
    %9883 = vmatprep.subr.mxu0 0.0
    %9884 = vmatpush1.msra.mxu0 0.0
    %9885 = vmatprep.subr.mxu0 0.0
    %9886 = vmatpush1.msra.mxu0 0.0
    %9887 = vmatprep.subr.mxu0 0.0
    %9888 = vmatpush1.msra.mxu0 0.0
    %9889 = vmatprep.subr.mxu0 0.0
    %9890 = vmatpush1.msra.mxu0 0.0
    %9891 = vmatprep.subr.mxu0 0.0
    %9892 = vmatpush1.msra.mxu0 0.0
    %9893 = vmatprep.mubr.f32.mxu0 0.0
    %9894 = vmatmul.mubr.f32.gmra.mrb[0].mxu0 %v9638
    %v9895 = vpop.f32.mrb[0].mxu0
    %v9896 = vadd.f32 0.0, %v9895
    %v9897 = vpop.f32.mrb[0].mxu0
    %v9898 = vadd.f32 0.0, %v9897
    %9899 = vmatprep.mubr.f32.mxu0 0.0
    %9900 = vmatmul.mubr.f32.gmra.mrb[0].mxu0 %v9641
    %v9901 = vpop.f32.mrb[0].mxu0
    %v9902 = vadd.f32 0.0, %v9901
    %v9903 = vpop.f32.mrb[0].mxu0
    %v9904 = vadd.f32 0.0, %v9903
    %9905 = vmatprep.mubr.f32.mxu0 0.0
    %9906 = vmatmul.mubr.f32.gmra.mrb[0].mxu0 %v9644
    %v9907 = vpop.f32.mrb[0].mxu0
    %v9908 = vadd.f32 0.0, %v9907
    %v9909 = vpop.f32.mrb[0].mxu0
    %v9910 = vadd.f32 0.0, %v9909
    %9911 = vmatprep.mubr.f32.mxu0 0.0
    %9912 = vmatmul.mubr.f32.gmra.mrb[0].mxu0 %v9647
    %v9913 = vpop.f32.mrb[0].mxu0
    %v9914 = vadd.f32 0.0, %v9913
    %v9915 = vpop.f32.mrb[0].mxu0
    %v9916 = vadd.f32 0.0, %v9915
    %9917 = vmatprep.mubr.f32.mxu0 0.0
    %9918 = vmatmul.mubr.f32.gmra.mrb[0].mxu0 %v9650
    %v9919 = vpop.f32.mrb[0].mxu0
    %v9920 = vadd.f32 0.0, %v9919
    %v9921 = vpop.f32.mrb[0].mxu0
    %v9922 = vadd.f32 0.0, %v9921
    %9923 = vmatprep.mubr.f32.mxu0 0.0
    %9924 = vmatmul.mubr.f32.gmra.mrb[0].mxu0 %v9653
    %v9925 = vpop.f32.mrb[0].mxu0
    %v9926 = vadd.f32 0.0, %v9925
    %v9927 = vpop.f32.mrb[0].mxu0
    %v9928 = vadd.f32 0.0, %v9927
    %9929 = vmatprep.mubr.f32.mxu0 0.0
    %9930 = vmatmul.mubr.f32.gmra.mrb[0].mxu0 %v9656
    %v9931 = vpop.f32.mrb[0].mxu0
    %v9932 = vadd.f32 0.0, %v9931
    %v9933 = vpop.f32.mrb[0].mxu0
    %v9934 = vadd.f32 0.0, %v9933
    %9935 = vmatprep.mubr.f32.mxu0 0.0
    %9936 = vmatmul.mubr.f32.gmra.mrb[0].mxu0 %v9659
    %v9937 = vpop.f32.mrb[0].mxu0
    %v9938 = vadd.f32 0.0, %v9937
    %v9939 = vpop.f32.mrb[0].mxu0
    %v9940 = vadd.f32 0.0, %v9939
    %9941 = vmatprep.mubr.f32.mxu0 0.0
    %9942 = vmatmul.mubr.f32.gmra.mrb[0].mxu0 %v9662
    %v9943 = vpop.f32.mrb[0].mxu0
    %v9944 = vadd.f32 0.0, %v9943
    %v9945 = vpop.f32.mrb[0].mxu0
    %v9946 = vadd.f32 0.0, %v9945
    %9947 = vmatprep.mubr.f32.mxu0 0.0
    %9948 = vmatmul.mubr.f32.gmra.mrb[0].mxu0 %v9665
    %v9949 = vpop.f32.mrb[0].mxu0
    %v9950 = vadd.f32 0.0, %v9949
    %v9951 = vpop.f32.mrb[0].mxu0
    %v9952 = vadd.f32 0.0, %v9951
    %9953 = vmatprep.mubr.f32.mxu0 0.0
    %9954 = vmatmul.mubr.f32.gmra.mrb[0].mxu0 %v9668
    %v9955 = vpop.f32.mrb[0].mxu0
    %v9956 = vadd.f32 0.0, %v9955
    %v9957 = vpop.f32.mrb[0].mxu0
    %v9958 = vadd.f32 0.0, %v9957
    %9959 = vmatprep.mubr.f32.mxu0 0.0
    %9960 = vmatmul.mubr.f32.gmra.mrb[0].mxu0 %v9671
    %v9961 = vpop.f32.mrb[0].mxu0
    %v9962 = vadd.f32 0.0, %v9961
    %v9963 = vpop.f32.mrb[0].mxu0
    %v9964 = vadd.f32 0.0, %v9963
    %9965 = vmatprep.mubr.f32.mxu0 0.0
    %9966 = vmatmul.mubr.f32.gmra.mrb[0].mxu0 %v9674
    %v9967 = vpop.f32.mrb[0].mxu0
    %v9968 = vadd.f32 0.0, %v9967
    %v9969 = vpop.f32.mrb[0].mxu0
    %v9970 = vadd.f32 0.0, %v9969
    %9971 = vmatprep.mubr.f32.mxu0 0.0
    %9972 = vmatmul.mubr.f32.gmra.mrb[0].mxu0 %v9677
    %v9973 = vpop.f32.mrb[0].mxu0
    %v9974 = vadd.f32 0.0, %v9973
    %v9975 = vpop.f32.mrb[0].mxu0
    %v9976 = vadd.f32 0.0, %v9975
    %9977 = vmatprep.mubr.f32.mxu0 0.0
    %9978 = vmatmul.mubr.f32.gmra.mrb[0].mxu0 %v9680
    %v9979 = vpop.f32.mrb[0].mxu0
    %v9980 = vadd.f32 0.0, %v9979
    %v9981 = vpop.f32.mrb[0].mxu0
    %v9982 = vadd.f32 0.0, %v9981
    %9983 = vmatprep.mubr.f32.mxu0 0.0
    %9984 = vmatmul.mubr.f32.gmra.mrb[0].mxu0 %v9683
    %v9985 = vpop.f32.mrb[0].mxu0
    %v9986 = vadd.f32 0.0, %v9985
    %v9987 = vpop.f32.mrb[0].mxu0
    %v9988 = vadd.f32 0.0, %v9987
    %9989 = vmatprep.mubr.f32.mxu0 0.0
    %9990 = vmatmul.mubr.f32.gmra.mrb[0].mxu0 %v9686
    %v9991 = vpop.f32.mrb[0].mxu0
    %v9992 = vadd.f32 0.0, %v9991
    %v9993 = vpop.f32.mrb[0].mxu0
    %v9994 = vadd.f32 0.0, %v9993
    %9995 = vmatprep.mubr.f32.mxu0 0.0
    %9996 = vmatmul.mubr.f32.gmra.mrb[0].mxu0 %v9689
    %v9997 = vpop.f32.mrb[0].mxu0
    %v9998 = vadd.f32 0.0, %v9997
    %v9999 = vpop.f32.mrb[0].mxu0
    %v10000 = vadd.f32 0.0, %v9999
    %10001 = vmatprep.mubr.f32.mxu0 0.0
    %10002 = vmatmul.mubr.f32.gmra.mrb[0].mxu0 %v9692
    %v10003 = vpop.f32.mrb[0].mxu0
    %v10004 = vadd.f32 0.0, %v10003
    %v10005 = vpop.f32.mrb[0].mxu0
    %v10006 = vadd.f32 0.0, %v10005
    %10007 = vmatprep.mubr.f32.mxu0 0.0
    %10008 = vmatmul.mubr.f32.gmra.mrb[0].mxu0 %v9695
    %v10009 = vpop.f32.mrb[0].mxu0
    %v10010 = vadd.f32 0.0, %v10009
    %v10011 = vpop.f32.mrb[0].mxu0
    %v10012 = vadd.f32 0.0, %v10011
    %10013 = vmatprep.mubr.f32.mxu0 0.0
    %10014 = vmatmul.mubr.f32.gmra.mrb[0].mxu0 %v9698
    %v10015 = vpop.f32.mrb[0].mxu0
    %v10016 = vadd.f32 0.0, %v10015
    %v10017 = vpop.f32.mrb[0].mxu0
    %v10018 = vadd.f32 0.0, %v10017
    %10019 = vmatprep.mubr.f32.mxu0 0.0
    %10020 = vmatmul.mubr.f32.gmra.mrb[0].mxu0 %v9701
    %v10021 = vpop.f32.mrb[0].mxu0
    %v10022 = vadd.f32 0.0, %v10021
    %v10023 = vpop.f32.mrb[0].mxu0
    %v10024 = vadd.f32 0.0, %v10023
    %10025 = vmatprep.mubr.f32.mxu0 0.0
    %10026 = vmatmul.mubr.f32.gmra.mrb[0].mxu0 %v9704
    %v10027 = vpop.f32.mrb[0].mxu0
    %v10028 = vadd.f32 0.0, %v10027
    %v10029 = vpop.f32.mrb[0].mxu0
    %v10030 = vadd.f32 0.0, %v10029
    %10031 = vmatprep.mubr.f32.mxu0 0.0
    %10032 = vmatmul.mubr.f32.gmra.mrb[0].mxu0 %v9707
    %v10033 = vpop.f32.mrb[0].mxu0
    %v10034 = vadd.f32 0.0, %v10033
    %v10035 = vpop.f32.mrb[0].mxu0
    %v10036 = vadd.f32 0.0, %v10035
    %10037 = vmatprep.mubr.f32.mxu0 0.0
    %10038 = vmatmul.mubr.f32.gmra.mrb[0].mxu0 %v9710
    %v10039 = vpop.f32.mrb[0].mxu0
    %v10040 = vadd.f32 0.0, %v10039
    %v10041 = vpop.f32.mrb[0].mxu0
    %v10042 = vadd.f32 0.0, %v10041
    %10043 = vmatprep.mubr.f32.mxu0 0.0
    %10044 = vmatmul.mubr.f32.gmra.mrb[0].mxu0 %v9713
    %v10045 = vpop.f32.mrb[0].mxu0
    %v10046 = vadd.f32 0.0, %v10045
    %v10047 = vpop.f32.mrb[0].mxu0
    %v10048 = vadd.f32 0.0, %v10047
    %10049 = vmatprep.mubr.f32.mxu0 0.0
    %10050 = vmatmul.mubr.f32.gmra.mrb[0].mxu0 %v9716
    %v10051 = vpop.f32.mrb[0].mxu0
    %v10052 = vadd.f32 0.0, %v10051
    %v10053 = vpop.f32.mrb[0].mxu0
    %v10054 = vadd.f32 0.0, %v10053
    %10055 = vmatprep.mubr.f32.mxu0 0.0
    %10056 = vmatmul.mubr.f32.gmra.mrb[0].mxu0 %v9719
    %v10057 = vpop.f32.mrb[0].mxu0
    %v10058 = vadd.f32 0.0, %v10057
    %v10059 = vpop.f32.mrb[0].mxu0
    %v10060 = vadd.f32 0.0, %v10059
    %10061 = vmatprep.mubr.f32.mxu0 0.0
    %10062 = vmatmul.mubr.f32.gmra.mrb[0].mxu0 %v9722
    %v10063 = vpop.f32.mrb[0].mxu0
    %v10064 = vadd.f32 0.0, %v10063
    %v10065 = vpop.f32.mrb[0].mxu0
    %v10066 = vadd.f32 0.0, %v10065
    %10067 = vmatprep.mubr.f32.mxu0 0.0
    %10068 = vmatmul.mubr.f32.gmra.mrb[0].mxu0 %v9725
    %v10069 = vpop.f32.mrb[0].mxu0
    %v10070 = vadd.f32 0.0, %v10069
    %v10071 = vpop.f32.mrb[0].mxu0
    %v10072 = vadd.f32 0.0, %v10071
    %10073 = vmatprep.mubr.f32.mxu0 0.0
    %10074 = vmatmul.mubr.f32.gmra.mrb[0].mxu0 %v9728
    %v10075 = vpop.f32.mrb[0].mxu0
    %v10076 = vadd.f32 0.0, %v10075
    %v10077 = vpop.f32.mrb[0].mxu0
    %v10078 = vadd.f32 0.0, %v10077
    %10079 = vmatprep.mubr.f32.mxu0 0.0
    %10080 = vmatmul.mubr.f32.gmra.mrb[0].mxu0 %v9731
    %v10081 = vpop.f32.mrb[0].mxu0
    %v10082 = vadd.f32 0.0, %v10081
    %v10083 = vpop.f32.mrb[0].mxu0
    %v10084 = vadd.f32 0.0, %v10083
    %10085 = vmatprep.mubr.f32.mxu0 0.0
    %10086 = vmatmul.mubr.f32.gmra.mrb[0].mxu0 %v9734
    %v10087 = vpop.f32.mrb[0].mxu0
    %v10088 = vadd.f32 0.0, %v10087
    %v10089 = vpop.f32.mrb[0].mxu0
    %v10090 = vadd.f32 0.0, %v10089
    %10091 = vmatprep.mubr.f32.mxu0 0.0
    %10092 = vmatmul.mubr.f32.gmra.mrb[0].mxu0 %v9737
    %v10093 = vpop.f32.mrb[0].mxu0
    %v10094 = vadd.f32 0.0, %v10093
    %v10095 = vpop.f32.mrb[0].mxu0
    %v10096 = vadd.f32 0.0, %v10095
    %10097 = vmatprep.mubr.f32.mxu0 0.0
    %10098 = vmatmul.mubr.f32.gmra.mrb[0].mxu0 %v9740
    %v10099 = vpop.f32.mrb[0].mxu0
    %v10100 = vadd.f32 0.0, %v10099
    %v10101 = vpop.f32.mrb[0].mxu0
    %v10102 = vadd.f32 0.0, %v10101
    %10103 = vmatprep.mubr.f32.mxu0 0.0
    %10104 = vmatmul.mubr.f32.gmra.mrb[0].mxu0 %v9743
    %v10105 = vpop.f32.mrb[0].mxu0
    %v10106 = vadd.f32 0.0, %v10105
    %v10107 = vpop.f32.mrb[0].mxu0
    %v10108 = vadd.f32 0.0, %v10107
    %10109 = vmatprep.mubr.f32.mxu0 0.0
    %10110 = vmatmul.mubr.f32.gmra.mrb[0].mxu0 %v9746
    %v10111 = vpop.f32.mrb[0].mxu0
    %v10112 = vadd.f32 0.0, %v10111
    %v10113 = vpop.f32.mrb[0].mxu0
    %v10114 = vadd.f32 0.0, %v10113
    %10115 = vmatprep.mubr.f32.mxu0 0.0
    %10116 = vmatmul.mubr.f32.gmra.mrb[0].mxu0 %v9749
    %v10117 = vpop.f32.mrb[0].mxu0
    %v10118 = vadd.f32 0.0, %v10117
    %v10119 = vpop.f32.mrb[0].mxu0
    %v10120 = vadd.f32 0.0, %v10119
    %10121 = vmatprep.mubr.f32.mxu0 0.0
    %10122 = vmatmul.mubr.f32.gmra.mrb[0].mxu0 %v9752
    %v10123 = vpop.f32.mrb[0].mxu0
    %v10124 = vadd.f32 0.0, %v10123
    %v10125 = vpop.f32.mrb[0].mxu0
    %v10126 = vadd.f32 0.0, %v10125
    %10127 = vmatprep.mubr.f32.mxu0 0.0
    %10128 = vmatmul.mubr.f32.gmra.mrb[0].mxu0 %v9755
    %v10129 = vpop.f32.mrb[0].mxu0
    %v10130 = vadd.f32 0.0, %v10129
    %v10131 = vpop.f32.mrb[0].mxu0
    %v10132 = vadd.f32 0.0, %v10131
    %10133 = vmatprep.mubr.f32.mxu0 0.0
    %10134 = vmatmul.mubr.f32.gmra.mrb[0].mxu0 %v9758
    %v10135 = vpop.f32.mrb[0].mxu0
    %v10136 = vadd.f32 0.0, %v10135
    %v10137 = vpop.f32.mrb[0].mxu0
    %v10138 = vadd.f32 0.0, %v10137
    %10139 = vmatprep.mubr.f32.mxu0 0.0
    %10140 = vmatmul.mubr.f32.gmra.mrb[0].mxu0 %v9761
    %v10141 = vpop.f32.mrb[0].mxu0
    %v10142 = vadd.f32 0.0, %v10141
    %v10143 = vpop.f32.mrb[0].mxu0
    %v10144 = vadd.f32 0.0, %v10143
    %10145 = vmatprep.mubr.f32.mxu0 0.0
    %10146 = vmatmul.mubr.f32.gmra.mrb[0].mxu0 %v9764
    %v10147 = vpop.f32.mrb[0].mxu0
    %v10148 = vadd.f32 0.0, %v10147
    %v10149 = vpop.f32.mrb[0].mxu0
    %v10150 = vadd.f32 0.0, %v10149
    %10151 = vmatprep.mubr.f32.mxu0 0.0
    %10152 = vmatmul.mubr.f32.gmra.mrb[0].mxu0 %v9767
    %v10153 = vpop.f32.mrb[0].mxu0
    %v10154 = vadd.f32 0.0, %v10153
    %v10155 = vpop.f32.mrb[0].mxu0
    %v10156 = vadd.f32 0.0, %v10155
    %10157 = vmatprep.mubr.f32.mxu0 0.0
    %10158 = vmatmul.mubr.f32.gmra.mrb[0].mxu0 %v9770
    %v10159 = vpop.f32.mrb[0].mxu0
    %v10160 = vadd.f32 0.0, %v10159
    %v10161 = vpop.f32.mrb[0].mxu0
    %v10162 = vadd.f32 0.0, %v10161
    %10163 = vmatprep.mubr.f32.mxu0 0.0
    %10164 = vmatmul.mubr.f32.gmra.mrb[0].mxu0 %v9773
    %v10165 = vpop.f32.mrb[0].mxu0
    %v10166 = vadd.f32 0.0, %v10165
    %v10167 = vpop.f32.mrb[0].mxu0
    %v10168 = vadd.f32 0.0, %v10167
    %10169 = vmatprep.mubr.f32.mxu0 0.0
    %10170 = vmatmul.mubr.f32.gmra.mrb[0].mxu0 %v9776
    %v10171 = vpop.f32.mrb[0].mxu0
    %v10172 = vadd.f32 0.0, %v10171
    %v10173 = vpop.f32.mrb[0].mxu0
    %v10174 = vadd.f32 0.0, %v10173
    %10175 = vmatprep.mubr.f32.mxu0 0.0
    %10176 = vmatmul.mubr.f32.gmra.mrb[0].mxu0 %v9779
    %v10177 = vpop.f32.mrb[0].mxu0
    %v10178 = vadd.f32 0.0, %v10177
    %v10179 = vpop.f32.mrb[0].mxu0
    %v10180 = vadd.f32 0.0, %v10179
    %10181 = vmatprep.mubr.f32.mxu0 0.0
    %10182 = vmatmul.mubr.f32.gmra.mrb[0].mxu0 %v9782
    %v10183 = vpop.f32.mrb[0].mxu0
    %v10184 = vadd.f32 0.0, %v10183
    %v10185 = vpop.f32.mrb[0].mxu0
    %v10186 = vadd.f32 0.0, %v10185
    %10187 = vmatprep.mubr.f32.mxu0 0.0
    %10188 = vmatmul.mubr.f32.gmra.mrb[0].mxu0 %v9785
    %v10189 = vpop.f32.mrb[0].mxu0
    %v10190 = vadd.f32 0.0, %v10189
    %v10191 = vpop.f32.mrb[0].mxu0
    %v10192 = vadd.f32 0.0, %v10191
    %10193 = vmatprep.mubr.f32.mxu0 0.0
    %10194 = vmatmul.mubr.f32.gmra.mrb[0].mxu0 %v9788
    %v10195 = vpop.f32.mrb[0].mxu0
    %v10196 = vadd.f32 0.0, %v10195
    %v10197 = vpop.f32.mrb[0].mxu0
    %v10198 = vadd.f32 0.0, %v10197
    %10199 = vmatprep.mubr.f32.mxu0 0.0
    %10200 = vmatmul.mubr.f32.gmra.mrb[0].mxu0 %v9791
    %v10201 = vpop.f32.mrb[0].mxu0
    %v10202 = vadd.f32 0.0, %v10201
    %v10203 = vpop.f32.mrb[0].mxu0
    %v10204 = vadd.f32 0.0, %v10203
    %10205 = vmatprep.mubr.f32.mxu0 0.0
    %10206 = vmatmul.mubr.f32.gmra.mrb[0].mxu0 %v9794
    %v10207 = vpop.f32.mrb[0].mxu0
    %v10208 = vadd.f32 0.0, %v10207
    %v10209 = vpop.f32.mrb[0].mxu0
    %v10210 = vadd.f32 0.0, %v10209
    %10211 = vmatprep.mubr.f32.mxu0 0.0
    %10212 = vmatmul.mubr.f32.gmra.mrb[0].mxu0 %v9797
    %v10213 = vpop.f32.mrb[0].mxu0
    %v10214 = vadd.f32 0.0, %v10213
    %v10215 = vpop.f32.mrb[0].mxu0
    %v10216 = vadd.f32 0.0, %v10215
    %10217 = vmatprep.mubr.f32.mxu0 0.0
    %10218 = vmatmul.mubr.f32.gmra.mrb[0].mxu0 %v9800
    %v10219 = vpop.f32.mrb[0].mxu0
    %v10220 = vadd.f32 0.0, %v10219
    %v10221 = vpop.f32.mrb[0].mxu0
    %v10222 = vadd.f32 0.0, %v10221
    %10223 = vmatprep.mubr.f32.mxu0 0.0
    %10224 = vmatmul.mubr.f32.gmra.mrb[0].mxu0 %v9803
    %v10225 = vpop.f32.mrb[0].mxu0
    %v10226 = vadd.f32 0.0, %v10225
    %v10227 = vpop.f32.mrb[0].mxu0
    %v10228 = vadd.f32 0.0, %v10227
    %10229 = vmatprep.mubr.f32.mxu0 0.0
    %10230 = vmatmul.mubr.f32.gmra.mrb[0].mxu0 %v9806
    %v10231 = vpop.f32.mrb[0].mxu0
    %v10232 = vadd.f32 0.0, %v10231
    %v10233 = vpop.f32.mrb[0].mxu0
    %v10234 = vadd.f32 0.0, %v10233
    %10235 = vmatprep.mubr.f32.mxu0 0.0
    %10236 = vmatmul.mubr.f32.gmra.mrb[0].mxu0 %v9809
    %v10237 = vpop.f32.mrb[0].mxu0
    %v10238 = vadd.f32 0.0, %v10237
    %v10239 = vpop.f32.mrb[0].mxu0
    %v10240 = vadd.f32 0.0, %v10239
    %10241 = vmatprep.mubr.f32.mxu0 0.0
    %10242 = vmatmul.mubr.f32.gmra.mrb[0].mxu0 %v9812
    %v10243 = vpop.f32.mrb[0].mxu0
    %v10244 = vadd.f32 0.0, %v10243
    %v10245 = vpop.f32.mrb[0].mxu0
    %v10246 = vadd.f32 0.0, %v10245
    %10247 = vmatprep.mubr.f32.mxu0 0.0
    %10248 = vmatmul.mubr.f32.gmra.mrb[0].mxu0 %v9815
    %v10249 = vpop.f32.mrb[0].mxu0
    %v10250 = vadd.f32 0.0, %v10249
    %v10251 = vpop.f32.mrb[0].mxu0
    %v10252 = vadd.f32 0.0, %v10251
    %10253 = vmatprep.mubr.f32.mxu0 0.0
    %10254 = vmatmul.mubr.f32.gmra.mrb[0].mxu0 %v9818
    %v10255 = vpop.f32.mrb[0].mxu0
    %v10256 = vadd.f32 0.0, %v10255
    %v10257 = vpop.f32.mrb[0].mxu0
    %v10258 = vadd.f32 0.0, %v10257
    %10259 = vmatprep.mubr.f32.mxu0 0.0
    %10260 = vmatmul.mubr.f32.gmra.mrb[0].mxu0 %v9821
    %v10261 = vpop.f32.mrb[0].mxu0
    %v10262 = vadd.f32 0.0, %v10261
    %v10263 = vpop.f32.mrb[0].mxu0
    %v10264 = vadd.f32 0.0, %v10263
    %10265 = vmatprep.mubr.f32.mxu0 0.0
    %10266 = vmatmul.mubr.f32.gmra.mrb[0].mxu0 %v9824
    %v10267 = vpop.f32.mrb[0].mxu0
    %v10268 = vadd.f32 0.0, %v10267
    %v10269 = vpop.f32.mrb[0].mxu0
    %v10270 = vadd.f32 0.0, %v10269
    %10271 = vmatprep.mubr.f32.mxu0 0.0
    %10272 = vmatmul.mubr.f32.gmra.mrb[0].mxu0 %v9827
    %v10273 = vpop.f32.mrb[0].mxu0
    %v10274 = vadd.f32 0.0, %v10273
    %v10275 = vpop.f32.mrb[0].mxu0
    %v10276 = vadd.f32 0.0, %v10275
    %10277 = vdwg.mxu0
    %v10279 = vsel %vm6925, %v8853, 0
    %v10282 = vsel %vm6925, %v8854, 0
    %v10285 = vsel %vm6925, %v8855, 0
    %v10288 = vsel %vm6925, %v8856, 0
    %v10291 = vsel %vm6925, %v8857, 0
    %v10294 = vsel %vm6925, %v8858, 0
    %v10297 = vsel %vm6925, %v8859, 0
    %v10300 = vsel %vm6925, %v8860, 0
    %v10303 = vsel %vm6925, %v8861, 0
    %v10306 = vsel %vm6925, %v8862, 0
    %v10309 = vsel %vm6925, %v8863, 0
    %v10312 = vsel %vm6925, %v8864, 0
    %v10315 = vsel %vm6925, %v8865, 0
    %v10318 = vsel %vm6925, %v8866, 0
    %v10321 = vsel %vm6925, %v8867, 0
    %v10324 = vsel %vm6925, %v8868, 0
    %v10327 = vsel %vm6925, %v8869, 0
    %v10330 = vsel %vm6925, %v8870, 0
    %v10333 = vsel %vm6925, %v8871, 0
    %v10336 = vsel %vm6925, %v8872, 0
    %v10339 = vsel %vm6925, %v8873, 0
    %v10342 = vsel %vm6925, %v8874, 0
    %v10345 = vsel %vm6925, %v8875, 0
    %v10348 = vsel %vm6925, %v8876, 0
    %v10351 = vsel %vm6925, %v8877, 0
    %v10354 = vsel %vm6925, %v8878, 0
    %v10357 = vsel %vm6925, %v8879, 0
    %v10360 = vsel %vm6925, %v8880, 0
    %v10363 = vsel %vm6925, %v8881, 0
    %v10366 = vsel %vm6925, %v8882, 0
    %v10369 = vsel %vm6925, %v8883, 0
    %v10372 = vsel %vm6925, %v8884, 0
    %v10375 = vsel %vm6925, %v8885, 0
    %v10378 = vsel %vm6925, %v8886, 0
    %v10381 = vsel %vm6925, %v8887, 0
    %v10384 = vsel %vm6925, %v8888, 0
    %v10387 = vsel %vm6925, %v8889, 0
    %v10390 = vsel %vm6925, %v8890, 0
    %v10393 = vsel %vm6925, %v8891, 0
    %v10396 = vsel %vm6925, %v8892, 0
    %v10399 = vsel %vm6925, %v8893, 0
    %v10402 = vsel %vm6925, %v8894, 0
    %v10405 = vsel %vm6925, %v8895, 0
    %v10408 = vsel %vm6925, %v8896, 0
    %v10411 = vsel %vm6925, %v8897, 0
    %v10414 = vsel %vm6925, %v8898, 0
    %v10417 = vsel %vm6925, %v8899, 0
    %v10420 = vsel %vm6925, %v8900, 0
    %v10423 = vsel %vm6925, %v8901, 0
    %v10426 = vsel %vm6925, %v8902, 0
    %v10429 = vsel %vm6925, %v8903, 0
    %v10432 = vsel %vm6925, %v8904, 0
    %v10435 = vsel %vm6925, %v8905, 0
    %v10438 = vsel %vm6925, %v8906, 0
    %v10441 = vsel %vm6925, %v8907, 0
    %v10444 = vsel %vm6925, %v8908, 0
    %v10447 = vsel %vm6925, %v8909, 0
    %v10450 = vsel %vm6925, %v8910, 0
    %v10453 = vsel %vm6925, %v8911, 0
    %v10456 = vsel %vm6925, %v8912, 0
    %v10459 = vsel %vm6925, %v8913, 0
    %v10462 = vsel %vm6925, %v8914, 0
    %v10465 = vsel %vm6925, %v8915, 0
    %v10468 = vsel %vm6925, %v8916, 0
    %10470 = vmatprep.subr.mxu0 %v9223
    %10471 = vmatpush1.msra.mxu0 %v9223
    %10472 = vmatprep.subr.mxu0 %v9224
    %10473 = vmatpush1.msra.mxu0 %v9224
    %10474 = vmatprep.subr.mxu0 %v9225
    %10475 = vmatpush1.msra.mxu0 %v9225
    %10476 = vmatprep.subr.mxu0 %v9226
    %10477 = vmatpush1.msra.mxu0 %v9226
    %10478 = vmatprep.subr.mxu0 %v9227
    %10479 = vmatpush1.msra.mxu0 %v9227
    %10480 = vmatprep.subr.mxu0 %v9228
    %10481 = vmatpush1.msra.mxu0 %v9228
    %10482 = vmatprep.subr.mxu0 %v9229
    %10483 = vmatpush1.msra.mxu0 %v9229
    %10484 = vmatprep.subr.mxu0 %v9230
    %10485 = vmatpush1.msra.mxu0 %v9230
    %10486 = vmatprep.subr.mxu0 0.0
    %10487 = vmatpush1.msra.mxu0 0.0
    %10488 = vmatprep.subr.mxu0 0.0
    %10489 = vmatpush1.msra.mxu0 0.0
    %10490 = vmatprep.subr.mxu0 0.0
    %10491 = vmatpush1.msra.mxu0 0.0
    %10492 = vmatprep.subr.mxu0 0.0
    %10493 = vmatpush1.msra.mxu0 0.0
    %10494 = vmatprep.subr.mxu0 0.0
    %10495 = vmatpush1.msra.mxu0 0.0
    %10496 = vmatprep.subr.mxu0 0.0
    %10497 = vmatpush1.msra.mxu0 0.0
    %10498 = vmatprep.subr.mxu0 0.0
    %10499 = vmatpush1.msra.mxu0 0.0
    %10500 = vmatprep.subr.mxu0 0.0
    %10501 = vmatpush1.msra.mxu0 0.0
    %10502 = vmatprep.subr.mxu0 0.0
    %10503 = vmatpush1.msra.mxu0 0.0
    %10504 = vmatprep.subr.mxu0 0.0
    %10505 = vmatpush1.msra.mxu0 0.0
    %10506 = vmatprep.subr.mxu0 0.0
    %10507 = vmatpush1.msra.mxu0 0.0
    %10508 = vmatprep.subr.mxu0 0.0
    %10509 = vmatpush1.msra.mxu0 0.0
    %10510 = vmatprep.subr.mxu0 0.0
    %10511 = vmatpush1.msra.mxu0 0.0
    %10512 = vmatprep.subr.mxu0 0.0
    %10513 = vmatpush1.msra.mxu0 0.0
    %10514 = vmatprep.subr.mxu0 0.0
    %10515 = vmatpush1.msra.mxu0 0.0
    %10516 = vmatprep.subr.mxu0 0.0
    %10517 = vmatpush1.msra.mxu0 0.0
    %10518 = vmatprep.subr.mxu0 0.0
    %10519 = vmatpush1.msra.mxu0 0.0
    %10520 = vmatprep.subr.mxu0 0.0
    %10521 = vmatpush1.msra.mxu0 0.0
    %10522 = vmatprep.subr.mxu0 0.0
    %10523 = vmatpush1.msra.mxu0 0.0
    %10524 = vmatprep.subr.mxu0 0.0
    %10525 = vmatpush1.msra.mxu0 0.0
    %10526 = vmatprep.subr.mxu0 0.0
    %10527 = vmatpush1.msra.mxu0 0.0
    %10528 = vmatprep.subr.mxu0 0.0
    %10529 = vmatpush1.msra.mxu0 0.0
    %10530 = vmatprep.subr.mxu0 0.0
    %10531 = vmatpush1.msra.mxu0 0.0
    %10532 = vmatprep.subr.mxu0 0.0
    %10533 = vmatpush1.msra.mxu0 0.0
    %10534 = vmatprep.mubr.f32.mxu0 0.0
    %10535 = vmatmul.mubr.f32.gmra.mrb[0].mxu0 %v10279
    %v10536 = vpop.f32.mrb[0].mxu0
    %v10537 = vadd.f32 %v9896, %v10536
    %v10538 = vpop.f32.mrb[0].mxu0
    %v10539 = vadd.f32 %v9898, %v10538
    %10540 = vmatprep.mubr.f32.mxu0 0.0
    %10541 = vmatmul.mubr.f32.gmra.mrb[0].mxu0 %v10282
    %v10542 = vpop.f32.mrb[0].mxu0
    %v10543 = vadd.f32 %v9902, %v10542
    %v10544 = vpop.f32.mrb[0].mxu0
    %v10545 = vadd.f32 %v9904, %v10544
    %10546 = vmatprep.mubr.f32.mxu0 0.0
    %10547 = vmatmul.mubr.f32.gmra.mrb[0].mxu0 %v10285
    %v10548 = vpop.f32.mrb[0].mxu0
    %v10549 = vadd.f32 %v9908, %v10548
    %v10550 = vpop.f32.mrb[0].mxu0
    %v10551 = vadd.f32 %v9910, %v10550
    %10552 = vmatprep.mubr.f32.mxu0 0.0
    %10553 = vmatmul.mubr.f32.gmra.mrb[0].mxu0 %v10288
    %v10554 = vpop.f32.mrb[0].mxu0
    %v10555 = vadd.f32 %v9914, %v10554
    %v10556 = vpop.f32.mrb[0].mxu0
    %v10557 = vadd.f32 %v9916, %v10556
    %10558 = vmatprep.mubr.f32.mxu0 0.0
    %10559 = vmatmul.mubr.f32.gmra.mrb[0].mxu0 %v10291
    %v10560 = vpop.f32.mrb[0].mxu0
    %v10561 = vadd.f32 %v9920, %v10560
    %v10562 = vpop.f32.mrb[0].mxu0
    %v10563 = vadd.f32 %v9922, %v10562
    %10564 = vmatprep.mubr.f32.mxu0 0.0
    %10565 = vmatmul.mubr.f32.gmra.mrb[0].mxu0 %v10294
    %v10566 = vpop.f32.mrb[0].mxu0
    %v10567 = vadd.f32 %v9926, %v10566
    %v10568 = vpop.f32.mrb[0].mxu0
    %v10569 = vadd.f32 %v9928, %v10568
    %10570 = vmatprep.mubr.f32.mxu0 0.0
    %10571 = vmatmul.mubr.f32.gmra.mrb[0].mxu0 %v10297
    %v10572 = vpop.f32.mrb[0].mxu0
    %v10573 = vadd.f32 %v9932, %v10572
    %v10574 = vpop.f32.mrb[0].mxu0
    %v10575 = vadd.f32 %v9934, %v10574
    %10576 = vmatprep.mubr.f32.mxu0 0.0
    %10577 = vmatmul.mubr.f32.gmra.mrb[0].mxu0 %v10300
    %v10578 = vpop.f32.mrb[0].mxu0
    %v10579 = vadd.f32 %v9938, %v10578
    %v10580 = vpop.f32.mrb[0].mxu0
    %v10581 = vadd.f32 %v9940, %v10580
    %10582 = vmatprep.mubr.f32.mxu0 0.0
    %10583 = vmatmul.mubr.f32.gmra.mrb[0].mxu0 %v10303
    %v10584 = vpop.f32.mrb[0].mxu0
    %v10585 = vadd.f32 %v9944, %v10584
    %v10586 = vpop.f32.mrb[0].mxu0
    %v10587 = vadd.f32 %v9946, %v10586
    %10588 = vmatprep.mubr.f32.mxu0 0.0
    %10589 = vmatmul.mubr.f32.gmra.mrb[0].mxu0 %v10306
    %v10590 = vpop.f32.mrb[0].mxu0
    %v10591 = vadd.f32 %v9950, %v10590
    %v10592 = vpop.f32.mrb[0].mxu0
    %v10593 = vadd.f32 %v9952, %v10592
    %10594 = vmatprep.mubr.f32.mxu0 0.0
    %10595 = vmatmul.mubr.f32.gmra.mrb[0].mxu0 %v10309
    %v10596 = vpop.f32.mrb[0].mxu0
    %v10597 = vadd.f32 %v9956, %v10596
    %v10598 = vpop.f32.mrb[0].mxu0
    %v10599 = vadd.f32 %v9958, %v10598
    %10600 = vmatprep.mubr.f32.mxu0 0.0
    %10601 = vmatmul.mubr.f32.gmra.mrb[0].mxu0 %v10312
    %v10602 = vpop.f32.mrb[0].mxu0
    %v10603 = vadd.f32 %v9962, %v10602
    %v10604 = vpop.f32.mrb[0].mxu0
    %v10605 = vadd.f32 %v9964, %v10604
    %10606 = vmatprep.mubr.f32.mxu0 0.0
    %10607 = vmatmul.mubr.f32.gmra.mrb[0].mxu0 %v10315
    %v10608 = vpop.f32.mrb[0].mxu0
    %v10609 = vadd.f32 %v9968, %v10608
    %v10610 = vpop.f32.mrb[0].mxu0
    %v10611 = vadd.f32 %v9970, %v10610
    %10612 = vmatprep.mubr.f32.mxu0 0.0
    %10613 = vmatmul.mubr.f32.gmra.mrb[0].mxu0 %v10318
    %v10614 = vpop.f32.mrb[0].mxu0
    %v10615 = vadd.f32 %v9974, %v10614
    %v10616 = vpop.f32.mrb[0].mxu0
    %v10617 = vadd.f32 %v9976, %v10616
    %10618 = vmatprep.mubr.f32.mxu0 0.0
    %10619 = vmatmul.mubr.f32.gmra.mrb[0].mxu0 %v10321
    %v10620 = vpop.f32.mrb[0].mxu0
    %v10621 = vadd.f32 %v9980, %v10620
    %v10622 = vpop.f32.mrb[0].mxu0
    %v10623 = vadd.f32 %v9982, %v10622
    %10624 = vmatprep.mubr.f32.mxu0 0.0
    %10625 = vmatmul.mubr.f32.gmra.mrb[0].mxu0 %v10324
    %v10626 = vpop.f32.mrb[0].mxu0
    %v10627 = vadd.f32 %v9986, %v10626
    %v10628 = vpop.f32.mrb[0].mxu0
    %v10629 = vadd.f32 %v9988, %v10628
    %10630 = vmatprep.mubr.f32.mxu0 0.0
    %10631 = vmatmul.mubr.f32.gmra.mrb[0].mxu0 %v10327
    %v10632 = vpop.f32.mrb[0].mxu0
    %v10633 = vadd.f32 %v9992, %v10632
    %v10634 = vpop.f32.mrb[0].mxu0
    %v10635 = vadd.f32 %v9994, %v10634
    %10636 = vmatprep.mubr.f32.mxu0 0.0
    %10637 = vmatmul.mubr.f32.gmra.mrb[0].mxu0 %v10330
    %v10638 = vpop.f32.mrb[0].mxu0
    %v10639 = vadd.f32 %v9998, %v10638
    %v10640 = vpop.f32.mrb[0].mxu0
    %v10641 = vadd.f32 %v10000, %v10640
    %10642 = vmatprep.mubr.f32.mxu0 0.0
    %10643 = vmatmul.mubr.f32.gmra.mrb[0].mxu0 %v10333
    %v10644 = vpop.f32.mrb[0].mxu0
    %v10645 = vadd.f32 %v10004, %v10644
    %v10646 = vpop.f32.mrb[0].mxu0
    %v10647 = vadd.f32 %v10006, %v10646
    %10648 = vmatprep.mubr.f32.mxu0 0.0
    %10649 = vmatmul.mubr.f32.gmra.mrb[0].mxu0 %v10336
    %v10650 = vpop.f32.mrb[0].mxu0
    %v10651 = vadd.f32 %v10010, %v10650
    %v10652 = vpop.f32.mrb[0].mxu0
    %v10653 = vadd.f32 %v10012, %v10652
    %10654 = vmatprep.mubr.f32.mxu0 0.0
    %10655 = vmatmul.mubr.f32.gmra.mrb[0].mxu0 %v10339
    %v10656 = vpop.f32.mrb[0].mxu0
    %v10657 = vadd.f32 %v10016, %v10656
    %v10658 = vpop.f32.mrb[0].mxu0
    %v10659 = vadd.f32 %v10018, %v10658
    %10660 = vmatprep.mubr.f32.mxu0 0.0
    %10661 = vmatmul.mubr.f32.gmra.mrb[0].mxu0 %v10342
    %v10662 = vpop.f32.mrb[0].mxu0
    %v10663 = vadd.f32 %v10022, %v10662
    %v10664 = vpop.f32.mrb[0].mxu0
    %v10665 = vadd.f32 %v10024, %v10664
    %10666 = vmatprep.mubr.f32.mxu0 0.0
    %10667 = vmatmul.mubr.f32.gmra.mrb[0].mxu0 %v10345
    %v10668 = vpop.f32.mrb[0].mxu0
    %v10669 = vadd.f32 %v10028, %v10668
    %v10670 = vpop.f32.mrb[0].mxu0
    %v10671 = vadd.f32 %v10030, %v10670
    %10672 = vmatprep.mubr.f32.mxu0 0.0
    %10673 = vmatmul.mubr.f32.gmra.mrb[0].mxu0 %v10348
    %v10674 = vpop.f32.mrb[0].mxu0
    %v10675 = vadd.f32 %v10034, %v10674
    %v10676 = vpop.f32.mrb[0].mxu0
    %v10677 = vadd.f32 %v10036, %v10676
    %10678 = vmatprep.mubr.f32.mxu0 0.0
    %10679 = vmatmul.mubr.f32.gmra.mrb[0].mxu0 %v10351
    %v10680 = vpop.f32.mrb[0].mxu0
    %v10681 = vadd.f32 %v10040, %v10680
    %v10682 = vpop.f32.mrb[0].mxu0
    %v10683 = vadd.f32 %v10042, %v10682
    %10684 = vmatprep.mubr.f32.mxu0 0.0
    %10685 = vmatmul.mubr.f32.gmra.mrb[0].mxu0 %v10354
    %v10686 = vpop.f32.mrb[0].mxu0
    %v10687 = vadd.f32 %v10046, %v10686
    %v10688 = vpop.f32.mrb[0].mxu0
    %v10689 = vadd.f32 %v10048, %v10688
    %10690 = vmatprep.mubr.f32.mxu0 0.0
    %10691 = vmatmul.mubr.f32.gmra.mrb[0].mxu0 %v10357
    %v10692 = vpop.f32.mrb[0].mxu0
    %v10693 = vadd.f32 %v10052, %v10692
    %v10694 = vpop.f32.mrb[0].mxu0
    %v10695 = vadd.f32 %v10054, %v10694
    %10696 = vmatprep.mubr.f32.mxu0 0.0
    %10697 = vmatmul.mubr.f32.gmra.mrb[0].mxu0 %v10360
    %v10698 = vpop.f32.mrb[0].mxu0
    %v10699 = vadd.f32 %v10058, %v10698
    %v10700 = vpop.f32.mrb[0].mxu0
    %v10701 = vadd.f32 %v10060, %v10700
    %10702 = vmatprep.mubr.f32.mxu0 0.0
    %10703 = vmatmul.mubr.f32.gmra.mrb[0].mxu0 %v10363
    %v10704 = vpop.f32.mrb[0].mxu0
    %v10705 = vadd.f32 %v10064, %v10704
    %v10706 = vpop.f32.mrb[0].mxu0
    %v10707 = vadd.f32 %v10066, %v10706
    %10708 = vmatprep.mubr.f32.mxu0 0.0
    %10709 = vmatmul.mubr.f32.gmra.mrb[0].mxu0 %v10366
    %v10710 = vpop.f32.mrb[0].mxu0
    %v10711 = vadd.f32 %v10070, %v10710
    %v10712 = vpop.f32.mrb[0].mxu0
    %v10713 = vadd.f32 %v10072, %v10712
    %10714 = vmatprep.mubr.f32.mxu0 0.0
    %10715 = vmatmul.mubr.f32.gmra.mrb[0].mxu0 %v10369
    %v10716 = vpop.f32.mrb[0].mxu0
    %v10717 = vadd.f32 %v10076, %v10716
    %v10718 = vpop.f32.mrb[0].mxu0
    %v10719 = vadd.f32 %v10078, %v10718
    %10720 = vmatprep.mubr.f32.mxu0 0.0
    %10721 = vmatmul.mubr.f32.gmra.mrb[0].mxu0 %v10372
    %v10722 = vpop.f32.mrb[0].mxu0
    %v10723 = vadd.f32 %v10082, %v10722
    %v10724 = vpop.f32.mrb[0].mxu0
    %v10725 = vadd.f32 %v10084, %v10724
    %10726 = vmatprep.mubr.f32.mxu0 0.0
    %10727 = vmatmul.mubr.f32.gmra.mrb[0].mxu0 %v10375
    %v10728 = vpop.f32.mrb[0].mxu0
    %v10729 = vadd.f32 %v10088, %v10728
    %v10730 = vpop.f32.mrb[0].mxu0
    %v10731 = vadd.f32 %v10090, %v10730
    %10732 = vmatprep.mubr.f32.mxu0 0.0
    %10733 = vmatmul.mubr.f32.gmra.mrb[0].mxu0 %v10378
    %v10734 = vpop.f32.mrb[0].mxu0
    %v10735 = vadd.f32 %v10094, %v10734
    %v10736 = vpop.f32.mrb[0].mxu0
    %v10737 = vadd.f32 %v10096, %v10736
    %10738 = vmatprep.mubr.f32.mxu0 0.0
    %10739 = vmatmul.mubr.f32.gmra.mrb[0].mxu0 %v10381
    %v10740 = vpop.f32.mrb[0].mxu0
    %v10741 = vadd.f32 %v10100, %v10740
    %v10742 = vpop.f32.mrb[0].mxu0
    %v10743 = vadd.f32 %v10102, %v10742
    %10744 = vmatprep.mubr.f32.mxu0 0.0
    %10745 = vmatmul.mubr.f32.gmra.mrb[0].mxu0 %v10384
    %v10746 = vpop.f32.mrb[0].mxu0
    %v10747 = vadd.f32 %v10106, %v10746
    %v10748 = vpop.f32.mrb[0].mxu0
    %v10749 = vadd.f32 %v10108, %v10748
    %10750 = vmatprep.mubr.f32.mxu0 0.0
    %10751 = vmatmul.mubr.f32.gmra.mrb[0].mxu0 %v10387
    %v10752 = vpop.f32.mrb[0].mxu0
    %v10753 = vadd.f32 %v10112, %v10752
    %v10754 = vpop.f32.mrb[0].mxu0
    %v10755 = vadd.f32 %v10114, %v10754
    %10756 = vmatprep.mubr.f32.mxu0 0.0
    %10757 = vmatmul.mubr.f32.gmra.mrb[0].mxu0 %v10390
    %v10758 = vpop.f32.mrb[0].mxu0
    %v10759 = vadd.f32 %v10118, %v10758
    %v10760 = vpop.f32.mrb[0].mxu0
    %v10761 = vadd.f32 %v10120, %v10760
    %10762 = vmatprep.mubr.f32.mxu0 0.0
    %10763 = vmatmul.mubr.f32.gmra.mrb[0].mxu0 %v10393
    %v10764 = vpop.f32.mrb[0].mxu0
    %v10765 = vadd.f32 %v10124, %v10764
    %v10766 = vpop.f32.mrb[0].mxu0
    %v10767 = vadd.f32 %v10126, %v10766
    %10768 = vmatprep.mubr.f32.mxu0 0.0
    %10769 = vmatmul.mubr.f32.gmra.mrb[0].mxu0 %v10396
    %v10770 = vpop.f32.mrb[0].mxu0
    %v10771 = vadd.f32 %v10130, %v10770
    %v10772 = vpop.f32.mrb[0].mxu0
    %v10773 = vadd.f32 %v10132, %v10772
    %10774 = vmatprep.mubr.f32.mxu0 0.0
    %10775 = vmatmul.mubr.f32.gmra.mrb[0].mxu0 %v10399
    %v10776 = vpop.f32.mrb[0].mxu0
    %v10777 = vadd.f32 %v10136, %v10776
    %v10778 = vpop.f32.mrb[0].mxu0
    %v10779 = vadd.f32 %v10138, %v10778
    %10780 = vmatprep.mubr.f32.mxu0 0.0
    %10781 = vmatmul.mubr.f32.gmra.mrb[0].mxu0 %v10402
    %v10782 = vpop.f32.mrb[0].mxu0
    %v10783 = vadd.f32 %v10142, %v10782
    %v10784 = vpop.f32.mrb[0].mxu0
    %v10785 = vadd.f32 %v10144, %v10784
    %10786 = vmatprep.mubr.f32.mxu0 0.0
    %10787 = vmatmul.mubr.f32.gmra.mrb[0].mxu0 %v10405
    %v10788 = vpop.f32.mrb[0].mxu0
    %v10789 = vadd.f32 %v10148, %v10788
    %v10790 = vpop.f32.mrb[0].mxu0
    %v10791 = vadd.f32 %v10150, %v10790
    %10792 = vmatprep.mubr.f32.mxu0 0.0
    %10793 = vmatmul.mubr.f32.gmra.mrb[0].mxu0 %v10408
    %v10794 = vpop.f32.mrb[0].mxu0
    %v10795 = vadd.f32 %v10154, %v10794
    %v10796 = vpop.f32.mrb[0].mxu0
    %v10797 = vadd.f32 %v10156, %v10796
    %10798 = vmatprep.mubr.f32.mxu0 0.0
    %10799 = vmatmul.mubr.f32.gmra.mrb[0].mxu0 %v10411
    %v10800 = vpop.f32.mrb[0].mxu0
    %v10801 = vadd.f32 %v10160, %v10800
    %v10802 = vpop.f32.mrb[0].mxu0
    %v10803 = vadd.f32 %v10162, %v10802
    %10804 = vmatprep.mubr.f32.mxu0 0.0
    %10805 = vmatmul.mubr.f32.gmra.mrb[0].mxu0 %v10414
    %v10806 = vpop.f32.mrb[0].mxu0
    %v10807 = vadd.f32 %v10166, %v10806
    %v10808 = vpop.f32.mrb[0].mxu0
    %v10809 = vadd.f32 %v10168, %v10808
    %10810 = vmatprep.mubr.f32.mxu0 0.0
    %10811 = vmatmul.mubr.f32.gmra.mrb[0].mxu0 %v10417
    %v10812 = vpop.f32.mrb[0].mxu0
    %v10813 = vadd.f32 %v10172, %v10812
    %v10814 = vpop.f32.mrb[0].mxu0
    %v10815 = vadd.f32 %v10174, %v10814
    %10816 = vmatprep.mubr.f32.mxu0 0.0
    %10817 = vmatmul.mubr.f32.gmra.mrb[0].mxu0 %v10420
    %v10818 = vpop.f32.mrb[0].mxu0
    %v10819 = vadd.f32 %v10178, %v10818
    %v10820 = vpop.f32.mrb[0].mxu0
    %v10821 = vadd.f32 %v10180, %v10820
    %10822 = vmatprep.mubr.f32.mxu0 0.0
    %10823 = vmatmul.mubr.f32.gmra.mrb[0].mxu0 %v10423
    %v10824 = vpop.f32.mrb[0].mxu0
    %v10825 = vadd.f32 %v10184, %v10824
    %v10826 = vpop.f32.mrb[0].mxu0
    %v10827 = vadd.f32 %v10186, %v10826
    %10828 = vmatprep.mubr.f32.mxu0 0.0
    %10829 = vmatmul.mubr.f32.gmra.mrb[0].mxu0 %v10426
    %v10830 = vpop.f32.mrb[0].mxu0
    %v10831 = vadd.f32 %v10190, %v10830
    %v10832 = vpop.f32.mrb[0].mxu0
    %v10833 = vadd.f32 %v10192, %v10832
    %10834 = vmatprep.mubr.f32.mxu0 0.0
    %10835 = vmatmul.mubr.f32.gmra.mrb[0].mxu0 %v10429
    %v10836 = vpop.f32.mrb[0].mxu0
    %v10837 = vadd.f32 %v10196, %v10836
    %v10838 = vpop.f32.mrb[0].mxu0
    %v10839 = vadd.f32 %v10198, %v10838
    %10840 = vmatprep.mubr.f32.mxu0 0.0
    %10841 = vmatmul.mubr.f32.gmra.mrb[0].mxu0 %v10432
    %v10842 = vpop.f32.mrb[0].mxu0
    %v10843 = vadd.f32 %v10202, %v10842
    %v10844 = vpop.f32.mrb[0].mxu0
    %v10845 = vadd.f32 %v10204, %v10844
    %10846 = vmatprep.mubr.f32.mxu0 0.0
    %10847 = vmatmul.mubr.f32.gmra.mrb[0].mxu0 %v10435
    %v10848 = vpop.f32.mrb[0].mxu0
    %v10849 = vadd.f32 %v10208, %v10848
    %v10850 = vpop.f32.mrb[0].mxu0
    %v10851 = vadd.f32 %v10210, %v10850
    %10852 = vmatprep.mubr.f32.mxu0 0.0
    %10853 = vmatmul.mubr.f32.gmra.mrb[0].mxu0 %v10438
    %v10854 = vpop.f32.mrb[0].mxu0
    %v10855 = vadd.f32 %v10214, %v10854
    %v10856 = vpop.f32.mrb[0].mxu0
    %v10857 = vadd.f32 %v10216, %v10856
    %10858 = vmatprep.mubr.f32.mxu0 0.0
    %10859 = vmatmul.mubr.f32.gmra.mrb[0].mxu0 %v10441
    %v10860 = vpop.f32.mrb[0].mxu0
    %v10861 = vadd.f32 %v10220, %v10860
    %v10862 = vpop.f32.mrb[0].mxu0
    %v10863 = vadd.f32 %v10222, %v10862
    %10864 = vmatprep.mubr.f32.mxu0 0.0
    %10865 = vmatmul.mubr.f32.gmra.mrb[0].mxu0 %v10444
    %v10866 = vpop.f32.mrb[0].mxu0
    %v10867 = vadd.f32 %v10226, %v10866
    %v10868 = vpop.f32.mrb[0].mxu0
    %v10869 = vadd.f32 %v10228, %v10868
    %10870 = vmatprep.mubr.f32.mxu0 0.0
    %10871 = vmatmul.mubr.f32.gmra.mrb[0].mxu0 %v10447
    %v10872 = vpop.f32.mrb[0].mxu0
    %v10873 = vadd.f32 %v10232, %v10872
    %v10874 = vpop.f32.mrb[0].mxu0
    %v10875 = vadd.f32 %v10234, %v10874
    %10876 = vmatprep.mubr.f32.mxu0 0.0
    %10877 = vmatmul.mubr.f32.gmra.mrb[0].mxu0 %v10450
    %v10878 = vpop.f32.mrb[0].mxu0
    %v10879 = vadd.f32 %v10238, %v10878
    %v10880 = vpop.f32.mrb[0].mxu0
    %v10881 = vadd.f32 %v10240, %v10880
    %10882 = vmatprep.mubr.f32.mxu0 0.0
    %10883 = vmatmul.mubr.f32.gmra.mrb[0].mxu0 %v10453
    %v10884 = vpop.f32.mrb[0].mxu0
    %v10885 = vadd.f32 %v10244, %v10884
    %v10886 = vpop.f32.mrb[0].mxu0
    %v10887 = vadd.f32 %v10246, %v10886
    %10888 = vmatprep.mubr.f32.mxu0 0.0
    %10889 = vmatmul.mubr.f32.gmra.mrb[0].mxu0 %v10456
    %v10890 = vpop.f32.mrb[0].mxu0
    %v10891 = vadd.f32 %v10250, %v10890
    %v10892 = vpop.f32.mrb[0].mxu0
    %v10893 = vadd.f32 %v10252, %v10892
    %10894 = vmatprep.mubr.f32.mxu0 0.0
    %10895 = vmatmul.mubr.f32.gmra.mrb[0].mxu0 %v10459
    %v10896 = vpop.f32.mrb[0].mxu0
    %v10897 = vadd.f32 %v10256, %v10896
    %v10898 = vpop.f32.mrb[0].mxu0
    %v10899 = vadd.f32 %v10258, %v10898
    %10900 = vmatprep.mubr.f32.mxu0 0.0
    %10901 = vmatmul.mubr.f32.gmra.mrb[0].mxu0 %v10462
    %v10902 = vpop.f32.mrb[0].mxu0
    %v10903 = vadd.f32 %v10262, %v10902
    %v10904 = vpop.f32.mrb[0].mxu0
    %v10905 = vadd.f32 %v10264, %v10904
    %10906 = vmatprep.mubr.f32.mxu0 0.0
    %10907 = vmatmul.mubr.f32.gmra.mrb[0].mxu0 %v10465
    %v10908 = vpop.f32.mrb[0].mxu0
    %v10909 = vadd.f32 %v10268, %v10908
    %v10910 = vpop.f32.mrb[0].mxu0
    %v10911 = vadd.f32 %v10270, %v10910
    %10912 = vmatprep.mubr.f32.mxu0 0.0
    %10913 = vmatmul.mubr.f32.gmra.mrb[0].mxu0 %v10468
    %v10914 = vpop.f32.mrb[0].mxu0
    %v10915 = vadd.f32 %v10274, %v10914
    %v10916 = vpop.f32.mrb[0].mxu0
    %v10917 = vadd.f32 %v10276, %v10916
    %10918 = vdwg.mxu0
    %v10920 = vsel %vm6925, %v9573, 0
    %v10923 = vsel %vm6925, %v9574, 0
    %v10926 = vsel %vm6925, %v9575, 0
    %v10929 = vsel %vm6925, %v9576, 0
    %v10932 = vsel %vm6925, %v9577, 0
    %v10935 = vsel %vm6925, %v9578, 0
    %v10938 = vsel %vm6925, %v9579, 0
    %v10941 = vsel %vm6925, %v9580, 0
    %v10944 = vsel %vm6925, %v9581, 0
    %v10947 = vsel %vm6925, %v9582, 0
    %v10950 = vsel %vm6925, %v9583, 0
    %v10953 = vsel %vm6925, %v9584, 0
    %v10956 = vsel %vm6925, %v9585, 0
    %v10959 = vsel %vm6925, %v9586, 0
    %v10962 = vsel %vm6925, %v9587, 0
    %v10965 = vsel %vm6925, %v9588, 0
    %v10968 = vsel %vm6925, %v9589, 0
    %v10971 = vsel %vm6925, %v9590, 0
    %v10974 = vsel %vm6925, %v9591, 0
    %v10977 = vsel %vm6925, %v9592, 0
    %v10980 = vsel %vm6925, %v9593, 0
    %v10983 = vsel %vm6925, %v9594, 0
    %v10986 = vsel %vm6925, %v9595, 0
    %v10989 = vsel %vm6925, %v9596, 0
    %v10992 = vsel %vm6925, %v9597, 0
    %v10995 = vsel %vm6925, %v9598, 0
    %v10998 = vsel %vm6925, %v9599, 0
    %v11001 = vsel %vm6925, %v9600, 0
    %v11004 = vsel %vm6925, %v9601, 0
    %v11007 = vsel %vm6925, %v9602, 0
    %v11010 = vsel %vm6925, %v9603, 0
    %v11013 = vsel %vm6925, %v9604, 0
    %v11016 = vsel %vm6925, %v9605, 0
    %v11019 = vsel %vm6925, %v9606, 0
    %v11022 = vsel %vm6925, %v9607, 0
    %v11025 = vsel %vm6925, %v9608, 0
    %v11028 = vsel %vm6925, %v9609, 0
    %v11031 = vsel %vm6925, %v9610, 0
    %v11034 = vsel %vm6925, %v9611, 0
    %v11037 = vsel %vm6925, %v9612, 0
    %v11040 = vsel %vm6925, %v9613, 0
    %v11043 = vsel %vm6925, %v9614, 0
    %v11046 = vsel %vm6925, %v9615, 0
    %v11049 = vsel %vm6925, %v9616, 0
    %v11052 = vsel %vm6925, %v9617, 0
    %v11055 = vsel %vm6925, %v9618, 0
    %v11058 = vsel %vm6925, %v9619, 0
    %v11061 = vsel %vm6925, %v9620, 0
    %v11064 = vsel %vm6925, %v9621, 0
    %v11067 = vsel %vm6925, %v9622, 0
    %v11070 = vsel %vm6925, %v9623, 0
    %v11073 = vsel %vm6925, %v9624, 0
    %v11076 = vsel %vm6925, %v9625, 0
    %v11079 = vsel %vm6925, %v9626, 0
    %v11082 = vsel %vm6925, %v9627, 0
    %v11085 = vsel %vm6925, %v9628, 0
    %v11088 = vsel %vm6925, %v9629, 0
    %v11091 = vsel %vm6925, %v9630, 0
    %v11094 = vsel %vm6925, %v9631, 0
    %v11097 = vsel %vm6925, %v9632, 0
    %v11100 = vsel %vm6925, %v9633, 0
    %v11103 = vsel %vm6925, %v9634, 0
    %v11106 = vsel %vm6925, %v9635, 0
    %v11109 = vsel %vm6925, %v9636, 0
    %11111 = vmatprep.subr.mxu0 %v9231
    %11112 = vmatpush1.msra.mxu0 %v9231
    %11113 = vmatprep.subr.mxu0 %v9232
    %11114 = vmatpush1.msra.mxu0 %v9232
    %11115 = vmatprep.subr.mxu0 %v9233
    %11116 = vmatpush1.msra.mxu0 %v9233
    %11117 = vmatprep.subr.mxu0 %v9234
    %11118 = vmatpush1.msra.mxu0 %v9234
    %11119 = vmatprep.subr.mxu0 %v9235
    %11120 = vmatpush1.msra.mxu0 %v9235
    %11121 = vmatprep.subr.mxu0 %v9236
    %11122 = vmatpush1.msra.mxu0 %v9236
    %11123 = vmatprep.subr.mxu0 %v9237
    %11124 = vmatpush1.msra.mxu0 %v9237
    %11125 = vmatprep.subr.mxu0 %v9238
    %11126 = vmatpush1.msra.mxu0 %v9238
    %11127 = vmatprep.subr.mxu0 0.0
    %11128 = vmatpush1.msra.mxu0 0.0
    %11129 = vmatprep.subr.mxu0 0.0
    %11130 = vmatpush1.msra.mxu0 0.0
    %11131 = vmatprep.subr.mxu0 0.0
    %11132 = vmatpush1.msra.mxu0 0.0
    %11133 = vmatprep.subr.mxu0 0.0
    %11134 = vmatpush1.msra.mxu0 0.0
    %11135 = vmatprep.subr.mxu0 0.0
    %11136 = vmatpush1.msra.mxu0 0.0
    %11137 = vmatprep.subr.mxu0 0.0
    %11138 = vmatpush1.msra.mxu0 0.0
    %11139 = vmatprep.subr.mxu0 0.0
    %11140 = vmatpush1.msra.mxu0 0.0
    %11141 = vmatprep.subr.mxu0 0.0
    %11142 = vmatpush1.msra.mxu0 0.0
    %11143 = vmatprep.subr.mxu0 0.0
    %11144 = vmatpush1.msra.mxu0 0.0
    %11145 = vmatprep.subr.mxu0 0.0
    %11146 = vmatpush1.msra.mxu0 0.0
    %11147 = vmatprep.subr.mxu0 0.0
    %11148 = vmatpush1.msra.mxu0 0.0
    %11149 = vmatprep.subr.mxu0 0.0
    %11150 = vmatpush1.msra.mxu0 0.0
    %11151 = vmatprep.subr.mxu0 0.0
    %11152 = vmatpush1.msra.mxu0 0.0
    %11153 = vmatprep.subr.mxu0 0.0
    %11154 = vmatpush1.msra.mxu0 0.0
    %11155 = vmatprep.subr.mxu0 0.0
    %11156 = vmatpush1.msra.mxu0 0.0
    %11157 = vmatprep.subr.mxu0 0.0
    %11158 = vmatpush1.msra.mxu0 0.0
    %11159 = vmatprep.subr.mxu0 0.0
    %11160 = vmatpush1.msra.mxu0 0.0
    %11161 = vmatprep.subr.mxu0 0.0
    %11162 = vmatpush1.msra.mxu0 0.0
    %11163 = vmatprep.subr.mxu0 0.0
    %11164 = vmatpush1.msra.mxu0 0.0
    %11165 = vmatprep.subr.mxu0 0.0
    %11166 = vmatpush1.msra.mxu0 0.0
    %11167 = vmatprep.subr.mxu0 0.0
    %11168 = vmatpush1.msra.mxu0 0.0
    %11169 = vmatprep.subr.mxu0 0.0
    %11170 = vmatpush1.msra.mxu0 0.0
    %11171 = vmatprep.subr.mxu0 0.0
    %11172 = vmatpush1.msra.mxu0 0.0
    %11173 = vmatprep.subr.mxu0 0.0
    %11174 = vmatpush1.msra.mxu0 0.0
    %11175 = vmatprep.mubr.f32.mxu0 0.0
    %11176 = vmatmul.mubr.f32.gmra.mrb[0].mxu0 %v10920
    %v11177 = vpop.f32.mrb[0].mxu0
    %v11178 = vadd.f32 0.0, %v11177
    %v11179 = vpop.f32.mrb[0].mxu0
    %v11180 = vadd.f32 0.0, %v11179
    %11181 = vmatprep.mubr.f32.mxu0 0.0
    %11182 = vmatmul.mubr.f32.gmra.mrb[0].mxu0 %v10923
    %v11183 = vpop.f32.mrb[0].mxu0
    %v11184 = vadd.f32 0.0, %v11183
    %v11185 = vpop.f32.mrb[0].mxu0
    %v11186 = vadd.f32 0.0, %v11185
    %11187 = vmatprep.mubr.f32.mxu0 0.0
    %11188 = vmatmul.mubr.f32.gmra.mrb[0].mxu0 %v10926
    %v11189 = vpop.f32.mrb[0].mxu0
    %v11190 = vadd.f32 0.0, %v11189
    %v11191 = vpop.f32.mrb[0].mxu0
    %v11192 = vadd.f32 0.0, %v11191
    %11193 = vmatprep.mubr.f32.mxu0 0.0
    %11194 = vmatmul.mubr.f32.gmra.mrb[0].mxu0 %v10929
    %v11195 = vpop.f32.mrb[0].mxu0
    %v11196 = vadd.f32 0.0, %v11195
    %v11197 = vpop.f32.mrb[0].mxu0
    %v11198 = vadd.f32 0.0, %v11197
    %11199 = vmatprep.mubr.f32.mxu0 0.0
    %11200 = vmatmul.mubr.f32.gmra.mrb[0].mxu0 %v10932
    %v11201 = vpop.f32.mrb[0].mxu0
    %v11202 = vadd.f32 0.0, %v11201
    %v11203 = vpop.f32.mrb[0].mxu0
    %v11204 = vadd.f32 0.0, %v11203
    %11205 = vmatprep.mubr.f32.mxu0 0.0
    %11206 = vmatmul.mubr.f32.gmra.mrb[0].mxu0 %v10935
    %v11207 = vpop.f32.mrb[0].mxu0
    %v11208 = vadd.f32 0.0, %v11207
    %v11209 = vpop.f32.mrb[0].mxu0
    %v11210 = vadd.f32 0.0, %v11209
    %11211 = vmatprep.mubr.f32.mxu0 0.0
    %11212 = vmatmul.mubr.f32.gmra.mrb[0].mxu0 %v10938
    %v11213 = vpop.f32.mrb[0].mxu0
    %v11214 = vadd.f32 0.0, %v11213
    %v11215 = vpop.f32.mrb[0].mxu0
    %v11216 = vadd.f32 0.0, %v11215
    %11217 = vmatprep.mubr.f32.mxu0 0.0
    %11218 = vmatmul.mubr.f32.gmra.mrb[0].mxu0 %v10941
    %v11219 = vpop.f32.mrb[0].mxu0
    %v11220 = vadd.f32 0.0, %v11219
    %v11221 = vpop.f32.mrb[0].mxu0
    %v11222 = vadd.f32 0.0, %v11221
    %11223 = vmatprep.mubr.f32.mxu0 0.0
    %11224 = vmatmul.mubr.f32.gmra.mrb[0].mxu0 %v10944
    %v11225 = vpop.f32.mrb[0].mxu0
    %v11226 = vadd.f32 0.0, %v11225
    %v11227 = vpop.f32.mrb[0].mxu0
    %v11228 = vadd.f32 0.0, %v11227
    %11229 = vmatprep.mubr.f32.mxu0 0.0
    %11230 = vmatmul.mubr.f32.gmra.mrb[0].mxu0 %v10947
    %v11231 = vpop.f32.mrb[0].mxu0
    %v11232 = vadd.f32 0.0, %v11231
    %v11233 = vpop.f32.mrb[0].mxu0
    %v11234 = vadd.f32 0.0, %v11233
    %11235 = vmatprep.mubr.f32.mxu0 0.0
    %11236 = vmatmul.mubr.f32.gmra.mrb[0].mxu0 %v10950
    %v11237 = vpop.f32.mrb[0].mxu0
    %v11238 = vadd.f32 0.0, %v11237
    %v11239 = vpop.f32.mrb[0].mxu0
    %v11240 = vadd.f32 0.0, %v11239
    %11241 = vmatprep.mubr.f32.mxu0 0.0
    %11242 = vmatmul.mubr.f32.gmra.mrb[0].mxu0 %v10953
    %v11243 = vpop.f32.mrb[0].mxu0
    %v11244 = vadd.f32 0.0, %v11243
    %v11245 = vpop.f32.mrb[0].mxu0
    %v11246 = vadd.f32 0.0, %v11245
    %11247 = vmatprep.mubr.f32.mxu0 0.0
    %11248 = vmatmul.mubr.f32.gmra.mrb[0].mxu0 %v10956
    %v11249 = vpop.f32.mrb[0].mxu0
    %v11250 = vadd.f32 0.0, %v11249
    %v11251 = vpop.f32.mrb[0].mxu0
    %v11252 = vadd.f32 0.0, %v11251
    %11253 = vmatprep.mubr.f32.mxu0 0.0
    %11254 = vmatmul.mubr.f32.gmra.mrb[0].mxu0 %v10959
    %v11255 = vpop.f32.mrb[0].mxu0
    %v11256 = vadd.f32 0.0, %v11255
    %v11257 = vpop.f32.mrb[0].mxu0
    %v11258 = vadd.f32 0.0, %v11257
    %11259 = vmatprep.mubr.f32.mxu0 0.0
    %11260 = vmatmul.mubr.f32.gmra.mrb[0].mxu0 %v10962
    %v11261 = vpop.f32.mrb[0].mxu0
    %v11262 = vadd.f32 0.0, %v11261
    %v11263 = vpop.f32.mrb[0].mxu0
    %v11264 = vadd.f32 0.0, %v11263
    %11265 = vmatprep.mubr.f32.mxu0 0.0
    %11266 = vmatmul.mubr.f32.gmra.mrb[0].mxu0 %v10965
    %v11267 = vpop.f32.mrb[0].mxu0
    %v11268 = vadd.f32 0.0, %v11267
    %v11269 = vpop.f32.mrb[0].mxu0
    %v11270 = vadd.f32 0.0, %v11269
    %11271 = vmatprep.mubr.f32.mxu0 0.0
    %11272 = vmatmul.mubr.f32.gmra.mrb[0].mxu0 %v10968
    %v11273 = vpop.f32.mrb[0].mxu0
    %v11274 = vadd.f32 0.0, %v11273
    %v11275 = vpop.f32.mrb[0].mxu0
    %v11276 = vadd.f32 0.0, %v11275
    %11277 = vmatprep.mubr.f32.mxu0 0.0
    %11278 = vmatmul.mubr.f32.gmra.mrb[0].mxu0 %v10971
    %v11279 = vpop.f32.mrb[0].mxu0
    %v11280 = vadd.f32 0.0, %v11279
    %v11281 = vpop.f32.mrb[0].mxu0
    %v11282 = vadd.f32 0.0, %v11281
    %11283 = vmatprep.mubr.f32.mxu0 0.0
    %11284 = vmatmul.mubr.f32.gmra.mrb[0].mxu0 %v10974
    %v11285 = vpop.f32.mrb[0].mxu0
    %v11286 = vadd.f32 0.0, %v11285
    %v11287 = vpop.f32.mrb[0].mxu0
    %v11288 = vadd.f32 0.0, %v11287
    %11289 = vmatprep.mubr.f32.mxu0 0.0
    %11290 = vmatmul.mubr.f32.gmra.mrb[0].mxu0 %v10977
    %v11291 = vpop.f32.mrb[0].mxu0
    %v11292 = vadd.f32 0.0, %v11291
    %v11293 = vpop.f32.mrb[0].mxu0
    %v11294 = vadd.f32 0.0, %v11293
    %11295 = vmatprep.mubr.f32.mxu0 0.0
    %11296 = vmatmul.mubr.f32.gmra.mrb[0].mxu0 %v10980
    %v11297 = vpop.f32.mrb[0].mxu0
    %v11298 = vadd.f32 0.0, %v11297
    %v11299 = vpop.f32.mrb[0].mxu0
    %v11300 = vadd.f32 0.0, %v11299
    %11301 = vmatprep.mubr.f32.mxu0 0.0
    %11302 = vmatmul.mubr.f32.gmra.mrb[0].mxu0 %v10983
    %v11303 = vpop.f32.mrb[0].mxu0
    %v11304 = vadd.f32 0.0, %v11303
    %v11305 = vpop.f32.mrb[0].mxu0
    %v11306 = vadd.f32 0.0, %v11305
    %11307 = vmatprep.mubr.f32.mxu0 0.0
    %11308 = vmatmul.mubr.f32.gmra.mrb[0].mxu0 %v10986
    %v11309 = vpop.f32.mrb[0].mxu0
    %v11310 = vadd.f32 0.0, %v11309
    %v11311 = vpop.f32.mrb[0].mxu0
    %v11312 = vadd.f32 0.0, %v11311
    %11313 = vmatprep.mubr.f32.mxu0 0.0
    %11314 = vmatmul.mubr.f32.gmra.mrb[0].mxu0 %v10989
    %v11315 = vpop.f32.mrb[0].mxu0
    %v11316 = vadd.f32 0.0, %v11315
    %v11317 = vpop.f32.mrb[0].mxu0
    %v11318 = vadd.f32 0.0, %v11317
    %11319 = vmatprep.mubr.f32.mxu0 0.0
    %11320 = vmatmul.mubr.f32.gmra.mrb[0].mxu0 %v10992
    %v11321 = vpop.f32.mrb[0].mxu0
    %v11322 = vadd.f32 0.0, %v11321
    %v11323 = vpop.f32.mrb[0].mxu0
    %v11324 = vadd.f32 0.0, %v11323
    %11325 = vmatprep.mubr.f32.mxu0 0.0
    %11326 = vmatmul.mubr.f32.gmra.mrb[0].mxu0 %v10995
    %v11327 = vpop.f32.mrb[0].mxu0
    %v11328 = vadd.f32 0.0, %v11327
    %v11329 = vpop.f32.mrb[0].mxu0
    %v11330 = vadd.f32 0.0, %v11329
    %11331 = vmatprep.mubr.f32.mxu0 0.0
    %11332 = vmatmul.mubr.f32.gmra.mrb[0].mxu0 %v10998
    %v11333 = vpop.f32.mrb[0].mxu0
    %v11334 = vadd.f32 0.0, %v11333
    %v11335 = vpop.f32.mrb[0].mxu0
    %v11336 = vadd.f32 0.0, %v11335
    %11337 = vmatprep.mubr.f32.mxu0 0.0
    %11338 = vmatmul.mubr.f32.gmra.mrb[0].mxu0 %v11001
    %v11339 = vpop.f32.mrb[0].mxu0
    %v11340 = vadd.f32 0.0, %v11339
    %v11341 = vpop.f32.mrb[0].mxu0
    %v11342 = vadd.f32 0.0, %v11341
    %11343 = vmatprep.mubr.f32.mxu0 0.0
    %11344 = vmatmul.mubr.f32.gmra.mrb[0].mxu0 %v11004
    %v11345 = vpop.f32.mrb[0].mxu0
    %v11346 = vadd.f32 0.0, %v11345
    %v11347 = vpop.f32.mrb[0].mxu0
    %v11348 = vadd.f32 0.0, %v11347
    %11349 = vmatprep.mubr.f32.mxu0 0.0
    %11350 = vmatmul.mubr.f32.gmra.mrb[0].mxu0 %v11007
    %v11351 = vpop.f32.mrb[0].mxu0
    %v11352 = vadd.f32 0.0, %v11351
    %v11353 = vpop.f32.mrb[0].mxu0
    %v11354 = vadd.f32 0.0, %v11353
    %11355 = vmatprep.mubr.f32.mxu0 0.0
    %11356 = vmatmul.mubr.f32.gmra.mrb[0].mxu0 %v11010
    %v11357 = vpop.f32.mrb[0].mxu0
    %v11358 = vadd.f32 0.0, %v11357
    %v11359 = vpop.f32.mrb[0].mxu0
    %v11360 = vadd.f32 0.0, %v11359
    %11361 = vmatprep.mubr.f32.mxu0 0.0
    %11362 = vmatmul.mubr.f32.gmra.mrb[0].mxu0 %v11013
    %v11363 = vpop.f32.mrb[0].mxu0
    %v11364 = vadd.f32 0.0, %v11363
    %v11365 = vpop.f32.mrb[0].mxu0
    %v11366 = vadd.f32 0.0, %v11365
    %11367 = vmatprep.mubr.f32.mxu0 0.0
    %11368 = vmatmul.mubr.f32.gmra.mrb[0].mxu0 %v11016
    %v11369 = vpop.f32.mrb[0].mxu0
    %v11370 = vadd.f32 0.0, %v11369
    %v11371 = vpop.f32.mrb[0].mxu0
    %v11372 = vadd.f32 0.0, %v11371
    %11373 = vmatprep.mubr.f32.mxu0 0.0
    %11374 = vmatmul.mubr.f32.gmra.mrb[0].mxu0 %v11019
    %v11375 = vpop.f32.mrb[0].mxu0
    %v11376 = vadd.f32 0.0, %v11375
    %v11377 = vpop.f32.mrb[0].mxu0
    %v11378 = vadd.f32 0.0, %v11377
    %11379 = vmatprep.mubr.f32.mxu0 0.0
    %11380 = vmatmul.mubr.f32.gmra.mrb[0].mxu0 %v11022
    %v11381 = vpop.f32.mrb[0].mxu0
    %v11382 = vadd.f32 0.0, %v11381
    %v11383 = vpop.f32.mrb[0].mxu0
    %v11384 = vadd.f32 0.0, %v11383
    %11385 = vmatprep.mubr.f32.mxu0 0.0
    %11386 = vmatmul.mubr.f32.gmra.mrb[0].mxu0 %v11025
    %v11387 = vpop.f32.mrb[0].mxu0
    %v11388 = vadd.f32 0.0, %v11387
    %v11389 = vpop.f32.mrb[0].mxu0
    %v11390 = vadd.f32 0.0, %v11389
    %11391 = vmatprep.mubr.f32.mxu0 0.0
    %11392 = vmatmul.mubr.f32.gmra.mrb[0].mxu0 %v11028
    %v11393 = vpop.f32.mrb[0].mxu0
    %v11394 = vadd.f32 0.0, %v11393
    %v11395 = vpop.f32.mrb[0].mxu0
    %v11396 = vadd.f32 0.0, %v11395
    %11397 = vmatprep.mubr.f32.mxu0 0.0
    %11398 = vmatmul.mubr.f32.gmra.mrb[0].mxu0 %v11031
    %v11399 = vpop.f32.mrb[0].mxu0
    %v11400 = vadd.f32 0.0, %v11399
    %v11401 = vpop.f32.mrb[0].mxu0
    %v11402 = vadd.f32 0.0, %v11401
    %11403 = vmatprep.mubr.f32.mxu0 0.0
    %11404 = vmatmul.mubr.f32.gmra.mrb[0].mxu0 %v11034
    %v11405 = vpop.f32.mrb[0].mxu0
    %v11406 = vadd.f32 0.0, %v11405
    %v11407 = vpop.f32.mrb[0].mxu0
    %v11408 = vadd.f32 0.0, %v11407
    %11409 = vmatprep.mubr.f32.mxu0 0.0
    %11410 = vmatmul.mubr.f32.gmra.mrb[0].mxu0 %v11037
    %v11411 = vpop.f32.mrb[0].mxu0
    %v11412 = vadd.f32 0.0, %v11411
    %v11413 = vpop.f32.mrb[0].mxu0
    %v11414 = vadd.f32 0.0, %v11413
    %11415 = vmatprep.mubr.f32.mxu0 0.0
    %11416 = vmatmul.mubr.f32.gmra.mrb[0].mxu0 %v11040
    %v11417 = vpop.f32.mrb[0].mxu0
    %v11418 = vadd.f32 0.0, %v11417
    %v11419 = vpop.f32.mrb[0].mxu0
    %v11420 = vadd.f32 0.0, %v11419
    %11421 = vmatprep.mubr.f32.mxu0 0.0
    %11422 = vmatmul.mubr.f32.gmra.mrb[0].mxu0 %v11043
    %v11423 = vpop.f32.mrb[0].mxu0
    %v11424 = vadd.f32 0.0, %v11423
    %v11425 = vpop.f32.mrb[0].mxu0
    %v11426 = vadd.f32 0.0, %v11425
    %11427 = vmatprep.mubr.f32.mxu0 0.0
    %11428 = vmatmul.mubr.f32.gmra.mrb[0].mxu0 %v11046
    %v11429 = vpop.f32.mrb[0].mxu0
    %v11430 = vadd.f32 0.0, %v11429
    %v11431 = vpop.f32.mrb[0].mxu0
    %v11432 = vadd.f32 0.0, %v11431
    %11433 = vmatprep.mubr.f32.mxu0 0.0
    %11434 = vmatmul.mubr.f32.gmra.mrb[0].mxu0 %v11049
    %v11435 = vpop.f32.mrb[0].mxu0
    %v11436 = vadd.f32 0.0, %v11435
    %v11437 = vpop.f32.mrb[0].mxu0
    %v11438 = vadd.f32 0.0, %v11437
    %11439 = vmatprep.mubr.f32.mxu0 0.0
    %11440 = vmatmul.mubr.f32.gmra.mrb[0].mxu0 %v11052
    %v11441 = vpop.f32.mrb[0].mxu0
    %v11442 = vadd.f32 0.0, %v11441
    %v11443 = vpop.f32.mrb[0].mxu0
    %v11444 = vadd.f32 0.0, %v11443
    %11445 = vmatprep.mubr.f32.mxu0 0.0
    %11446 = vmatmul.mubr.f32.gmra.mrb[0].mxu0 %v11055
    %v11447 = vpop.f32.mrb[0].mxu0
    %v11448 = vadd.f32 0.0, %v11447
    %v11449 = vpop.f32.mrb[0].mxu0
    %v11450 = vadd.f32 0.0, %v11449
    %11451 = vmatprep.mubr.f32.mxu0 0.0
    %11452 = vmatmul.mubr.f32.gmra.mrb[0].mxu0 %v11058
    %v11453 = vpop.f32.mrb[0].mxu0
    %v11454 = vadd.f32 0.0, %v11453
    %v11455 = vpop.f32.mrb[0].mxu0
    %v11456 = vadd.f32 0.0, %v11455
    %11457 = vmatprep.mubr.f32.mxu0 0.0
    %11458 = vmatmul.mubr.f32.gmra.mrb[0].mxu0 %v11061
    %v11459 = vpop.f32.mrb[0].mxu0
    %v11460 = vadd.f32 0.0, %v11459
    %v11461 = vpop.f32.mrb[0].mxu0
    %v11462 = vadd.f32 0.0, %v11461
    %11463 = vmatprep.mubr.f32.mxu0 0.0
    %11464 = vmatmul.mubr.f32.gmra.mrb[0].mxu0 %v11064
    %v11465 = vpop.f32.mrb[0].mxu0
    %v11466 = vadd.f32 0.0, %v11465
    %v11467 = vpop.f32.mrb[0].mxu0
    %v11468 = vadd.f32 0.0, %v11467
    %11469 = vmatprep.mubr.f32.mxu0 0.0
    %11470 = vmatmul.mubr.f32.gmra.mrb[0].mxu0 %v11067
    %v11471 = vpop.f32.mrb[0].mxu0
    %v11472 = vadd.f32 0.0, %v11471
    %v11473 = vpop.f32.mrb[0].mxu0
    %v11474 = vadd.f32 0.0, %v11473
    %11475 = vmatprep.mubr.f32.mxu0 0.0
    %11476 = vmatmul.mubr.f32.gmra.mrb[0].mxu0 %v11070
    %v11477 = vpop.f32.mrb[0].mxu0
    %v11478 = vadd.f32 0.0, %v11477
    %v11479 = vpop.f32.mrb[0].mxu0
    %v11480 = vadd.f32 0.0, %v11479
    %11481 = vmatprep.mubr.f32.mxu0 0.0
    %11482 = vmatmul.mubr.f32.gmra.mrb[0].mxu0 %v11073
    %v11483 = vpop.f32.mrb[0].mxu0
    %v11484 = vadd.f32 0.0, %v11483
    %v11485 = vpop.f32.mrb[0].mxu0
    %v11486 = vadd.f32 0.0, %v11485
    %11487 = vmatprep.mubr.f32.mxu0 0.0
    %11488 = vmatmul.mubr.f32.gmra.mrb[0].mxu0 %v11076
    %v11489 = vpop.f32.mrb[0].mxu0
    %v11490 = vadd.f32 0.0, %v11489
    %v11491 = vpop.f32.mrb[0].mxu0
    %v11492 = vadd.f32 0.0, %v11491
    %11493 = vmatprep.mubr.f32.mxu0 0.0
    %11494 = vmatmul.mubr.f32.gmra.mrb[0].mxu0 %v11079
    %v11495 = vpop.f32.mrb[0].mxu0
    %v11496 = vadd.f32 0.0, %v11495
    %v11497 = vpop.f32.mrb[0].mxu0
    %v11498 = vadd.f32 0.0, %v11497
    %11499 = vmatprep.mubr.f32.mxu0 0.0
    %11500 = vmatmul.mubr.f32.gmra.mrb[0].mxu0 %v11082
    %v11501 = vpop.f32.mrb[0].mxu0
    %v11502 = vadd.f32 0.0, %v11501
    %v11503 = vpop.f32.mrb[0].mxu0
    %v11504 = vadd.f32 0.0, %v11503
    %11505 = vmatprep.mubr.f32.mxu0 0.0
    %11506 = vmatmul.mubr.f32.gmra.mrb[0].mxu0 %v11085
    %v11507 = vpop.f32.mrb[0].mxu0
    %v11508 = vadd.f32 0.0, %v11507
    %v11509 = vpop.f32.mrb[0].mxu0
    %v11510 = vadd.f32 0.0, %v11509
    %11511 = vmatprep.mubr.f32.mxu0 0.0
    %11512 = vmatmul.mubr.f32.gmra.mrb[0].mxu0 %v11088
    %v11513 = vpop.f32.mrb[0].mxu0
    %v11514 = vadd.f32 0.0, %v11513
    %v11515 = vpop.f32.mrb[0].mxu0
    %v11516 = vadd.f32 0.0, %v11515
    %11517 = vmatprep.mubr.f32.mxu0 0.0
    %11518 = vmatmul.mubr.f32.gmra.mrb[0].mxu0 %v11091
    %v11519 = vpop.f32.mrb[0].mxu0
    %v11520 = vadd.f32 0.0, %v11519
    %v11521 = vpop.f32.mrb[0].mxu0
    %v11522 = vadd.f32 0.0, %v11521
    %11523 = vmatprep.mubr.f32.mxu0 0.0
    %11524 = vmatmul.mubr.f32.gmra.mrb[0].mxu0 %v11094
    %v11525 = vpop.f32.mrb[0].mxu0
    %v11526 = vadd.f32 0.0, %v11525
    %v11527 = vpop.f32.mrb[0].mxu0
    %v11528 = vadd.f32 0.0, %v11527
    %11529 = vmatprep.mubr.f32.mxu0 0.0
    %11530 = vmatmul.mubr.f32.gmra.mrb[0].mxu0 %v11097
    %v11531 = vpop.f32.mrb[0].mxu0
    %v11532 = vadd.f32 0.0, %v11531
    %v11533 = vpop.f32.mrb[0].mxu0
    %v11534 = vadd.f32 0.0, %v11533
    %11535 = vmatprep.mubr.f32.mxu0 0.0
    %11536 = vmatmul.mubr.f32.gmra.mrb[0].mxu0 %v11100
    %v11537 = vpop.f32.mrb[0].mxu0
    %v11538 = vadd.f32 0.0, %v11537
    %v11539 = vpop.f32.mrb[0].mxu0
    %v11540 = vadd.f32 0.0, %v11539
    %11541 = vmatprep.mubr.f32.mxu0 0.0
    %11542 = vmatmul.mubr.f32.gmra.mrb[0].mxu0 %v11103
    %v11543 = vpop.f32.mrb[0].mxu0
    %v11544 = vadd.f32 0.0, %v11543
    %v11545 = vpop.f32.mrb[0].mxu0
    %v11546 = vadd.f32 0.0, %v11545
    %11547 = vmatprep.mubr.f32.mxu0 0.0
    %11548 = vmatmul.mubr.f32.gmra.mrb[0].mxu0 %v11106
    %v11549 = vpop.f32.mrb[0].mxu0
    %v11550 = vadd.f32 0.0, %v11549
    %v11551 = vpop.f32.mrb[0].mxu0
    %v11552 = vadd.f32 0.0, %v11551
    %11553 = vmatprep.mubr.f32.mxu0 0.0
    %11554 = vmatmul.mubr.f32.gmra.mrb[0].mxu0 %v11109
    %v11555 = vpop.f32.mrb[0].mxu0
    %v11556 = vadd.f32 0.0, %v11555
    %v11557 = vpop.f32.mrb[0].mxu0
    %v11558 = vadd.f32 0.0, %v11557
    %11559 = vdwg.mxu0
    %v11560 = vadd.f32 %v10537, %v11178
    %v11561 = vadd.f32 %v10539, %v11180
    %v11562 = vadd.f32 %v10543, %v11184
    %v11563 = vadd.f32 %v10545, %v11186
    %v11564 = vadd.f32 %v10549, %v11190
    %v11565 = vadd.f32 %v10551, %v11192
    %v11566 = vadd.f32 %v10555, %v11196
    %v11567 = vadd.f32 %v10557, %v11198
    %v11568 = vadd.f32 %v10561, %v11202
    %v11569 = vadd.f32 %v10563, %v11204
    %v11570 = vadd.f32 %v10567, %v11208
    %v11571 = vadd.f32 %v10569, %v11210
    %v11572 = vadd.f32 %v10573, %v11214
    %v11573 = vadd.f32 %v10575, %v11216
    %v11574 = vadd.f32 %v10579, %v11220
    %v11575 = vadd.f32 %v10581, %v11222
    %v11576 = vadd.f32 %v10585, %v11226
    %v11577 = vadd.f32 %v10587, %v11228
    %v11578 = vadd.f32 %v10591, %v11232
    %v11579 = vadd.f32 %v10593, %v11234
    %v11580 = vadd.f32 %v10597, %v11238
    %v11581 = vadd.f32 %v10599, %v11240
    %v11582 = vadd.f32 %v10603, %v11244
    %v11583 = vadd.f32 %v10605, %v11246
    %v11584 = vadd.f32 %v10609, %v11250
    %v11585 = vadd.f32 %v10611, %v11252
    %v11586 = vadd.f32 %v10615, %v11256
    %v11587 = vadd.f32 %v10617, %v11258
    %v11588 = vadd.f32 %v10621, %v11262
    %v11589 = vadd.f32 %v10623, %v11264
    %v11590 = vadd.f32 %v10627, %v11268
    %v11591 = vadd.f32 %v10629, %v11270
    %v11592 = vadd.f32 %v10633, %v11274
    %v11593 = vadd.f32 %v10635, %v11276
    %v11594 = vadd.f32 %v10639, %v11280
    %v11595 = vadd.f32 %v10641, %v11282
    %v11596 = vadd.f32 %v10645, %v11286
    %v11597 = vadd.f32 %v10647, %v11288
    %v11598 = vadd.f32 %v10651, %v11292
    %v11599 = vadd.f32 %v10653, %v11294
    %v11600 = vadd.f32 %v10657, %v11298
    %v11601 = vadd.f32 %v10659, %v11300
    %v11602 = vadd.f32 %v10663, %v11304
    %v11603 = vadd.f32 %v10665, %v11306
    %v11604 = vadd.f32 %v10669, %v11310
    %v11605 = vadd.f32 %v10671, %v11312
    %v11606 = vadd.f32 %v10675, %v11316
    %v11607 = vadd.f32 %v10677, %v11318
    %v11608 = vadd.f32 %v10681, %v11322
    %v11609 = vadd.f32 %v10683, %v11324
    %v11610 = vadd.f32 %v10687, %v11328
    %v11611 = vadd.f32 %v10689, %v11330
    %v11612 = vadd.f32 %v10693, %v11334
    %v11613 = vadd.f32 %v10695, %v11336
    %v11614 = vadd.f32 %v10699, %v11340
    %v11615 = vadd.f32 %v10701, %v11342
    %v11616 = vadd.f32 %v10705, %v11346
    %v11617 = vadd.f32 %v10707, %v11348
    %v11618 = vadd.f32 %v10711, %v11352
    %v11619 = vadd.f32 %v10713, %v11354
    %v11620 = vadd.f32 %v10717, %v11358
    %v11621 = vadd.f32 %v10719, %v11360
    %v11622 = vadd.f32 %v10723, %v11364
    %v11623 = vadd.f32 %v10725, %v11366
    %v11624 = vadd.f32 %v10729, %v11370
    %v11625 = vadd.f32 %v10731, %v11372
    %v11626 = vadd.f32 %v10735, %v11376
    %v11627 = vadd.f32 %v10737, %v11378
    %v11628 = vadd.f32 %v10741, %v11382
    %v11629 = vadd.f32 %v10743, %v11384
    %v11630 = vadd.f32 %v10747, %v11388
    %v11631 = vadd.f32 %v10749, %v11390
    %v11632 = vadd.f32 %v10753, %v11394
    %v11633 = vadd.f32 %v10755, %v11396
    %v11634 = vadd.f32 %v10759, %v11400
    %v11635 = vadd.f32 %v10761, %v11402
    %v11636 = vadd.f32 %v10765, %v11406
    %v11637 = vadd.f32 %v10767, %v11408
    %v11638 = vadd.f32 %v10771, %v11412
    %v11639 = vadd.f32 %v10773, %v11414
    %v11640 = vadd.f32 %v10777, %v11418
    %v11641 = vadd.f32 %v10779, %v11420
    %v11642 = vadd.f32 %v10783, %v11424
    %v11643 = vadd.f32 %v10785, %v11426
    %v11644 = vadd.f32 %v10789, %v11430
    %v11645 = vadd.f32 %v10791, %v11432
    %v11646 = vadd.f32 %v10795, %v11436
    %v11647 = vadd.f32 %v10797, %v11438
    %v11648 = vadd.f32 %v10801, %v11442
    %v11649 = vadd.f32 %v10803, %v11444
    %v11650 = vadd.f32 %v10807, %v11448
    %v11651 = vadd.f32 %v10809, %v11450
    %v11652 = vadd.f32 %v10813, %v11454
    %v11653 = vadd.f32 %v10815, %v11456
    %v11654 = vadd.f32 %v10819, %v11460
    %v11655 = vadd.f32 %v10821, %v11462
    %v11656 = vadd.f32 %v10825, %v11466
    %v11657 = vadd.f32 %v10827, %v11468
    %v11658 = vadd.f32 %v10831, %v11472
    %v11659 = vadd.f32 %v10833, %v11474
    %v11660 = vadd.f32 %v10837, %v11478
    %v11661 = vadd.f32 %v10839, %v11480
    %v11662 = vadd.f32 %v10843, %v11484
    %v11663 = vadd.f32 %v10845, %v11486
    %v11664 = vadd.f32 %v10849, %v11490
    %v11665 = vadd.f32 %v10851, %v11492
    %v11666 = vadd.f32 %v10855, %v11496
    %v11667 = vadd.f32 %v10857, %v11498
    %v11668 = vadd.f32 %v10861, %v11502
    %v11669 = vadd.f32 %v10863, %v11504
    %v11670 = vadd.f32 %v10867, %v11508
    %v11671 = vadd.f32 %v10869, %v11510
    %v11672 = vadd.f32 %v10873, %v11514
    %v11673 = vadd.f32 %v10875, %v11516
    %v11674 = vadd.f32 %v10879, %v11520
    %v11675 = vadd.f32 %v10881, %v11522
    %v11676 = vadd.f32 %v10885, %v11526
    %v11677 = vadd.f32 %v10887, %v11528
    %v11678 = vadd.f32 %v10891, %v11532
    %v11679 = vadd.f32 %v10893, %v11534
    %v11680 = vadd.f32 %v10897, %v11538
    %v11681 = vadd.f32 %v10899, %v11540
    %v11682 = vadd.f32 %v10903, %v11544
    %v11683 = vadd.f32 %v10905, %v11546
    %v11684 = vadd.f32 %v10909, %v11550
    %v11685 = vadd.f32 %v10911, %v11552
    %v11686 = vadd.f32 %v10915, %v11556
    %v11687 = vadd.f32 %v10917, %v11558
    %v11688 = vlaneseq
    %v11689 = vshrl.u32 %v11688, 7
    %v11690 = vsub.s32 0, %v11689
    %v11691 = vrot.slane %v9252, %v11690
    %v11692 = vadd.f32 %v11560, %v11691
    %v11693 = vadd.f32 %v11561, %v11691
    %v11694 = vadd.f32 %v11562, %v11691
    %v11695 = vadd.f32 %v11563, %v11691
    %v11696 = vadd.f32 %v11564, %v11691
    %v11697 = vadd.f32 %v11565, %v11691
    %v11698 = vadd.f32 %v11566, %v11691
    %v11699 = vadd.f32 %v11567, %v11691
    %v11700 = vadd.f32 %v11568, %v11691
    %v11701 = vadd.f32 %v11569, %v11691
    %v11702 = vadd.f32 %v11570, %v11691
    %v11703 = vadd.f32 %v11571, %v11691
    %v11704 = vadd.f32 %v11572, %v11691
    %v11705 = vadd.f32 %v11573, %v11691
    %v11706 = vadd.f32 %v11574, %v11691
    %v11707 = vadd.f32 %v11575, %v11691
    %v11708 = vadd.f32 %v11576, %v11691
    %v11709 = vadd.f32 %v11577, %v11691
    %v11710 = vadd.f32 %v11578, %v11691
    %v11711 = vadd.f32 %v11579, %v11691
    %v11712 = vadd.f32 %v11580, %v11691
    %v11713 = vadd.f32 %v11581, %v11691
    %v11714 = vadd.f32 %v11582, %v11691
    %v11715 = vadd.f32 %v11583, %v11691
    %v11716 = vadd.f32 %v11584, %v11691
    %v11717 = vadd.f32 %v11585, %v11691
    %v11718 = vadd.f32 %v11586, %v11691
    %v11719 = vadd.f32 %v11587, %v11691
    %v11720 = vadd.f32 %v11588, %v11691
    %v11721 = vadd.f32 %v11589, %v11691
    %v11722 = vadd.f32 %v11590, %v11691
    %v11723 = vadd.f32 %v11591, %v11691
    %v11724 = vadd.f32 %v11592, %v11691
    %v11725 = vadd.f32 %v11593, %v11691
    %v11726 = vadd.f32 %v11594, %v11691
    %v11727 = vadd.f32 %v11595, %v11691
    %v11728 = vadd.f32 %v11596, %v11691
    %v11729 = vadd.f32 %v11597, %v11691
    %v11730 = vadd.f32 %v11598, %v11691
    %v11731 = vadd.f32 %v11599, %v11691
    %v11732 = vadd.f32 %v11600, %v11691
    %v11733 = vadd.f32 %v11601, %v11691
    %v11734 = vadd.f32 %v11602, %v11691
    %v11735 = vadd.f32 %v11603, %v11691
    %v11736 = vadd.f32 %v11604, %v11691
    %v11737 = vadd.f32 %v11605, %v11691
    %v11738 = vadd.f32 %v11606, %v11691
    %v11739 = vadd.f32 %v11607, %v11691
    %v11740 = vadd.f32 %v11608, %v11691
    %v11741 = vadd.f32 %v11609, %v11691
    %v11742 = vadd.f32 %v11610, %v11691
    %v11743 = vadd.f32 %v11611, %v11691
    %v11744 = vadd.f32 %v11612, %v11691
    %v11745 = vadd.f32 %v11613, %v11691
    %v11746 = vadd.f32 %v11614, %v11691
    %v11747 = vadd.f32 %v11615, %v11691
    %v11748 = vadd.f32 %v11616, %v11691
    %v11749 = vadd.f32 %v11617, %v11691
    %v11750 = vadd.f32 %v11618, %v11691
    %v11751 = vadd.f32 %v11619, %v11691
    %v11752 = vadd.f32 %v11620, %v11691
    %v11753 = vadd.f32 %v11621, %v11691
    %v11754 = vadd.f32 %v11622, %v11691
    %v11755 = vadd.f32 %v11623, %v11691
    %v11756 = vadd.f32 %v11624, %v11691
    %v11757 = vadd.f32 %v11625, %v11691
    %v11758 = vadd.f32 %v11626, %v11691
    %v11759 = vadd.f32 %v11627, %v11691
    %v11760 = vadd.f32 %v11628, %v11691
    %v11761 = vadd.f32 %v11629, %v11691
    %v11762 = vadd.f32 %v11630, %v11691
    %v11763 = vadd.f32 %v11631, %v11691
    %v11764 = vadd.f32 %v11632, %v11691
    %v11765 = vadd.f32 %v11633, %v11691
    %v11766 = vadd.f32 %v11634, %v11691
    %v11767 = vadd.f32 %v11635, %v11691
    %v11768 = vadd.f32 %v11636, %v11691
    %v11769 = vadd.f32 %v11637, %v11691
    %v11770 = vadd.f32 %v11638, %v11691
    %v11771 = vadd.f32 %v11639, %v11691
    %v11772 = vadd.f32 %v11640, %v11691
    %v11773 = vadd.f32 %v11641, %v11691
    %v11774 = vadd.f32 %v11642, %v11691
    %v11775 = vadd.f32 %v11643, %v11691
    %v11776 = vadd.f32 %v11644, %v11691
    %v11777 = vadd.f32 %v11645, %v11691
    %v11778 = vadd.f32 %v11646, %v11691
    %v11779 = vadd.f32 %v11647, %v11691
    %v11780 = vadd.f32 %v11648, %v11691
    %v11781 = vadd.f32 %v11649, %v11691
    %v11782 = vadd.f32 %v11650, %v11691
    %v11783 = vadd.f32 %v11651, %v11691
    %v11784 = vadd.f32 %v11652, %v11691
    %v11785 = vadd.f32 %v11653, %v11691
    %v11786 = vadd.f32 %v11654, %v11691
    %v11787 = vadd.f32 %v11655, %v11691
    %v11788 = vadd.f32 %v11656, %v11691
    %v11789 = vadd.f32 %v11657, %v11691
    %v11790 = vadd.f32 %v11658, %v11691
    %v11791 = vadd.f32 %v11659, %v11691
    %v11792 = vadd.f32 %v11660, %v11691
    %v11793 = vadd.f32 %v11661, %v11691
    %v11794 = vadd.f32 %v11662, %v11691
    %v11795 = vadd.f32 %v11663, %v11691
    %v11796 = vadd.f32 %v11664, %v11691
    %v11797 = vadd.f32 %v11665, %v11691
    %v11798 = vadd.f32 %v11666, %v11691
    %v11799 = vadd.f32 %v11667, %v11691
    %v11800 = vadd.f32 %v11668, %v11691
    %v11801 = vadd.f32 %v11669, %v11691
    %v11802 = vadd.f32 %v11670, %v11691
    %v11803 = vadd.f32 %v11671, %v11691
    %v11804 = vadd.f32 %v11672, %v11691
    %v11805 = vadd.f32 %v11673, %v11691
    %v11806 = vadd.f32 %v11674, %v11691
    %v11807 = vadd.f32 %v11675, %v11691
    %v11808 = vadd.f32 %v11676, %v11691
    %v11809 = vadd.f32 %v11677, %v11691
    %v11810 = vadd.f32 %v11678, %v11691
    %v11811 = vadd.f32 %v11679, %v11691
    %v11812 = vadd.f32 %v11680, %v11691
    %v11813 = vadd.f32 %v11681, %v11691
    %v11814 = vadd.f32 %v11682, %v11691
    %v11815 = vadd.f32 %v11683, %v11691
    %v11816 = vadd.f32 %v11684, %v11691
    %v11817 = vadd.f32 %v11685, %v11691
    %v11818 = vadd.f32 %v11686, %v11691
    %v11819 = vadd.f32 %v11687, %v11691
    %v11820 = vmax.f32 %v11692, 0.0
    %v11821 = vmax.f32 %v11693, 0.0
    %v11822 = vmax.f32 %v11694, 0.0
    %v11823 = vmax.f32 %v11695, 0.0
    %v11824 = vmax.f32 %v11696, 0.0
    %v11825 = vmax.f32 %v11697, 0.0
    %v11826 = vmax.f32 %v11698, 0.0
    %v11827 = vmax.f32 %v11699, 0.0
    %v11828 = vmax.f32 %v11700, 0.0
    %v11829 = vmax.f32 %v11701, 0.0
    %v11830 = vmax.f32 %v11702, 0.0
    %v11831 = vmax.f32 %v11703, 0.0
    %v11832 = vmax.f32 %v11704, 0.0
    %v11833 = vmax.f32 %v11705, 0.0
    %v11834 = vmax.f32 %v11706, 0.0
    %v11835 = vmax.f32 %v11707, 0.0
    %v11836 = vmax.f32 %v11708, 0.0
    %v11837 = vmax.f32 %v11709, 0.0
    %v11838 = vmax.f32 %v11710, 0.0
    %v11839 = vmax.f32 %v11711, 0.0
    %v11840 = vmax.f32 %v11712, 0.0
    %v11841 = vmax.f32 %v11713, 0.0
    %v11842 = vmax.f32 %v11714, 0.0
    %v11843 = vmax.f32 %v11715, 0.0
    %v11844 = vmax.f32 %v11716, 0.0
    %v11845 = vmax.f32 %v11717, 0.0
    %v11846 = vmax.f32 %v11718, 0.0
    %v11847 = vmax.f32 %v11719, 0.0
    %v11848 = vmax.f32 %v11720, 0.0
    %v11849 = vmax.f32 %v11721, 0.0
    %v11850 = vmax.f32 %v11722, 0.0
    %v11851 = vmax.f32 %v11723, 0.0
    %v11852 = vmax.f32 %v11724, 0.0
    %v11853 = vmax.f32 %v11725, 0.0
    %v11854 = vmax.f32 %v11726, 0.0
    %v11855 = vmax.f32 %v11727, 0.0
    %v11856 = vmax.f32 %v11728, 0.0
    %v11857 = vmax.f32 %v11729, 0.0
    %v11858 = vmax.f32 %v11730, 0.0
    %v11859 = vmax.f32 %v11731, 0.0
    %v11860 = vmax.f32 %v11732, 0.0
    %v11861 = vmax.f32 %v11733, 0.0
    %v11862 = vmax.f32 %v11734, 0.0
    %v11863 = vmax.f32 %v11735, 0.0
    %v11864 = vmax.f32 %v11736, 0.0
    %v11865 = vmax.f32 %v11737, 0.0
    %v11866 = vmax.f32 %v11738, 0.0
    %v11867 = vmax.f32 %v11739, 0.0
    %v11868 = vmax.f32 %v11740, 0.0
    %v11869 = vmax.f32 %v11741, 0.0
    %v11870 = vmax.f32 %v11742, 0.0
    %v11871 = vmax.f32 %v11743, 0.0
    %v11872 = vmax.f32 %v11744, 0.0
    %v11873 = vmax.f32 %v11745, 0.0
    %v11874 = vmax.f32 %v11746, 0.0
    %v11875 = vmax.f32 %v11747, 0.0
    %v11876 = vmax.f32 %v11748, 0.0
    %v11877 = vmax.f32 %v11749, 0.0
    %v11878 = vmax.f32 %v11750, 0.0
    %v11879 = vmax.f32 %v11751, 0.0
    %v11880 = vmax.f32 %v11752, 0.0
    %v11881 = vmax.f32 %v11753, 0.0
    %v11882 = vmax.f32 %v11754, 0.0
    %v11883 = vmax.f32 %v11755, 0.0
    %v11884 = vmax.f32 %v11756, 0.0
    %v11885 = vmax.f32 %v11757, 0.0
    %v11886 = vmax.f32 %v11758, 0.0
    %v11887 = vmax.f32 %v11759, 0.0
    %v11888 = vmax.f32 %v11760, 0.0
    %v11889 = vmax.f32 %v11761, 0.0
    %v11890 = vmax.f32 %v11762, 0.0
    %v11891 = vmax.f32 %v11763, 0.0
    %v11892 = vmax.f32 %v11764, 0.0
    %v11893 = vmax.f32 %v11765, 0.0
    %v11894 = vmax.f32 %v11766, 0.0
    %v11895 = vmax.f32 %v11767, 0.0
    %v11896 = vmax.f32 %v11768, 0.0
    %v11897 = vmax.f32 %v11769, 0.0
    %v11898 = vmax.f32 %v11770, 0.0
    %v11899 = vmax.f32 %v11771, 0.0
    %v11900 = vmax.f32 %v11772, 0.0
    %v11901 = vmax.f32 %v11773, 0.0
    %v11902 = vmax.f32 %v11774, 0.0
    %v11903 = vmax.f32 %v11775, 0.0
    %v11904 = vmax.f32 %v11776, 0.0
    %v11905 = vmax.f32 %v11777, 0.0
    %v11906 = vmax.f32 %v11778, 0.0
    %v11907 = vmax.f32 %v11779, 0.0
    %v11908 = vmax.f32 %v11780, 0.0
    %v11909 = vmax.f32 %v11781, 0.0
    %v11910 = vmax.f32 %v11782, 0.0
    %v11911 = vmax.f32 %v11783, 0.0
    %v11912 = vmax.f32 %v11784, 0.0
    %v11913 = vmax.f32 %v11785, 0.0
    %v11914 = vmax.f32 %v11786, 0.0
    %v11915 = vmax.f32 %v11787, 0.0
    %v11916 = vmax.f32 %v11788, 0.0
    %v11917 = vmax.f32 %v11789, 0.0
    %v11918 = vmax.f32 %v11790, 0.0
    %v11919 = vmax.f32 %v11791, 0.0
    %v11920 = vmax.f32 %v11792, 0.0
    %v11921 = vmax.f32 %v11793, 0.0
    %v11922 = vmax.f32 %v11794, 0.0
    %v11923 = vmax.f32 %v11795, 0.0
    %v11924 = vmax.f32 %v11796, 0.0
    %v11925 = vmax.f32 %v11797, 0.0
    %v11926 = vmax.f32 %v11798, 0.0
    %v11927 = vmax.f32 %v11799, 0.0
    %v11928 = vmax.f32 %v11800, 0.0
    %v11929 = vmax.f32 %v11801, 0.0
    %v11930 = vmax.f32 %v11802, 0.0
    %v11931 = vmax.f32 %v11803, 0.0
    %v11932 = vmax.f32 %v11804, 0.0
    %v11933 = vmax.f32 %v11805, 0.0
    %v11934 = vmax.f32 %v11806, 0.0
    %v11935 = vmax.f32 %v11807, 0.0
    %v11936 = vmax.f32 %v11808, 0.0
    %v11937 = vmax.f32 %v11809, 0.0
    %v11938 = vmax.f32 %v11810, 0.0
    %v11939 = vmax.f32 %v11811, 0.0
    %v11940 = vmax.f32 %v11812, 0.0
    %v11941 = vmax.f32 %v11813, 0.0
    %v11942 = vmax.f32 %v11814, 0.0
    %v11943 = vmax.f32 %v11815, 0.0
    %v11944 = vmax.f32 %v11816, 0.0
    %v11945 = vmax.f32 %v11817, 0.0
    %v11946 = vmax.f32 %v11818, 0.0
    %v11947 = vmax.f32 %v11819, 0.0
    %v11948 = vlaneseq
    %v11949 = vand.u32 %v11948, 127
    %v11950 = vadd.s32 %v11949, 128
    %v11951 = vshra.s32 %v11949, 5
    %v11952 = vshra.s32 %v11950, 5
    %v11953 = vand.u32 %v158, 1
    %v11954 = vand.u32 %v159, 1
    %v11955 = vand.u32 %v160, 1
    %v11956 = vand.u32 %v161, 1
    %v11957 = vand.u32 %v162, 1
    %v11958 = vand.u32 %v163, 1
    %v11959 = vand.u32 %v164, 1
    %v11960 = vand.u32 %v165, 1
    %v11961 = vand.u32 %v166, 1
    %v11962 = vand.u32 %v167, 1
    %v11963 = vand.u32 %v168, 1
    %v11964 = vand.u32 %v169, 1
    %v11965 = vand.u32 %v170, 1
    %v11966 = vand.u32 %v171, 1
    %v11967 = vand.u32 %v172, 1
    %v11968 = vand.u32 %v173, 1
    %v11969 = vand.u32 %v174, 1
    %v11970 = vand.u32 %v175, 1
    %v11971 = vand.u32 %v176, 1
    %v11972 = vand.u32 %v177, 1
    %v11973 = vand.u32 %v178, 1
    %v11974 = vand.u32 %v179, 1
    %v11975 = vand.u32 %v180, 1
    %v11976 = vand.u32 %v181, 1
    %v11977 = vand.u32 %v182, 1
    %v11978 = vand.u32 %v183, 1
    %v11979 = vand.u32 %v184, 1
    %v11980 = vand.u32 %v185, 1
    %v11981 = vand.u32 %v186, 1
    %v11982 = vand.u32 %v187, 1
    %v11983 = vand.u32 %v188, 1
    %v11984 = vand.u32 %v189, 1
    %v11985 = vand.u32 %v190, 1
    %v11986 = vand.u32 %v191, 1
    %v11987 = vand.u32 %v192, 1
    %v11988 = vand.u32 %v193, 1
    %v11989 = vand.u32 %v194, 1
    %v11990 = vand.u32 %v195, 1
    %v11991 = vand.u32 %v196, 1
    %v11992 = vand.u32 %v197, 1
    %v11993 = vand.u32 %v198, 1
    %v11994 = vand.u32 %v199, 1
    %v11995 = vand.u32 %v200, 1
    %v11996 = vand.u32 %v201, 1
    %v11997 = vand.u32 %v202, 1
    %v11998 = vand.u32 %v203, 1
    %v11999 = vand.u32 %v204, 1
    %v12000 = vand.u32 %v205, 1
    %v12001 = vand.u32 %v206, 1
    %v12002 = vand.u32 %v207, 1
    %v12003 = vand.u32 %v208, 1
    %v12004 = vand.u32 %v209, 1
    %v12005 = vand.u32 %v210, 1
    %v12006 = vand.u32 %v211, 1
    %v12007 = vand.u32 %v212, 1
    %v12008 = vand.u32 %v213, 1
    %v12009 = vand.u32 %v214, 1
    %v12010 = vand.u32 %v215, 1
    %v12011 = vand.u32 %v216, 1
    %v12012 = vand.u32 %v217, 1
    %v12013 = vand.u32 %v218, 1
    %v12014 = vand.u32 %v219, 1
    %v12015 = vand.u32 %v220, 1
    %v12016 = vand.u32 %v221, 1
    %vm12017 = vcmp.eq.s32.totalorder %v11953, 0
    %vm12018 = vcmp.eq.s32.totalorder %v11954, 0
    %vm12019 = vcmp.eq.s32.totalorder %v11955, 0
    %vm12020 = vcmp.eq.s32.totalorder %v11956, 0
    %vm12021 = vcmp.eq.s32.totalorder %v11957, 0
    %vm12022 = vcmp.eq.s32.totalorder %v11958, 0
    %vm12023 = vcmp.eq.s32.totalorder %v11959, 0
    %vm12024 = vcmp.eq.s32.totalorder %v11960, 0
    %vm12025 = vcmp.eq.s32.totalorder %v11961, 0
    %vm12026 = vcmp.eq.s32.totalorder %v11962, 0
    %vm12027 = vcmp.eq.s32.totalorder %v11963, 0
    %vm12028 = vcmp.eq.s32.totalorder %v11964, 0
    %vm12029 = vcmp.eq.s32.totalorder %v11965, 0
    %vm12030 = vcmp.eq.s32.totalorder %v11966, 0
    %vm12031 = vcmp.eq.s32.totalorder %v11967, 0
    %vm12032 = vcmp.eq.s32.totalorder %v11968, 0
    %vm12033 = vcmp.eq.s32.totalorder %v11969, 0
    %vm12034 = vcmp.eq.s32.totalorder %v11970, 0
    %vm12035 = vcmp.eq.s32.totalorder %v11971, 0
    %vm12036 = vcmp.eq.s32.totalorder %v11972, 0
    %vm12037 = vcmp.eq.s32.totalorder %v11973, 0
    %vm12038 = vcmp.eq.s32.totalorder %v11974, 0
    %vm12039 = vcmp.eq.s32.totalorder %v11975, 0
    %vm12040 = vcmp.eq.s32.totalorder %v11976, 0
    %vm12041 = vcmp.eq.s32.totalorder %v11977, 0
    %vm12042 = vcmp.eq.s32.totalorder %v11978, 0
    %vm12043 = vcmp.eq.s32.totalorder %v11979, 0
    %vm12044 = vcmp.eq.s32.totalorder %v11980, 0
    %vm12045 = vcmp.eq.s32.totalorder %v11981, 0
    %vm12046 = vcmp.eq.s32.totalorder %v11982, 0
    %vm12047 = vcmp.eq.s32.totalorder %v11983, 0
    %vm12048 = vcmp.eq.s32.totalorder %v11984, 0
    %vm12049 = vcmp.eq.s32.totalorder %v11985, 0
    %vm12050 = vcmp.eq.s32.totalorder %v11986, 0
    %vm12051 = vcmp.eq.s32.totalorder %v11987, 0
    %vm12052 = vcmp.eq.s32.totalorder %v11988, 0
    %vm12053 = vcmp.eq.s32.totalorder %v11989, 0
    %vm12054 = vcmp.eq.s32.totalorder %v11990, 0
    %vm12055 = vcmp.eq.s32.totalorder %v11991, 0
    %vm12056 = vcmp.eq.s32.totalorder %v11992, 0
    %vm12057 = vcmp.eq.s32.totalorder %v11993, 0
    %vm12058 = vcmp.eq.s32.totalorder %v11994, 0
    %vm12059 = vcmp.eq.s32.totalorder %v11995, 0
    %vm12060 = vcmp.eq.s32.totalorder %v11996, 0
    %vm12061 = vcmp.eq.s32.totalorder %v11997, 0
    %vm12062 = vcmp.eq.s32.totalorder %v11998, 0
    %vm12063 = vcmp.eq.s32.totalorder %v11999, 0
    %vm12064 = vcmp.eq.s32.totalorder %v12000, 0
    %vm12065 = vcmp.eq.s32.totalorder %v12001, 0
    %vm12066 = vcmp.eq.s32.totalorder %v12002, 0
    %vm12067 = vcmp.eq.s32.totalorder %v12003, 0
    %vm12068 = vcmp.eq.s32.totalorder %v12004, 0
    %vm12069 = vcmp.eq.s32.totalorder %v12005, 0
    %vm12070 = vcmp.eq.s32.totalorder %v12006, 0
    %vm12071 = vcmp.eq.s32.totalorder %v12007, 0
    %vm12072 = vcmp.eq.s32.totalorder %v12008, 0
    %vm12073 = vcmp.eq.s32.totalorder %v12009, 0
    %vm12074 = vcmp.eq.s32.totalorder %v12010, 0
    %vm12075 = vcmp.eq.s32.totalorder %v12011, 0
    %vm12076 = vcmp.eq.s32.totalorder %v12012, 0
    %vm12077 = vcmp.eq.s32.totalorder %v12013, 0
    %vm12078 = vcmp.eq.s32.totalorder %v12014, 0
    %vm12079 = vcmp.eq.s32.totalorder %v12015, 0
    %vm12080 = vcmp.eq.s32.totalorder %v12016, 0
    %v12081 = vshra.s32 %v158, 1
    %v12082 = vshra.s32 %v159, 1
    %v12083 = vshra.s32 %v160, 1
    %v12084 = vshra.s32 %v161, 1
    %v12085 = vshra.s32 %v162, 1
    %v12086 = vshra.s32 %v163, 1
    %v12087 = vshra.s32 %v164, 1
    %v12088 = vshra.s32 %v165, 1
    %v12089 = vshra.s32 %v166, 1
    %v12090 = vshra.s32 %v167, 1
    %v12091 = vshra.s32 %v168, 1
    %v12092 = vshra.s32 %v169, 1
    %v12093 = vshra.s32 %v170, 1
    %v12094 = vshra.s32 %v171, 1
    %v12095 = vshra.s32 %v172, 1
    %v12096 = vshra.s32 %v173, 1
    %v12097 = vshra.s32 %v174, 1
    %v12098 = vshra.s32 %v175, 1
    %v12099 = vshra.s32 %v176, 1
    %v12100 = vshra.s32 %v177, 1
    %v12101 = vshra.s32 %v178, 1
    %v12102 = vshra.s32 %v179, 1
    %v12103 = vshra.s32 %v180, 1
    %v12104 = vshra.s32 %v181, 1
    %v12105 = vshra.s32 %v182, 1
    %v12106 = vshra.s32 %v183, 1
    %v12107 = vshra.s32 %v184, 1
    %v12108 = vshra.s32 %v185, 1
    %v12109 = vshra.s32 %v186, 1
    %v12110 = vshra.s32 %v187, 1
    %v12111 = vshra.s32 %v188, 1
    %v12112 = vshra.s32 %v189, 1
    %v12113 = vshra.s32 %v190, 1
    %v12114 = vshra.s32 %v191, 1
    %v12115 = vshra.s32 %v192, 1
    %v12116 = vshra.s32 %v193, 1
    %v12117 = vshra.s32 %v194, 1
    %v12118 = vshra.s32 %v195, 1
    %v12119 = vshra.s32 %v196, 1
    %v12120 = vshra.s32 %v197, 1
    %v12121 = vshra.s32 %v198, 1
    %v12122 = vshra.s32 %v199, 1
    %v12123 = vshra.s32 %v200, 1
    %v12124 = vshra.s32 %v201, 1
    %v12125 = vshra.s32 %v202, 1
    %v12126 = vshra.s32 %v203, 1
    %v12127 = vshra.s32 %v204, 1
    %v12128 = vshra.s32 %v205, 1
    %v12129 = vshra.s32 %v206, 1
    %v12130 = vshra.s32 %v207, 1
    %v12131 = vshra.s32 %v208, 1
    %v12132 = vshra.s32 %v209, 1
    %v12133 = vshra.s32 %v210, 1
    %v12134 = vshra.s32 %v211, 1
    %v12135 = vshra.s32 %v212, 1
    %v12136 = vshra.s32 %v213, 1
    %v12137 = vshra.s32 %v214, 1
    %v12138 = vshra.s32 %v215, 1
    %v12139 = vshra.s32 %v216, 1
    %v12140 = vshra.s32 %v217, 1
    %v12141 = vshra.s32 %v218, 1
    %v12142 = vshra.s32 %v219, 1
    %v12143 = vshra.s32 %v220, 1
    %v12144 = vshra.s32 %v221, 1
    %v12145 = vsel %vm12017, %v12081, 4294967295
    %v12146 = vsel %vm12018, %v12082, 4294967295
    %v12147 = vsel %vm12019, %v12083, 4294967295
    %v12148 = vsel %vm12020, %v12084, 4294967295
    %v12149 = vsel %vm12021, %v12085, 4294967295
    %v12150 = vsel %vm12022, %v12086, 4294967295
    %v12151 = vsel %vm12023, %v12087, 4294967295
    %v12152 = vsel %vm12024, %v12088, 4294967295
    %v12153 = vsel %vm12025, %v12089, 4294967295
    %v12154 = vsel %vm12026, %v12090, 4294967295
    %v12155 = vsel %vm12027, %v12091, 4294967295
    %v12156 = vsel %vm12028, %v12092, 4294967295
    %v12157 = vsel %vm12029, %v12093, 4294967295
    %v12158 = vsel %vm12030, %v12094, 4294967295
    %v12159 = vsel %vm12031, %v12095, 4294967295
    %v12160 = vsel %vm12032, %v12096, 4294967295
    %v12161 = vsel %vm12033, %v12097, 4294967295
    %v12162 = vsel %vm12034, %v12098, 4294967295
    %v12163 = vsel %vm12035, %v12099, 4294967295
    %v12164 = vsel %vm12036, %v12100, 4294967295
    %v12165 = vsel %vm12037, %v12101, 4294967295
    %v12166 = vsel %vm12038, %v12102, 4294967295
    %v12167 = vsel %vm12039, %v12103, 4294967295
    %v12168 = vsel %vm12040, %v12104, 4294967295
    %v12169 = vsel %vm12041, %v12105, 4294967295
    %v12170 = vsel %vm12042, %v12106, 4294967295
    %v12171 = vsel %vm12043, %v12107, 4294967295
    %v12172 = vsel %vm12044, %v12108, 4294967295
    %v12173 = vsel %vm12045, %v12109, 4294967295
    %v12174 = vsel %vm12046, %v12110, 4294967295
    %v12175 = vsel %vm12047, %v12111, 4294967295
    %v12176 = vsel %vm12048, %v12112, 4294967295
    %v12177 = vsel %vm12049, %v12113, 4294967295
    %v12178 = vsel %vm12050, %v12114, 4294967295
    %v12179 = vsel %vm12051, %v12115, 4294967295
    %v12180 = vsel %vm12052, %v12116, 4294967295
    %v12181 = vsel %vm12053, %v12117, 4294967295
    %v12182 = vsel %vm12054, %v12118, 4294967295
    %v12183 = vsel %vm12055, %v12119, 4294967295
    %v12184 = vsel %vm12056, %v12120, 4294967295
    %v12185 = vsel %vm12057, %v12121, 4294967295
    %v12186 = vsel %vm12058, %v12122, 4294967295
    %v12187 = vsel %vm12059, %v12123, 4294967295
    %v12188 = vsel %vm12060, %v12124, 4294967295
    %v12189 = vsel %vm12061, %v12125, 4294967295
    %v12190 = vsel %vm12062, %v12126, 4294967295
    %v12191 = vsel %vm12063, %v12127, 4294967295
    %v12192 = vsel %vm12064, %v12128, 4294967295
    %v12193 = vsel %vm12065, %v12129, 4294967295
    %v12194 = vsel %vm12066, %v12130, 4294967295
    %v12195 = vsel %vm12067, %v12131, 4294967295
    %v12196 = vsel %vm12068, %v12132, 4294967295
    %v12197 = vsel %vm12069, %v12133, 4294967295
    %v12198 = vsel %vm12070, %v12134, 4294967295
    %v12199 = vsel %vm12071, %v12135, 4294967295
    %v12200 = vsel %vm12072, %v12136, 4294967295
    %v12201 = vsel %vm12073, %v12137, 4294967295
    %v12202 = vsel %vm12074, %v12138, 4294967295
    %v12203 = vsel %vm12075, %v12139, 4294967295
    %v12204 = vsel %vm12076, %v12140, 4294967295
    %v12205 = vsel %vm12077, %v12141, 4294967295
    %v12206 = vsel %vm12078, %v12142, 4294967295
    %v12207 = vsel %vm12079, %v12143, 4294967295
    %v12208 = vsel %vm12080, %v12144, 4294967295
    %vm12209 = vcmp.eq.s32.totalorder %v11951, %v12145
    %vm12210 = vcmp.eq.s32.totalorder %v11952, %v12145
    %vm12211 = vcmp.eq.s32.totalorder %v11951, %v12146
    %vm12212 = vcmp.eq.s32.totalorder %v11952, %v12146
    %vm12213 = vcmp.eq.s32.totalorder %v11951, %v12147
    %vm12214 = vcmp.eq.s32.totalorder %v11952, %v12147
    %vm12215 = vcmp.eq.s32.totalorder %v11951, %v12148
    %vm12216 = vcmp.eq.s32.totalorder %v11952, %v12148
    %vm12217 = vcmp.eq.s32.totalorder %v11951, %v12149
    %vm12218 = vcmp.eq.s32.totalorder %v11952, %v12149
    %vm12219 = vcmp.eq.s32.totalorder %v11951, %v12150
    %vm12220 = vcmp.eq.s32.totalorder %v11952, %v12150
    %vm12221 = vcmp.eq.s32.totalorder %v11951, %v12151
    %vm12222 = vcmp.eq.s32.totalorder %v11952, %v12151
    %vm12223 = vcmp.eq.s32.totalorder %v11951, %v12152
    %vm12224 = vcmp.eq.s32.totalorder %v11952, %v12152
    %vm12225 = vcmp.eq.s32.totalorder %v11951, %v12153
    %vm12226 = vcmp.eq.s32.totalorder %v11952, %v12153
    %vm12227 = vcmp.eq.s32.totalorder %v11951, %v12154
    %vm12228 = vcmp.eq.s32.totalorder %v11952, %v12154
    %vm12229 = vcmp.eq.s32.totalorder %v11951, %v12155
    %vm12230 = vcmp.eq.s32.totalorder %v11952, %v12155
    %vm12231 = vcmp.eq.s32.totalorder %v11951, %v12156
    %vm12232 = vcmp.eq.s32.totalorder %v11952, %v12156
    %vm12233 = vcmp.eq.s32.totalorder %v11951, %v12157
    %vm12234 = vcmp.eq.s32.totalorder %v11952, %v12157
    %vm12235 = vcmp.eq.s32.totalorder %v11951, %v12158
    %vm12236 = vcmp.eq.s32.totalorder %v11952, %v12158
    %vm12237 = vcmp.eq.s32.totalorder %v11951, %v12159
    %vm12238 = vcmp.eq.s32.totalorder %v11952, %v12159
    %vm12239 = vcmp.eq.s32.totalorder %v11951, %v12160
    %vm12240 = vcmp.eq.s32.totalorder %v11952, %v12160
    %vm12241 = vcmp.eq.s32.totalorder %v11951, %v12161
    %vm12242 = vcmp.eq.s32.totalorder %v11952, %v12161
    %vm12243 = vcmp.eq.s32.totalorder %v11951, %v12162
    %vm12244 = vcmp.eq.s32.totalorder %v11952, %v12162
    %vm12245 = vcmp.eq.s32.totalorder %v11951, %v12163
    %vm12246 = vcmp.eq.s32.totalorder %v11952, %v12163
    %vm12247 = vcmp.eq.s32.totalorder %v11951, %v12164
    %vm12248 = vcmp.eq.s32.totalorder %v11952, %v12164
    %vm12249 = vcmp.eq.s32.totalorder %v11951, %v12165
    %vm12250 = vcmp.eq.s32.totalorder %v11952, %v12165
    %vm12251 = vcmp.eq.s32.totalorder %v11951, %v12166
    %vm12252 = vcmp.eq.s32.totalorder %v11952, %v12166
    %vm12253 = vcmp.eq.s32.totalorder %v11951, %v12167
    %vm12254 = vcmp.eq.s32.totalorder %v11952, %v12167
    %vm12255 = vcmp.eq.s32.totalorder %v11951, %v12168
    %vm12256 = vcmp.eq.s32.totalorder %v11952, %v12168
    %vm12257 = vcmp.eq.s32.totalorder %v11951, %v12169
    %vm12258 = vcmp.eq.s32.totalorder %v11952, %v12169
    %vm12259 = vcmp.eq.s32.totalorder %v11951, %v12170
    %vm12260 = vcmp.eq.s32.totalorder %v11952, %v12170
    %vm12261 = vcmp.eq.s32.totalorder %v11951, %v12171
    %vm12262 = vcmp.eq.s32.totalorder %v11952, %v12171
    %vm12263 = vcmp.eq.s32.totalorder %v11951, %v12172
    %vm12264 = vcmp.eq.s32.totalorder %v11952, %v12172
    %vm12265 = vcmp.eq.s32.totalorder %v11951, %v12173
    %vm12266 = vcmp.eq.s32.totalorder %v11952, %v12173
    %vm12267 = vcmp.eq.s32.totalorder %v11951, %v12174
    %vm12268 = vcmp.eq.s32.totalorder %v11952, %v12174
    %vm12269 = vcmp.eq.s32.totalorder %v11951, %v12175
    %vm12270 = vcmp.eq.s32.totalorder %v11952, %v12175
    %vm12271 = vcmp.eq.s32.totalorder %v11951, %v12176
    %vm12272 = vcmp.eq.s32.totalorder %v11952, %v12176
    %vm12273 = vcmp.eq.s32.totalorder %v11951, %v12177
    %vm12274 = vcmp.eq.s32.totalorder %v11952, %v12177
    %vm12275 = vcmp.eq.s32.totalorder %v11951, %v12178
    %vm12276 = vcmp.eq.s32.totalorder %v11952, %v12178
    %vm12277 = vcmp.eq.s32.totalorder %v11951, %v12179
    %vm12278 = vcmp.eq.s32.totalorder %v11952, %v12179
    %vm12279 = vcmp.eq.s32.totalorder %v11951, %v12180
    %vm12280 = vcmp.eq.s32.totalorder %v11952, %v12180
    %vm12281 = vcmp.eq.s32.totalorder %v11951, %v12181
    %vm12282 = vcmp.eq.s32.totalorder %v11952, %v12181
    %vm12283 = vcmp.eq.s32.totalorder %v11951, %v12182
    %vm12284 = vcmp.eq.s32.totalorder %v11952, %v12182
    %vm12285 = vcmp.eq.s32.totalorder %v11951, %v12183
    %vm12286 = vcmp.eq.s32.totalorder %v11952, %v12183
    %vm12287 = vcmp.eq.s32.totalorder %v11951, %v12184
    %vm12288 = vcmp.eq.s32.totalorder %v11952, %v12184
    %vm12289 = vcmp.eq.s32.totalorder %v11951, %v12185
    %vm12290 = vcmp.eq.s32.totalorder %v11952, %v12185
    %vm12291 = vcmp.eq.s32.totalorder %v11951, %v12186
    %vm12292 = vcmp.eq.s32.totalorder %v11952, %v12186
    %vm12293 = vcmp.eq.s32.totalorder %v11951, %v12187
    %vm12294 = vcmp.eq.s32.totalorder %v11952, %v12187
    %vm12295 = vcmp.eq.s32.totalorder %v11951, %v12188
    %vm12296 = vcmp.eq.s32.totalorder %v11952, %v12188
    %vm12297 = vcmp.eq.s32.totalorder %v11951, %v12189
    %vm12298 = vcmp.eq.s32.totalorder %v11952, %v12189
    %vm12299 = vcmp.eq.s32.totalorder %v11951, %v12190
    %vm12300 = vcmp.eq.s32.totalorder %v11952, %v12190
    %vm12301 = vcmp.eq.s32.totalorder %v11951, %v12191
    %vm12302 = vcmp.eq.s32.totalorder %v11952, %v12191
    %vm12303 = vcmp.eq.s32.totalorder %v11951, %v12192
    %vm12304 = vcmp.eq.s32.totalorder %v11952, %v12192
    %vm12305 = vcmp.eq.s32.totalorder %v11951, %v12193
    %vm12306 = vcmp.eq.s32.totalorder %v11952, %v12193
    %vm12307 = vcmp.eq.s32.totalorder %v11951, %v12194
    %vm12308 = vcmp.eq.s32.totalorder %v11952, %v12194
    %vm12309 = vcmp.eq.s32.totalorder %v11951, %v12195
    %vm12310 = vcmp.eq.s32.totalorder %v11952, %v12195
    %vm12311 = vcmp.eq.s32.totalorder %v11951, %v12196
    %vm12312 = vcmp.eq.s32.totalorder %v11952, %v12196
    %vm12313 = vcmp.eq.s32.totalorder %v11951, %v12197
    %vm12314 = vcmp.eq.s32.totalorder %v11952, %v12197
    %vm12315 = vcmp.eq.s32.totalorder %v11951, %v12198
    %vm12316 = vcmp.eq.s32.totalorder %v11952, %v12198
    %vm12317 = vcmp.eq.s32.totalorder %v11951, %v12199
    %vm12318 = vcmp.eq.s32.totalorder %v11952, %v12199
    %vm12319 = vcmp.eq.s32.totalorder %v11951, %v12200
    %vm12320 = vcmp.eq.s32.totalorder %v11952, %v12200
    %vm12321 = vcmp.eq.s32.totalorder %v11951, %v12201
    %vm12322 = vcmp.eq.s32.totalorder %v11952, %v12201
    %vm12323 = vcmp.eq.s32.totalorder %v11951, %v12202
    %vm12324 = vcmp.eq.s32.totalorder %v11952, %v12202
    %vm12325 = vcmp.eq.s32.totalorder %v11951, %v12203
    %vm12326 = vcmp.eq.s32.totalorder %v11952, %v12203
    %vm12327 = vcmp.eq.s32.totalorder %v11951, %v12204
    %vm12328 = vcmp.eq.s32.totalorder %v11952, %v12204
    %vm12329 = vcmp.eq.s32.totalorder %v11951, %v12205
    %vm12330 = vcmp.eq.s32.totalorder %v11952, %v12205
    %vm12331 = vcmp.eq.s32.totalorder %v11951, %v12206
    %vm12332 = vcmp.eq.s32.totalorder %v11952, %v12206
    %vm12333 = vcmp.eq.s32.totalorder %v11951, %v12207
    %vm12334 = vcmp.eq.s32.totalorder %v11952, %v12207
    %vm12335 = vcmp.eq.s32.totalorder %v11951, %v12208
    %vm12336 = vcmp.eq.s32.totalorder %v11952, %v12208
    %v12337 = vsel %vm12209, %v11820, 0.0
    %v12338 = vsel %vm12210, %v11821, 0.0
    %v12339 = vsel %vm12211, %v11822, 0.0
    %v12340 = vsel %vm12212, %v11823, 0.0
    %v12341 = vsel %vm12213, %v11824, 0.0
    %v12342 = vsel %vm12214, %v11825, 0.0
    %v12343 = vsel %vm12215, %v11826, 0.0
    %v12344 = vsel %vm12216, %v11827, 0.0
    %v12345 = vsel %vm12217, %v11828, 0.0
    %v12346 = vsel %vm12218, %v11829, 0.0
    %v12347 = vsel %vm12219, %v11830, 0.0
    %v12348 = vsel %vm12220, %v11831, 0.0
    %v12349 = vsel %vm12221, %v11832, 0.0
    %v12350 = vsel %vm12222, %v11833, 0.0
    %v12351 = vsel %vm12223, %v11834, 0.0
    %v12352 = vsel %vm12224, %v11835, 0.0
    %v12353 = vsel %vm12225, %v11836, 0.0
    %v12354 = vsel %vm12226, %v11837, 0.0
    %v12355 = vsel %vm12227, %v11838, 0.0
    %v12356 = vsel %vm12228, %v11839, 0.0
    %v12357 = vsel %vm12229, %v11840, 0.0
    %v12358 = vsel %vm12230, %v11841, 0.0
    %v12359 = vsel %vm12231, %v11842, 0.0
    %v12360 = vsel %vm12232, %v11843, 0.0
    %v12361 = vsel %vm12233, %v11844, 0.0
    %v12362 = vsel %vm12234, %v11845, 0.0
    %v12363 = vsel %vm12235, %v11846, 0.0
    %v12364 = vsel %vm12236, %v11847, 0.0
    %v12365 = vsel %vm12237, %v11848, 0.0
    %v12366 = vsel %vm12238, %v11849, 0.0
    %v12367 = vsel %vm12239, %v11850, 0.0
    %v12368 = vsel %vm12240, %v11851, 0.0
    %v12369 = vsel %vm12241, %v11852, 0.0
    %v12370 = vsel %vm12242, %v11853, 0.0
    %v12371 = vsel %vm12243, %v11854, 0.0
    %v12372 = vsel %vm12244, %v11855, 0.0
    %v12373 = vsel %vm12245, %v11856, 0.0
    %v12374 = vsel %vm12246, %v11857, 0.0
    %v12375 = vsel %vm12247, %v11858, 0.0
    %v12376 = vsel %vm12248, %v11859, 0.0
    %v12377 = vsel %vm12249, %v11860, 0.0
    %v12378 = vsel %vm12250, %v11861, 0.0
    %v12379 = vsel %vm12251, %v11862, 0.0
    %v12380 = vsel %vm12252, %v11863, 0.0
    %v12381 = vsel %vm12253, %v11864, 0.0
    %v12382 = vsel %vm12254, %v11865, 0.0
    %v12383 = vsel %vm12255, %v11866, 0.0
    %v12384 = vsel %vm12256, %v11867, 0.0
    %v12385 = vsel %vm12257, %v11868, 0.0
    %v12386 = vsel %vm12258, %v11869, 0.0
    %v12387 = vsel %vm12259, %v11870, 0.0
    %v12388 = vsel %vm12260, %v11871, 0.0
    %v12389 = vsel %vm12261, %v11872, 0.0
    %v12390 = vsel %vm12262, %v11873, 0.0
    %v12391 = vsel %vm12263, %v11874, 0.0
    %v12392 = vsel %vm12264, %v11875, 0.0
    %v12393 = vsel %vm12265, %v11876, 0.0
    %v12394 = vsel %vm12266, %v11877, 0.0
    %v12395 = vsel %vm12267, %v11878, 0.0
    %v12396 = vsel %vm12268, %v11879, 0.0
    %v12397 = vsel %vm12269, %v11880, 0.0
    %v12398 = vsel %vm12270, %v11881, 0.0
    %v12399 = vsel %vm12271, %v11882, 0.0
    %v12400 = vsel %vm12272, %v11883, 0.0
    %v12401 = vsel %vm12273, %v11884, 0.0
    %v12402 = vsel %vm12274, %v11885, 0.0
    %v12403 = vsel %vm12275, %v11886, 0.0
    %v12404 = vsel %vm12276, %v11887, 0.0
    %v12405 = vsel %vm12277, %v11888, 0.0
    %v12406 = vsel %vm12278, %v11889, 0.0
    %v12407 = vsel %vm12279, %v11890, 0.0
    %v12408 = vsel %vm12280, %v11891, 0.0
    %v12409 = vsel %vm12281, %v11892, 0.0
    %v12410 = vsel %vm12282, %v11893, 0.0
    %v12411 = vsel %vm12283, %v11894, 0.0
    %v12412 = vsel %vm12284, %v11895, 0.0
    %v12413 = vsel %vm12285, %v11896, 0.0
    %v12414 = vsel %vm12286, %v11897, 0.0
    %v12415 = vsel %vm12287, %v11898, 0.0
    %v12416 = vsel %vm12288, %v11899, 0.0
    %v12417 = vsel %vm12289, %v11900, 0.0
    %v12418 = vsel %vm12290, %v11901, 0.0
    %v12419 = vsel %vm12291, %v11902, 0.0
    %v12420 = vsel %vm12292, %v11903, 0.0
    %v12421 = vsel %vm12293, %v11904, 0.0
    %v12422 = vsel %vm12294, %v11905, 0.0
    %v12423 = vsel %vm12295, %v11906, 0.0
    %v12424 = vsel %vm12296, %v11907, 0.0
    %v12425 = vsel %vm12297, %v11908, 0.0
    %v12426 = vsel %vm12298, %v11909, 0.0
    %v12427 = vsel %vm12299, %v11910, 0.0
    %v12428 = vsel %vm12300, %v11911, 0.0
    %v12429 = vsel %vm12301, %v11912, 0.0
    %v12430 = vsel %vm12302, %v11913, 0.0
    %v12431 = vsel %vm12303, %v11914, 0.0
    %v12432 = vsel %vm12304, %v11915, 0.0
    %v12433 = vsel %vm12305, %v11916, 0.0
    %v12434 = vsel %vm12306, %v11917, 0.0
    %v12435 = vsel %vm12307, %v11918, 0.0
    %v12436 = vsel %vm12308, %v11919, 0.0
    %v12437 = vsel %vm12309, %v11920, 0.0
    %v12438 = vsel %vm12310, %v11921, 0.0
    %v12439 = vsel %vm12311, %v11922, 0.0
    %v12440 = vsel %vm12312, %v11923, 0.0
    %v12441 = vsel %vm12313, %v11924, 0.0
    %v12442 = vsel %vm12314, %v11925, 0.0
    %v12443 = vsel %vm12315, %v11926, 0.0
    %v12444 = vsel %vm12316, %v11927, 0.0
    %v12445 = vsel %vm12317, %v11928, 0.0
    %v12446 = vsel %vm12318, %v11929, 0.0
    %v12447 = vsel %vm12319, %v11930, 0.0
    %v12448 = vsel %vm12320, %v11931, 0.0
    %v12449 = vsel %vm12321, %v11932, 0.0
    %v12450 = vsel %vm12322, %v11933, 0.0
    %v12451 = vsel %vm12323, %v11934, 0.0
    %v12452 = vsel %vm12324, %v11935, 0.0
    %v12453 = vsel %vm12325, %v11936, 0.0
    %v12454 = vsel %vm12326, %v11937, 0.0
    %v12455 = vsel %vm12327, %v11938, 0.0
    %v12456 = vsel %vm12328, %v11939, 0.0
    %v12457 = vsel %vm12329, %v11940, 0.0
    %v12458 = vsel %vm12330, %v11941, 0.0
    %v12459 = vsel %vm12331, %v11942, 0.0
    %v12460 = vsel %vm12332, %v11943, 0.0
    %v12461 = vsel %vm12333, %v11944, 0.0
    %v12462 = vsel %vm12334, %v11945, 0.0
    %v12463 = vsel %vm12335, %v11946, 0.0
    %v12464 = vsel %vm12336, %v11947, 0.0
    %v12465 = vadd.s32 %v11949, 256
    %v12466 = vadd.s32 %v11949, 384
    %v12467 = vshra.s32 %v11949, 4
    %v12468 = vshra.s32 %v11950, 4
    %v12469 = vshra.s32 %v12465, 4
    %v12470 = vshra.s32 %v12466, 4
    %vm12471 = vcmp.eq.s32.totalorder %v12467, %v94
    %vm12472 = vcmp.eq.s32.totalorder %v12468, %v94
    %vm12473 = vcmp.eq.s32.totalorder %v12469, %v94
    %vm12474 = vcmp.eq.s32.totalorder %v12470, %v94
    %vm12475 = vcmp.eq.s32.totalorder %v12467, %v95
    %vm12476 = vcmp.eq.s32.totalorder %v12468, %v95
    %vm12477 = vcmp.eq.s32.totalorder %v12469, %v95
    %vm12478 = vcmp.eq.s32.totalorder %v12470, %v95
    %vm12479 = vcmp.eq.s32.totalorder %v12467, %v96
    %vm12480 = vcmp.eq.s32.totalorder %v12468, %v96
    %vm12481 = vcmp.eq.s32.totalorder %v12469, %v96
    %vm12482 = vcmp.eq.s32.totalorder %v12470, %v96
    %vm12483 = vcmp.eq.s32.totalorder %v12467, %v97
    %vm12484 = vcmp.eq.s32.totalorder %v12468, %v97
    %vm12485 = vcmp.eq.s32.totalorder %v12469, %v97
    %vm12486 = vcmp.eq.s32.totalorder %v12470, %v97
    %v12487 = vsel %vm12471, 1.0, 0.0
    %v12488 = vsel %vm12472, 1.0, 0.0
    %v12489 = vsel %vm12473, 1.0, 0.0
    %v12490 = vsel %vm12474, 1.0, 0.0
    %v12491 = vsel %vm12475, 1.0, 0.0
    %v12492 = vsel %vm12476, 1.0, 0.0
    %v12493 = vsel %vm12477, 1.0, 0.0
    %v12494 = vsel %vm12478, 1.0, 0.0
    %v12495 = vsel %vm12479, 1.0, 0.0
    %v12496 = vsel %vm12480, 1.0, 0.0
    %v12497 = vsel %vm12481, 1.0, 0.0
    %v12498 = vsel %vm12482, 1.0, 0.0
    %v12499 = vsel %vm12483, 1.0, 0.0
    %v12500 = vsel %vm12484, 1.0, 0.0
    %v12501 = vsel %vm12485, 1.0, 0.0
    %v12502 = vsel %vm12486, 1.0, 0.0
    %12503 = vmatprep.subr.mxu0 %v12338
    %12504 = vmatpush1.msra.mxu0 %v12337
    %12505 = vmatprep.subr.mxu0 %v12340
    %12506 = vmatpush1.msra.mxu0 %v12339
    %12507 = vmatprep.subr.mxu0 %v12342
    %12508 = vmatpush1.msra.mxu0 %v12341
    %12509 = vmatprep.subr.mxu0 %v12344
    %12510 = vmatpush1.msra.mxu0 %v12343
    %12511 = vmatprep.subr.mxu0 %v12346
    %12512 = vmatpush1.msra.mxu0 %v12345
    %12513 = vmatprep.subr.mxu0 %v12348
    %12514 = vmatpush1.msra.mxu0 %v12347
    %12515 = vmatprep.subr.mxu0 %v12350
    %12516 = vmatpush1.msra.mxu0 %v12349
    %12517 = vmatprep.subr.mxu0 %v12352
    %12518 = vmatpush1.msra.mxu0 %v12351
    %12519 = vmatprep.subr.mxu0 %v12354
    %12520 = vmatpush1.msra.mxu0 %v12353
    %12521 = vmatprep.subr.mxu0 %v12356
    %12522 = vmatpush1.msra.mxu0 %v12355
    %12523 = vmatprep.subr.mxu0 %v12358
    %12524 = vmatpush1.msra.mxu0 %v12357
    %12525 = vmatprep.subr.mxu0 %v12360
    %12526 = vmatpush1.msra.mxu0 %v12359
    %12527 = vmatprep.subr.mxu0 %v12362
    %12528 = vmatpush1.msra.mxu0 %v12361
    %12529 = vmatprep.subr.mxu0 %v12364
    %12530 = vmatpush1.msra.mxu0 %v12363
    %12531 = vmatprep.subr.mxu0 %v12366
    %12532 = vmatpush1.msra.mxu0 %v12365
    %12533 = vmatprep.subr.mxu0 %v12368
    %12534 = vmatpush1.msra.mxu0 %v12367
    %12535 = vmatprep.subr.mxu0 %v12370
    %12536 = vmatpush1.msra.mxu0 %v12369
    %12537 = vmatprep.subr.mxu0 %v12372
    %12538 = vmatpush1.msra.mxu0 %v12371
    %12539 = vmatprep.subr.mxu0 %v12374
    %12540 = vmatpush1.msra.mxu0 %v12373
    %12541 = vmatprep.subr.mxu0 %v12376
    %12542 = vmatpush1.msra.mxu0 %v12375
    %12543 = vmatprep.subr.mxu0 %v12378
    %12544 = vmatpush1.msra.mxu0 %v12377
    %12545 = vmatprep.subr.mxu0 %v12380
    %12546 = vmatpush1.msra.mxu0 %v12379
    %12547 = vmatprep.subr.mxu0 %v12382
    %12548 = vmatpush1.msra.mxu0 %v12381
    %12549 = vmatprep.subr.mxu0 %v12384
    %12550 = vmatpush1.msra.mxu0 %v12383
    %12551 = vmatprep.subr.mxu0 %v12386
    %12552 = vmatpush1.msra.mxu0 %v12385
    %12553 = vmatprep.subr.mxu0 %v12388
    %12554 = vmatpush1.msra.mxu0 %v12387
    %12555 = vmatprep.subr.mxu0 %v12390
    %12556 = vmatpush1.msra.mxu0 %v12389
    %12557 = vmatprep.subr.mxu0 %v12392
    %12558 = vmatpush1.msra.mxu0 %v12391
    %12559 = vmatprep.subr.mxu0 %v12394
    %12560 = vmatpush1.msra.mxu0 %v12393
    %12561 = vmatprep.subr.mxu0 %v12396
    %12562 = vmatpush1.msra.mxu0 %v12395
    %12563 = vmatprep.subr.mxu0 %v12398
    %12564 = vmatpush1.msra.mxu0 %v12397
    %12565 = vmatprep.subr.mxu0 %v12400
    %12566 = vmatpush1.msra.mxu0 %v12399
    %12567 = vmatprep.mubr.f32.mxu0 %v12488
    %12568 = vmatmul.mubr.f32.gmra.mrb[0].mxu0 %v12487
    %v12569 = vpop.f32.mrb[0].mxu0
    %v12570 = vadd.f32 0.0, %v12569
    %v12571 = vpop.f32.mrb[0].mxu0
    %v12572 = vadd.f32 0.0, %v12571
    %12573 = vmatprep.mubr.f32.mxu0 %v12492
    %12574 = vmatmul.mubr.f32.gmra.mrb[0].mxu0 %v12491
    %v12575 = vpop.f32.mrb[0].mxu0
    %v12576 = vadd.f32 0.0, %v12575
    %v12577 = vpop.f32.mrb[0].mxu0
    %v12578 = vadd.f32 0.0, %v12577
    %12579 = vmatprep.mubr.f32.mxu0 %v12496
    %12580 = vmatmul.mubr.f32.gmra.mrb[0].mxu0 %v12495
    %v12581 = vpop.f32.mrb[0].mxu0
    %v12582 = vadd.f32 0.0, %v12581
    %v12583 = vpop.f32.mrb[0].mxu0
    %v12584 = vadd.f32 0.0, %v12583
    %12585 = vmatprep.mubr.f32.mxu0 %v12500
    %12586 = vmatmul.mubr.f32.gmra.mrb[0].mxu0 %v12499
    %v12587 = vpop.f32.mrb[0].mxu0
    %v12588 = vadd.f32 0.0, %v12587
    %v12589 = vpop.f32.mrb[0].mxu0
    %v12590 = vadd.f32 0.0, %v12589
    %12591 = vdwg.mxu0
    %12592 = vmatprep.subr.mxu0 %v12402
    %12593 = vmatpush1.msra.mxu0 %v12401
    %12594 = vmatprep.subr.mxu0 %v12404
    %12595 = vmatpush1.msra.mxu0 %v12403
    %12596 = vmatprep.subr.mxu0 %v12406
    %12597 = vmatpush1.msra.mxu0 %v12405
    %12598 = vmatprep.subr.mxu0 %v12408
    %12599 = vmatpush1.msra.mxu0 %v12407
    %12600 = vmatprep.subr.mxu0 %v12410
    %12601 = vmatpush1.msra.mxu0 %v12409
    %12602 = vmatprep.subr.mxu0 %v12412
    %12603 = vmatpush1.msra.mxu0 %v12411
    %12604 = vmatprep.subr.mxu0 %v12414
    %12605 = vmatpush1.msra.mxu0 %v12413
    %12606 = vmatprep.subr.mxu0 %v12416
    %12607 = vmatpush1.msra.mxu0 %v12415
    %12608 = vmatprep.subr.mxu0 %v12418
    %12609 = vmatpush1.msra.mxu0 %v12417
    %12610 = vmatprep.subr.mxu0 %v12420
    %12611 = vmatpush1.msra.mxu0 %v12419
    %12612 = vmatprep.subr.mxu0 %v12422
    %12613 = vmatpush1.msra.mxu0 %v12421
    %12614 = vmatprep.subr.mxu0 %v12424
    %12615 = vmatpush1.msra.mxu0 %v12423
    %12616 = vmatprep.subr.mxu0 %v12426
    %12617 = vmatpush1.msra.mxu0 %v12425
    %12618 = vmatprep.subr.mxu0 %v12428
    %12619 = vmatpush1.msra.mxu0 %v12427
    %12620 = vmatprep.subr.mxu0 %v12430
    %12621 = vmatpush1.msra.mxu0 %v12429
    %12622 = vmatprep.subr.mxu0 %v12432
    %12623 = vmatpush1.msra.mxu0 %v12431
    %12624 = vmatprep.subr.mxu0 %v12434
    %12625 = vmatpush1.msra.mxu0 %v12433
    %12626 = vmatprep.subr.mxu0 %v12436
    %12627 = vmatpush1.msra.mxu0 %v12435
    %12628 = vmatprep.subr.mxu0 %v12438
    %12629 = vmatpush1.msra.mxu0 %v12437
    %12630 = vmatprep.subr.mxu0 %v12440
    %12631 = vmatpush1.msra.mxu0 %v12439
    %12632 = vmatprep.subr.mxu0 %v12442
    %12633 = vmatpush1.msra.mxu0 %v12441
    %12634 = vmatprep.subr.mxu0 %v12444
    %12635 = vmatpush1.msra.mxu0 %v12443
    %12636 = vmatprep.subr.mxu0 %v12446
    %12637 = vmatpush1.msra.mxu0 %v12445
    %12638 = vmatprep.subr.mxu0 %v12448
    %12639 = vmatpush1.msra.mxu0 %v12447
    %12640 = vmatprep.subr.mxu0 %v12450
    %12641 = vmatpush1.msra.mxu0 %v12449
    %12642 = vmatprep.subr.mxu0 %v12452
    %12643 = vmatpush1.msra.mxu0 %v12451
    %12644 = vmatprep.subr.mxu0 %v12454
    %12645 = vmatpush1.msra.mxu0 %v12453
    %12646 = vmatprep.subr.mxu0 %v12456
    %12647 = vmatpush1.msra.mxu0 %v12455
    %12648 = vmatprep.subr.mxu0 %v12458
    %12649 = vmatpush1.msra.mxu0 %v12457
    %12650 = vmatprep.subr.mxu0 %v12460
    %12651 = vmatpush1.msra.mxu0 %v12459
    %12652 = vmatprep.subr.mxu0 %v12462
    %12653 = vmatpush1.msra.mxu0 %v12461
    %12654 = vmatprep.subr.mxu0 %v12464
    %12655 = vmatpush1.msra.mxu0 %v12463
    %12656 = vmatprep.mubr.f32.mxu0 %v12490
    %12657 = vmatmul.mubr.f32.gmra.mrb[0].mxu0 %v12489
    %v12658 = vpop.f32.mrb[0].mxu0
    %v12659 = vadd.f32 %v12570, %v12658
    %v12660 = vpop.f32.mrb[0].mxu0
    %v12661 = vadd.f32 %v12572, %v12660
    %12662 = vmatprep.mubr.f32.mxu0 %v12494
    %12663 = vmatmul.mubr.f32.gmra.mrb[0].mxu0 %v12493
    %v12664 = vpop.f32.mrb[0].mxu0
    %v12665 = vadd.f32 %v12576, %v12664
    %v12666 = vpop.f32.mrb[0].mxu0
    %v12667 = vadd.f32 %v12578, %v12666
    %12668 = vmatprep.mubr.f32.mxu0 %v12498
    %12669 = vmatmul.mubr.f32.gmra.mrb[0].mxu0 %v12497
    %v12670 = vpop.f32.mrb[0].mxu0
    %v12671 = vadd.f32 %v12582, %v12670
    %v12672 = vpop.f32.mrb[0].mxu0
    %v12673 = vadd.f32 %v12584, %v12672
    %12674 = vmatprep.mubr.f32.mxu0 %v12502
    %12675 = vmatmul.mubr.f32.gmra.mrb[0].mxu0 %v12501
    %v12676 = vpop.f32.mrb[0].mxu0
    %v12677 = vadd.f32 %v12588, %v12676
    %v12678 = vpop.f32.mrb[0].mxu0
    %v12679 = vadd.f32 %v12590, %v12678
    %12680 = vdwg.mxu0
    %v12681 = vld [vmem:[#allocation2 + $0x318] sm:$0xff]
    %v12682 = vld [vmem:[#allocation2 + $0x320] sm:$0xff]
    %v12683 = vld [vmem:[#allocation2 + $0x328] sm:$0xff]
    %v12684 = vld [vmem:[#allocation2 + $0x330] sm:$0xff]
    %v12685 = vld [vmem:[#allocation2 + $0x338] sm:$0xff]
    %v12686 = vld [vmem:[#allocation2 + $0x340] sm:$0xff]
    %v12687 = vld [vmem:[#allocation2 + $0x348] sm:$0xff]
    %v12688 = vld [vmem:[#allocation2 + $0x350] sm:$0xff]
    %v12689 = vld [vmem:[#allocation2 + $0x358] sm:$0xff]
    %v12690 = vld [vmem:[#allocation2 + $0x360] sm:$0xff]
    %v12691 = vld [vmem:[#allocation2 + $0x368] sm:$0xff]
    %v12692 = vld [vmem:[#allocation2 + $0x370] sm:$0xff]
    %v12693 = vld [vmem:[#allocation2 + $0x378] sm:$0xff]
    %v12694 = vld [vmem:[#allocation2 + $0x380] sm:$0xff]
    %v12695 = vld [vmem:[#allocation2 + $0x388] sm:$0xff]
    %v12696 = vld [vmem:[#allocation2 + $0x390] sm:$0xff]
    %v12697 = vld [vmem:[#allocation2 + $0x398] sm:$0xff]
    %v12698 = vld [vmem:[#allocation2 + $0x3a0] sm:$0xff]
    %v12699 = vld [vmem:[#allocation2 + $0x3a8] sm:$0xff]
    %v12700 = vld [vmem:[#allocation2 + $0x3b0] sm:$0xff]
    %v12701 = vld [vmem:[#allocation2 + $0x3b8] sm:$0xff]
    %v12702 = vld [vmem:[#allocation2 + $0x3c0] sm:$0xff]
    %v12703 = vld [vmem:[#allocation2 + $0x3c8] sm:$0xff]
    %v12704 = vld [vmem:[#allocation2 + $0x3d0] sm:$0xff]
    %v12705 = vld [vmem:[#allocation2 + $0x3d8] sm:$0xff]
    %v12706 = vld [vmem:[#allocation2 + $0x3e0] sm:$0xff]
    %v12707 = vld [vmem:[#allocation2 + $0x3e8] sm:$0xff]
    %v12708 = vld [vmem:[#allocation2 + $0x3f0] sm:$0xff]
    %v12709 = vld [vmem:[#allocation2 + $0x3f8] sm:$0xff]
    %v12710 = vld [vmem:[#allocation2 + $0x400] sm:$0xff]
    %v12711 = vld [vmem:[#allocation2 + $0x408] sm:$0xff]
    %v12712 = vld [vmem:[#allocation2 + $0x410] sm:$0xff]
    %v12713 = vld [vmem:[%s2 + $0x5] sm:$0x1]
    %v12714 = vlaneseq
    %v12715 = vshrl.u32 %v12714, 7
    %v12716 = vsub.s32 0, %v12715
    %v12717 = vrot.slane %v12713, %v12716
    %12718 = vmatprep.subr.mxu0 0.0
    %12719 = vmatpush1.msra.mxu0 %v12681
    %12720 = vmatprep.subr.mxu0 0.0
    %12721 = vmatpush1.msra.mxu0 %v12682
    %12722 = vmatprep.subr.mxu0 0.0
    %12723 = vmatpush1.msra.mxu0 %v12683
    %12724 = vmatprep.subr.mxu0 0.0
    %12725 = vmatpush1.msra.mxu0 %v12684
    %12726 = vmatprep.subr.mxu0 0.0
    %12727 = vmatpush1.msra.mxu0 %v12685
    %12728 = vmatprep.subr.mxu0 0.0
    %12729 = vmatpush1.msra.mxu0 %v12686
    %12730 = vmatprep.subr.mxu0 0.0
    %12731 = vmatpush1.msra.mxu0 %v12687
    %12732 = vmatprep.subr.mxu0 0.0
    %12733 = vmatpush1.msra.mxu0 %v12688
    %12734 = vmatprep.subr.mxu0 0.0
    %12735 = vmatpush1.msra.mxu0 %v12689
    %12736 = vmatprep.subr.mxu0 0.0
    %12737 = vmatpush1.msra.mxu0 %v12690
    %12738 = vmatprep.subr.mxu0 0.0
    %12739 = vmatpush1.msra.mxu0 %v12691
    %12740 = vmatprep.subr.mxu0 0.0
    %12741 = vmatpush1.msra.mxu0 %v12692
    %12742 = vmatprep.subr.mxu0 0.0
    %12743 = vmatpush1.msra.mxu0 %v12693
    %12744 = vmatprep.subr.mxu0 0.0
    %12745 = vmatpush1.msra.mxu0 %v12694
    %12746 = vmatprep.subr.mxu0 0.0
    %12747 = vmatpush1.msra.mxu0 %v12695
    %12748 = vmatprep.subr.mxu0 0.0
    %12749 = vmatpush1.msra.mxu0 %v12696
    %12750 = vmatprep.subr.mxu0 0.0
    %12751 = vmatpush1.msra.mxu0 %v12697
    %12752 = vmatprep.subr.mxu0 0.0
    %12753 = vmatpush1.msra.mxu0 %v12698
    %12754 = vmatprep.subr.mxu0 0.0
    %12755 = vmatpush1.msra.mxu0 %v12699
    %12756 = vmatprep.subr.mxu0 0.0
    %12757 = vmatpush1.msra.mxu0 %v12700
    %12758 = vmatprep.subr.mxu0 0.0
    %12759 = vmatpush1.msra.mxu0 %v12701
    %12760 = vmatprep.subr.mxu0 0.0
    %12761 = vmatpush1.msra.mxu0 %v12702
    %12762 = vmatprep.subr.mxu0 0.0
    %12763 = vmatpush1.msra.mxu0 %v12703
    %12764 = vmatprep.subr.mxu0 0.0
    %12765 = vmatpush1.msra.mxu0 %v12704
    %12766 = vmatprep.subr.mxu0 0.0
    %12767 = vmatpush1.msra.mxu0 %v12705
    %12768 = vmatprep.subr.mxu0 0.0
    %12769 = vmatpush1.msra.mxu0 %v12706
    %12770 = vmatprep.subr.mxu0 0.0
    %12771 = vmatpush1.msra.mxu0 %v12707
    %12772 = vmatprep.subr.mxu0 0.0
    %12773 = vmatpush1.msra.mxu0 %v12708
    %12774 = vmatprep.subr.mxu0 0.0
    %12775 = vmatpush1.msra.mxu0 %v12709
    %12776 = vmatprep.subr.mxu0 0.0
    %12777 = vmatpush1.msra.mxu0 %v12710
    %12778 = vmatprep.subr.mxu0 0.0
    %12779 = vmatpush1.msra.mxu0 %v12711
    %12780 = vmatprep.subr.mxu0 0.0
    %12781 = vmatpush1.msra.mxu0 %v12712
    %12782 = vmatprep.mubr.f32.mxu0 %v12661
    %12783 = vmatmul.mubr.f32.gmra.mrb[0].mxu0 %v12659
    %v12784 = vpop.f32.mrb[0].mxu0
    %v12785 = vadd.f32 %v12717, %v12784
    %v12786 = vpop.f32.mrb[0].mxu0
    %12787 = vmatprep.mubr.f32.mxu0 %v12667
    %12788 = vmatmul.mubr.f32.gmra.mrb[0].mxu0 %v12665
    %v12789 = vpop.f32.mrb[0].mxu0
    %v12790 = vadd.f32 %v12717, %v12789
    %v12791 = vpop.f32.mrb[0].mxu0
    %12792 = vmatprep.mubr.f32.mxu0 %v12673
    %12793 = vmatmul.mubr.f32.gmra.mrb[0].mxu0 %v12671
    %v12794 = vpop.f32.mrb[0].mxu0
    %v12795 = vadd.f32 %v12717, %v12794
    %v12796 = vpop.f32.mrb[0].mxu0
    %12797 = vmatprep.mubr.f32.mxu0 %v12679
    %12798 = vmatmul.mubr.f32.gmra.mrb[0].mxu0 %v12677
    %v12799 = vpop.f32.mrb[0].mxu0
    %v12800 = vadd.f32 %v12717, %v12799
    %v12801 = vpop.f32.mrb[0].mxu0
    %12802 = vdwg.mxu0
    %v12803 = vmax.f32 %v12785, 0.0
    %v12804 = vmax.f32 %v12790, 0.0
    %v12805 = vmax.f32 %v12795, 0.0
    %v12806 = vmax.f32 %v12800, 0.0
    %v12807 = vld [vmem:[%s2 + $0x6] sm:$0x1]
    %v12808 = vlaneseq
    %v12809 = vshrl.u32 %v12808, 7
    %v12810 = vsub.s32 0, %v12809
    %v12811 = vrot.slane %v12807, %v12810
    %v12812 = vmul.f32 %v12811, %v12803
    %v12813 = vmul.f32 %v12811, %v12804
    %v12814 = vmul.f32 %v12811, %v12805
    %v12815 = vmul.f32 %v12811, %v12806
    %v12816 = vld [vmem:[%s2 + $0x7] sm:$0x1]
    %v12817 = vlaneseq
    %v12818 = vshrl.u32 %v12817, 7
    %v12819 = vsub.s32 0, %v12818
    %v12820 = vrot.slane %v12816, %v12819
    %v12821 = vadd.f32 %v12812, %v12820
    %v12822 = vadd.f32 %v12813, %v12820
    %v12823 = vadd.f32 %v12814, %v12820
    %v12824 = vadd.f32 %v12815, %v12820
    %v12825 = vshra.s32 %v11949, 2
    %vm12826 = vcmp.eq.s32.totalorder %v12825, %v94
    %v12827 = vsel %vm12826, 1.0, 0.0
    %v12828 = vmul.f32 %v12821, %v12803
    %v12829 = vmul.f32 %v12822, %v12804
    %v12830 = vmul.f32 %v12823, %v12805
    %v12831 = vmul.f32 %v12824, %v12806
    %v12833 = vsel %vm9165, %v12827, 0
    %12835 = vmatprep.subr.mxu0 0.0
    %12836 = vmatpush1.msra.mxu0 %v12828
    %12837 = vmatprep.subr.mxu0 0.0
    %12838 = vmatpush1.msra.mxu0 %v12829
    %12839 = vmatprep.subr.mxu0 0.0
    %12840 = vmatpush1.msra.mxu0 %v12830
    %12841 = vmatprep.subr.mxu0 0.0
    %12842 = vmatpush1.msra.mxu0 %v12831
    %12843 = vmatprep.subr.mxu0 0.0
    %12844 = vmatpush1.msra.mxu0 0.0
    %12845 = vmatprep.subr.mxu0 0.0
    %12846 = vmatpush1.msra.mxu0 0.0
    %12847 = vmatprep.subr.mxu0 0.0
    %12848 = vmatpush1.msra.mxu0 0.0
    %12849 = vmatprep.subr.mxu0 0.0
    %12850 = vmatpush1.msra.mxu0 0.0
    %12851 = vmatprep.subr.mxu0 0.0
    %12852 = vmatpush1.msra.mxu0 0.0
    %12853 = vmatprep.subr.mxu0 0.0
    %12854 = vmatpush1.msra.mxu0 0.0
    %12855 = vmatprep.subr.mxu0 0.0
    %12856 = vmatpush1.msra.mxu0 0.0
    %12857 = vmatprep.subr.mxu0 0.0
    %12858 = vmatpush1.msra.mxu0 0.0
    %12859 = vmatprep.subr.mxu0 0.0
    %12860 = vmatpush1.msra.mxu0 0.0
    %12861 = vmatprep.subr.mxu0 0.0
    %12862 = vmatpush1.msra.mxu0 0.0
    %12863 = vmatprep.subr.mxu0 0.0
    %12864 = vmatpush1.msra.mxu0 0.0
    %12865 = vmatprep.subr.mxu0 0.0
    %12866 = vmatpush1.msra.mxu0 0.0
    %12867 = vmatprep.subr.mxu0 0.0
    %12868 = vmatpush1.msra.mxu0 0.0
    %12869 = vmatprep.subr.mxu0 0.0
    %12870 = vmatpush1.msra.mxu0 0.0
    %12871 = vmatprep.subr.mxu0 0.0
    %12872 = vmatpush1.msra.mxu0 0.0
    %12873 = vmatprep.subr.mxu0 0.0
    %12874 = vmatpush1.msra.mxu0 0.0
    %12875 = vmatprep.subr.mxu0 0.0
    %12876 = vmatpush1.msra.mxu0 0.0
    %12877 = vmatprep.subr.mxu0 0.0
    %12878 = vmatpush1.msra.mxu0 0.0
    %12879 = vmatprep.subr.mxu0 0.0
    %12880 = vmatpush1.msra.mxu0 0.0
    %12881 = vmatprep.subr.mxu0 0.0
    %12882 = vmatpush1.msra.mxu0 0.0
    %12883 = vmatprep.subr.mxu0 0.0
    %12884 = vmatpush1.msra.mxu0 0.0
    %12885 = vmatprep.subr.mxu0 0.0
    %12886 = vmatpush1.msra.mxu0 0.0
    %12887 = vmatprep.subr.mxu0 0.0
    %12888 = vmatpush1.msra.mxu0 0.0
    %12889 = vmatprep.subr.mxu0 0.0
    %12890 = vmatpush1.msra.mxu0 0.0
    %12891 = vmatprep.subr.mxu0 0.0
    %12892 = vmatpush1.msra.mxu0 0.0
    %12893 = vmatprep.subr.mxu0 0.0
    %12894 = vmatpush1.msra.mxu0 0.0
    %12895 = vmatprep.subr.mxu0 0.0
    %12896 = vmatpush1.msra.mxu0 0.0
    %12897 = vmatprep.subr.mxu0 0.0
    %12898 = vmatpush1.msra.mxu0 0.0
    %12899 = vmatprep.mubr.f32.mxu0 0.0
    %12900 = vmatmul.mubr.f32.gmra.mrb[0].mxu0 %v12833
    %v12901 = vpop.f32.mrb[0].mxu0
    %v12902 = vadd.f32 0.0, %v12901
    %v12903 = vpop.f32.mrb[0].mxu0
    %12904 = vdwg.mxu0
    %12905 = vst [vmem:[#allocation5] sm:$0xff] %v12902
    // Predicated region
    $region18: #{cnn_gated_vec_forward.1} parent=1 // pred_check
      _
    $region19: #{cnn_gated_vec_forward.1} parent=1 // pred_check_branch
      %12907 = sbr.rel (0) target = $region21
    $region20: #{cnn_gated_vec_forward.1} parent=1 // pred_region
      %s12909 = ssub.s32 128, 128
      %12910 = vsyncadd [#allocation4], %s12909
      %s12912 = sshll.u32 [#allocation5], 4
      %s12913 = int_to_ptr.vmem [resolvable:$true] %s12912
      %12915 = dma.vmem_to_hbm [thread:$0]  %s12913, 128, %s3, [#allocation4]
    $region21: #{cnn_gated_vec_forward.1} parent=1 // pred_fallthru
      _
    // Predicated region
    $region22: #{cnn_gated_vec_forward.1} parent=1 // pred_check
      _
    $region23: #{cnn_gated_vec_forward.1} parent=1 // pred_check_branch
      %12917 = sbr.rel (0) target = $region25
    $region24: #{cnn_gated_vec_forward.1} parent=1 // pred_region
      %12918 = dma.done [#allocation4], 128
    $region25: #{cnn_gated_vec_forward.1} parent=1 // pred_fallthru
      _
    %12919 = vsyncpa [#allocation3], 1
    %12920 = vsyncpa [#allocation4], 1

</llo_original>
